<compile_context>
chip_gen: v7x
topology: tpu7x:2x2x1
jax: 0.10.0
libtpu: 0.0.40
codegen_flags: <defaults>
</compile_context>

<pallas_src>
import functools

import jax
import jax.numpy as jnp
from jax.experimental import pallas as pl
from jax.experimental.pallas import tpu as pltpu

OMEGA = 30.0

DEFAULT_WEIGHTS_FMLOSS = {
    "data_constraint": 10000.0,
    "identity_constraint": 1000.0,
    "inv_constraint": 10000.0,
    "TPS_constraint": 1000.0,
}

_VMEM = pltpu.MemorySpace.VMEM


def _vspec():
    return pl.BlockSpec(memory_space=_VMEM)


def _pack_scalars(*vals):
    """Pack a few reduced scalars into one lane-dense (1, 128) f32 row."""
    lane = jax.lax.broadcasted_iota(jnp.int32, (1, 128), 1)
    out = jnp.zeros((1, 128), jnp.float32)
    for i, v in enumerate(vals):
        out = out + jnp.where(lane == i, v, 0.0)
    return out


# ----------------------------------------------------------------------------
# Single fused kernel.
#
# Wave A (inputs known a priori), stacked rows of the hidden scratch / y_a
# (T = len(times), off_a = 2n + 2p):
#   [0        , n        )  y_main     = f(coords_xy, t = coords_t)
#   [n        , 2n       )  x1         = f(coords_xy, t = +1)
#   [2n       , 2n+p     )  y_src      = f(src,       t = +1)
#   [2n+p     , 2n+2p    )  y_tgt      = f(tgt,       t = -1)
#   [off_a+2kp   , +p)       y_src_0[k] = f(src, t = times[k])
#   [off_a+(2k+1)p, +p)      y_tgt_0[k] = f(tgt, t = times[k]-1)
#
# Wave B (consumes wave-A outputs), rows 0..m_b of the SAME scratch:
#   [0        , n        )  Xs          = f(y_main,      t = -coords_t)
#   [n        , 2n       )  Xt          = f(y_main,      t = 1 - coords_t)
#   [2n+2kp      , +p)       y_src_t[k]  = f(y_src_0[k],  t = -times[k])
#   [2n+(2k+1)p  , +p)       y_tgt_t[k]  = f(y_tgt_0[k],  t = 1 - times[k])
# ----------------------------------------------------------------------------
def _warping_loss_kernel(coords_ref, src_ref, tgt_ref,
                         w1_ref, b1_ref, w2_ref, b2_ref, c_ref,
                         out_ref, s_scr, *, n, p, times):
    w1 = w1_ref[...]                       # [3, H], pre-scaled by omega
    b1 = b1_ref[...]                       # [1, H], pre-scaled by omega
    w2 = w2_ref[...]                       # [H, 2]
    b2 = b2_ref[...]                       # [1, 2]
    w1x, w1y, w1t = w1[0:1, :], w1[1:2, :], w1[2:3, :]

    def base(xy):
        # shared x/y part of the first layer (broadcast FMAs on the VPU)
        return xy[:, 0:1] * w1x + xy[:, 1:2] * w1y + b1

    coords = coords_ref[...]
    xy_main, t_main = coords[:, 0:2], coords[:, 2:3]
    src = src_ref[...]
    tgt = tgt_ref[...]

    T = len(times)
    off_a = 2 * n + 2 * p
    m_a = 2 * n + (2 + 2 * T) * p
    m_b = 2 * n + 2 * T * p

    # --- wave A: hidden activations, staged in scratch -----------------------
    base_main = base(xy_main)                                  # [n, H]
    base_src = base(src)                                       # [p, H]
    base_tgt = base(tgt)                                       # [p, H]

    s_scr[0:n, :] = jnp.sin(base_main + t_main * w1t)          # y_main
    s_scr[n:2 * n, :] = jnp.sin(base_main + w1t)               # x1      (t=+1)
    s_scr[2 * n:2 * n + p, :] = jnp.sin(base_src + w1t)        # y_src   (t=+1)
    s_scr[2 * n + p:2 * n + 2 * p, :] = jnp.sin(base_tgt - w1t)  # y_tgt  (t=-1)
    for k, t in enumerate(times):
        tf = float(t)
        s_scr[off_a + 2 * k * p: off_a + (2 * k + 1) * p, :] = \
            jnp.sin(base_src + tf * w1t)                       # y_src_0[k]
        s_scr[off_a + (2 * k + 1) * p: off_a + (2 * k + 2) * p, :] = \
            jnp.sin(base_tgt + (tf - 1.0) * w1t)               # y_tgt_0[k]

    s_a = s_scr[...]                                           # [m_a, H] value

    # one stacked output-layer matmul for all wave-A evaluations (MXU)
    y_a = jnp.dot(s_a, w2, preferred_element_type=jnp.float32) + b2

    # analytic hessian of f wrt its input (coords batch only); omega^2 folded
    # into c_ref, the sign disappears under the square.
    hess = jnp.dot(s_a[0:n, :], c_ref[...], preferred_element_type=jnp.float32)
    tps_sum = jnp.sum(hess * hess)

    y_main = y_a[0:n, :]
    x1 = y_a[n:2 * n, :]
    y_src = y_a[2 * n:2 * n + p, :]
    y_tgt = y_a[2 * n + p:2 * n + 2 * p, :]

    d1 = tgt - y_src
    d2 = src - y_tgt
    data_sum = 100.0 * (jnp.sum(d1 * d1) + jnp.sum(d2 * d2))
    for k in range(T):
        y_src_0 = y_a[off_a + 2 * k * p: off_a + (2 * k + 1) * p, :]
        y_tgt_0 = y_a[off_a + (2 * k + 1) * p: off_a + (2 * k + 2) * p, :]
        d = y_src_0 - y_tgt_0
        data_sum = data_sum + 50.0 * jnp.sum(d * d)

    # identity constraint: only exact t == 0 rows contribute; denominator is
    # the FULL batch (matches torch.where(...).mean()).
    mask_t0 = (t_main == 0.0).astype(jnp.float32)              # [n, 1]
    d_id = y_main - xy_main
    id_sum = jnp.sum(mask_t0 * (d_id * d_id))

    # --- wave B: overwrite scratch rows (m_b <= m_a), second stacked matmul --
    base_ymain = base(y_main)                                  # [n, H]
    s_scr[0:n, :] = jnp.sin(base_ymain - t_main * w1t)         # Xs (t=-t)
    s_scr[n:2 * n, :] = jnp.sin(base_ymain + (1.0 - t_main) * w1t)  # Xt (t=1-t)
    for k, t in enumerate(times):
        tf = float(t)
        y_src_0 = y_a[off_a + 2 * k * p: off_a + (2 * k + 1) * p, :]
        y_tgt_0 = y_a[off_a + (2 * k + 1) * p: off_a + (2 * k + 2) * p, :]
        s_scr[2 * n + 2 * k * p: 2 * n + (2 * k + 1) * p, :] = \
            jnp.sin(base(y_src_0) - tf * w1t)                  # y_src_t[k]
        s_scr[2 * n + (2 * k + 1) * p: 2 * n + (2 * k + 2) * p, :] = \
            jnp.sin(base(y_tgt_0) + (1.0 - tf) * w1t)          # y_tgt_t[k]

    y_b = jnp.dot(s_scr[0:m_b, :], w2, preferred_element_type=jnp.float32) + b2

    xs = y_b[0:n, :]
    xt = y_b[n:2 * n, :]

    # inverse constraint (zeroed where t == 0, denominator is the full batch)
    mask_not0 = 1.0 - mask_t0
    d_s = xs - xy_main
    d_t = xt - x1
    inv_sum = jnp.sum(mask_not0 * (d_s * d_s + d_t * d_t))

    for k in range(T):
        y_src_t = y_b[2 * n + 2 * k * p: 2 * n + (2 * k + 1) * p, :]
        y_tgt_t = y_b[2 * n + (2 * k + 1) * p: 2 * n + (2 * k + 2) * p, :]
        ds = y_src_t - src
        dtg = y_tgt_t - tgt
        data_sum = data_sum + 20.0 * (jnp.sum(ds * ds) + jnp.sum(dtg * dtg))

    # means match the PyTorch reference: .mean() over the FULL tensors
    # (masked-out rows contribute zeros but still count in the denominator).
    tps_mean = tps_sum * (1.0 / float(n * 2 * 3 * 3))
    data_mean = data_sum * (1.0 / float(p * 2))
    id_mean = id_sum * (1.0 / float(n * 2))
    inv_mean = inv_sum * (1.0 / float(n * 2))

    out_ref[...] = _pack_scalars(data_mean, id_mean, inv_mean, tps_mean)


# ----------------------------------------------------------------------------
# pallas_call wrapper
# ----------------------------------------------------------------------------
def _warping_loss_call(coords, src, tgt, params, times):
    n, p, tcnt = coords.shape[0], src.shape[0], len(times)
    h = params["w1"].shape[1]
    m_a = 2 * n + (2 + 2 * tcnt) * p
    m_b = 2 * n + 2 * tcnt * p
    m_tot = m_a + m_b
    kernel = functools.partial(_warping_loss_kernel, n=n, p=p, times=times)
    flops = 10 * m_tot * h + 4 * m_tot * h + 2 * n * h * 18 + 12 * m_tot
    bytes_accessed = 4 * (3 * n + 4 * p + 3 * h + h + 2 * h + 2 + 18 * h + 128)
    return pl.pallas_call(
        kernel,
        out_shape=jax.ShapeDtypeStruct((1, 128), jnp.float32),
        in_specs=[_vspec()] * 8,
        out_specs=_vspec(),
        scratch_shapes=[pltpu.VMEM((m_a, h), jnp.float32)],
        cost_estimate=pl.CostEstimate(flops=int(flops),
                                      transcendentals=int(m_tot * h),
                                      bytes_accessed=int(bytes_accessed)),
    )(coords, src, tgt, params["w1"], params["b1"], params["w2"],
      params["b2"], params["c_hess"])


# ----------------------------------------------------------------------------
# Deterministic synthetic model parameters (SIREN, 3 -> H -> 2).
# omega is folded into W1/b1 here (weight-only preprocessing); c_hess carries
# the omega^2 hessian factor (sign dropped since it is squared in-kernel).
# ----------------------------------------------------------------------------
def init_siren_params(key, hidden=32):
    k1, k2, k3, k4 = jax.random.split(key, 4)
    w1 = jax.random.uniform(k1, (3, hidden), jnp.float32,
                            minval=-1.0 / 3.0, maxval=1.0 / 3.0)
    b1 = jax.random.uniform(k2, (1, hidden), jnp.float32,
                            minval=-1.0 / 3.0, maxval=1.0 / 3.0)
    lim = float(jnp.sqrt(6.0 / hidden)) / OMEGA
    w2 = jax.random.uniform(k3, (hidden, 2), jnp.float32,
                            minval=-lim, maxval=lim)
    b2 = jax.random.uniform(k4, (1, 2), jnp.float32,
                            minval=-0.01, maxval=0.01)
    w1s = OMEGA * w1
    b1s = OMEGA * b1
    # C[h, (o,i,j)] = omega^2 * W1[i,h] * W1[j,h] * W2[h,o]
    c_hess = jnp.einsum("ih,jh,ho->hoij", w1s, w1s, w2).reshape(hidden, 2 * 3 * 3)
    return {"w1": w1s, "b1": b1s, "w2": w2, "b2": b2, "c_hess": c_hess}


# ----------------------------------------------------------------------------
# WarpingLoss.forward
# ----------------------------------------------------------------------------
@functools.partial(jax.jit, static_argnames=("intermediate_times",))
def warping_loss(coords, src, tgt, params,
                 intermediate_times=(0.25, 0.5, 0.75),
                 constraint_weights=None):
    if intermediate_times is None or not len(intermediate_times):
        intermediate_times = (0.25, 0.5, 0.75)
    times = tuple(float(t) for t in intermediate_times)
    if constraint_weights is None or not len(constraint_weights):
        constraint_weights = dict(DEFAULT_WEIGHTS_FMLOSS)
    else:
        constraint_weights = {**DEFAULT_WEIGHTS_FMLOSS, **constraint_weights}

    coords = coords.astype(jnp.float32)
    src = src.astype(jnp.float32)
    tgt = tgt.astype(jnp.float32)

    n, p = coords.shape[0], src.shape[0]
    # Static row offsets in the fused kernel stay sublane-aligned.
    assert n % 8 == 0 and p % 8 == 0, "row counts must be multiples of 8"

    sc = _warping_loss_call(coords, src, tgt, params, times)

    return {
        "data_constraint": sc[0, 0] * constraint_weights["data_constraint"],
        "identity_constraint": sc[0, 1] * constraint_weights["identity_constraint"],
        "inv_constraint": sc[0, 2] * constraint_weights["inv_constraint"],
        "TPS_constraint": sc[0, 3] * constraint_weights["TPS_constraint"],
    }


# ----------------------------------------------------------------------------
if __name__ == "__main__":
    key = jax.random.PRNGKey(0)
    k_params, k_xy, k_t, k_src, k_off = jax.random.split(key, 5)

    HIDDEN = 32
    N_COORDS = 64   # space-time samples (x, y, t)
    N_FEATS = 8     # matched feature points

    params = init_siren_params(k_params, hidden=HIDDEN)

    # coords: [N, 3]; first 16 samples have t == 0 exactly (identity mask path)
    xy = jax.random.uniform(k_xy, (N_COORDS, 2), jnp.float32,
                            minval=-1.0, maxval=1.0)
    t_rest = jax.random.uniform(k_t, (N_COORDS - 16, 1), jnp.float32,
                                minval=-1.0, maxval=1.0)
    t_col = jnp.concatenate([jnp.zeros((16, 1), jnp.float32), t_rest], axis=0)
    coords = jnp.concatenate([xy, t_col], axis=1)

    # feature points in [-1, 1]
    warp_src_pts = jax.random.uniform(k_src, (N_FEATS, 2), jnp.float32,
                                      minval=-0.9, maxval=0.9)
    offset = jax.random.uniform(k_off, (N_FEATS, 2), jnp.float32,
                                minval=-0.1, maxval=0.1)
    warp_tgt_pts = jnp.clip(warp_src_pts + offset, -1.0, 1.0)

    losses = warping_loss(coords, warp_src_pts, warp_tgt_pts, params)
    jax.block_until_ready(losses)
    print("KERNEL_OK")
</pallas_src>

<mosaic_0001>
module attributes {stable_mosaic.version = 11 : i64} {
  func.func @_warping_loss_kernel(%arg0: memref<64x3xf32, #tpu.memory_space<vmem>>, %arg1: memref<8x2xf32, #tpu.memory_space<vmem>>, %arg2: memref<8x2xf32, #tpu.memory_space<vmem>>, %arg3: memref<3x32xf32, #tpu.memory_space<vmem>>, %arg4: memref<1x32xf32, #tpu.memory_space<vmem>>, %arg5: memref<32x2xf32, #tpu.memory_space<vmem>>, %arg6: memref<1x2xf32, #tpu.memory_space<vmem>>, %arg7: memref<32x18xf32, #tpu.memory_space<vmem>>, %arg8: memref<1x128xf32, #tpu.memory_space<vmem>>, %arg9: memref<192x32xf32, #tpu.memory_space<vmem>>) attributes {dimension_semantics = [], scalar_prefetch = 0 : i64, scratch_operands = 1 : i64, tpu.core_type = #tpu.core_type<tc>} {
    %c0 = arith.constant 0 : index
    %c0_0 = arith.constant 0 : index
    %0 = vector.load %arg3[%c0, %c0_0] : memref<3x32xf32, #tpu.memory_space<vmem>>, vector<3x32xf32>
    %c0_1 = arith.constant 0 : index
    %c0_2 = arith.constant 0 : index
    %1 = vector.load %arg4[%c0_1, %c0_2] : memref<1x32xf32, #tpu.memory_space<vmem>>, vector<1x32xf32>
    %c0_3 = arith.constant 0 : index
    %c0_4 = arith.constant 0 : index
    %2 = vector.load %arg5[%c0_3, %c0_4] : memref<32x2xf32, #tpu.memory_space<vmem>>, vector<32x2xf32>
    %c0_5 = arith.constant 0 : index
    %c0_6 = arith.constant 0 : index
    %3 = vector.load %arg6[%c0_5, %c0_6] : memref<1x2xf32, #tpu.memory_space<vmem>>, vector<1x2xf32>
    %4 = vector.extract_strided_slice %0 {offsets = [0, 0], sizes = [1, 32], strides = [1, 1]} : vector<3x32xf32> to vector<1x32xf32>
    %5 = vector.extract_strided_slice %0 {offsets = [1, 0], sizes = [1, 32], strides = [1, 1]} : vector<3x32xf32> to vector<1x32xf32>
    %6 = vector.extract_strided_slice %0 {offsets = [2, 0], sizes = [1, 32], strides = [1, 1]} : vector<3x32xf32> to vector<1x32xf32>
    %c0_7 = arith.constant 0 : index
    %c0_8 = arith.constant 0 : index
    %7 = vector.load %arg0[%c0_7, %c0_8] : memref<64x3xf32, #tpu.memory_space<vmem>>, vector<64x3xf32>
    %8 = vector.extract_strided_slice %7 {offsets = [0, 0], sizes = [64, 2], strides = [1, 1]} : vector<64x3xf32> to vector<64x2xf32>
    %9 = vector.extract_strided_slice %7 {offsets = [0, 2], sizes = [64, 1], strides = [1, 1]} : vector<64x3xf32> to vector<64x1xf32>
    %c0_9 = arith.constant 0 : index
    %c0_10 = arith.constant 0 : index
    %10 = vector.load %arg1[%c0_9, %c0_10] : memref<8x2xf32, #tpu.memory_space<vmem>>, vector<8x2xf32>
    %c0_11 = arith.constant 0 : index
    %c0_12 = arith.constant 0 : index
    %11 = vector.load %arg2[%c0_11, %c0_12] : memref<8x2xf32, #tpu.memory_space<vmem>>, vector<8x2xf32>
    %12 = vector.extract_strided_slice %8 {offsets = [0, 0], sizes = [64, 1], strides = [1, 1]} : vector<64x2xf32> to vector<64x1xf32>
    %13 = vector.broadcast %12 : vector<64x1xf32> to vector<64x32xf32>
    %14 = vector.broadcast %4 : vector<1x32xf32> to vector<64x32xf32>
    %15 = arith.mulf %13, %14 : vector<64x32xf32>
    %16 = vector.extract_strided_slice %8 {offsets = [0, 1], sizes = [64, 1], strides = [1, 1]} : vector<64x2xf32> to vector<64x1xf32>
    %17 = vector.broadcast %16 : vector<64x1xf32> to vector<64x32xf32>
    %18 = vector.broadcast %5 : vector<1x32xf32> to vector<64x32xf32>
    %19 = arith.mulf %17, %18 : vector<64x32xf32>
    %20 = arith.addf %15, %19 : vector<64x32xf32>
    %21 = vector.broadcast %1 : vector<1x32xf32> to vector<64x32xf32>
    %22 = arith.addf %20, %21 : vector<64x32xf32>
    %23 = vector.extract_strided_slice %10 {offsets = [0, 0], sizes = [8, 1], strides = [1, 1]} : vector<8x2xf32> to vector<8x1xf32>
    %24 = vector.broadcast %23 : vector<8x1xf32> to vector<8x32xf32>
    %25 = vector.broadcast %4 : vector<1x32xf32> to vector<8x32xf32>
    %26 = arith.mulf %24, %25 : vector<8x32xf32>
    %27 = vector.extract_strided_slice %10 {offsets = [0, 1], sizes = [8, 1], strides = [1, 1]} : vector<8x2xf32> to vector<8x1xf32>
    %28 = vector.broadcast %27 : vector<8x1xf32> to vector<8x32xf32>
    %29 = vector.broadcast %5 : vector<1x32xf32> to vector<8x32xf32>
    %30 = arith.mulf %28, %29 : vector<8x32xf32>
    %31 = arith.addf %26, %30 : vector<8x32xf32>
    %32 = vector.broadcast %1 : vector<1x32xf32> to vector<8x32xf32>
    %33 = arith.addf %31, %32 : vector<8x32xf32>
    %34 = vector.extract_strided_slice %11 {offsets = [0, 0], sizes = [8, 1], strides = [1, 1]} : vector<8x2xf32> to vector<8x1xf32>
    %35 = vector.broadcast %34 : vector<8x1xf32> to vector<8x32xf32>
    %36 = vector.broadcast %4 : vector<1x32xf32> to vector<8x32xf32>
    %37 = arith.mulf %35, %36 : vector<8x32xf32>
    %38 = vector.extract_strided_slice %11 {offsets = [0, 1], sizes = [8, 1], strides = [1, 1]} : vector<8x2xf32> to vector<8x1xf32>
    %39 = vector.broadcast %38 : vector<8x1xf32> to vector<8x32xf32>
    %40 = vector.broadcast %5 : vector<1x32xf32> to vector<8x32xf32>
    %41 = arith.mulf %39, %40 : vector<8x32xf32>
    %42 = arith.addf %37, %41 : vector<8x32xf32>
    %43 = vector.broadcast %1 : vector<1x32xf32> to vector<8x32xf32>
    %44 = arith.addf %42, %43 : vector<8x32xf32>
    %45 = vector.broadcast %9 : vector<64x1xf32> to vector<64x32xf32>
    %46 = vector.broadcast %6 : vector<1x32xf32> to vector<64x32xf32>
    %47 = arith.mulf %45, %46 : vector<64x32xf32>
    %48 = arith.addf %22, %47 : vector<64x32xf32>
    %49 = math.sin %48 : vector<64x32xf32>
    %c0_13 = arith.constant 0 : index
    %c0_14 = arith.constant 0 : index
    %50 = vector.load %arg9[%c0_13, %c0_14] : memref<192x32xf32, #tpu.memory_space<vmem>>, vector<64x32xf32>
    tpu.vector_store %arg9[%c0_13, %c0_14], %49 {strides = array<i32>} : memref<192x32xf32, #tpu.memory_space<vmem>>, vector<64x32xf32>,
    %51 = vector.broadcast %6 : vector<1x32xf32> to vector<64x32xf32>
    %52 = arith.addf %22, %51 : vector<64x32xf32>
    %53 = math.sin %52 : vector<64x32xf32>
    %c64 = arith.constant 64 : index
    %c0_15 = arith.constant 0 : index
    %54 = vector.load %arg9[%c64, %c0_15] : memref<192x32xf32, #tpu.memory_space<vmem>>, vector<64x32xf32>
    tpu.vector_store %arg9[%c64, %c0_15], %53 {strides = array<i32>} : memref<192x32xf32, #tpu.memory_space<vmem>>, vector<64x32xf32>,
    %55 = vector.broadcast %6 : vector<1x32xf32> to vector<8x32xf32>
    %56 = arith.addf %33, %55 : vector<8x32xf32>
    %57 = math.sin %56 : vector<8x32xf32>
    %c128 = arith.constant 128 : index
    %c0_16 = arith.constant 0 : index
    %58 = vector.load %arg9[%c128, %c0_16] : memref<192x32xf32, #tpu.memory_space<vmem>>, vector<8x32xf32>
    tpu.vector_store %arg9[%c128, %c0_16], %57 {strides = array<i32>} : memref<192x32xf32, #tpu.memory_space<vmem>>, vector<8x32xf32>,
    %59 = vector.broadcast %6 : vector<1x32xf32> to vector<8x32xf32>
    %60 = arith.subf %44, %59 : vector<8x32xf32>
    %61 = math.sin %60 : vector<8x32xf32>
    %c136 = arith.constant 136 : index
    %c0_17 = arith.constant 0 : index
    %62 = vector.load %arg9[%c136, %c0_17] : memref<192x32xf32, #tpu.memory_space<vmem>>, vector<8x32xf32>
    tpu.vector_store %arg9[%c136, %c0_17], %61 {strides = array<i32>} : memref<192x32xf32, #tpu.memory_space<vmem>>, vector<8x32xf32>,
    %cst = arith.constant 2.500000e-01 : f32
    %63 = vector.broadcast %cst : f32 to vector<1x32xf32>
    %64 = arith.mulf %63, %6 : vector<1x32xf32>
    %65 = vector.broadcast %64 : vector<1x32xf32> to vector<8x32xf32>
    %66 = arith.addf %33, %65 : vector<8x32xf32>
    %67 = math.sin %66 : vector<8x32xf32>
    %c144 = arith.constant 144 : index
    %c0_18 = arith.constant 0 : index
    %68 = vector.load %arg9[%c144, %c0_18] : memref<192x32xf32, #tpu.memory_space<vmem>>, vector<8x32xf32>
    tpu.vector_store %arg9[%c144, %c0_18], %67 {strides = array<i32>} : memref<192x32xf32, #tpu.memory_space<vmem>>, vector<8x32xf32>,
    %cst_19 = arith.constant -7.500000e-01 : f32
    %69 = vector.broadcast %cst_19 : f32 to vector<1x32xf32>
    %70 = arith.mulf %69, %6 : vector<1x32xf32>
    %71 = vector.broadcast %70 : vector<1x32xf32> to vector<8x32xf32>
    %72 = arith.addf %44, %71 : vector<8x32xf32>
    %73 = math.sin %72 : vector<8x32xf32>
    %c152 = arith.constant 152 : index
    %c0_20 = arith.constant 0 : index
    %74 = vector.load %arg9[%c152, %c0_20] : memref<192x32xf32, #tpu.memory_space<vmem>>, vector<8x32xf32>
    tpu.vector_store %arg9[%c152, %c0_20], %73 {strides = array<i32>} : memref<192x32xf32, #tpu.memory_space<vmem>>, vector<8x32xf32>,
    %cst_21 = arith.constant 5.000000e-01 : f32
    %75 = vector.broadcast %cst_21 : f32 to vector<1x32xf32>
    %76 = arith.mulf %75, %6 : vector<1x32xf32>
    %77 = vector.broadcast %76 : vector<1x32xf32> to vector<8x32xf32>
    %78 = arith.addf %33, %77 : vector<8x32xf32>
    %79 = math.sin %78 : vector<8x32xf32>
    %c160 = arith.constant 160 : index
    %c0_22 = arith.constant 0 : index
    %80 = vector.load %arg9[%c160, %c0_22] : memref<192x32xf32, #tpu.memory_space<vmem>>, vector<8x32xf32>
    tpu.vector_store %arg9[%c160, %c0_22], %79 {strides = array<i32>} : memref<192x32xf32, #tpu.memory_space<vmem>>, vector<8x32xf32>,
    %cst_23 = arith.constant -5.000000e-01 : f32
    %81 = vector.broadcast %cst_23 : f32 to vector<1x32xf32>
    %82 = arith.mulf %81, %6 : vector<1x32xf32>
    %83 = vector.broadcast %82 : vector<1x32xf32> to vector<8x32xf32>
    %84 = arith.addf %44, %83 : vector<8x32xf32>
    %85 = math.sin %84 : vector<8x32xf32>
    %c168 = arith.constant 168 : index
    %c0_24 = arith.constant 0 : index
    %86 = vector.load %arg9[%c168, %c0_24] : memref<192x32xf32, #tpu.memory_space<vmem>>, vector<8x32xf32>
    tpu.vector_store %arg9[%c168, %c0_24], %85 {strides = array<i32>} : memref<192x32xf32, #tpu.memory_space<vmem>>, vector<8x32xf32>,
    %cst_25 = arith.constant 7.500000e-01 : f32
    %87 = vector.broadcast %cst_25 : f32 to vector<1x32xf32>
    %88 = arith.mulf %87, %6 : vector<1x32xf32>
    %89 = vector.broadcast %88 : vector<1x32xf32> to vector<8x32xf32>
    %90 = arith.addf %33, %89 : vector<8x32xf32>
    %91 = math.sin %90 : vector<8x32xf32>
    %c176 = arith.constant 176 : index
    %c0_26 = arith.constant 0 : index
    %92 = vector.load %arg9[%c176, %c0_26] : memref<192x32xf32, #tpu.memory_space<vmem>>, vector<8x32xf32>
    tpu.vector_store %arg9[%c176, %c0_26], %91 {strides = array<i32>} : memref<192x32xf32, #tpu.memory_space<vmem>>, vector<8x32xf32>,
    %cst_27 = arith.constant -2.500000e-01 : f32
    %93 = vector.broadcast %cst_27 : f32 to vector<1x32xf32>
    %94 = arith.mulf %93, %6 : vector<1x32xf32>
    %95 = vector.broadcast %94 : vector<1x32xf32> to vector<8x32xf32>
    %96 = arith.addf %44, %95 : vector<8x32xf32>
    %97 = math.sin %96 : vector<8x32xf32>
    %c184 = arith.constant 184 : index
    %c0_28 = arith.constant 0 : index
    %98 = vector.load %arg9[%c184, %c0_28] : memref<192x32xf32, #tpu.memory_space<vmem>>, vector<8x32xf32>
    tpu.vector_store %arg9[%c184, %c0_28], %97 {strides = array<i32>} : memref<192x32xf32, #tpu.memory_space<vmem>>, vector<8x32xf32>,
    %c0_29 = arith.constant 0 : index
    %c0_30 = arith.constant 0 : index
    %99 = vector.load %arg9[%c0_29, %c0_30] : memref<192x32xf32, #tpu.memory_space<vmem>>, vector<192x32xf32>
    %cst_31 = arith.constant dense<0.000000e+00> : vector<192x2xf32>
    %100 = tpu.matmul %99, %2, %cst_31 {dimension_numbers = #tpu.dot_dimension_numbers<[1], [0], [0], [1], [0, 0, 1, 1], [], []>} : vector<192x32xf32>, vector<32x2xf32>, vector<192x2xf32> -> vector<192x2xf32>
    %101 = vector.broadcast %3 : vector<1x2xf32> to vector<192x2xf32>
    %102 = arith.addf %100, %101 : vector<192x2xf32>
    %103 = vector.extract_strided_slice %99 {offsets = [0, 0], sizes = [64, 32], strides = [1, 1]} : vector<192x32xf32> to vector<64x32xf32>
    %c0_32 = arith.constant 0 : index
    %c0_33 = arith.constant 0 : index
    %104 = vector.load %arg7[%c0_32, %c0_33] : memref<32x18xf32, #tpu.memory_space<vmem>>, vector<32x18xf32>
    %cst_34 = arith.constant dense<0.000000e+00> : vector<64x18xf32>
    %105 = tpu.matmul %103, %104, %cst_34 {dimension_numbers = #tpu.dot_dimension_numbers<[1], [0], [0], [1], [0, 0, 1, 1], [], []>} : vector<64x32xf32>, vector<32x18xf32>, vector<64x18xf32> -> vector<64x18xf32>
    %106 = arith.mulf %105, %105 : vector<64x18xf32>
    %107 = vector.shape_cast %106 : vector<64x18xf32> to vector<1x64x18xf32>
    %cst_35 = arith.constant dense<0.000000e+00> : vector<1xf32>
    %108 = vector.multi_reduction <add>, %107, %cst_35 [1, 2] : vector<1x64x18xf32> to vector<1xf32>
    %109 = vector.shape_cast %108 : vector<1xf32> to vector<1x1x1xf32>
    %110 = vector.extract %109[0, 0, 0] : f32 from vector<1x1x1xf32>
    %111 = vector.extract_strided_slice %102 {offsets = [0, 0], sizes = [64, 2], strides = [1, 1]} : vector<192x2xf32> to vector<64x2xf32>
    %112 = vector.extract_strided_slice %102 {offsets = [64, 0], sizes = [64, 2], strides = [1, 1]} : vector<192x2xf32> to vector<64x2xf32>
    %113 = vector.extract_strided_slice %102 {offsets = [128, 0], sizes = [8, 2], strides = [1, 1]} : vector<192x2xf32> to vector<8x2xf32>
    %114 = vector.extract_strided_slice %102 {offsets = [136, 0], sizes = [8, 2], strides = [1, 1]} : vector<192x2xf32> to vector<8x2xf32>
    %115 = arith.subf %11, %113 : vector<8x2xf32>
    %116 = arith.subf %10, %114 : vector<8x2xf32>
    %117 = arith.mulf %115, %115 : vector<8x2xf32>
    %118 = vector.shape_cast %117 : vector<8x2xf32> to vector<1x8x2xf32>
    %cst_36 = arith.constant dense<0.000000e+00> : vector<1xf32>
    %119 = vector.multi_reduction <add>, %118, %cst_36 [1, 2] : vector<1x8x2xf32> to vector<1xf32>
    %120 = vector.shape_cast %119 : vector<1xf32> to vector<1x1x1xf32>
    %121 = vector.extract %120[0, 0, 0] : f32 from vector<1x1x1xf32>
    %122 = arith.mulf %116, %116 : vector<8x2xf32>
    %123 = vector.shape_cast %122 : vector<8x2xf32> to vector<1x8x2xf32>
    %cst_37 = arith.constant dense<0.000000e+00> : vector<1xf32>
    %124 = vector.multi_reduction <add>, %123, %cst_37 [1, 2] : vector<1x8x2xf32> to vector<1xf32>
    %125 = vector.shape_cast %124 : vector<1xf32> to vector<1x1x1xf32>
    %126 = vector.extract %125[0, 0, 0] : f32 from vector<1x1x1xf32>
    %127 = arith.addf %121, %126 : f32
    %cst_38 = arith.constant 1.000000e+02 : f32
    %128 = arith.mulf %cst_38, %127 : f32
    %129 = vector.extract_strided_slice %102 {offsets = [144, 0], sizes = [8, 2], strides = [1, 1]} : vector<192x2xf32> to vector<8x2xf32>
    %130 = vector.extract_strided_slice %102 {offsets = [152, 0], sizes = [8, 2], strides = [1, 1]} : vector<192x2xf32> to vector<8x2xf32>
    %131 = arith.subf %129, %130 : vector<8x2xf32>
    %132 = arith.mulf %131, %131 : vector<8x2xf32>
    %133 = vector.shape_cast %132 : vector<8x2xf32> to vector<1x8x2xf32>
    %cst_39 = arith.constant dense<0.000000e+00> : vector<1xf32>
    %134 = vector.multi_reduction <add>, %133, %cst_39 [1, 2] : vector<1x8x2xf32> to vector<1xf32>
    %135 = vector.shape_cast %134 : vector<1xf32> to vector<1x1x1xf32>
    %136 = vector.extract %135[0, 0, 0] : f32 from vector<1x1x1xf32>
    %cst_40 = arith.constant 5.000000e+01 : f32
    %137 = arith.mulf %cst_40, %136 : f32
    %138 = arith.addf %128, %137 : f32
    %139 = vector.extract_strided_slice %102 {offsets = [160, 0], sizes = [8, 2], strides = [1, 1]} : vector<192x2xf32> to vector<8x2xf32>
    %140 = vector.extract_strided_slice %102 {offsets = [168, 0], sizes = [8, 2], strides = [1, 1]} : vector<192x2xf32> to vector<8x2xf32>
    %141 = arith.subf %139, %140 : vector<8x2xf32>
    %142 = arith.mulf %141, %141 : vector<8x2xf32>
    %143 = vector.shape_cast %142 : vector<8x2xf32> to vector<1x8x2xf32>
    %cst_41 = arith.constant dense<0.000000e+00> : vector<1xf32>
    %144 = vector.multi_reduction <add>, %143, %cst_41 [1, 2] : vector<1x8x2xf32> to vector<1xf32>
    %145 = vector.shape_cast %144 : vector<1xf32> to vector<1x1x1xf32>
    %146 = vector.extract %145[0, 0, 0] : f32 from vector<1x1x1xf32>
    %cst_42 = arith.constant 5.000000e+01 : f32
    %147 = arith.mulf %cst_42, %146 : f32
    %148 = arith.addf %138, %147 : f32
    %149 = vector.extract_strided_slice %102 {offsets = [176, 0], sizes = [8, 2], strides = [1, 1]} : vector<192x2xf32> to vector<8x2xf32>
    %150 = vector.extract_strided_slice %102 {offsets = [184, 0], sizes = [8, 2], strides = [1, 1]} : vector<192x2xf32> to vector<8x2xf32>
    %151 = arith.subf %149, %150 : vector<8x2xf32>
    %152 = arith.mulf %151, %151 : vector<8x2xf32>
    %153 = vector.shape_cast %152 : vector<8x2xf32> to vector<1x8x2xf32>
    %cst_43 = arith.constant dense<0.000000e+00> : vector<1xf32>
    %154 = vector.multi_reduction <add>, %153, %cst_43 [1, 2] : vector<1x8x2xf32> to vector<1xf32>
    %155 = vector.shape_cast %154 : vector<1xf32> to vector<1x1x1xf32>
    %156 = vector.extract %155[0, 0, 0] : f32 from vector<1x1x1xf32>
    %cst_44 = arith.constant 5.000000e+01 : f32
    %157 = arith.mulf %cst_44, %156 : f32
    %158 = arith.addf %148, %157 : f32
    %cst_45 = arith.constant 0.000000e+00 : f32
    %159 = vector.broadcast %cst_45 : f32 to vector<64x1xf32>
    %160 = arith.cmpf oeq, %9, %159 : vector<64x1xf32>
    %161 = arith.extui %160 : vector<64x1xi1> to vector<64x1xi32>
    %162 = arith.sitofp %161 : vector<64x1xi32> to vector<64x1xf32>
    %163 = arith.subf %111, %8 : vector<64x2xf32>
    %164 = arith.mulf %163, %163 : vector<64x2xf32>
    %165 = vector.broadcast %162 : vector<64x1xf32> to vector<64x2xf32>
    %166 = arith.mulf %165, %164 : vector<64x2xf32>
    %167 = vector.shape_cast %166 : vector<64x2xf32> to vector<1x64x2xf32>
    %cst_46 = arith.constant dense<0.000000e+00> : vector<1xf32>
    %168 = vector.multi_reduction <add>, %167, %cst_46 [1, 2] : vector<1x64x2xf32> to vector<1xf32>
    %169 = vector.shape_cast %168 : vector<1xf32> to vector<1x1x1xf32>
    %170 = vector.extract %169[0, 0, 0] : f32 from vector<1x1x1xf32>
    %171 = vector.extract_strided_slice %111 {offsets = [0, 0], sizes = [64, 1], strides = [1, 1]} : vector<64x2xf32> to vector<64x1xf32>
    %172 = vector.broadcast %171 : vector<64x1xf32> to vector<64x32xf32>
    %173 = vector.broadcast %4 : vector<1x32xf32> to vector<64x32xf32>
    %174 = arith.mulf %172, %173 : vector<64x32xf32>
    %175 = vector.extract_strided_slice %111 {offsets = [0, 1], sizes = [64, 1], strides = [1, 1]} : vector<64x2xf32> to vector<64x1xf32>
    %176 = vector.broadcast %175 : vector<64x1xf32> to vector<64x32xf32>
    %177 = vector.broadcast %5 : vector<1x32xf32> to vector<64x32xf32>
    %178 = arith.mulf %176, %177 : vector<64x32xf32>
    %179 = arith.addf %174, %178 : vector<64x32xf32>
    %180 = vector.broadcast %1 : vector<1x32xf32> to vector<64x32xf32>
    %181 = arith.addf %179, %180 : vector<64x32xf32>
    %182 = vector.broadcast %9 : vector<64x1xf32> to vector<64x32xf32>
    %183 = vector.broadcast %6 : vector<1x32xf32> to vector<64x32xf32>
    %184 = arith.mulf %182, %183 : vector<64x32xf32>
    %185 = arith.subf %181, %184 : vector<64x32xf32>
    %186 = math.sin %185 : vector<64x32xf32>
    %c0_47 = arith.constant 0 : index
    %c0_48 = arith.constant 0 : index
    %187 = vector.load %arg9[%c0_47, %c0_48] : memref<192x32xf32, #tpu.memory_space<vmem>>, vector<64x32xf32>
    tpu.vector_store %arg9[%c0_47, %c0_48], %186 {strides = array<i32>} : memref<192x32xf32, #tpu.memory_space<vmem>>, vector<64x32xf32>,
    %cst_49 = arith.constant 1.000000e+00 : f32
    %188 = vector.broadcast %cst_49 : f32 to vector<64x1xf32>
    %189 = arith.subf %188, %9 : vector<64x1xf32>
    %190 = vector.broadcast %189 : vector<64x1xf32> to vector<64x32xf32>
    %191 = vector.broadcast %6 : vector<1x32xf32> to vector<64x32xf32>
    %192 = arith.mulf %190, %191 : vector<64x32xf32>
    %193 = arith.addf %181, %192 : vector<64x32xf32>
    %194 = math.sin %193 : vector<64x32xf32>
    %c64_50 = arith.constant 64 : index
    %c0_51 = arith.constant 0 : index
    %195 = vector.load %arg9[%c64_50, %c0_51] : memref<192x32xf32, #tpu.memory_space<vmem>>, vector<64x32xf32>
    tpu.vector_store %arg9[%c64_50, %c0_51], %194 {strides = array<i32>} : memref<192x32xf32, #tpu.memory_space<vmem>>, vector<64x32xf32>,
    %196 = vector.extract_strided_slice %102 {offsets = [144, 0], sizes = [8, 2], strides = [1, 1]} : vector<192x2xf32> to vector<8x2xf32>
    %197 = vector.extract_strided_slice %102 {offsets = [152, 0], sizes = [8, 2], strides = [1, 1]} : vector<192x2xf32> to vector<8x2xf32>
    %198 = vector.extract_strided_slice %196 {offsets = [0, 0], sizes = [8, 1], strides = [1, 1]} : vector<8x2xf32> to vector<8x1xf32>
    %199 = vector.broadcast %198 : vector<8x1xf32> to vector<8x32xf32>
    %200 = vector.broadcast %4 : vector<1x32xf32> to vector<8x32xf32>
    %201 = arith.mulf %199, %200 : vector<8x32xf32>
    %202 = vector.extract_strided_slice %196 {offsets = [0, 1], sizes = [8, 1], strides = [1, 1]} : vector<8x2xf32> to vector<8x1xf32>
    %203 = vector.broadcast %202 : vector<8x1xf32> to vector<8x32xf32>
    %204 = vector.broadcast %5 : vector<1x32xf32> to vector<8x32xf32>
    %205 = arith.mulf %203, %204 : vector<8x32xf32>
    %206 = arith.addf %201, %205 : vector<8x32xf32>
    %207 = vector.broadcast %1 : vector<1x32xf32> to vector<8x32xf32>
    %208 = arith.addf %206, %207 : vector<8x32xf32>
    %cst_52 = arith.constant 2.500000e-01 : f32
    %209 = vector.broadcast %cst_52 : f32 to vector<1x32xf32>
    %210 = arith.mulf %209, %6 : vector<1x32xf32>
    %211 = vector.broadcast %210 : vector<1x32xf32> to vector<8x32xf32>
    %212 = arith.subf %208, %211 : vector<8x32xf32>
    %213 = math.sin %212 : vector<8x32xf32>
    %c128_53 = arith.constant 128 : index
    %c0_54 = arith.constant 0 : index
    %214 = vector.load %arg9[%c128_53, %c0_54] : memref<192x32xf32, #tpu.memory_space<vmem>>, vector<8x32xf32>
    tpu.vector_store %arg9[%c128_53, %c0_54], %213 {strides = array<i32>} : memref<192x32xf32, #tpu.memory_space<vmem>>, vector<8x32xf32>,
    %215 = vector.extract_strided_slice %197 {offsets = [0, 0], sizes = [8, 1], strides = [1, 1]} : vector<8x2xf32> to vector<8x1xf32>
    %216 = vector.broadcast %215 : vector<8x1xf32> to vector<8x32xf32>
    %217 = vector.broadcast %4 : vector<1x32xf32> to vector<8x32xf32>
    %218 = arith.mulf %216, %217 : vector<8x32xf32>
    %219 = vector.extract_strided_slice %197 {offsets = [0, 1], sizes = [8, 1], strides = [1, 1]} : vector<8x2xf32> to vector<8x1xf32>
    %220 = vector.broadcast %219 : vector<8x1xf32> to vector<8x32xf32>
    %221 = vector.broadcast %5 : vector<1x32xf32> to vector<8x32xf32>
    %222 = arith.mulf %220, %221 : vector<8x32xf32>
    %223 = arith.addf %218, %222 : vector<8x32xf32>
    %224 = vector.broadcast %1 : vector<1x32xf32> to vector<8x32xf32>
    %225 = arith.addf %223, %224 : vector<8x32xf32>
    %cst_55 = arith.constant 7.500000e-01 : f32
    %226 = vector.broadcast %cst_55 : f32 to vector<1x32xf32>
    %227 = arith.mulf %226, %6 : vector<1x32xf32>
    %228 = vector.broadcast %227 : vector<1x32xf32> to vector<8x32xf32>
    %229 = arith.addf %225, %228 : vector<8x32xf32>
    %230 = math.sin %229 : vector<8x32xf32>
    %c136_56 = arith.constant 136 : index
    %c0_57 = arith.constant 0 : index
    %231 = vector.load %arg9[%c136_56, %c0_57] : memref<192x32xf32, #tpu.memory_space<vmem>>, vector<8x32xf32>
    tpu.vector_store %arg9[%c136_56, %c0_57], %230 {strides = array<i32>} : memref<192x32xf32, #tpu.memory_space<vmem>>, vector<8x32xf32>,
    %232 = vector.extract_strided_slice %102 {offsets = [160, 0], sizes = [8, 2], strides = [1, 1]} : vector<192x2xf32> to vector<8x2xf32>
    %233 = vector.extract_strided_slice %102 {offsets = [168, 0], sizes = [8, 2], strides = [1, 1]} : vector<192x2xf32> to vector<8x2xf32>
    %234 = vector.extract_strided_slice %232 {offsets = [0, 0], sizes = [8, 1], strides = [1, 1]} : vector<8x2xf32> to vector<8x1xf32>
    %235 = vector.broadcast %234 : vector<8x1xf32> to vector<8x32xf32>
    %236 = vector.broadcast %4 : vector<1x32xf32> to vector<8x32xf32>
    %237 = arith.mulf %235, %236 : vector<8x32xf32>
    %238 = vector.extract_strided_slice %232 {offsets = [0, 1], sizes = [8, 1], strides = [1, 1]} : vector<8x2xf32> to vector<8x1xf32>
    %239 = vector.broadcast %238 : vector<8x1xf32> to vector<8x32xf32>
    %240 = vector.broadcast %5 : vector<1x32xf32> to vector<8x32xf32>
    %241 = arith.mulf %239, %240 : vector<8x32xf32>
    %242 = arith.addf %237, %241 : vector<8x32xf32>
    %243 = vector.broadcast %1 : vector<1x32xf32> to vector<8x32xf32>
    %244 = arith.addf %242, %243 : vector<8x32xf32>
    %cst_58 = arith.constant 5.000000e-01 : f32
    %245 = vector.broadcast %cst_58 : f32 to vector<1x32xf32>
    %246 = arith.mulf %245, %6 : vector<1x32xf32>
    %247 = vector.broadcast %246 : vector<1x32xf32> to vector<8x32xf32>
    %248 = arith.subf %244, %247 : vector<8x32xf32>
    %249 = math.sin %248 : vector<8x32xf32>
    %c144_59 = arith.constant 144 : index
    %c0_60 = arith.constant 0 : index
    %250 = vector.load %arg9[%c144_59, %c0_60] : memref<192x32xf32, #tpu.memory_space<vmem>>, vector<8x32xf32>
    tpu.vector_store %arg9[%c144_59, %c0_60], %249 {strides = array<i32>} : memref<192x32xf32, #tpu.memory_space<vmem>>, vector<8x32xf32>,
    %251 = vector.extract_strided_slice %233 {offsets = [0, 0], sizes = [8, 1], strides = [1, 1]} : vector<8x2xf32> to vector<8x1xf32>
    %252 = vector.broadcast %251 : vector<8x1xf32> to vector<8x32xf32>
    %253 = vector.broadcast %4 : vector<1x32xf32> to vector<8x32xf32>
    %254 = arith.mulf %252, %253 : vector<8x32xf32>
    %255 = vector.extract_strided_slice %233 {offsets = [0, 1], sizes = [8, 1], strides = [1, 1]} : vector<8x2xf32> to vector<8x1xf32>
    %256 = vector.broadcast %255 : vector<8x1xf32> to vector<8x32xf32>
    %257 = vector.broadcast %5 : vector<1x32xf32> to vector<8x32xf32>
    %258 = arith.mulf %256, %257 : vector<8x32xf32>
    %259 = arith.addf %254, %258 : vector<8x32xf32>
    %260 = vector.broadcast %1 : vector<1x32xf32> to vector<8x32xf32>
    %261 = arith.addf %259, %260 : vector<8x32xf32>
    %cst_61 = arith.constant 5.000000e-01 : f32
    %262 = vector.broadcast %cst_61 : f32 to vector<1x32xf32>
    %263 = arith.mulf %262, %6 : vector<1x32xf32>
    %264 = vector.broadcast %263 : vector<1x32xf32> to vector<8x32xf32>
    %265 = arith.addf %261, %264 : vector<8x32xf32>
    %266 = math.sin %265 : vector<8x32xf32>
    %c152_62 = arith.constant 152 : index
    %c0_63 = arith.constant 0 : index
    %267 = vector.load %arg9[%c152_62, %c0_63] : memref<192x32xf32, #tpu.memory_space<vmem>>, vector<8x32xf32>
    tpu.vector_store %arg9[%c152_62, %c0_63], %266 {strides = array<i32>} : memref<192x32xf32, #tpu.memory_space<vmem>>, vector<8x32xf32>,
    %268 = vector.extract_strided_slice %102 {offsets = [176, 0], sizes = [8, 2], strides = [1, 1]} : vector<192x2xf32> to vector<8x2xf32>
    %269 = vector.extract_strided_slice %102 {offsets = [184, 0], sizes = [8, 2], strides = [1, 1]} : vector<192x2xf32> to vector<8x2xf32>
    %270 = vector.extract_strided_slice %268 {offsets = [0, 0], sizes = [8, 1], strides = [1, 1]} : vector<8x2xf32> to vector<8x1xf32>
    %271 = vector.broadcast %270 : vector<8x1xf32> to vector<8x32xf32>
    %272 = vector.broadcast %4 : vector<1x32xf32> to vector<8x32xf32>
    %273 = arith.mulf %271, %272 : vector<8x32xf32>
    %274 = vector.extract_strided_slice %268 {offsets = [0, 1], sizes = [8, 1], strides = [1, 1]} : vector<8x2xf32> to vector<8x1xf32>
    %275 = vector.broadcast %274 : vector<8x1xf32> to vector<8x32xf32>
    %276 = vector.broadcast %5 : vector<1x32xf32> to vector<8x32xf32>
    %277 = arith.mulf %275, %276 : vector<8x32xf32>
    %278 = arith.addf %273, %277 : vector<8x32xf32>
    %279 = vector.broadcast %1 : vector<1x32xf32> to vector<8x32xf32>
    %280 = arith.addf %278, %279 : vector<8x32xf32>
    %cst_64 = arith.constant 7.500000e-01 : f32
    %281 = vector.broadcast %cst_64 : f32 to vector<1x32xf32>
    %282 = arith.mulf %281, %6 : vector<1x32xf32>
    %283 = vector.broadcast %282 : vector<1x32xf32> to vector<8x32xf32>
    %284 = arith.subf %280, %283 : vector<8x32xf32>
    %285 = math.sin %284 : vector<8x32xf32>
    %c160_65 = arith.constant 160 : index
    %c0_66 = arith.constant 0 : index
    %286 = vector.load %arg9[%c160_65, %c0_66] : memref<192x32xf32, #tpu.memory_space<vmem>>, vector<8x32xf32>
    tpu.vector_store %arg9[%c160_65, %c0_66], %285 {strides = array<i32>} : memref<192x32xf32, #tpu.memory_space<vmem>>, vector<8x32xf32>,
    %287 = vector.extract_strided_slice %269 {offsets = [0, 0], sizes = [8, 1], strides = [1, 1]} : vector<8x2xf32> to vector<8x1xf32>
    %288 = vector.broadcast %287 : vector<8x1xf32> to vector<8x32xf32>
    %289 = vector.broadcast %4 : vector<1x32xf32> to vector<8x32xf32>
    %290 = arith.mulf %288, %289 : vector<8x32xf32>
    %291 = vector.extract_strided_slice %269 {offsets = [0, 1], sizes = [8, 1], strides = [1, 1]} : vector<8x2xf32> to vector<8x1xf32>
    %292 = vector.broadcast %291 : vector<8x1xf32> to vector<8x32xf32>
    %293 = vector.broadcast %5 : vector<1x32xf32> to vector<8x32xf32>
    %294 = arith.mulf %292, %293 : vector<8x32xf32>
    %295 = arith.addf %290, %294 : vector<8x32xf32>
    %296 = vector.broadcast %1 : vector<1x32xf32> to vector<8x32xf32>
    %297 = arith.addf %295, %296 : vector<8x32xf32>
    %cst_67 = arith.constant 2.500000e-01 : f32
    %298 = vector.broadcast %cst_67 : f32 to vector<1x32xf32>
    %299 = arith.mulf %298, %6 : vector<1x32xf32>
    %300 = vector.broadcast %299 : vector<1x32xf32> to vector<8x32xf32>
    %301 = arith.addf %297, %300 : vector<8x32xf32>
    %302 = math.sin %301 : vector<8x32xf32>
    %c168_68 = arith.constant 168 : index
    %c0_69 = arith.constant 0 : index
    %303 = vector.load %arg9[%c168_68, %c0_69] : memref<192x32xf32, #tpu.memory_space<vmem>>, vector<8x32xf32>
    tpu.vector_store %arg9[%c168_68, %c0_69], %302 {strides = array<i32>} : memref<192x32xf32, #tpu.memory_space<vmem>>, vector<8x32xf32>,
    %c0_70 = arith.constant 0 : index
    %c0_71 = arith.constant 0 : index
    %304 = vector.load %arg9[%c0_70, %c0_71] : memref<192x32xf32, #tpu.memory_space<vmem>>, vector<176x32xf32>
    %cst_72 = arith.constant dense<0.000000e+00> : vector<176x2xf32>
    %305 = tpu.matmul %304, %2, %cst_72 {dimension_numbers = #tpu.dot_dimension_numbers<[1], [0], [0], [1], [0, 0, 1, 1], [], []>} : vector<176x32xf32>, vector<32x2xf32>, vector<176x2xf32> -> vector<176x2xf32>
    %306 = vector.broadcast %3 : vector<1x2xf32> to vector<176x2xf32>
    %307 = arith.addf %305, %306 : vector<176x2xf32>
    %308 = vector.extract_strided_slice %307 {offsets = [0, 0], sizes = [64, 2], strides = [1, 1]} : vector<176x2xf32> to vector<64x2xf32>
    %309 = vector.extract_strided_slice %307 {offsets = [64, 0], sizes = [64, 2], strides = [1, 1]} : vector<176x2xf32> to vector<64x2xf32>
    %cst_73 = arith.constant 1.000000e+00 : f32
    %310 = vector.broadcast %cst_73 : f32 to vector<64x1xf32>
    %311 = arith.subf %310, %162 : vector<64x1xf32>
    %312 = arith.subf %308, %8 : vector<64x2xf32>
    %313 = arith.subf %309, %112 : vector<64x2xf32>
    %314 = arith.mulf %312, %312 : vector<64x2xf32>
    %315 = arith.mulf %313, %313 : vector<64x2xf32>
    %316 = arith.addf %314, %315 : vector<64x2xf32>
    %317 = vector.broadcast %311 : vector<64x1xf32> to vector<64x2xf32>
    %318 = arith.mulf %317, %316 : vector<64x2xf32>
    %319 = vector.shape_cast %318 : vector<64x2xf32> to vector<1x64x2xf32>
    %cst_74 = arith.constant dense<0.000000e+00> : vector<1xf32>
    %320 = vector.multi_reduction <add>, %319, %cst_74 [1, 2] : vector<1x64x2xf32> to vector<1xf32>
    %321 = vector.shape_cast %320 : vector<1xf32> to vector<1x1x1xf32>
    %322 = vector.extract %321[0, 0, 0] : f32 from vector<1x1x1xf32>
    %323 = vector.extract_strided_slice %307 {offsets = [128, 0], sizes = [8, 2], strides = [1, 1]} : vector<176x2xf32> to vector<8x2xf32>
    %324 = vector.extract_strided_slice %307 {offsets = [136, 0], sizes = [8, 2], strides = [1, 1]} : vector<176x2xf32> to vector<8x2xf32>
    %325 = arith.subf %323, %10 : vector<8x2xf32>
    %326 = arith.subf %324, %11 : vector<8x2xf32>
    %327 = arith.mulf %325, %325 : vector<8x2xf32>
    %328 = vector.shape_cast %327 : vector<8x2xf32> to vector<1x8x2xf32>
    %cst_75 = arith.constant dense<0.000000e+00> : vector<1xf32>
    %329 = vector.multi_reduction <add>, %328, %cst_75 [1, 2] : vector<1x8x2xf32> to vector<1xf32>
    %330 = vector.shape_cast %329 : vector<1xf32> to vector<1x1x1xf32>
    %331 = vector.extract %330[0, 0, 0] : f32 from vector<1x1x1xf32>
    %332 = arith.mulf %326, %326 : vector<8x2xf32>
    %333 = vector.shape_cast %332 : vector<8x2xf32> to vector<1x8x2xf32>
    %cst_76 = arith.constant dense<0.000000e+00> : vector<1xf32>
    %334 = vector.multi_reduction <add>, %333, %cst_76 [1, 2] : vector<1x8x2xf32> to vector<1xf32>
    %335 = vector.shape_cast %334 : vector<1xf32> to vector<1x1x1xf32>
    %336 = vector.extract %335[0, 0, 0] : f32 from vector<1x1x1xf32>
    %337 = arith.addf %331, %336 : f32
    %cst_77 = arith.constant 2.000000e+01 : f32
    %338 = arith.mulf %cst_77, %337 : f32
    %339 = arith.addf %158, %338 : f32
    %340 = vector.extract_strided_slice %307 {offsets = [144, 0], sizes = [8, 2], strides = [1, 1]} : vector<176x2xf32> to vector<8x2xf32>
    %341 = vector.extract_strided_slice %307 {offsets = [152, 0], sizes = [8, 2], strides = [1, 1]} : vector<176x2xf32> to vector<8x2xf32>
    %342 = arith.subf %340, %10 : vector<8x2xf32>
    %343 = arith.subf %341, %11 : vector<8x2xf32>
    %344 = arith.mulf %342, %342 : vector<8x2xf32>
    %345 = vector.shape_cast %344 : vector<8x2xf32> to vector<1x8x2xf32>
    %cst_78 = arith.constant dense<0.000000e+00> : vector<1xf32>
    %346 = vector.multi_reduction <add>, %345, %cst_78 [1, 2] : vector<1x8x2xf32> to vector<1xf32>
    %347 = vector.shape_cast %346 : vector<1xf32> to vector<1x1x1xf32>
    %348 = vector.extract %347[0, 0, 0] : f32 from vector<1x1x1xf32>
    %349 = arith.mulf %343, %343 : vector<8x2xf32>
    %350 = vector.shape_cast %349 : vector<8x2xf32> to vector<1x8x2xf32>
    %cst_79 = arith.constant dense<0.000000e+00> : vector<1xf32>
    %351 = vector.multi_reduction <add>, %350, %cst_79 [1, 2] : vector<1x8x2xf32> to vector<1xf32>
    %352 = vector.shape_cast %351 : vector<1xf32> to vector<1x1x1xf32>
    %353 = vector.extract %352[0, 0, 0] : f32 from vector<1x1x1xf32>
    %354 = arith.addf %348, %353 : f32
    %cst_80 = arith.constant 2.000000e+01 : f32
    %355 = arith.mulf %cst_80, %354 : f32
    %356 = arith.addf %339, %355 : f32
    %357 = vector.extract_strided_slice %307 {offsets = [160, 0], sizes = [8, 2], strides = [1, 1]} : vector<176x2xf32> to vector<8x2xf32>
    %358 = vector.extract_strided_slice %307 {offsets = [168, 0], sizes = [8, 2], strides = [1, 1]} : vector<176x2xf32> to vector<8x2xf32>
    %359 = arith.subf %357, %10 : vector<8x2xf32>
    %360 = arith.subf %358, %11 : vector<8x2xf32>
    %361 = arith.mulf %359, %359 : vector<8x2xf32>
    %362 = vector.shape_cast %361 : vector<8x2xf32> to vector<1x8x2xf32>
    %cst_81 = arith.constant dense<0.000000e+00> : vector<1xf32>
    %363 = vector.multi_reduction <add>, %362, %cst_81 [1, 2] : vector<1x8x2xf32> to vector<1xf32>
    %364 = vector.shape_cast %363 : vector<1xf32> to vector<1x1x1xf32>
    %365 = vector.extract %364[0, 0, 0] : f32 from vector<1x1x1xf32>
    %366 = arith.mulf %360, %360 : vector<8x2xf32>
    %367 = vector.shape_cast %366 : vector<8x2xf32> to vector<1x8x2xf32>
    %cst_82 = arith.constant dense<0.000000e+00> : vector<1xf32>
    %368 = vector.multi_reduction <add>, %367, %cst_82 [1, 2] : vector<1x8x2xf32> to vector<1xf32>
    %369 = vector.shape_cast %368 : vector<1xf32> to vector<1x1x1xf32>
    %370 = vector.extract %369[0, 0, 0] : f32 from vector<1x1x1xf32>
    %371 = arith.addf %365, %370 : f32
    %cst_83 = arith.constant 2.000000e+01 : f32
    %372 = arith.mulf %cst_83, %371 : f32
    %373 = arith.addf %356, %372 : f32
    %cst_84 = arith.constant 8.68055562E-4 : f32
    %374 = arith.mulf %110, %cst_84 : f32
    %cst_85 = arith.constant 6.250000e-02 : f32
    %375 = arith.mulf %373, %cst_85 : f32
    %cst_86 = arith.constant 7.812500e-03 : f32
    %376 = arith.mulf %170, %cst_86 : f32
    %cst_87 = arith.constant 7.812500e-03 : f32
    %377 = arith.mulf %322, %cst_87 : f32
    %378 = tpu.iota {dimensions = array<i32: 1>} : vector<1x128xi32>
    %cst_88 = arith.constant 0.000000e+00 : f32
    %379 = vector.broadcast %cst_88 : f32 to vector<1x128xf32>
    %c0_i32 = arith.constant 0 : i32
    %380 = vector.broadcast %c0_i32 : i32 to vector<1x128xi32>
    %381 = arith.cmpi eq, %378, %380 : vector<1x128xi32>
    %cst_89 = arith.constant 0.000000e+00 : f32
    %382 = vector.broadcast %375 : f32 to vector<1x128xf32>
    %383 = vector.broadcast %cst_89 : f32 to vector<1x128xf32>
    %384 = arith.select %381, %382, %383 : vector<1x128xi1>, vector<1x128xf32>
    %385 = arith.addf %379, %384 : vector<1x128xf32>
    %c1_i32 = arith.constant 1 : i32
    %386 = vector.broadcast %c1_i32 : i32 to vector<1x128xi32>
    %387 = arith.cmpi eq, %378, %386 : vector<1x128xi32>
    %cst_90 = arith.constant 0.000000e+00 : f32
    %388 = vector.broadcast %376 : f32 to vector<1x128xf32>
    %389 = vector.broadcast %cst_90 : f32 to vector<1x128xf32>
    %390 = arith.select %387, %388, %389 : vector<1x128xi1>, vector<1x128xf32>
    %391 = arith.addf %385, %390 : vector<1x128xf32>
    %c2_i32 = arith.constant 2 : i32
    %392 = vector.broadcast %c2_i32 : i32 to vector<1x128xi32>
    %393 = arith.cmpi eq, %378, %392 : vector<1x128xi32>
    %cst_91 = arith.constant 0.000000e+00 : f32
    %394 = vector.broadcast %377 : f32 to vector<1x128xf32>
    %395 = vector.broadcast %cst_91 : f32 to vector<1x128xf32>
    %396 = arith.select %393, %394, %395 : vector<1x128xi1>, vector<1x128xf32>
    %397 = arith.addf %391, %396 : vector<1x128xf32>
    %c3_i32 = arith.constant 3 : i32
    %398 = vector.broadcast %c3_i32 : i32 to vector<1x128xi32>
    %399 = arith.cmpi eq, %378, %398 : vector<1x128xi32>
    %cst_92 = arith.constant 0.000000e+00 : f32
    %400 = vector.broadcast %374 : f32 to vector<1x128xf32>
    %401 = vector.broadcast %cst_92 : f32 to vector<1x128xf32>
    %402 = arith.select %399, %400, %401 : vector<1x128xi1>, vector<1x128xf32>
    %403 = arith.addf %397, %402 : vector<1x128xf32>
    %c0_93 = arith.constant 0 : index
    %c0_94 = arith.constant 0 : index
    %404 = vector.load %arg8[%c0_93, %c0_94] : memref<1x128xf32, #tpu.memory_space<vmem>>, vector<1x128xf32>
    tpu.vector_store %arg8[%c0_93, %c0_94], %403 {strides = array<i32>} : memref<1x128xf32, #tpu.memory_space<vmem>>, vector<1x128xf32>,
    return
  }
}

</mosaic_0001>

<llo_original>
// kernel: warping_loss.1
$region0: #{warping_loss.1}
  #allocation0 [shape = 'u32[]', space=smem, size = 0x4, offset = 0x4, fixed_abs, tag = 'smem constant byte address 0x4 - core index']
  #allocation1 [shape = 'u32[144,128]{1,0:T(1,128)}', space=vmem, size = 0x12000, scoped, tag = 'internal scratch']
  #allocation2 [shape = 'f32[192,32]{1,0:T(8,128)}', space=vmem, size = 0x18000, scoped, tag = 'scratch operand']
  %s0 = inlined_call_operand.vmem [shape: f32[64,3], index: 0, kind: input, shape index: {}]
  %s1 = inlined_call_operand.vmem [shape: f32[8,2], index: 1, kind: input, shape index: {}]
  %s2 = inlined_call_operand.vmem [shape: f32[8,2], index: 2, kind: input, shape index: {}]
  %s3 = inlined_call_operand.vmem [shape: f32[3,32], index: 3, kind: input, shape index: {}]
  %s4 = inlined_call_operand.vmem [shape: f32[1,32], index: 4, kind: input, shape index: {}]
  %s5 = inlined_call_operand.vmem [shape: f32[32,2], index: 5, kind: input, shape index: {}]
  %s6 = inlined_call_operand.vmem [shape: f32[1,2], index: 6, kind: input, shape index: {}]
  %s7 = inlined_call_operand.vmem [shape: f32[32,18], index: 7, kind: input, shape index: {}]
  %s8 = inlined_call_operand.vmem [shape: f32[1,128], index: 8, kind: output, shape index: {}]
  %s9 = sld [smem:[#allocation0]]
  $region42: #{warping_loss.1} parent=0
    _
  %s11 = ssub.s32 1, %s9
  %s12 = scalar_select 0, %s11, %s9
  // Predicated region
  $region2: #{warping_loss.1} parent=0 // pred_check
    _
  $region3: #{warping_loss.1} parent=0 // pred_check_branch
    %14 = sbr.rel (0) target = $region5
  $region4: #{warping_loss.1} parent=0 // pred_region
    _
  $region5: #{warping_loss.1} parent=0 // pred_fallthru
    _
  // Predicated region
  $region6: #{warping_loss.1} parent=0 // pred_check
    _
  $region7: #{warping_loss.1} parent=0 // pred_check_branch
    %16 = sbr.rel (0) target = $region9
  $region8: #{warping_loss.1} parent=0 // pred_region
    _
  $region9: #{warping_loss.1} parent=0 // pred_fallthru
    _
  // Predicated region
  $region10: #{warping_loss.1} parent=0 // pred_check
    _
  $region11: #{warping_loss.1} parent=0 // pred_check_branch
    %18 = sbr.rel (0) target = $region13
  $region12: #{warping_loss.1} parent=0 // pred_region
    _
  $region13: #{warping_loss.1} parent=0 // pred_fallthru
    _
  // Predicated region
  $region14: #{warping_loss.1} parent=0 // pred_check
    _
  $region15: #{warping_loss.1} parent=0 // pred_check_branch
    %20 = sbr.rel (0) target = $region17
  $region16: #{warping_loss.1} parent=0 // pred_region
    _
  $region17: #{warping_loss.1} parent=0 // pred_fallthru
    _
  // Predicated region
  $region18: #{warping_loss.1} parent=0 // pred_check
    _
  $region19: #{warping_loss.1} parent=0 // pred_check_branch
    %22 = sbr.rel (0) target = $region21
  $region20: #{warping_loss.1} parent=0 // pred_region
    _
  $region21: #{warping_loss.1} parent=0 // pred_fallthru
    _
  // Predicated region
  $region22: #{warping_loss.1} parent=0 // pred_check
    _
  $region23: #{warping_loss.1} parent=0 // pred_check_branch
    %24 = sbr.rel (0) target = $region25
  $region24: #{warping_loss.1} parent=0 // pred_region
    _
  $region25: #{warping_loss.1} parent=0 // pred_fallthru
    _
  // Predicated region
  $region26: #{warping_loss.1} parent=0 // pred_check
    _
  $region27: #{warping_loss.1} parent=0 // pred_check_branch
    %26 = sbr.rel (0) target = $region29
  $region28: #{warping_loss.1} parent=0 // pred_region
    _
  $region29: #{warping_loss.1} parent=0 // pred_fallthru
    _
  // Predicated region
  $region30: #{warping_loss.1} parent=0 // pred_check
    _
  $region31: #{warping_loss.1} parent=0 // pred_check_branch
    %28 = sbr.rel (0) target = $region33
  $region32: #{warping_loss.1} parent=0 // pred_region
    _
  $region33: #{warping_loss.1} parent=0 // pred_fallthru
    _
  %v29 = vld [vmem:[%s3] sm:$0x7]
  %v30 = vld [vmem:[%s4] sm:$0x1]
  %v31 = vld [vmem:[%s5] sm:$0xff]
  %v32 = vld [vmem:[%s5 + $0x8] sm:$0xff]
  %v33 = vld [vmem:[%s5 + $0x10] sm:$0xff]
  %v34 = vld [vmem:[%s5 + $0x18] sm:$0xff]
  %v35 = vld [vmem:[%s6] sm:$0x1]
  %v36 = vld [vmem:[%s0] sm:$0xff]
  %v37 = vld [vmem:[%s0 + $0x8] sm:$0xff]
  %v38 = vld [vmem:[%s0 + $0x10] sm:$0xff]
  %v39 = vld [vmem:[%s0 + $0x18] sm:$0xff]
  %v40 = vld [vmem:[%s0 + $0x20] sm:$0xff]
  %v41 = vld [vmem:[%s0 + $0x28] sm:$0xff]
  %v42 = vld [vmem:[%s0 + $0x30] sm:$0xff]
  %v43 = vld [vmem:[%s0 + $0x38] sm:$0xff]
  %v44 = vld [vmem:[%s1] sm:$0xff]
  %v45 = vld [vmem:[%s2] sm:$0xff]
  %47 = vset.pattern.permute.xlu0 0
  %48 = vperm.xlu0 %47, %v36
  %v49 = vpop.permute.xlu0 %48
  %52 = vset.pattern.permute.xlu0 0
  %53 = vperm.xlu0 %52, %v37
  %v54 = vpop.permute.xlu0 %53
  %57 = vset.pattern.permute.xlu0 0
  %58 = vperm.xlu0 %57, %v38
  %v59 = vpop.permute.xlu0 %58
  %62 = vset.pattern.permute.xlu0 0
  %63 = vperm.xlu0 %62, %v39
  %v64 = vpop.permute.xlu0 %63
  %67 = vset.pattern.permute.xlu0 0
  %68 = vperm.xlu0 %67, %v40
  %v69 = vpop.permute.xlu0 %68
  %72 = vset.pattern.permute.xlu0 0
  %73 = vperm.xlu0 %72, %v41
  %v74 = vpop.permute.xlu0 %73
  %77 = vset.pattern.permute.xlu0 0
  %78 = vperm.xlu0 %77, %v42
  %v79 = vpop.permute.xlu0 %78
  %82 = vset.pattern.permute.xlu0 0
  %83 = vperm.xlu0 %82, %v43
  %v84 = vpop.permute.xlu0 %83
  %v86 = vlaneseq
  %v87 = vshrl.u32 %v86, 7
  %v88 = vsub.s32 0, %v87
  %v89 = vrot.slane %v29, %v88
  %v90 = vmul.f32 %v49, %v89
  %v91 = vmul.f32 %v54, %v89
  %v92 = vmul.f32 %v59, %v89
  %v93 = vmul.f32 %v64, %v89
  %v94 = vmul.f32 %v69, %v89
  %v95 = vmul.f32 %v74, %v89
  %v96 = vmul.f32 %v79, %v89
  %v97 = vmul.f32 %v84, %v89
  %98 = vset.pattern.permute.xlu0 1
  %99 = vperm.xlu0 %98, %v36
  %v100 = vpop.permute.xlu0 %99
  %102 = vset.pattern.permute.xlu0 1
  %103 = vperm.xlu0 %102, %v37
  %v104 = vpop.permute.xlu0 %103
  %106 = vset.pattern.permute.xlu0 1
  %107 = vperm.xlu0 %106, %v38
  %v108 = vpop.permute.xlu0 %107
  %110 = vset.pattern.permute.xlu0 1
  %111 = vperm.xlu0 %110, %v39
  %v112 = vpop.permute.xlu0 %111
  %114 = vset.pattern.permute.xlu0 1
  %115 = vperm.xlu0 %114, %v40
  %v116 = vpop.permute.xlu0 %115
  %118 = vset.pattern.permute.xlu0 1
  %119 = vperm.xlu0 %118, %v41
  %v120 = vpop.permute.xlu0 %119
  %122 = vset.pattern.permute.xlu0 1
  %123 = vperm.xlu0 %122, %v42
  %v124 = vpop.permute.xlu0 %123
  %126 = vset.pattern.permute.xlu0 1
  %127 = vperm.xlu0 %126, %v43
  %v128 = vpop.permute.xlu0 %127
  %v130 = vlaneseq
  %v131 = vshrl.u32 %v130, 7
  %v132 = vsub.s32 1, %v131
  %v133 = vrot.slane %v29, %v132
  %v134 = vmul.f32 %v100, %v133
  %v135 = vmul.f32 %v104, %v133
  %v136 = vmul.f32 %v108, %v133
  %v137 = vmul.f32 %v112, %v133
  %v138 = vmul.f32 %v116, %v133
  %v139 = vmul.f32 %v120, %v133
  %v140 = vmul.f32 %v124, %v133
  %v141 = vmul.f32 %v128, %v133
  %v142 = vadd.f32 %v90, %v134
  %v143 = vadd.f32 %v91, %v135
  %v144 = vadd.f32 %v92, %v136
  %v145 = vadd.f32 %v93, %v137
  %v146 = vadd.f32 %v94, %v138
  %v147 = vadd.f32 %v95, %v139
  %v148 = vadd.f32 %v96, %v140
  %v149 = vadd.f32 %v97, %v141
  %v151 = vlaneseq
  %v152 = vshrl.u32 %v151, 7
  %v153 = vsub.s32 0, %v152
  %v154 = vrot.slane %v30, %v153
  %v156 = vadd.f32 %v142, %v154
  %v157 = vadd.f32 %v143, %v154
  %v158 = vadd.f32 %v144, %v154
  %v159 = vadd.f32 %v145, %v154
  %v160 = vadd.f32 %v146, %v154
  %v161 = vadd.f32 %v147, %v154
  %v162 = vadd.f32 %v148, %v154
  %v163 = vadd.f32 %v149, %v154
  %165 = vset.pattern.permute.xlu0 0
  %166 = vperm.xlu0 %165, %v44
  %v167 = vpop.permute.xlu0 %166
  %v169 = vmul.f32 %v167, %v89
  %170 = vset.pattern.permute.xlu0 1
  %171 = vperm.xlu0 %170, %v44
  %v172 = vpop.permute.xlu0 %171
  %v174 = vmul.f32 %v172, %v133
  %v175 = vadd.f32 %v169, %v174
  %v176 = vadd.f32 %v175, %v154
  %178 = vset.pattern.permute.xlu0 0
  %179 = vperm.xlu0 %178, %v45
  %v180 = vpop.permute.xlu0 %179
  %v182 = vmul.f32 %v180, %v89
  %183 = vset.pattern.permute.xlu0 1
  %184 = vperm.xlu0 %183, %v45
  %v185 = vpop.permute.xlu0 %184
  %v187 = vmul.f32 %v185, %v133
  %v188 = vadd.f32 %v182, %v187
  %v189 = vadd.f32 %v188, %v154
  %190 = vset.pattern.permute.xlu0 2
  %191 = vperm.xlu0 %190, %v36
  %v192 = vpop.permute.xlu0 %191
  %194 = vset.pattern.permute.xlu0 2
  %195 = vperm.xlu0 %194, %v37
  %v196 = vpop.permute.xlu0 %195
  %198 = vset.pattern.permute.xlu0 2
  %199 = vperm.xlu0 %198, %v38
  %v200 = vpop.permute.xlu0 %199
  %202 = vset.pattern.permute.xlu0 2
  %203 = vperm.xlu0 %202, %v39
  %v204 = vpop.permute.xlu0 %203
  %206 = vset.pattern.permute.xlu0 2
  %207 = vperm.xlu0 %206, %v40
  %v208 = vpop.permute.xlu0 %207
  %210 = vset.pattern.permute.xlu0 2
  %211 = vperm.xlu0 %210, %v41
  %v212 = vpop.permute.xlu0 %211
  %214 = vset.pattern.permute.xlu0 2
  %215 = vperm.xlu0 %214, %v42
  %v216 = vpop.permute.xlu0 %215
  %218 = vset.pattern.permute.xlu0 2
  %219 = vperm.xlu0 %218, %v43
  %v220 = vpop.permute.xlu0 %219
  %v222 = vlaneseq
  %v223 = vshrl.u32 %v222, 7
  %v224 = vsub.s32 2, %v223
  %v225 = vrot.slane %v29, %v224
  %v226 = vmul.f32 %v192, %v225
  %v227 = vmul.f32 %v196, %v225
  %v228 = vmul.f32 %v200, %v225
  %v229 = vmul.f32 %v204, %v225
  %v230 = vmul.f32 %v208, %v225
  %v231 = vmul.f32 %v212, %v225
  %v232 = vmul.f32 %v216, %v225
  %v233 = vmul.f32 %v220, %v225
  %v234 = vadd.f32 %v156, %v226
  %v235 = vadd.f32 %v157, %v227
  %v236 = vadd.f32 %v158, %v228
  %v237 = vadd.f32 %v159, %v229
  %v238 = vadd.f32 %v160, %v230
  %v239 = vadd.f32 %v161, %v231
  %v240 = vadd.f32 %v162, %v232
  %v241 = vadd.f32 %v163, %v233
  %v242 = vand.u32 2147483647, %v234
  %vm243 = vcmp.le.f32.partialorder %v242, 0.7853982
  %vm244 = vcmp.lt.s32.totalorder %v234, 0
  %v245 = vand.u32 %v234, 2139095040
  %v246 = vshrl.u32 %v245, 23
  %v247 = vsub.s32 %v246, 127
  %v248 = vand.u32 2147483647, %v234
  %v249 = vand.u32 %v248, 8388607
  %v250 = vor.u32 %v249, 8388608
  %v251 = vsub.s32 0, %v250
  %v252 = vadd.s32 %v247, 1
  %vm253 = vcmp.gt.s32.totalorder %v252, 0
  %v254 = vsel %vm253, %v252, 0
  %v255 = vshrl.u32 %v254, 5
  %v256 = vand.u32 %v254, 31
  %v257 = vsub.s32 32, %v256
  %v258 = vshrl.u32 683565275, %v257
  %v259 = vshll.u32 683565275, %v256
  %v260 = vshrl.u32 2475754826, %v257
  %v261 = vor.u32 %v259, %v260
  %v262 = vshll.u32 2475754826, %v256
  %v263 = vshrl.u32 2131351028, %v257
  %v264 = vor.u32 %v262, %v263
  %v265 = vshll.u32 2131351028, %v256
  %v266 = vshrl.u32 2102212464, %v257
  %v267 = vor.u32 %v265, %v266
  %v268 = vshll.u32 2102212464, %v256
  %v269 = vshrl.u32 920167782, %v257
  %v270 = vor.u32 %v268, %v269
  %v271 = vshll.u32 920167782, %v256
  %v272 = vshrl.u32 1326507024, %v257
  %v273 = vor.u32 %v271, %v272
  %vm274 = vcmp.lt.s32.totalorder %v255, 1
  %vm275 = vcmp.lt.s32.totalorder %v255, 2
  %vm276 = vcmp.lt.s32.totalorder %v255, 3
  %vm277 = vcmp.lt.s32.totalorder %v255, 4
  %v278 = vsel %vm274, %v258, %v261
  %v279 = vsel %vm277, %v267, 2102212464
  %v280 = vsel %vm276, %v264, %v279
  %v281 = vsel %vm275, %v278, %v280
  %v282 = vsel %vm274, %v261, %v264
  %v283 = vsel %vm277, %v270, 920167782
  %v284 = vsel %vm276, %v267, %v283
  %v285 = vsel %vm275, %v282, %v284
  %v286 = vsel %vm274, %v264, %v267
  %v287 = vsel %vm277, %v273, 1326507024
  %v288 = vsel %vm276, %v270, %v287
  %v289 = vsel %vm275, %v286, %v288
  %v290 = vshll.u32 %v250, 8
  %v291 = vmul.u32.u64.compose %v290, %v289
  %v292 = vextract.low.u32 %v291
  %v293 = vextract.high.u32 %v291
  %v294 = vmul.u32.u64.compose %v290, %v285
  %v295 = vextract.low.u32 %v294
  %v296 = vextract.high.u32 %v294
  %v297 = vmul.u32 %v290, %v281
  %v298 = vadd.s32 %v293, %v295
  %vm299 = vc.u32 %v293, %v295
  %v300 = vadd.s32 %v296, 1
  %v301 = vsel %vm299, %v300, %v296
  %v302 = vadd.s32 %v297, %v301
  %v303 = vadd.s32 %v302, 536870912
  %v304 = vshrl.u32 %v303, 30
  %v305 = vshll.u32 %v304, 30
  %v306 = vsub.s32 %v302, %v305
  %vm307 = vcmp.lt.s32.totalorder %v306, 0
  %v308 = vsub.s32 0, %v306
  %v309 = vsel %vm307, %v308, %v306
  %v310 = vclz %v309
  %v311 = vsub.s32 %v310, 2
  %vm312 = vcmp.gt.s32.totalorder 0, %v311
  %v313 = vsel %vm312, 0, %v311
  %v314 = vsub.s32 32, %v313
  %v315 = vshll.u32 %v306, %v313
  %v316 = vshrl.u32 %v298, %v314
  %v317 = vor.u32 %v315, %v316
  %v318 = vsub.s32 4294967266, %v313
  %v319 = vadd.s32 %v318, 127
  %v320 = vshll.u32 %v319, 23
  %v321 = vor.u32 4788187, %v320
  %v322 = vand.u32 2147483647, %v321
  %v324 = vcvt.s32.f32 %v317
  %v325 = vmul.f32 %v324, %v322
  %v326 = vxor.u32 %v325, 2147483648
  %v327 = vsel %vm244, %v326, %v325
  %v328 = vsub.s32 4, %v304
  %v329 = vsel %vm244, %v328, %v304
  %v330 = vsel %vm243, %v234, %v327
  %v331 = vsel %vm243, 0, %v329
  %v332 = vcosq.f32.pop %v330
  %v333 = vsinq.f32.pop %v330
  %vm334 = vweird.f32 %v234
  %v335 = vadd.s32 %v331, 3
  %v336 = vand.u32 %v335, 3
  %vm337 = vcmp.lt.s32.totalorder %v336, 2
  %vm338 = vcmp.eq.s32.totalorder %v336, 0
  %v339 = vxor.u32 %v333, 2147483648
  %v340 = vsel %vm338, %v332, %v339
  %vm341 = vcmp.eq.s32.totalorder %v336, 2
  %v342 = vxor.u32 %v332, 2147483648
  %v343 = vsel %vm341, %v342, %v333
  %v344 = vsel %vm337, %v340, %v343
  %v345 = vsel %vm334, nan, %v344
  %v346 = vand.u32 2147483647, %v235
  %vm347 = vcmp.le.f32.partialorder %v346, 0.7853982
  %vm348 = vcmp.lt.s32.totalorder %v235, 0
  %v349 = vand.u32 %v235, 2139095040
  %v350 = vshrl.u32 %v349, 23
  %v351 = vsub.s32 %v350, 127
  %v352 = vand.u32 2147483647, %v235
  %v353 = vand.u32 %v352, 8388607
  %v354 = vor.u32 %v353, 8388608
  %v355 = vsub.s32 0, %v354
  %v356 = vadd.s32 %v351, 1
  %vm357 = vcmp.gt.s32.totalorder %v356, 0
  %v358 = vsel %vm357, %v356, 0
  %v359 = vshrl.u32 %v358, 5
  %v360 = vand.u32 %v358, 31
  %v361 = vsub.s32 32, %v360
  %v362 = vshrl.u32 683565275, %v361
  %v363 = vshll.u32 683565275, %v360
  %v364 = vshrl.u32 2475754826, %v361
  %v365 = vor.u32 %v363, %v364
  %v366 = vshll.u32 2475754826, %v360
  %v367 = vshrl.u32 2131351028, %v361
  %v368 = vor.u32 %v366, %v367
  %v369 = vshll.u32 2131351028, %v360
  %v370 = vshrl.u32 2102212464, %v361
  %v371 = vor.u32 %v369, %v370
  %v372 = vshll.u32 2102212464, %v360
  %v373 = vshrl.u32 920167782, %v361
  %v374 = vor.u32 %v372, %v373
  %v375 = vshll.u32 920167782, %v360
  %v376 = vshrl.u32 1326507024, %v361
  %v377 = vor.u32 %v375, %v376
  %vm378 = vcmp.lt.s32.totalorder %v359, 1
  %vm379 = vcmp.lt.s32.totalorder %v359, 2
  %vm380 = vcmp.lt.s32.totalorder %v359, 3
  %vm381 = vcmp.lt.s32.totalorder %v359, 4
  %v382 = vsel %vm378, %v362, %v365
  %v383 = vsel %vm381, %v371, 2102212464
  %v384 = vsel %vm380, %v368, %v383
  %v385 = vsel %vm379, %v382, %v384
  %v386 = vsel %vm378, %v365, %v368
  %v387 = vsel %vm381, %v374, 920167782
  %v388 = vsel %vm380, %v371, %v387
  %v389 = vsel %vm379, %v386, %v388
  %v390 = vsel %vm378, %v368, %v371
  %v391 = vsel %vm381, %v377, 1326507024
  %v392 = vsel %vm380, %v374, %v391
  %v393 = vsel %vm379, %v390, %v392
  %v394 = vshll.u32 %v354, 8
  %v395 = vmul.u32.u64.compose %v394, %v393
  %v396 = vextract.low.u32 %v395
  %v397 = vextract.high.u32 %v395
  %v398 = vmul.u32.u64.compose %v394, %v389
  %v399 = vextract.low.u32 %v398
  %v400 = vextract.high.u32 %v398
  %v401 = vmul.u32 %v394, %v385
  %v402 = vadd.s32 %v397, %v399
  %vm403 = vc.u32 %v397, %v399
  %v404 = vadd.s32 %v400, 1
  %v405 = vsel %vm403, %v404, %v400
  %v406 = vadd.s32 %v401, %v405
  %v407 = vadd.s32 %v406, 536870912
  %v408 = vshrl.u32 %v407, 30
  %v409 = vshll.u32 %v408, 30
  %v410 = vsub.s32 %v406, %v409
  %vm411 = vcmp.lt.s32.totalorder %v410, 0
  %v412 = vsub.s32 0, %v410
  %v413 = vsel %vm411, %v412, %v410
  %v414 = vclz %v413
  %v415 = vsub.s32 %v414, 2
  %vm416 = vcmp.gt.s32.totalorder 0, %v415
  %v417 = vsel %vm416, 0, %v415
  %v418 = vsub.s32 32, %v417
  %v419 = vshll.u32 %v410, %v417
  %v420 = vshrl.u32 %v402, %v418
  %v421 = vor.u32 %v419, %v420
  %v422 = vsub.s32 4294967266, %v417
  %v423 = vadd.s32 %v422, 127
  %v424 = vshll.u32 %v423, 23
  %v425 = vor.u32 4788187, %v424
  %v426 = vand.u32 2147483647, %v425
  %v428 = vcvt.s32.f32 %v421
  %v429 = vmul.f32 %v428, %v426
  %v430 = vxor.u32 %v429, 2147483648
  %v431 = vsel %vm348, %v430, %v429
  %v432 = vsub.s32 4, %v408
  %v433 = vsel %vm348, %v432, %v408
  %v434 = vsel %vm347, %v235, %v431
  %v435 = vsel %vm347, 0, %v433
  %v436 = vcosq.f32.pop %v434
  %v437 = vsinq.f32.pop %v434
  %vm438 = vweird.f32 %v235
  %v439 = vadd.s32 %v435, 3
  %v440 = vand.u32 %v439, 3
  %vm441 = vcmp.lt.s32.totalorder %v440, 2
  %vm442 = vcmp.eq.s32.totalorder %v440, 0
  %v443 = vxor.u32 %v437, 2147483648
  %v444 = vsel %vm442, %v436, %v443
  %vm445 = vcmp.eq.s32.totalorder %v440, 2
  %v446 = vxor.u32 %v436, 2147483648
  %v447 = vsel %vm445, %v446, %v437
  %v448 = vsel %vm441, %v444, %v447
  %v449 = vsel %vm438, nan, %v448
  %v450 = vand.u32 2147483647, %v236
  %vm451 = vcmp.le.f32.partialorder %v450, 0.7853982
  %vm452 = vcmp.lt.s32.totalorder %v236, 0
  %v453 = vand.u32 %v236, 2139095040
  %v454 = vshrl.u32 %v453, 23
  %v455 = vsub.s32 %v454, 127
  %v456 = vand.u32 2147483647, %v236
  %v457 = vand.u32 %v456, 8388607
  %v458 = vor.u32 %v457, 8388608
  %v459 = vsub.s32 0, %v458
  %v460 = vadd.s32 %v455, 1
  %vm461 = vcmp.gt.s32.totalorder %v460, 0
  %v462 = vsel %vm461, %v460, 0
  %v463 = vshrl.u32 %v462, 5
  %v464 = vand.u32 %v462, 31
  %v465 = vsub.s32 32, %v464
  %v466 = vshrl.u32 683565275, %v465
  %v467 = vshll.u32 683565275, %v464
  %v468 = vshrl.u32 2475754826, %v465
  %v469 = vor.u32 %v467, %v468
  %v470 = vshll.u32 2475754826, %v464
  %v471 = vshrl.u32 2131351028, %v465
  %v472 = vor.u32 %v470, %v471
  %v473 = vshll.u32 2131351028, %v464
  %v474 = vshrl.u32 2102212464, %v465
  %v475 = vor.u32 %v473, %v474
  %v476 = vshll.u32 2102212464, %v464
  %v477 = vshrl.u32 920167782, %v465
  %v478 = vor.u32 %v476, %v477
  %v479 = vshll.u32 920167782, %v464
  %v480 = vshrl.u32 1326507024, %v465
  %v481 = vor.u32 %v479, %v480
  %vm482 = vcmp.lt.s32.totalorder %v463, 1
  %vm483 = vcmp.lt.s32.totalorder %v463, 2
  %vm484 = vcmp.lt.s32.totalorder %v463, 3
  %vm485 = vcmp.lt.s32.totalorder %v463, 4
  %v486 = vsel %vm482, %v466, %v469
  %v487 = vsel %vm485, %v475, 2102212464
  %v488 = vsel %vm484, %v472, %v487
  %v489 = vsel %vm483, %v486, %v488
  %v490 = vsel %vm482, %v469, %v472
  %v491 = vsel %vm485, %v478, 920167782
  %v492 = vsel %vm484, %v475, %v491
  %v493 = vsel %vm483, %v490, %v492
  %v494 = vsel %vm482, %v472, %v475
  %v495 = vsel %vm485, %v481, 1326507024
  %v496 = vsel %vm484, %v478, %v495
  %v497 = vsel %vm483, %v494, %v496
  %v498 = vshll.u32 %v458, 8
  %v499 = vmul.u32.u64.compose %v498, %v497
  %v500 = vextract.low.u32 %v499
  %v501 = vextract.high.u32 %v499
  %v502 = vmul.u32.u64.compose %v498, %v493
  %v503 = vextract.low.u32 %v502
  %v504 = vextract.high.u32 %v502
  %v505 = vmul.u32 %v498, %v489
  %v506 = vadd.s32 %v501, %v503
  %vm507 = vc.u32 %v501, %v503
  %v508 = vadd.s32 %v504, 1
  %v509 = vsel %vm507, %v508, %v504
  %v510 = vadd.s32 %v505, %v509
  %v511 = vadd.s32 %v510, 536870912
  %v512 = vshrl.u32 %v511, 30
  %v513 = vshll.u32 %v512, 30
  %v514 = vsub.s32 %v510, %v513
  %vm515 = vcmp.lt.s32.totalorder %v514, 0
  %v516 = vsub.s32 0, %v514
  %v517 = vsel %vm515, %v516, %v514
  %v518 = vclz %v517
  %v519 = vsub.s32 %v518, 2
  %vm520 = vcmp.gt.s32.totalorder 0, %v519
  %v521 = vsel %vm520, 0, %v519
  %v522 = vsub.s32 32, %v521
  %v523 = vshll.u32 %v514, %v521
  %v524 = vshrl.u32 %v506, %v522
  %v525 = vor.u32 %v523, %v524
  %v526 = vsub.s32 4294967266, %v521
  %v527 = vadd.s32 %v526, 127
  %v528 = vshll.u32 %v527, 23
  %v529 = vor.u32 4788187, %v528
  %v530 = vand.u32 2147483647, %v529
  %v532 = vcvt.s32.f32 %v525
  %v533 = vmul.f32 %v532, %v530
  %v534 = vxor.u32 %v533, 2147483648
  %v535 = vsel %vm452, %v534, %v533
  %v536 = vsub.s32 4, %v512
  %v537 = vsel %vm452, %v536, %v512
  %v538 = vsel %vm451, %v236, %v535
  %v539 = vsel %vm451, 0, %v537
  %v540 = vcosq.f32.pop %v538
  %v541 = vsinq.f32.pop %v538
  %vm542 = vweird.f32 %v236
  %v543 = vadd.s32 %v539, 3
  %v544 = vand.u32 %v543, 3
  %vm545 = vcmp.lt.s32.totalorder %v544, 2
  %vm546 = vcmp.eq.s32.totalorder %v544, 0
  %v547 = vxor.u32 %v541, 2147483648
  %v548 = vsel %vm546, %v540, %v547
  %vm549 = vcmp.eq.s32.totalorder %v544, 2
  %v550 = vxor.u32 %v540, 2147483648
  %v551 = vsel %vm549, %v550, %v541
  %v552 = vsel %vm545, %v548, %v551
  %v553 = vsel %vm542, nan, %v552
  %v554 = vand.u32 2147483647, %v237
  %vm555 = vcmp.le.f32.partialorder %v554, 0.7853982
  %vm556 = vcmp.lt.s32.totalorder %v237, 0
  %v557 = vand.u32 %v237, 2139095040
  %v558 = vshrl.u32 %v557, 23
  %v559 = vsub.s32 %v558, 127
  %v560 = vand.u32 2147483647, %v237
  %v561 = vand.u32 %v560, 8388607
  %v562 = vor.u32 %v561, 8388608
  %v563 = vsub.s32 0, %v562
  %v564 = vadd.s32 %v559, 1
  %vm565 = vcmp.gt.s32.totalorder %v564, 0
  %v566 = vsel %vm565, %v564, 0
  %v567 = vshrl.u32 %v566, 5
  %v568 = vand.u32 %v566, 31
  %v569 = vsub.s32 32, %v568
  %v570 = vshrl.u32 683565275, %v569
  %v571 = vshll.u32 683565275, %v568
  %v572 = vshrl.u32 2475754826, %v569
  %v573 = vor.u32 %v571, %v572
  %v574 = vshll.u32 2475754826, %v568
  %v575 = vshrl.u32 2131351028, %v569
  %v576 = vor.u32 %v574, %v575
  %v577 = vshll.u32 2131351028, %v568
  %v578 = vshrl.u32 2102212464, %v569
  %v579 = vor.u32 %v577, %v578
  %v580 = vshll.u32 2102212464, %v568
  %v581 = vshrl.u32 920167782, %v569
  %v582 = vor.u32 %v580, %v581
  %v583 = vshll.u32 920167782, %v568
  %v584 = vshrl.u32 1326507024, %v569
  %v585 = vor.u32 %v583, %v584
  %vm586 = vcmp.lt.s32.totalorder %v567, 1
  %vm587 = vcmp.lt.s32.totalorder %v567, 2
  %vm588 = vcmp.lt.s32.totalorder %v567, 3
  %vm589 = vcmp.lt.s32.totalorder %v567, 4
  %v590 = vsel %vm586, %v570, %v573
  %v591 = vsel %vm589, %v579, 2102212464
  %v592 = vsel %vm588, %v576, %v591
  %v593 = vsel %vm587, %v590, %v592
  %v594 = vsel %vm586, %v573, %v576
  %v595 = vsel %vm589, %v582, 920167782
  %v596 = vsel %vm588, %v579, %v595
  %v597 = vsel %vm587, %v594, %v596
  %v598 = vsel %vm586, %v576, %v579
  %v599 = vsel %vm589, %v585, 1326507024
  %v600 = vsel %vm588, %v582, %v599
  %v601 = vsel %vm587, %v598, %v600
  %v602 = vshll.u32 %v562, 8
  %v603 = vmul.u32.u64.compose %v602, %v601
  %v604 = vextract.low.u32 %v603
  %v605 = vextract.high.u32 %v603
  %v606 = vmul.u32.u64.compose %v602, %v597
  %v607 = vextract.low.u32 %v606
  %v608 = vextract.high.u32 %v606
  %v609 = vmul.u32 %v602, %v593
  %v610 = vadd.s32 %v605, %v607
  %vm611 = vc.u32 %v605, %v607
  %v612 = vadd.s32 %v608, 1
  %v613 = vsel %vm611, %v612, %v608
  %v614 = vadd.s32 %v609, %v613
  %v615 = vadd.s32 %v614, 536870912
  %v616 = vshrl.u32 %v615, 30
  %v617 = vshll.u32 %v616, 30
  %v618 = vsub.s32 %v614, %v617
  %vm619 = vcmp.lt.s32.totalorder %v618, 0
  %v620 = vsub.s32 0, %v618
  %v621 = vsel %vm619, %v620, %v618
  %v622 = vclz %v621
  %v623 = vsub.s32 %v622, 2
  %vm624 = vcmp.gt.s32.totalorder 0, %v623
  %v625 = vsel %vm624, 0, %v623
  %v626 = vsub.s32 32, %v625
  %v627 = vshll.u32 %v618, %v625
  %v628 = vshrl.u32 %v610, %v626
  %v629 = vor.u32 %v627, %v628
  %v630 = vsub.s32 4294967266, %v625
  %v631 = vadd.s32 %v630, 127
  %v632 = vshll.u32 %v631, 23
  %v633 = vor.u32 4788187, %v632
  %v634 = vand.u32 2147483647, %v633
  %v636 = vcvt.s32.f32 %v629
  %v637 = vmul.f32 %v636, %v634
  %v638 = vxor.u32 %v637, 2147483648
  %v639 = vsel %vm556, %v638, %v637
  %v640 = vsub.s32 4, %v616
  %v641 = vsel %vm556, %v640, %v616
  %v642 = vsel %vm555, %v237, %v639
  %v643 = vsel %vm555, 0, %v641
  %v644 = vcosq.f32.pop %v642
  %v645 = vsinq.f32.pop %v642
  %vm646 = vweird.f32 %v237
  %v647 = vadd.s32 %v643, 3
  %v648 = vand.u32 %v647, 3
  %vm649 = vcmp.lt.s32.totalorder %v648, 2
  %vm650 = vcmp.eq.s32.totalorder %v648, 0
  %v651 = vxor.u32 %v645, 2147483648
  %v652 = vsel %vm650, %v644, %v651
  %vm653 = vcmp.eq.s32.totalorder %v648, 2
  %v654 = vxor.u32 %v644, 2147483648
  %v655 = vsel %vm653, %v654, %v645
  %v656 = vsel %vm649, %v652, %v655
  %v657 = vsel %vm646, nan, %v656
  %v658 = vand.u32 2147483647, %v238
  %vm659 = vcmp.le.f32.partialorder %v658, 0.7853982
  %vm660 = vcmp.lt.s32.totalorder %v238, 0
  %v661 = vand.u32 %v238, 2139095040
  %v662 = vshrl.u32 %v661, 23
  %v663 = vsub.s32 %v662, 127
  %v664 = vand.u32 2147483647, %v238
  %v665 = vand.u32 %v664, 8388607
  %v666 = vor.u32 %v665, 8388608
  %v667 = vsub.s32 0, %v666
  %v668 = vadd.s32 %v663, 1
  %vm669 = vcmp.gt.s32.totalorder %v668, 0
  %v670 = vsel %vm669, %v668, 0
  %v671 = vshrl.u32 %v670, 5
  %v672 = vand.u32 %v670, 31
  %v673 = vsub.s32 32, %v672
  %v674 = vshrl.u32 683565275, %v673
  %v675 = vshll.u32 683565275, %v672
  %v676 = vshrl.u32 2475754826, %v673
  %v677 = vor.u32 %v675, %v676
  %v678 = vshll.u32 2475754826, %v672
  %v679 = vshrl.u32 2131351028, %v673
  %v680 = vor.u32 %v678, %v679
  %v681 = vshll.u32 2131351028, %v672
  %v682 = vshrl.u32 2102212464, %v673
  %v683 = vor.u32 %v681, %v682
  %v684 = vshll.u32 2102212464, %v672
  %v685 = vshrl.u32 920167782, %v673
  %v686 = vor.u32 %v684, %v685
  %v687 = vshll.u32 920167782, %v672
  %v688 = vshrl.u32 1326507024, %v673
  %v689 = vor.u32 %v687, %v688
  %vm690 = vcmp.lt.s32.totalorder %v671, 1
  %vm691 = vcmp.lt.s32.totalorder %v671, 2
  %vm692 = vcmp.lt.s32.totalorder %v671, 3
  %vm693 = vcmp.lt.s32.totalorder %v671, 4
  %v694 = vsel %vm690, %v674, %v677
  %v695 = vsel %vm693, %v683, 2102212464
  %v696 = vsel %vm692, %v680, %v695
  %v697 = vsel %vm691, %v694, %v696
  %v698 = vsel %vm690, %v677, %v680
  %v699 = vsel %vm693, %v686, 920167782
  %v700 = vsel %vm692, %v683, %v699
  %v701 = vsel %vm691, %v698, %v700
  %v702 = vsel %vm690, %v680, %v683
  %v703 = vsel %vm693, %v689, 1326507024
  %v704 = vsel %vm692, %v686, %v703
  %v705 = vsel %vm691, %v702, %v704
  %v706 = vshll.u32 %v666, 8
  %v707 = vmul.u32.u64.compose %v706, %v705
  %v708 = vextract.low.u32 %v707
  %v709 = vextract.high.u32 %v707
  %v710 = vmul.u32.u64.compose %v706, %v701
  %v711 = vextract.low.u32 %v710
  %v712 = vextract.high.u32 %v710
  %v713 = vmul.u32 %v706, %v697
  %v714 = vadd.s32 %v709, %v711
  %vm715 = vc.u32 %v709, %v711
  %v716 = vadd.s32 %v712, 1
  %v717 = vsel %vm715, %v716, %v712
  %v718 = vadd.s32 %v713, %v717
  %v719 = vadd.s32 %v718, 536870912
  %v720 = vshrl.u32 %v719, 30
  %v721 = vshll.u32 %v720, 30
  %v722 = vsub.s32 %v718, %v721
  %vm723 = vcmp.lt.s32.totalorder %v722, 0
  %v724 = vsub.s32 0, %v722
  %v725 = vsel %vm723, %v724, %v722
  %v726 = vclz %v725
  %v727 = vsub.s32 %v726, 2
  %vm728 = vcmp.gt.s32.totalorder 0, %v727
  %v729 = vsel %vm728, 0, %v727
  %v730 = vsub.s32 32, %v729
  %v731 = vshll.u32 %v722, %v729
  %v732 = vshrl.u32 %v714, %v730
  %v733 = vor.u32 %v731, %v732
  %v734 = vsub.s32 4294967266, %v729
  %v735 = vadd.s32 %v734, 127
  %v736 = vshll.u32 %v735, 23
  %v737 = vor.u32 4788187, %v736
  %v738 = vand.u32 2147483647, %v737
  %v740 = vcvt.s32.f32 %v733
  %v741 = vmul.f32 %v740, %v738
  %v742 = vxor.u32 %v741, 2147483648
  %v743 = vsel %vm660, %v742, %v741
  %v744 = vsub.s32 4, %v720
  %v745 = vsel %vm660, %v744, %v720
  %v746 = vsel %vm659, %v238, %v743
  %v747 = vsel %vm659, 0, %v745
  %v748 = vcosq.f32.pop %v746
  %v749 = vsinq.f32.pop %v746
  %vm750 = vweird.f32 %v238
  %v751 = vadd.s32 %v747, 3
  %v752 = vand.u32 %v751, 3
  %vm753 = vcmp.lt.s32.totalorder %v752, 2
  %vm754 = vcmp.eq.s32.totalorder %v752, 0
  %v755 = vxor.u32 %v749, 2147483648
  %v756 = vsel %vm754, %v748, %v755
  %vm757 = vcmp.eq.s32.totalorder %v752, 2
  %v758 = vxor.u32 %v748, 2147483648
  %v759 = vsel %vm757, %v758, %v749
  %v760 = vsel %vm753, %v756, %v759
  %v761 = vsel %vm750, nan, %v760
  %v762 = vand.u32 2147483647, %v239
  %vm763 = vcmp.le.f32.partialorder %v762, 0.7853982
  %vm764 = vcmp.lt.s32.totalorder %v239, 0
  %v765 = vand.u32 %v239, 2139095040
  %v766 = vshrl.u32 %v765, 23
  %v767 = vsub.s32 %v766, 127
  %v768 = vand.u32 2147483647, %v239
  %v769 = vand.u32 %v768, 8388607
  %v770 = vor.u32 %v769, 8388608
  %v771 = vsub.s32 0, %v770
  %v772 = vadd.s32 %v767, 1
  %vm773 = vcmp.gt.s32.totalorder %v772, 0
  %v774 = vsel %vm773, %v772, 0
  %v775 = vshrl.u32 %v774, 5
  %v776 = vand.u32 %v774, 31
  %v777 = vsub.s32 32, %v776
  %v778 = vshrl.u32 683565275, %v777
  %v779 = vshll.u32 683565275, %v776
  %v780 = vshrl.u32 2475754826, %v777
  %v781 = vor.u32 %v779, %v780
  %v782 = vshll.u32 2475754826, %v776
  %v783 = vshrl.u32 2131351028, %v777
  %v784 = vor.u32 %v782, %v783
  %v785 = vshll.u32 2131351028, %v776
  %v786 = vshrl.u32 2102212464, %v777
  %v787 = vor.u32 %v785, %v786
  %v788 = vshll.u32 2102212464, %v776
  %v789 = vshrl.u32 920167782, %v777
  %v790 = vor.u32 %v788, %v789
  %v791 = vshll.u32 920167782, %v776
  %v792 = vshrl.u32 1326507024, %v777
  %v793 = vor.u32 %v791, %v792
  %vm794 = vcmp.lt.s32.totalorder %v775, 1
  %vm795 = vcmp.lt.s32.totalorder %v775, 2
  %vm796 = vcmp.lt.s32.totalorder %v775, 3
  %vm797 = vcmp.lt.s32.totalorder %v775, 4
  %v798 = vsel %vm794, %v778, %v781
  %v799 = vsel %vm797, %v787, 2102212464
  %v800 = vsel %vm796, %v784, %v799
  %v801 = vsel %vm795, %v798, %v800
  %v802 = vsel %vm794, %v781, %v784
  %v803 = vsel %vm797, %v790, 920167782
  %v804 = vsel %vm796, %v787, %v803
  %v805 = vsel %vm795, %v802, %v804
  %v806 = vsel %vm794, %v784, %v787
  %v807 = vsel %vm797, %v793, 1326507024
  %v808 = vsel %vm796, %v790, %v807
  %v809 = vsel %vm795, %v806, %v808
  %v810 = vshll.u32 %v770, 8
  %v811 = vmul.u32.u64.compose %v810, %v809
  %v812 = vextract.low.u32 %v811
  %v813 = vextract.high.u32 %v811
  %v814 = vmul.u32.u64.compose %v810, %v805
  %v815 = vextract.low.u32 %v814
  %v816 = vextract.high.u32 %v814
  %v817 = vmul.u32 %v810, %v801
  %v818 = vadd.s32 %v813, %v815
  %vm819 = vc.u32 %v813, %v815
  %v820 = vadd.s32 %v816, 1
  %v821 = vsel %vm819, %v820, %v816
  %v822 = vadd.s32 %v817, %v821
  %v823 = vadd.s32 %v822, 536870912
  %v824 = vshrl.u32 %v823, 30
  %v825 = vshll.u32 %v824, 30
  %v826 = vsub.s32 %v822, %v825
  %vm827 = vcmp.lt.s32.totalorder %v826, 0
  %v828 = vsub.s32 0, %v826
  %v829 = vsel %vm827, %v828, %v826
  %v830 = vclz %v829
  %v831 = vsub.s32 %v830, 2
  %vm832 = vcmp.gt.s32.totalorder 0, %v831
  %v833 = vsel %vm832, 0, %v831
  %v834 = vsub.s32 32, %v833
  %v835 = vshll.u32 %v826, %v833
  %v836 = vshrl.u32 %v818, %v834
  %v837 = vor.u32 %v835, %v836
  %v838 = vsub.s32 4294967266, %v833
  %v839 = vadd.s32 %v838, 127
  %v840 = vshll.u32 %v839, 23
  %v841 = vor.u32 4788187, %v840
  %v842 = vand.u32 2147483647, %v841
  %v844 = vcvt.s32.f32 %v837
  %v845 = vmul.f32 %v844, %v842
  %v846 = vxor.u32 %v845, 2147483648
  %v847 = vsel %vm764, %v846, %v845
  %v848 = vsub.s32 4, %v824
  %v849 = vsel %vm764, %v848, %v824
  %v850 = vsel %vm763, %v239, %v847
  %v851 = vsel %vm763, 0, %v849
  %v852 = vcosq.f32.pop %v850
  %v853 = vsinq.f32.pop %v850
  %vm854 = vweird.f32 %v239
  %v855 = vadd.s32 %v851, 3
  %v856 = vand.u32 %v855, 3
  %vm857 = vcmp.lt.s32.totalorder %v856, 2
  %vm858 = vcmp.eq.s32.totalorder %v856, 0
  %v859 = vxor.u32 %v853, 2147483648
  %v860 = vsel %vm858, %v852, %v859
  %vm861 = vcmp.eq.s32.totalorder %v856, 2
  %v862 = vxor.u32 %v852, 2147483648
  %v863 = vsel %vm861, %v862, %v853
  %v864 = vsel %vm857, %v860, %v863
  %v865 = vsel %vm854, nan, %v864
  %v866 = vand.u32 2147483647, %v240
  %vm867 = vcmp.le.f32.partialorder %v866, 0.7853982
  %vm868 = vcmp.lt.s32.totalorder %v240, 0
  %v869 = vand.u32 %v240, 2139095040
  %v870 = vshrl.u32 %v869, 23
  %v871 = vsub.s32 %v870, 127
  %v872 = vand.u32 2147483647, %v240
  %v873 = vand.u32 %v872, 8388607
  %v874 = vor.u32 %v873, 8388608
  %v875 = vsub.s32 0, %v874
  %v876 = vadd.s32 %v871, 1
  %vm877 = vcmp.gt.s32.totalorder %v876, 0
  %v878 = vsel %vm877, %v876, 0
  %v879 = vshrl.u32 %v878, 5
  %v880 = vand.u32 %v878, 31
  %v881 = vsub.s32 32, %v880
  %v882 = vshrl.u32 683565275, %v881
  %v883 = vshll.u32 683565275, %v880
  %v884 = vshrl.u32 2475754826, %v881
  %v885 = vor.u32 %v883, %v884
  %v886 = vshll.u32 2475754826, %v880
  %v887 = vshrl.u32 2131351028, %v881
  %v888 = vor.u32 %v886, %v887
  %v889 = vshll.u32 2131351028, %v880
  %v890 = vshrl.u32 2102212464, %v881
  %v891 = vor.u32 %v889, %v890
  %v892 = vshll.u32 2102212464, %v880
  %v893 = vshrl.u32 920167782, %v881
  %v894 = vor.u32 %v892, %v893
  %v895 = vshll.u32 920167782, %v880
  %v896 = vshrl.u32 1326507024, %v881
  %v897 = vor.u32 %v895, %v896
  %vm898 = vcmp.lt.s32.totalorder %v879, 1
  %vm899 = vcmp.lt.s32.totalorder %v879, 2
  %vm900 = vcmp.lt.s32.totalorder %v879, 3
  %vm901 = vcmp.lt.s32.totalorder %v879, 4
  %v902 = vsel %vm898, %v882, %v885
  %v903 = vsel %vm901, %v891, 2102212464
  %v904 = vsel %vm900, %v888, %v903
  %v905 = vsel %vm899, %v902, %v904
  %v906 = vsel %vm898, %v885, %v888
  %v907 = vsel %vm901, %v894, 920167782
  %v908 = vsel %vm900, %v891, %v907
  %v909 = vsel %vm899, %v906, %v908
  %v910 = vsel %vm898, %v888, %v891
  %v911 = vsel %vm901, %v897, 1326507024
  %v912 = vsel %vm900, %v894, %v911
  %v913 = vsel %vm899, %v910, %v912
  %v914 = vshll.u32 %v874, 8
  %v915 = vmul.u32.u64.compose %v914, %v913
  %v916 = vextract.low.u32 %v915
  %v917 = vextract.high.u32 %v915
  %v918 = vmul.u32.u64.compose %v914, %v909
  %v919 = vextract.low.u32 %v918
  %v920 = vextract.high.u32 %v918
  %v921 = vmul.u32 %v914, %v905
  %v922 = vadd.s32 %v917, %v919
  %vm923 = vc.u32 %v917, %v919
  %v924 = vadd.s32 %v920, 1
  %v925 = vsel %vm923, %v924, %v920
  %v926 = vadd.s32 %v921, %v925
  %v927 = vadd.s32 %v926, 536870912
  %v928 = vshrl.u32 %v927, 30
  %v929 = vshll.u32 %v928, 30
  %v930 = vsub.s32 %v926, %v929
  %vm931 = vcmp.lt.s32.totalorder %v930, 0
  %v932 = vsub.s32 0, %v930
  %v933 = vsel %vm931, %v932, %v930
  %v934 = vclz %v933
  %v935 = vsub.s32 %v934, 2
  %vm936 = vcmp.gt.s32.totalorder 0, %v935
  %v937 = vsel %vm936, 0, %v935
  %v938 = vsub.s32 32, %v937
  %v939 = vshll.u32 %v930, %v937
  %v940 = vshrl.u32 %v922, %v938
  %v941 = vor.u32 %v939, %v940
  %v942 = vsub.s32 4294967266, %v937
  %v943 = vadd.s32 %v942, 127
  %v944 = vshll.u32 %v943, 23
  %v945 = vor.u32 4788187, %v944
  %v946 = vand.u32 2147483647, %v945
  %v948 = vcvt.s32.f32 %v941
  %v949 = vmul.f32 %v948, %v946
  %v950 = vxor.u32 %v949, 2147483648
  %v951 = vsel %vm868, %v950, %v949
  %v952 = vsub.s32 4, %v928
  %v953 = vsel %vm868, %v952, %v928
  %v954 = vsel %vm867, %v240, %v951
  %v955 = vsel %vm867, 0, %v953
  %v956 = vcosq.f32.pop %v954
  %v957 = vsinq.f32.pop %v954
  %vm958 = vweird.f32 %v240
  %v959 = vadd.s32 %v955, 3
  %v960 = vand.u32 %v959, 3
  %vm961 = vcmp.lt.s32.totalorder %v960, 2
  %vm962 = vcmp.eq.s32.totalorder %v960, 0
  %v963 = vxor.u32 %v957, 2147483648
  %v964 = vsel %vm962, %v956, %v963
  %vm965 = vcmp.eq.s32.totalorder %v960, 2
  %v966 = vxor.u32 %v956, 2147483648
  %v967 = vsel %vm965, %v966, %v957
  %v968 = vsel %vm961, %v964, %v967
  %v969 = vsel %vm958, nan, %v968
  %v970 = vand.u32 2147483647, %v241
  %vm971 = vcmp.le.f32.partialorder %v970, 0.7853982
  %vm972 = vcmp.lt.s32.totalorder %v241, 0
  %v973 = vand.u32 %v241, 2139095040
  %v974 = vshrl.u32 %v973, 23
  %v975 = vsub.s32 %v974, 127
  %v976 = vand.u32 2147483647, %v241
  %v977 = vand.u32 %v976, 8388607
  %v978 = vor.u32 %v977, 8388608
  %v979 = vsub.s32 0, %v978
  %v980 = vadd.s32 %v975, 1
  %vm981 = vcmp.gt.s32.totalorder %v980, 0
  %v982 = vsel %vm981, %v980, 0
  %v983 = vshrl.u32 %v982, 5
  %v984 = vand.u32 %v982, 31
  %v985 = vsub.s32 32, %v984
  %v986 = vshrl.u32 683565275, %v985
  %v987 = vshll.u32 683565275, %v984
  %v988 = vshrl.u32 2475754826, %v985
  %v989 = vor.u32 %v987, %v988
  %v990 = vshll.u32 2475754826, %v984
  %v991 = vshrl.u32 2131351028, %v985
  %v992 = vor.u32 %v990, %v991
  %v993 = vshll.u32 2131351028, %v984
  %v994 = vshrl.u32 2102212464, %v985
  %v995 = vor.u32 %v993, %v994
  %v996 = vshll.u32 2102212464, %v984
  %v997 = vshrl.u32 920167782, %v985
  %v998 = vor.u32 %v996, %v997
  %v999 = vshll.u32 920167782, %v984
  %v1000 = vshrl.u32 1326507024, %v985
  %v1001 = vor.u32 %v999, %v1000
  %vm1002 = vcmp.lt.s32.totalorder %v983, 1
  %vm1003 = vcmp.lt.s32.totalorder %v983, 2
  %vm1004 = vcmp.lt.s32.totalorder %v983, 3
  %vm1005 = vcmp.lt.s32.totalorder %v983, 4
  %v1006 = vsel %vm1002, %v986, %v989
  %v1007 = vsel %vm1005, %v995, 2102212464
  %v1008 = vsel %vm1004, %v992, %v1007
  %v1009 = vsel %vm1003, %v1006, %v1008
  %v1010 = vsel %vm1002, %v989, %v992
  %v1011 = vsel %vm1005, %v998, 920167782
  %v1012 = vsel %vm1004, %v995, %v1011
  %v1013 = vsel %vm1003, %v1010, %v1012
  %v1014 = vsel %vm1002, %v992, %v995
  %v1015 = vsel %vm1005, %v1001, 1326507024
  %v1016 = vsel %vm1004, %v998, %v1015
  %v1017 = vsel %vm1003, %v1014, %v1016
  %v1018 = vshll.u32 %v978, 8
  %v1019 = vmul.u32.u64.compose %v1018, %v1017
  %v1020 = vextract.low.u32 %v1019
  %v1021 = vextract.high.u32 %v1019
  %v1022 = vmul.u32.u64.compose %v1018, %v1013
  %v1023 = vextract.low.u32 %v1022
  %v1024 = vextract.high.u32 %v1022
  %v1025 = vmul.u32 %v1018, %v1009
  %v1026 = vadd.s32 %v1021, %v1023
  %vm1027 = vc.u32 %v1021, %v1023
  %v1028 = vadd.s32 %v1024, 1
  %v1029 = vsel %vm1027, %v1028, %v1024
  %v1030 = vadd.s32 %v1025, %v1029
  %v1031 = vadd.s32 %v1030, 536870912
  %v1032 = vshrl.u32 %v1031, 30
  %v1033 = vshll.u32 %v1032, 30
  %v1034 = vsub.s32 %v1030, %v1033
  %vm1035 = vcmp.lt.s32.totalorder %v1034, 0
  %v1036 = vsub.s32 0, %v1034
  %v1037 = vsel %vm1035, %v1036, %v1034
  %v1038 = vclz %v1037
  %v1039 = vsub.s32 %v1038, 2
  %vm1040 = vcmp.gt.s32.totalorder 0, %v1039
  %v1041 = vsel %vm1040, 0, %v1039
  %v1042 = vsub.s32 32, %v1041
  %v1043 = vshll.u32 %v1034, %v1041
  %v1044 = vshrl.u32 %v1026, %v1042
  %v1045 = vor.u32 %v1043, %v1044
  %v1046 = vsub.s32 4294967266, %v1041
  %v1047 = vadd.s32 %v1046, 127
  %v1048 = vshll.u32 %v1047, 23
  %v1049 = vor.u32 4788187, %v1048
  %v1050 = vand.u32 2147483647, %v1049
  %v1052 = vcvt.s32.f32 %v1045
  %v1053 = vmul.f32 %v1052, %v1050
  %v1054 = vxor.u32 %v1053, 2147483648
  %v1055 = vsel %vm972, %v1054, %v1053
  %v1056 = vsub.s32 4, %v1032
  %v1057 = vsel %vm972, %v1056, %v1032
  %v1058 = vsel %vm971, %v241, %v1055
  %v1059 = vsel %vm971, 0, %v1057
  %v1060 = vcosq.f32.pop %v1058
  %v1061 = vsinq.f32.pop %v1058
  %vm1062 = vweird.f32 %v241
  %v1063 = vadd.s32 %v1059, 3
  %v1064 = vand.u32 %v1063, 3
  %vm1065 = vcmp.lt.s32.totalorder %v1064, 2
  %vm1066 = vcmp.eq.s32.totalorder %v1064, 0
  %v1067 = vxor.u32 %v1061, 2147483648
  %v1068 = vsel %vm1066, %v1060, %v1067
  %vm1069 = vcmp.eq.s32.totalorder %v1064, 2
  %v1070 = vxor.u32 %v1060, 2147483648
  %v1071 = vsel %vm1069, %v1070, %v1061
  %v1072 = vsel %vm1065, %v1068, %v1071
  %v1073 = vsel %vm1062, nan, %v1072
  %vm1074 = vcmask 261120
  %1075 = vst.msk [vmem:[#allocation2] sm:$0xff] %vm1074, %v345
  %1076 = vst.msk [vmem:[#allocation2 + $0x8] sm:$0xff] %vm1074, %v449
  %1077 = vst.msk [vmem:[#allocation2 + $0x10] sm:$0xff] %vm1074, %v553
  %1078 = vst.msk [vmem:[#allocation2 + $0x18] sm:$0xff] %vm1074, %v657
  %1079 = vst.msk [vmem:[#allocation2 + $0x20] sm:$0xff] %vm1074, %v761
  %1080 = vst.msk [vmem:[#allocation2 + $0x28] sm:$0xff] %vm1074, %v865
  %1081 = vst.msk [vmem:[#allocation2 + $0x30] sm:$0xff] %vm1074, %v969
  %1082 = vst.msk [vmem:[#allocation2 + $0x38] sm:$0xff] %vm1074, %v1073
  %v1083 = vadd.f32 %v156, %v225
  %v1084 = vadd.f32 %v157, %v225
  %v1085 = vadd.f32 %v158, %v225
  %v1086 = vadd.f32 %v159, %v225
  %v1087 = vadd.f32 %v160, %v225
  %v1088 = vadd.f32 %v161, %v225
  %v1089 = vadd.f32 %v162, %v225
  %v1090 = vadd.f32 %v163, %v225
  %v1091 = vand.u32 2147483647, %v1083
  %vm1092 = vcmp.le.f32.partialorder %v1091, 0.7853982
  %vm1093 = vcmp.lt.s32.totalorder %v1083, 0
  %v1094 = vand.u32 %v1083, 2139095040
  %v1095 = vshrl.u32 %v1094, 23
  %v1096 = vsub.s32 %v1095, 127
  %v1097 = vand.u32 2147483647, %v1083
  %v1098 = vand.u32 %v1097, 8388607
  %v1099 = vor.u32 %v1098, 8388608
  %v1100 = vsub.s32 0, %v1099
  %v1101 = vadd.s32 %v1096, 1
  %vm1102 = vcmp.gt.s32.totalorder %v1101, 0
  %v1103 = vsel %vm1102, %v1101, 0
  %v1104 = vshrl.u32 %v1103, 5
  %v1105 = vand.u32 %v1103, 31
  %v1106 = vsub.s32 32, %v1105
  %v1107 = vshrl.u32 683565275, %v1106
  %v1108 = vshll.u32 683565275, %v1105
  %v1109 = vshrl.u32 2475754826, %v1106
  %v1110 = vor.u32 %v1108, %v1109
  %v1111 = vshll.u32 2475754826, %v1105
  %v1112 = vshrl.u32 2131351028, %v1106
  %v1113 = vor.u32 %v1111, %v1112
  %v1114 = vshll.u32 2131351028, %v1105
  %v1115 = vshrl.u32 2102212464, %v1106
  %v1116 = vor.u32 %v1114, %v1115
  %v1117 = vshll.u32 2102212464, %v1105
  %v1118 = vshrl.u32 920167782, %v1106
  %v1119 = vor.u32 %v1117, %v1118
  %v1120 = vshll.u32 920167782, %v1105
  %v1121 = vshrl.u32 1326507024, %v1106
  %v1122 = vor.u32 %v1120, %v1121
  %vm1123 = vcmp.lt.s32.totalorder %v1104, 1
  %vm1124 = vcmp.lt.s32.totalorder %v1104, 2
  %vm1125 = vcmp.lt.s32.totalorder %v1104, 3
  %vm1126 = vcmp.lt.s32.totalorder %v1104, 4
  %v1127 = vsel %vm1123, %v1107, %v1110
  %v1128 = vsel %vm1126, %v1116, 2102212464
  %v1129 = vsel %vm1125, %v1113, %v1128
  %v1130 = vsel %vm1124, %v1127, %v1129
  %v1131 = vsel %vm1123, %v1110, %v1113
  %v1132 = vsel %vm1126, %v1119, 920167782
  %v1133 = vsel %vm1125, %v1116, %v1132
  %v1134 = vsel %vm1124, %v1131, %v1133
  %v1135 = vsel %vm1123, %v1113, %v1116
  %v1136 = vsel %vm1126, %v1122, 1326507024
  %v1137 = vsel %vm1125, %v1119, %v1136
  %v1138 = vsel %vm1124, %v1135, %v1137
  %v1139 = vshll.u32 %v1099, 8
  %v1140 = vmul.u32.u64.compose %v1139, %v1138
  %v1141 = vextract.low.u32 %v1140
  %v1142 = vextract.high.u32 %v1140
  %v1143 = vmul.u32.u64.compose %v1139, %v1134
  %v1144 = vextract.low.u32 %v1143
  %v1145 = vextract.high.u32 %v1143
  %v1146 = vmul.u32 %v1139, %v1130
  %v1147 = vadd.s32 %v1142, %v1144
  %vm1148 = vc.u32 %v1142, %v1144
  %v1149 = vadd.s32 %v1145, 1
  %v1150 = vsel %vm1148, %v1149, %v1145
  %v1151 = vadd.s32 %v1146, %v1150
  %v1152 = vadd.s32 %v1151, 536870912
  %v1153 = vshrl.u32 %v1152, 30
  %v1154 = vshll.u32 %v1153, 30
  %v1155 = vsub.s32 %v1151, %v1154
  %vm1156 = vcmp.lt.s32.totalorder %v1155, 0
  %v1157 = vsub.s32 0, %v1155
  %v1158 = vsel %vm1156, %v1157, %v1155
  %v1159 = vclz %v1158
  %v1160 = vsub.s32 %v1159, 2
  %vm1161 = vcmp.gt.s32.totalorder 0, %v1160
  %v1162 = vsel %vm1161, 0, %v1160
  %v1163 = vsub.s32 32, %v1162
  %v1164 = vshll.u32 %v1155, %v1162
  %v1165 = vshrl.u32 %v1147, %v1163
  %v1166 = vor.u32 %v1164, %v1165
  %v1167 = vsub.s32 4294967266, %v1162
  %v1168 = vadd.s32 %v1167, 127
  %v1169 = vshll.u32 %v1168, 23
  %v1170 = vor.u32 4788187, %v1169
  %v1171 = vand.u32 2147483647, %v1170
  %v1173 = vcvt.s32.f32 %v1166
  %v1174 = vmul.f32 %v1173, %v1171
  %v1175 = vxor.u32 %v1174, 2147483648
  %v1176 = vsel %vm1093, %v1175, %v1174
  %v1177 = vsub.s32 4, %v1153
  %v1178 = vsel %vm1093, %v1177, %v1153
  %v1179 = vsel %vm1092, %v1083, %v1176
  %v1180 = vsel %vm1092, 0, %v1178
  %v1181 = vcosq.f32.pop %v1179
  %v1182 = vsinq.f32.pop %v1179
  %vm1183 = vweird.f32 %v1083
  %v1184 = vadd.s32 %v1180, 3
  %v1185 = vand.u32 %v1184, 3
  %vm1186 = vcmp.lt.s32.totalorder %v1185, 2
  %vm1187 = vcmp.eq.s32.totalorder %v1185, 0
  %v1188 = vxor.u32 %v1182, 2147483648
  %v1189 = vsel %vm1187, %v1181, %v1188
  %vm1190 = vcmp.eq.s32.totalorder %v1185, 2
  %v1191 = vxor.u32 %v1181, 2147483648
  %v1192 = vsel %vm1190, %v1191, %v1182
  %v1193 = vsel %vm1186, %v1189, %v1192
  %v1194 = vsel %vm1183, nan, %v1193
  %v1195 = vand.u32 2147483647, %v1084
  %vm1196 = vcmp.le.f32.partialorder %v1195, 0.7853982
  %vm1197 = vcmp.lt.s32.totalorder %v1084, 0
  %v1198 = vand.u32 %v1084, 2139095040
  %v1199 = vshrl.u32 %v1198, 23
  %v1200 = vsub.s32 %v1199, 127
  %v1201 = vand.u32 2147483647, %v1084
  %v1202 = vand.u32 %v1201, 8388607
  %v1203 = vor.u32 %v1202, 8388608
  %v1204 = vsub.s32 0, %v1203
  %v1205 = vadd.s32 %v1200, 1
  %vm1206 = vcmp.gt.s32.totalorder %v1205, 0
  %v1207 = vsel %vm1206, %v1205, 0
  %v1208 = vshrl.u32 %v1207, 5
  %v1209 = vand.u32 %v1207, 31
  %v1210 = vsub.s32 32, %v1209
  %v1211 = vshrl.u32 683565275, %v1210
  %v1212 = vshll.u32 683565275, %v1209
  %v1213 = vshrl.u32 2475754826, %v1210
  %v1214 = vor.u32 %v1212, %v1213
  %v1215 = vshll.u32 2475754826, %v1209
  %v1216 = vshrl.u32 2131351028, %v1210
  %v1217 = vor.u32 %v1215, %v1216
  %v1218 = vshll.u32 2131351028, %v1209
  %v1219 = vshrl.u32 2102212464, %v1210
  %v1220 = vor.u32 %v1218, %v1219
  %v1221 = vshll.u32 2102212464, %v1209
  %v1222 = vshrl.u32 920167782, %v1210
  %v1223 = vor.u32 %v1221, %v1222
  %v1224 = vshll.u32 920167782, %v1209
  %v1225 = vshrl.u32 1326507024, %v1210
  %v1226 = vor.u32 %v1224, %v1225
  %vm1227 = vcmp.lt.s32.totalorder %v1208, 1
  %vm1228 = vcmp.lt.s32.totalorder %v1208, 2
  %vm1229 = vcmp.lt.s32.totalorder %v1208, 3
  %vm1230 = vcmp.lt.s32.totalorder %v1208, 4
  %v1231 = vsel %vm1227, %v1211, %v1214
  %v1232 = vsel %vm1230, %v1220, 2102212464
  %v1233 = vsel %vm1229, %v1217, %v1232
  %v1234 = vsel %vm1228, %v1231, %v1233
  %v1235 = vsel %vm1227, %v1214, %v1217
  %v1236 = vsel %vm1230, %v1223, 920167782
  %v1237 = vsel %vm1229, %v1220, %v1236
  %v1238 = vsel %vm1228, %v1235, %v1237
  %v1239 = vsel %vm1227, %v1217, %v1220
  %v1240 = vsel %vm1230, %v1226, 1326507024
  %v1241 = vsel %vm1229, %v1223, %v1240
  %v1242 = vsel %vm1228, %v1239, %v1241
  %v1243 = vshll.u32 %v1203, 8
  %v1244 = vmul.u32.u64.compose %v1243, %v1242
  %v1245 = vextract.low.u32 %v1244
  %v1246 = vextract.high.u32 %v1244
  %v1247 = vmul.u32.u64.compose %v1243, %v1238
  %v1248 = vextract.low.u32 %v1247
  %v1249 = vextract.high.u32 %v1247
  %v1250 = vmul.u32 %v1243, %v1234
  %v1251 = vadd.s32 %v1246, %v1248
  %vm1252 = vc.u32 %v1246, %v1248
  %v1253 = vadd.s32 %v1249, 1
  %v1254 = vsel %vm1252, %v1253, %v1249
  %v1255 = vadd.s32 %v1250, %v1254
  %v1256 = vadd.s32 %v1255, 536870912
  %v1257 = vshrl.u32 %v1256, 30
  %v1258 = vshll.u32 %v1257, 30
  %v1259 = vsub.s32 %v1255, %v1258
  %vm1260 = vcmp.lt.s32.totalorder %v1259, 0
  %v1261 = vsub.s32 0, %v1259
  %v1262 = vsel %vm1260, %v1261, %v1259
  %v1263 = vclz %v1262
  %v1264 = vsub.s32 %v1263, 2
  %vm1265 = vcmp.gt.s32.totalorder 0, %v1264
  %v1266 = vsel %vm1265, 0, %v1264
  %v1267 = vsub.s32 32, %v1266
  %v1268 = vshll.u32 %v1259, %v1266
  %v1269 = vshrl.u32 %v1251, %v1267
  %v1270 = vor.u32 %v1268, %v1269
  %v1271 = vsub.s32 4294967266, %v1266
  %v1272 = vadd.s32 %v1271, 127
  %v1273 = vshll.u32 %v1272, 23
  %v1274 = vor.u32 4788187, %v1273
  %v1275 = vand.u32 2147483647, %v1274
  %v1277 = vcvt.s32.f32 %v1270
  %v1278 = vmul.f32 %v1277, %v1275
  %v1279 = vxor.u32 %v1278, 2147483648
  %v1280 = vsel %vm1197, %v1279, %v1278
  %v1281 = vsub.s32 4, %v1257
  %v1282 = vsel %vm1197, %v1281, %v1257
  %v1283 = vsel %vm1196, %v1084, %v1280
  %v1284 = vsel %vm1196, 0, %v1282
  %v1285 = vcosq.f32.pop %v1283
  %v1286 = vsinq.f32.pop %v1283
  %vm1287 = vweird.f32 %v1084
  %v1288 = vadd.s32 %v1284, 3
  %v1289 = vand.u32 %v1288, 3
  %vm1290 = vcmp.lt.s32.totalorder %v1289, 2
  %vm1291 = vcmp.eq.s32.totalorder %v1289, 0
  %v1292 = vxor.u32 %v1286, 2147483648
  %v1293 = vsel %vm1291, %v1285, %v1292
  %vm1294 = vcmp.eq.s32.totalorder %v1289, 2
  %v1295 = vxor.u32 %v1285, 2147483648
  %v1296 = vsel %vm1294, %v1295, %v1286
  %v1297 = vsel %vm1290, %v1293, %v1296
  %v1298 = vsel %vm1287, nan, %v1297
  %v1299 = vand.u32 2147483647, %v1085
  %vm1300 = vcmp.le.f32.partialorder %v1299, 0.7853982
  %vm1301 = vcmp.lt.s32.totalorder %v1085, 0
  %v1302 = vand.u32 %v1085, 2139095040
  %v1303 = vshrl.u32 %v1302, 23
  %v1304 = vsub.s32 %v1303, 127
  %v1305 = vand.u32 2147483647, %v1085
  %v1306 = vand.u32 %v1305, 8388607
  %v1307 = vor.u32 %v1306, 8388608
  %v1308 = vsub.s32 0, %v1307
  %v1309 = vadd.s32 %v1304, 1
  %vm1310 = vcmp.gt.s32.totalorder %v1309, 0
  %v1311 = vsel %vm1310, %v1309, 0
  %v1312 = vshrl.u32 %v1311, 5
  %v1313 = vand.u32 %v1311, 31
  %v1314 = vsub.s32 32, %v1313
  %v1315 = vshrl.u32 683565275, %v1314
  %v1316 = vshll.u32 683565275, %v1313
  %v1317 = vshrl.u32 2475754826, %v1314
  %v1318 = vor.u32 %v1316, %v1317
  %v1319 = vshll.u32 2475754826, %v1313
  %v1320 = vshrl.u32 2131351028, %v1314
  %v1321 = vor.u32 %v1319, %v1320
  %v1322 = vshll.u32 2131351028, %v1313
  %v1323 = vshrl.u32 2102212464, %v1314
  %v1324 = vor.u32 %v1322, %v1323
  %v1325 = vshll.u32 2102212464, %v1313
  %v1326 = vshrl.u32 920167782, %v1314
  %v1327 = vor.u32 %v1325, %v1326
  %v1328 = vshll.u32 920167782, %v1313
  %v1329 = vshrl.u32 1326507024, %v1314
  %v1330 = vor.u32 %v1328, %v1329
  %vm1331 = vcmp.lt.s32.totalorder %v1312, 1
  %vm1332 = vcmp.lt.s32.totalorder %v1312, 2
  %vm1333 = vcmp.lt.s32.totalorder %v1312, 3
  %vm1334 = vcmp.lt.s32.totalorder %v1312, 4
  %v1335 = vsel %vm1331, %v1315, %v1318
  %v1336 = vsel %vm1334, %v1324, 2102212464
  %v1337 = vsel %vm1333, %v1321, %v1336
  %v1338 = vsel %vm1332, %v1335, %v1337
  %v1339 = vsel %vm1331, %v1318, %v1321
  %v1340 = vsel %vm1334, %v1327, 920167782
  %v1341 = vsel %vm1333, %v1324, %v1340
  %v1342 = vsel %vm1332, %v1339, %v1341
  %v1343 = vsel %vm1331, %v1321, %v1324
  %v1344 = vsel %vm1334, %v1330, 1326507024
  %v1345 = vsel %vm1333, %v1327, %v1344
  %v1346 = vsel %vm1332, %v1343, %v1345
  %v1347 = vshll.u32 %v1307, 8
  %v1348 = vmul.u32.u64.compose %v1347, %v1346
  %v1349 = vextract.low.u32 %v1348
  %v1350 = vextract.high.u32 %v1348
  %v1351 = vmul.u32.u64.compose %v1347, %v1342
  %v1352 = vextract.low.u32 %v1351
  %v1353 = vextract.high.u32 %v1351
  %v1354 = vmul.u32 %v1347, %v1338
  %v1355 = vadd.s32 %v1350, %v1352
  %vm1356 = vc.u32 %v1350, %v1352
  %v1357 = vadd.s32 %v1353, 1
  %v1358 = vsel %vm1356, %v1357, %v1353
  %v1359 = vadd.s32 %v1354, %v1358
  %v1360 = vadd.s32 %v1359, 536870912
  %v1361 = vshrl.u32 %v1360, 30
  %v1362 = vshll.u32 %v1361, 30
  %v1363 = vsub.s32 %v1359, %v1362
  %vm1364 = vcmp.lt.s32.totalorder %v1363, 0
  %v1365 = vsub.s32 0, %v1363
  %v1366 = vsel %vm1364, %v1365, %v1363
  %v1367 = vclz %v1366
  %v1368 = vsub.s32 %v1367, 2
  %vm1369 = vcmp.gt.s32.totalorder 0, %v1368
  %v1370 = vsel %vm1369, 0, %v1368
  %v1371 = vsub.s32 32, %v1370
  %v1372 = vshll.u32 %v1363, %v1370
  %v1373 = vshrl.u32 %v1355, %v1371
  %v1374 = vor.u32 %v1372, %v1373
  %v1375 = vsub.s32 4294967266, %v1370
  %v1376 = vadd.s32 %v1375, 127
  %v1377 = vshll.u32 %v1376, 23
  %v1378 = vor.u32 4788187, %v1377
  %v1379 = vand.u32 2147483647, %v1378
  %v1381 = vcvt.s32.f32 %v1374
  %v1382 = vmul.f32 %v1381, %v1379
  %v1383 = vxor.u32 %v1382, 2147483648
  %v1384 = vsel %vm1301, %v1383, %v1382
  %v1385 = vsub.s32 4, %v1361
  %v1386 = vsel %vm1301, %v1385, %v1361
  %v1387 = vsel %vm1300, %v1085, %v1384
  %v1388 = vsel %vm1300, 0, %v1386
  %v1389 = vcosq.f32.pop %v1387
  %v1390 = vsinq.f32.pop %v1387
  %vm1391 = vweird.f32 %v1085
  %v1392 = vadd.s32 %v1388, 3
  %v1393 = vand.u32 %v1392, 3
  %vm1394 = vcmp.lt.s32.totalorder %v1393, 2
  %vm1395 = vcmp.eq.s32.totalorder %v1393, 0
  %v1396 = vxor.u32 %v1390, 2147483648
  %v1397 = vsel %vm1395, %v1389, %v1396
  %vm1398 = vcmp.eq.s32.totalorder %v1393, 2
  %v1399 = vxor.u32 %v1389, 2147483648
  %v1400 = vsel %vm1398, %v1399, %v1390
  %v1401 = vsel %vm1394, %v1397, %v1400
  %v1402 = vsel %vm1391, nan, %v1401
  %v1403 = vand.u32 2147483647, %v1086
  %vm1404 = vcmp.le.f32.partialorder %v1403, 0.7853982
  %vm1405 = vcmp.lt.s32.totalorder %v1086, 0
  %v1406 = vand.u32 %v1086, 2139095040
  %v1407 = vshrl.u32 %v1406, 23
  %v1408 = vsub.s32 %v1407, 127
  %v1409 = vand.u32 2147483647, %v1086
  %v1410 = vand.u32 %v1409, 8388607
  %v1411 = vor.u32 %v1410, 8388608
  %v1412 = vsub.s32 0, %v1411
  %v1413 = vadd.s32 %v1408, 1
  %vm1414 = vcmp.gt.s32.totalorder %v1413, 0
  %v1415 = vsel %vm1414, %v1413, 0
  %v1416 = vshrl.u32 %v1415, 5
  %v1417 = vand.u32 %v1415, 31
  %v1418 = vsub.s32 32, %v1417
  %v1419 = vshrl.u32 683565275, %v1418
  %v1420 = vshll.u32 683565275, %v1417
  %v1421 = vshrl.u32 2475754826, %v1418
  %v1422 = vor.u32 %v1420, %v1421
  %v1423 = vshll.u32 2475754826, %v1417
  %v1424 = vshrl.u32 2131351028, %v1418
  %v1425 = vor.u32 %v1423, %v1424
  %v1426 = vshll.u32 2131351028, %v1417
  %v1427 = vshrl.u32 2102212464, %v1418
  %v1428 = vor.u32 %v1426, %v1427
  %v1429 = vshll.u32 2102212464, %v1417
  %v1430 = vshrl.u32 920167782, %v1418
  %v1431 = vor.u32 %v1429, %v1430
  %v1432 = vshll.u32 920167782, %v1417
  %v1433 = vshrl.u32 1326507024, %v1418
  %v1434 = vor.u32 %v1432, %v1433
  %vm1435 = vcmp.lt.s32.totalorder %v1416, 1
  %vm1436 = vcmp.lt.s32.totalorder %v1416, 2
  %vm1437 = vcmp.lt.s32.totalorder %v1416, 3
  %vm1438 = vcmp.lt.s32.totalorder %v1416, 4
  %v1439 = vsel %vm1435, %v1419, %v1422
  %v1440 = vsel %vm1438, %v1428, 2102212464
  %v1441 = vsel %vm1437, %v1425, %v1440
  %v1442 = vsel %vm1436, %v1439, %v1441
  %v1443 = vsel %vm1435, %v1422, %v1425
  %v1444 = vsel %vm1438, %v1431, 920167782
  %v1445 = vsel %vm1437, %v1428, %v1444
  %v1446 = vsel %vm1436, %v1443, %v1445
  %v1447 = vsel %vm1435, %v1425, %v1428
  %v1448 = vsel %vm1438, %v1434, 1326507024
  %v1449 = vsel %vm1437, %v1431, %v1448
  %v1450 = vsel %vm1436, %v1447, %v1449
  %v1451 = vshll.u32 %v1411, 8
  %v1452 = vmul.u32.u64.compose %v1451, %v1450
  %v1453 = vextract.low.u32 %v1452
  %v1454 = vextract.high.u32 %v1452
  %v1455 = vmul.u32.u64.compose %v1451, %v1446
  %v1456 = vextract.low.u32 %v1455
  %v1457 = vextract.high.u32 %v1455
  %v1458 = vmul.u32 %v1451, %v1442
  %v1459 = vadd.s32 %v1454, %v1456
  %vm1460 = vc.u32 %v1454, %v1456
  %v1461 = vadd.s32 %v1457, 1
  %v1462 = vsel %vm1460, %v1461, %v1457
  %v1463 = vadd.s32 %v1458, %v1462
  %v1464 = vadd.s32 %v1463, 536870912
  %v1465 = vshrl.u32 %v1464, 30
  %v1466 = vshll.u32 %v1465, 30
  %v1467 = vsub.s32 %v1463, %v1466
  %vm1468 = vcmp.lt.s32.totalorder %v1467, 0
  %v1469 = vsub.s32 0, %v1467
  %v1470 = vsel %vm1468, %v1469, %v1467
  %v1471 = vclz %v1470
  %v1472 = vsub.s32 %v1471, 2
  %vm1473 = vcmp.gt.s32.totalorder 0, %v1472
  %v1474 = vsel %vm1473, 0, %v1472
  %v1475 = vsub.s32 32, %v1474
  %v1476 = vshll.u32 %v1467, %v1474
  %v1477 = vshrl.u32 %v1459, %v1475
  %v1478 = vor.u32 %v1476, %v1477
  %v1479 = vsub.s32 4294967266, %v1474
  %v1480 = vadd.s32 %v1479, 127
  %v1481 = vshll.u32 %v1480, 23
  %v1482 = vor.u32 4788187, %v1481
  %v1483 = vand.u32 2147483647, %v1482
  %v1485 = vcvt.s32.f32 %v1478
  %v1486 = vmul.f32 %v1485, %v1483
  %v1487 = vxor.u32 %v1486, 2147483648
  %v1488 = vsel %vm1405, %v1487, %v1486
  %v1489 = vsub.s32 4, %v1465
  %v1490 = vsel %vm1405, %v1489, %v1465
  %v1491 = vsel %vm1404, %v1086, %v1488
  %v1492 = vsel %vm1404, 0, %v1490
  %v1493 = vcosq.f32.pop %v1491
  %v1494 = vsinq.f32.pop %v1491
  %vm1495 = vweird.f32 %v1086
  %v1496 = vadd.s32 %v1492, 3
  %v1497 = vand.u32 %v1496, 3
  %vm1498 = vcmp.lt.s32.totalorder %v1497, 2
  %vm1499 = vcmp.eq.s32.totalorder %v1497, 0
  %v1500 = vxor.u32 %v1494, 2147483648
  %v1501 = vsel %vm1499, %v1493, %v1500
  %vm1502 = vcmp.eq.s32.totalorder %v1497, 2
  %v1503 = vxor.u32 %v1493, 2147483648
  %v1504 = vsel %vm1502, %v1503, %v1494
  %v1505 = vsel %vm1498, %v1501, %v1504
  %v1506 = vsel %vm1495, nan, %v1505
  %v1507 = vand.u32 2147483647, %v1087
  %vm1508 = vcmp.le.f32.partialorder %v1507, 0.7853982
  %vm1509 = vcmp.lt.s32.totalorder %v1087, 0
  %v1510 = vand.u32 %v1087, 2139095040
  %v1511 = vshrl.u32 %v1510, 23
  %v1512 = vsub.s32 %v1511, 127
  %v1513 = vand.u32 2147483647, %v1087
  %v1514 = vand.u32 %v1513, 8388607
  %v1515 = vor.u32 %v1514, 8388608
  %v1516 = vsub.s32 0, %v1515
  %v1517 = vadd.s32 %v1512, 1
  %vm1518 = vcmp.gt.s32.totalorder %v1517, 0
  %v1519 = vsel %vm1518, %v1517, 0
  %v1520 = vshrl.u32 %v1519, 5
  %v1521 = vand.u32 %v1519, 31
  %v1522 = vsub.s32 32, %v1521
  %v1523 = vshrl.u32 683565275, %v1522
  %v1524 = vshll.u32 683565275, %v1521
  %v1525 = vshrl.u32 2475754826, %v1522
  %v1526 = vor.u32 %v1524, %v1525
  %v1527 = vshll.u32 2475754826, %v1521
  %v1528 = vshrl.u32 2131351028, %v1522
  %v1529 = vor.u32 %v1527, %v1528
  %v1530 = vshll.u32 2131351028, %v1521
  %v1531 = vshrl.u32 2102212464, %v1522
  %v1532 = vor.u32 %v1530, %v1531
  %v1533 = vshll.u32 2102212464, %v1521
  %v1534 = vshrl.u32 920167782, %v1522
  %v1535 = vor.u32 %v1533, %v1534
  %v1536 = vshll.u32 920167782, %v1521
  %v1537 = vshrl.u32 1326507024, %v1522
  %v1538 = vor.u32 %v1536, %v1537
  %vm1539 = vcmp.lt.s32.totalorder %v1520, 1
  %vm1540 = vcmp.lt.s32.totalorder %v1520, 2
  %vm1541 = vcmp.lt.s32.totalorder %v1520, 3
  %vm1542 = vcmp.lt.s32.totalorder %v1520, 4
  %v1543 = vsel %vm1539, %v1523, %v1526
  %v1544 = vsel %vm1542, %v1532, 2102212464
  %v1545 = vsel %vm1541, %v1529, %v1544
  %v1546 = vsel %vm1540, %v1543, %v1545
  %v1547 = vsel %vm1539, %v1526, %v1529
  %v1548 = vsel %vm1542, %v1535, 920167782
  %v1549 = vsel %vm1541, %v1532, %v1548
  %v1550 = vsel %vm1540, %v1547, %v1549
  %v1551 = vsel %vm1539, %v1529, %v1532
  %v1552 = vsel %vm1542, %v1538, 1326507024
  %v1553 = vsel %vm1541, %v1535, %v1552
  %v1554 = vsel %vm1540, %v1551, %v1553
  %v1555 = vshll.u32 %v1515, 8
  %v1556 = vmul.u32.u64.compose %v1555, %v1554
  %v1557 = vextract.low.u32 %v1556
  %v1558 = vextract.high.u32 %v1556
  %v1559 = vmul.u32.u64.compose %v1555, %v1550
  %v1560 = vextract.low.u32 %v1559
  %v1561 = vextract.high.u32 %v1559
  %v1562 = vmul.u32 %v1555, %v1546
  %v1563 = vadd.s32 %v1558, %v1560
  %vm1564 = vc.u32 %v1558, %v1560
  %v1565 = vadd.s32 %v1561, 1
  %v1566 = vsel %vm1564, %v1565, %v1561
  %v1567 = vadd.s32 %v1562, %v1566
  %v1568 = vadd.s32 %v1567, 536870912
  %v1569 = vshrl.u32 %v1568, 30
  %v1570 = vshll.u32 %v1569, 30
  %v1571 = vsub.s32 %v1567, %v1570
  %vm1572 = vcmp.lt.s32.totalorder %v1571, 0
  %v1573 = vsub.s32 0, %v1571
  %v1574 = vsel %vm1572, %v1573, %v1571
  %v1575 = vclz %v1574
  %v1576 = vsub.s32 %v1575, 2
  %vm1577 = vcmp.gt.s32.totalorder 0, %v1576
  %v1578 = vsel %vm1577, 0, %v1576
  %v1579 = vsub.s32 32, %v1578
  %v1580 = vshll.u32 %v1571, %v1578
  %v1581 = vshrl.u32 %v1563, %v1579
  %v1582 = vor.u32 %v1580, %v1581
  %v1583 = vsub.s32 4294967266, %v1578
  %v1584 = vadd.s32 %v1583, 127
  %v1585 = vshll.u32 %v1584, 23
  %v1586 = vor.u32 4788187, %v1585
  %v1587 = vand.u32 2147483647, %v1586
  %v1589 = vcvt.s32.f32 %v1582
  %v1590 = vmul.f32 %v1589, %v1587
  %v1591 = vxor.u32 %v1590, 2147483648
  %v1592 = vsel %vm1509, %v1591, %v1590
  %v1593 = vsub.s32 4, %v1569
  %v1594 = vsel %vm1509, %v1593, %v1569
  %v1595 = vsel %vm1508, %v1087, %v1592
  %v1596 = vsel %vm1508, 0, %v1594
  %v1597 = vcosq.f32.pop %v1595
  %v1598 = vsinq.f32.pop %v1595
  %vm1599 = vweird.f32 %v1087
  %v1600 = vadd.s32 %v1596, 3
  %v1601 = vand.u32 %v1600, 3
  %vm1602 = vcmp.lt.s32.totalorder %v1601, 2
  %vm1603 = vcmp.eq.s32.totalorder %v1601, 0
  %v1604 = vxor.u32 %v1598, 2147483648
  %v1605 = vsel %vm1603, %v1597, %v1604
  %vm1606 = vcmp.eq.s32.totalorder %v1601, 2
  %v1607 = vxor.u32 %v1597, 2147483648
  %v1608 = vsel %vm1606, %v1607, %v1598
  %v1609 = vsel %vm1602, %v1605, %v1608
  %v1610 = vsel %vm1599, nan, %v1609
  %v1611 = vand.u32 2147483647, %v1088
  %vm1612 = vcmp.le.f32.partialorder %v1611, 0.7853982
  %vm1613 = vcmp.lt.s32.totalorder %v1088, 0
  %v1614 = vand.u32 %v1088, 2139095040
  %v1615 = vshrl.u32 %v1614, 23
  %v1616 = vsub.s32 %v1615, 127
  %v1617 = vand.u32 2147483647, %v1088
  %v1618 = vand.u32 %v1617, 8388607
  %v1619 = vor.u32 %v1618, 8388608
  %v1620 = vsub.s32 0, %v1619
  %v1621 = vadd.s32 %v1616, 1
  %vm1622 = vcmp.gt.s32.totalorder %v1621, 0
  %v1623 = vsel %vm1622, %v1621, 0
  %v1624 = vshrl.u32 %v1623, 5
  %v1625 = vand.u32 %v1623, 31
  %v1626 = vsub.s32 32, %v1625
  %v1627 = vshrl.u32 683565275, %v1626
  %v1628 = vshll.u32 683565275, %v1625
  %v1629 = vshrl.u32 2475754826, %v1626
  %v1630 = vor.u32 %v1628, %v1629
  %v1631 = vshll.u32 2475754826, %v1625
  %v1632 = vshrl.u32 2131351028, %v1626
  %v1633 = vor.u32 %v1631, %v1632
  %v1634 = vshll.u32 2131351028, %v1625
  %v1635 = vshrl.u32 2102212464, %v1626
  %v1636 = vor.u32 %v1634, %v1635
  %v1637 = vshll.u32 2102212464, %v1625
  %v1638 = vshrl.u32 920167782, %v1626
  %v1639 = vor.u32 %v1637, %v1638
  %v1640 = vshll.u32 920167782, %v1625
  %v1641 = vshrl.u32 1326507024, %v1626
  %v1642 = vor.u32 %v1640, %v1641
  %vm1643 = vcmp.lt.s32.totalorder %v1624, 1
  %vm1644 = vcmp.lt.s32.totalorder %v1624, 2
  %vm1645 = vcmp.lt.s32.totalorder %v1624, 3
  %vm1646 = vcmp.lt.s32.totalorder %v1624, 4
  %v1647 = vsel %vm1643, %v1627, %v1630
  %v1648 = vsel %vm1646, %v1636, 2102212464
  %v1649 = vsel %vm1645, %v1633, %v1648
  %v1650 = vsel %vm1644, %v1647, %v1649
  %v1651 = vsel %vm1643, %v1630, %v1633
  %v1652 = vsel %vm1646, %v1639, 920167782
  %v1653 = vsel %vm1645, %v1636, %v1652
  %v1654 = vsel %vm1644, %v1651, %v1653
  %v1655 = vsel %vm1643, %v1633, %v1636
  %v1656 = vsel %vm1646, %v1642, 1326507024
  %v1657 = vsel %vm1645, %v1639, %v1656
  %v1658 = vsel %vm1644, %v1655, %v1657
  %v1659 = vshll.u32 %v1619, 8
  %v1660 = vmul.u32.u64.compose %v1659, %v1658
  %v1661 = vextract.low.u32 %v1660
  %v1662 = vextract.high.u32 %v1660
  %v1663 = vmul.u32.u64.compose %v1659, %v1654
  %v1664 = vextract.low.u32 %v1663
  %v1665 = vextract.high.u32 %v1663
  %v1666 = vmul.u32 %v1659, %v1650
  %v1667 = vadd.s32 %v1662, %v1664
  %vm1668 = vc.u32 %v1662, %v1664
  %v1669 = vadd.s32 %v1665, 1
  %v1670 = vsel %vm1668, %v1669, %v1665
  %v1671 = vadd.s32 %v1666, %v1670
  %v1672 = vadd.s32 %v1671, 536870912
  %v1673 = vshrl.u32 %v1672, 30
  %v1674 = vshll.u32 %v1673, 30
  %v1675 = vsub.s32 %v1671, %v1674
  %vm1676 = vcmp.lt.s32.totalorder %v1675, 0
  %v1677 = vsub.s32 0, %v1675
  %v1678 = vsel %vm1676, %v1677, %v1675
  %v1679 = vclz %v1678
  %v1680 = vsub.s32 %v1679, 2
  %vm1681 = vcmp.gt.s32.totalorder 0, %v1680
  %v1682 = vsel %vm1681, 0, %v1680
  %v1683 = vsub.s32 32, %v1682
  %v1684 = vshll.u32 %v1675, %v1682
  %v1685 = vshrl.u32 %v1667, %v1683
  %v1686 = vor.u32 %v1684, %v1685
  %v1687 = vsub.s32 4294967266, %v1682
  %v1688 = vadd.s32 %v1687, 127
  %v1689 = vshll.u32 %v1688, 23
  %v1690 = vor.u32 4788187, %v1689
  %v1691 = vand.u32 2147483647, %v1690
  %v1693 = vcvt.s32.f32 %v1686
  %v1694 = vmul.f32 %v1693, %v1691
  %v1695 = vxor.u32 %v1694, 2147483648
  %v1696 = vsel %vm1613, %v1695, %v1694
  %v1697 = vsub.s32 4, %v1673
  %v1698 = vsel %vm1613, %v1697, %v1673
  %v1699 = vsel %vm1612, %v1088, %v1696
  %v1700 = vsel %vm1612, 0, %v1698
  %v1701 = vcosq.f32.pop %v1699
  %v1702 = vsinq.f32.pop %v1699
  %vm1703 = vweird.f32 %v1088
  %v1704 = vadd.s32 %v1700, 3
  %v1705 = vand.u32 %v1704, 3
  %vm1706 = vcmp.lt.s32.totalorder %v1705, 2
  %vm1707 = vcmp.eq.s32.totalorder %v1705, 0
  %v1708 = vxor.u32 %v1702, 2147483648
  %v1709 = vsel %vm1707, %v1701, %v1708
  %vm1710 = vcmp.eq.s32.totalorder %v1705, 2
  %v1711 = vxor.u32 %v1701, 2147483648
  %v1712 = vsel %vm1710, %v1711, %v1702
  %v1713 = vsel %vm1706, %v1709, %v1712
  %v1714 = vsel %vm1703, nan, %v1713
  %v1715 = vand.u32 2147483647, %v1089
  %vm1716 = vcmp.le.f32.partialorder %v1715, 0.7853982
  %vm1717 = vcmp.lt.s32.totalorder %v1089, 0
  %v1718 = vand.u32 %v1089, 2139095040
  %v1719 = vshrl.u32 %v1718, 23
  %v1720 = vsub.s32 %v1719, 127
  %v1721 = vand.u32 2147483647, %v1089
  %v1722 = vand.u32 %v1721, 8388607
  %v1723 = vor.u32 %v1722, 8388608
  %v1724 = vsub.s32 0, %v1723
  %v1725 = vadd.s32 %v1720, 1
  %vm1726 = vcmp.gt.s32.totalorder %v1725, 0
  %v1727 = vsel %vm1726, %v1725, 0
  %v1728 = vshrl.u32 %v1727, 5
  %v1729 = vand.u32 %v1727, 31
  %v1730 = vsub.s32 32, %v1729
  %v1731 = vshrl.u32 683565275, %v1730
  %v1732 = vshll.u32 683565275, %v1729
  %v1733 = vshrl.u32 2475754826, %v1730
  %v1734 = vor.u32 %v1732, %v1733
  %v1735 = vshll.u32 2475754826, %v1729
  %v1736 = vshrl.u32 2131351028, %v1730
  %v1737 = vor.u32 %v1735, %v1736
  %v1738 = vshll.u32 2131351028, %v1729
  %v1739 = vshrl.u32 2102212464, %v1730
  %v1740 = vor.u32 %v1738, %v1739
  %v1741 = vshll.u32 2102212464, %v1729
  %v1742 = vshrl.u32 920167782, %v1730
  %v1743 = vor.u32 %v1741, %v1742
  %v1744 = vshll.u32 920167782, %v1729
  %v1745 = vshrl.u32 1326507024, %v1730
  %v1746 = vor.u32 %v1744, %v1745
  %vm1747 = vcmp.lt.s32.totalorder %v1728, 1
  %vm1748 = vcmp.lt.s32.totalorder %v1728, 2
  %vm1749 = vcmp.lt.s32.totalorder %v1728, 3
  %vm1750 = vcmp.lt.s32.totalorder %v1728, 4
  %v1751 = vsel %vm1747, %v1731, %v1734
  %v1752 = vsel %vm1750, %v1740, 2102212464
  %v1753 = vsel %vm1749, %v1737, %v1752
  %v1754 = vsel %vm1748, %v1751, %v1753
  %v1755 = vsel %vm1747, %v1734, %v1737
  %v1756 = vsel %vm1750, %v1743, 920167782
  %v1757 = vsel %vm1749, %v1740, %v1756
  %v1758 = vsel %vm1748, %v1755, %v1757
  %v1759 = vsel %vm1747, %v1737, %v1740
  %v1760 = vsel %vm1750, %v1746, 1326507024
  %v1761 = vsel %vm1749, %v1743, %v1760
  %v1762 = vsel %vm1748, %v1759, %v1761
  %v1763 = vshll.u32 %v1723, 8
  %v1764 = vmul.u32.u64.compose %v1763, %v1762
  %v1765 = vextract.low.u32 %v1764
  %v1766 = vextract.high.u32 %v1764
  %v1767 = vmul.u32.u64.compose %v1763, %v1758
  %v1768 = vextract.low.u32 %v1767
  %v1769 = vextract.high.u32 %v1767
  %v1770 = vmul.u32 %v1763, %v1754
  %v1771 = vadd.s32 %v1766, %v1768
  %vm1772 = vc.u32 %v1766, %v1768
  %v1773 = vadd.s32 %v1769, 1
  %v1774 = vsel %vm1772, %v1773, %v1769
  %v1775 = vadd.s32 %v1770, %v1774
  %v1776 = vadd.s32 %v1775, 536870912
  %v1777 = vshrl.u32 %v1776, 30
  %v1778 = vshll.u32 %v1777, 30
  %v1779 = vsub.s32 %v1775, %v1778
  %vm1780 = vcmp.lt.s32.totalorder %v1779, 0
  %v1781 = vsub.s32 0, %v1779
  %v1782 = vsel %vm1780, %v1781, %v1779
  %v1783 = vclz %v1782
  %v1784 = vsub.s32 %v1783, 2
  %vm1785 = vcmp.gt.s32.totalorder 0, %v1784
  %v1786 = vsel %vm1785, 0, %v1784
  %v1787 = vsub.s32 32, %v1786
  %v1788 = vshll.u32 %v1779, %v1786
  %v1789 = vshrl.u32 %v1771, %v1787
  %v1790 = vor.u32 %v1788, %v1789
  %v1791 = vsub.s32 4294967266, %v1786
  %v1792 = vadd.s32 %v1791, 127
  %v1793 = vshll.u32 %v1792, 23
  %v1794 = vor.u32 4788187, %v1793
  %v1795 = vand.u32 2147483647, %v1794
  %v1797 = vcvt.s32.f32 %v1790
  %v1798 = vmul.f32 %v1797, %v1795
  %v1799 = vxor.u32 %v1798, 2147483648
  %v1800 = vsel %vm1717, %v1799, %v1798
  %v1801 = vsub.s32 4, %v1777
  %v1802 = vsel %vm1717, %v1801, %v1777
  %v1803 = vsel %vm1716, %v1089, %v1800
  %v1804 = vsel %vm1716, 0, %v1802
  %v1805 = vcosq.f32.pop %v1803
  %v1806 = vsinq.f32.pop %v1803
  %vm1807 = vweird.f32 %v1089
  %v1808 = vadd.s32 %v1804, 3
  %v1809 = vand.u32 %v1808, 3
  %vm1810 = vcmp.lt.s32.totalorder %v1809, 2
  %vm1811 = vcmp.eq.s32.totalorder %v1809, 0
  %v1812 = vxor.u32 %v1806, 2147483648
  %v1813 = vsel %vm1811, %v1805, %v1812
  %vm1814 = vcmp.eq.s32.totalorder %v1809, 2
  %v1815 = vxor.u32 %v1805, 2147483648
  %v1816 = vsel %vm1814, %v1815, %v1806
  %v1817 = vsel %vm1810, %v1813, %v1816
  %v1818 = vsel %vm1807, nan, %v1817
  %v1819 = vand.u32 2147483647, %v1090
  %vm1820 = vcmp.le.f32.partialorder %v1819, 0.7853982
  %vm1821 = vcmp.lt.s32.totalorder %v1090, 0
  %v1822 = vand.u32 %v1090, 2139095040
  %v1823 = vshrl.u32 %v1822, 23
  %v1824 = vsub.s32 %v1823, 127
  %v1825 = vand.u32 2147483647, %v1090
  %v1826 = vand.u32 %v1825, 8388607
  %v1827 = vor.u32 %v1826, 8388608
  %v1828 = vsub.s32 0, %v1827
  %v1829 = vadd.s32 %v1824, 1
  %vm1830 = vcmp.gt.s32.totalorder %v1829, 0
  %v1831 = vsel %vm1830, %v1829, 0
  %v1832 = vshrl.u32 %v1831, 5
  %v1833 = vand.u32 %v1831, 31
  %v1834 = vsub.s32 32, %v1833
  %v1835 = vshrl.u32 683565275, %v1834
  %v1836 = vshll.u32 683565275, %v1833
  %v1837 = vshrl.u32 2475754826, %v1834
  %v1838 = vor.u32 %v1836, %v1837
  %v1839 = vshll.u32 2475754826, %v1833
  %v1840 = vshrl.u32 2131351028, %v1834
  %v1841 = vor.u32 %v1839, %v1840
  %v1842 = vshll.u32 2131351028, %v1833
  %v1843 = vshrl.u32 2102212464, %v1834
  %v1844 = vor.u32 %v1842, %v1843
  %v1845 = vshll.u32 2102212464, %v1833
  %v1846 = vshrl.u32 920167782, %v1834
  %v1847 = vor.u32 %v1845, %v1846
  %v1848 = vshll.u32 920167782, %v1833
  %v1849 = vshrl.u32 1326507024, %v1834
  %v1850 = vor.u32 %v1848, %v1849
  %vm1851 = vcmp.lt.s32.totalorder %v1832, 1
  %vm1852 = vcmp.lt.s32.totalorder %v1832, 2
  %vm1853 = vcmp.lt.s32.totalorder %v1832, 3
  %vm1854 = vcmp.lt.s32.totalorder %v1832, 4
  %v1855 = vsel %vm1851, %v1835, %v1838
  %v1856 = vsel %vm1854, %v1844, 2102212464
  %v1857 = vsel %vm1853, %v1841, %v1856
  %v1858 = vsel %vm1852, %v1855, %v1857
  %v1859 = vsel %vm1851, %v1838, %v1841
  %v1860 = vsel %vm1854, %v1847, 920167782
  %v1861 = vsel %vm1853, %v1844, %v1860
  %v1862 = vsel %vm1852, %v1859, %v1861
  %v1863 = vsel %vm1851, %v1841, %v1844
  %v1864 = vsel %vm1854, %v1850, 1326507024
  %v1865 = vsel %vm1853, %v1847, %v1864
  %v1866 = vsel %vm1852, %v1863, %v1865
  %v1867 = vshll.u32 %v1827, 8
  %v1868 = vmul.u32.u64.compose %v1867, %v1866
  %v1869 = vextract.low.u32 %v1868
  %v1870 = vextract.high.u32 %v1868
  %v1871 = vmul.u32.u64.compose %v1867, %v1862
  %v1872 = vextract.low.u32 %v1871
  %v1873 = vextract.high.u32 %v1871
  %v1874 = vmul.u32 %v1867, %v1858
  %v1875 = vadd.s32 %v1870, %v1872
  %vm1876 = vc.u32 %v1870, %v1872
  %v1877 = vadd.s32 %v1873, 1
  %v1878 = vsel %vm1876, %v1877, %v1873
  %v1879 = vadd.s32 %v1874, %v1878
  %v1880 = vadd.s32 %v1879, 536870912
  %v1881 = vshrl.u32 %v1880, 30
  %v1882 = vshll.u32 %v1881, 30
  %v1883 = vsub.s32 %v1879, %v1882
  %vm1884 = vcmp.lt.s32.totalorder %v1883, 0
  %v1885 = vsub.s32 0, %v1883
  %v1886 = vsel %vm1884, %v1885, %v1883
  %v1887 = vclz %v1886
  %v1888 = vsub.s32 %v1887, 2
  %vm1889 = vcmp.gt.s32.totalorder 0, %v1888
  %v1890 = vsel %vm1889, 0, %v1888
  %v1891 = vsub.s32 32, %v1890
  %v1892 = vshll.u32 %v1883, %v1890
  %v1893 = vshrl.u32 %v1875, %v1891
  %v1894 = vor.u32 %v1892, %v1893
  %v1895 = vsub.s32 4294967266, %v1890
  %v1896 = vadd.s32 %v1895, 127
  %v1897 = vshll.u32 %v1896, 23
  %v1898 = vor.u32 4788187, %v1897
  %v1899 = vand.u32 2147483647, %v1898
  %v1901 = vcvt.s32.f32 %v1894
  %v1902 = vmul.f32 %v1901, %v1899
  %v1903 = vxor.u32 %v1902, 2147483648
  %v1904 = vsel %vm1821, %v1903, %v1902
  %v1905 = vsub.s32 4, %v1881
  %v1906 = vsel %vm1821, %v1905, %v1881
  %v1907 = vsel %vm1820, %v1090, %v1904
  %v1908 = vsel %vm1820, 0, %v1906
  %v1909 = vcosq.f32.pop %v1907
  %v1910 = vsinq.f32.pop %v1907
  %vm1911 = vweird.f32 %v1090
  %v1912 = vadd.s32 %v1908, 3
  %v1913 = vand.u32 %v1912, 3
  %vm1914 = vcmp.lt.s32.totalorder %v1913, 2
  %vm1915 = vcmp.eq.s32.totalorder %v1913, 0
  %v1916 = vxor.u32 %v1910, 2147483648
  %v1917 = vsel %vm1915, %v1909, %v1916
  %vm1918 = vcmp.eq.s32.totalorder %v1913, 2
  %v1919 = vxor.u32 %v1909, 2147483648
  %v1920 = vsel %vm1918, %v1919, %v1910
  %v1921 = vsel %vm1914, %v1917, %v1920
  %v1922 = vsel %vm1911, nan, %v1921
  %1923 = vst.msk [vmem:[#allocation2 + $0x40] sm:$0xff] %vm1074, %v1194
  %1924 = vst.msk [vmem:[#allocation2 + $0x48] sm:$0xff] %vm1074, %v1298
  %1925 = vst.msk [vmem:[#allocation2 + $0x50] sm:$0xff] %vm1074, %v1402
  %1926 = vst.msk [vmem:[#allocation2 + $0x58] sm:$0xff] %vm1074, %v1506
  %1927 = vst.msk [vmem:[#allocation2 + $0x60] sm:$0xff] %vm1074, %v1610
  %1928 = vst.msk [vmem:[#allocation2 + $0x68] sm:$0xff] %vm1074, %v1714
  %1929 = vst.msk [vmem:[#allocation2 + $0x70] sm:$0xff] %vm1074, %v1818
  %1930 = vst.msk [vmem:[#allocation2 + $0x78] sm:$0xff] %vm1074, %v1922
  %v1931 = vadd.f32 %v176, %v225
  %v1932 = vand.u32 2147483647, %v1931
  %vm1933 = vcmp.le.f32.partialorder %v1932, 0.7853982
  %vm1934 = vcmp.lt.s32.totalorder %v1931, 0
  %v1935 = vand.u32 %v1931, 2139095040
  %v1936 = vshrl.u32 %v1935, 23
  %v1937 = vsub.s32 %v1936, 127
  %v1938 = vand.u32 2147483647, %v1931
  %v1939 = vand.u32 %v1938, 8388607
  %v1940 = vor.u32 %v1939, 8388608
  %v1941 = vsub.s32 0, %v1940
  %v1942 = vadd.s32 %v1937, 1
  %vm1943 = vcmp.gt.s32.totalorder %v1942, 0
  %v1944 = vsel %vm1943, %v1942, 0
  %v1945 = vshrl.u32 %v1944, 5
  %v1946 = vand.u32 %v1944, 31
  %v1947 = vsub.s32 32, %v1946
  %v1948 = vshrl.u32 683565275, %v1947
  %v1949 = vshll.u32 683565275, %v1946
  %v1950 = vshrl.u32 2475754826, %v1947
  %v1951 = vor.u32 %v1949, %v1950
  %v1952 = vshll.u32 2475754826, %v1946
  %v1953 = vshrl.u32 2131351028, %v1947
  %v1954 = vor.u32 %v1952, %v1953
  %v1955 = vshll.u32 2131351028, %v1946
  %v1956 = vshrl.u32 2102212464, %v1947
  %v1957 = vor.u32 %v1955, %v1956
  %v1958 = vshll.u32 2102212464, %v1946
  %v1959 = vshrl.u32 920167782, %v1947
  %v1960 = vor.u32 %v1958, %v1959
  %v1961 = vshll.u32 920167782, %v1946
  %v1962 = vshrl.u32 1326507024, %v1947
  %v1963 = vor.u32 %v1961, %v1962
  %vm1964 = vcmp.lt.s32.totalorder %v1945, 1
  %vm1965 = vcmp.lt.s32.totalorder %v1945, 2
  %vm1966 = vcmp.lt.s32.totalorder %v1945, 3
  %vm1967 = vcmp.lt.s32.totalorder %v1945, 4
  %v1968 = vsel %vm1964, %v1948, %v1951
  %v1969 = vsel %vm1967, %v1957, 2102212464
  %v1970 = vsel %vm1966, %v1954, %v1969
  %v1971 = vsel %vm1965, %v1968, %v1970
  %v1972 = vsel %vm1964, %v1951, %v1954
  %v1973 = vsel %vm1967, %v1960, 920167782
  %v1974 = vsel %vm1966, %v1957, %v1973
  %v1975 = vsel %vm1965, %v1972, %v1974
  %v1976 = vsel %vm1964, %v1954, %v1957
  %v1977 = vsel %vm1967, %v1963, 1326507024
  %v1978 = vsel %vm1966, %v1960, %v1977
  %v1979 = vsel %vm1965, %v1976, %v1978
  %v1980 = vshll.u32 %v1940, 8
  %v1981 = vmul.u32.u64.compose %v1980, %v1979
  %v1982 = vextract.low.u32 %v1981
  %v1983 = vextract.high.u32 %v1981
  %v1984 = vmul.u32.u64.compose %v1980, %v1975
  %v1985 = vextract.low.u32 %v1984
  %v1986 = vextract.high.u32 %v1984
  %v1987 = vmul.u32 %v1980, %v1971
  %v1988 = vadd.s32 %v1983, %v1985
  %vm1989 = vc.u32 %v1983, %v1985
  %v1990 = vadd.s32 %v1986, 1
  %v1991 = vsel %vm1989, %v1990, %v1986
  %v1992 = vadd.s32 %v1987, %v1991
  %v1993 = vadd.s32 %v1992, 536870912
  %v1994 = vshrl.u32 %v1993, 30
  %v1995 = vshll.u32 %v1994, 30
  %v1996 = vsub.s32 %v1992, %v1995
  %vm1997 = vcmp.lt.s32.totalorder %v1996, 0
  %v1998 = vsub.s32 0, %v1996
  %v1999 = vsel %vm1997, %v1998, %v1996
  %v2000 = vclz %v1999
  %v2001 = vsub.s32 %v2000, 2
  %vm2002 = vcmp.gt.s32.totalorder 0, %v2001
  %v2003 = vsel %vm2002, 0, %v2001
  %v2004 = vsub.s32 32, %v2003
  %v2005 = vshll.u32 %v1996, %v2003
  %v2006 = vshrl.u32 %v1988, %v2004
  %v2007 = vor.u32 %v2005, %v2006
  %v2008 = vsub.s32 4294967266, %v2003
  %v2009 = vadd.s32 %v2008, 127
  %v2010 = vshll.u32 %v2009, 23
  %v2011 = vor.u32 4788187, %v2010
  %v2012 = vand.u32 2147483647, %v2011
  %v2014 = vcvt.s32.f32 %v2007
  %v2015 = vmul.f32 %v2014, %v2012
  %v2016 = vxor.u32 %v2015, 2147483648
  %v2017 = vsel %vm1934, %v2016, %v2015
  %v2018 = vsub.s32 4, %v1994
  %v2019 = vsel %vm1934, %v2018, %v1994
  %v2020 = vsel %vm1933, %v1931, %v2017
  %v2021 = vsel %vm1933, 0, %v2019
  %v2022 = vcosq.f32.pop %v2020
  %v2023 = vsinq.f32.pop %v2020
  %vm2024 = vweird.f32 %v1931
  %v2025 = vadd.s32 %v2021, 3
  %v2026 = vand.u32 %v2025, 3
  %vm2027 = vcmp.lt.s32.totalorder %v2026, 2
  %vm2028 = vcmp.eq.s32.totalorder %v2026, 0
  %v2029 = vxor.u32 %v2023, 2147483648
  %v2030 = vsel %vm2028, %v2022, %v2029
  %vm2031 = vcmp.eq.s32.totalorder %v2026, 2
  %v2032 = vxor.u32 %v2022, 2147483648
  %v2033 = vsel %vm2031, %v2032, %v2023
  %v2034 = vsel %vm2027, %v2030, %v2033
  %v2035 = vsel %vm2024, nan, %v2034
  %2036 = vst.msk [vmem:[#allocation2 + $0x80] sm:$0xff] %vm1074, %v2035
  %v2037 = vsub.f32 %v189, %v225
  %v2038 = vand.u32 2147483647, %v2037
  %vm2039 = vcmp.le.f32.partialorder %v2038, 0.7853982
  %vm2040 = vcmp.lt.s32.totalorder %v2037, 0
  %v2041 = vand.u32 %v2037, 2139095040
  %v2042 = vshrl.u32 %v2041, 23
  %v2043 = vsub.s32 %v2042, 127
  %v2044 = vand.u32 2147483647, %v2037
  %v2045 = vand.u32 %v2044, 8388607
  %v2046 = vor.u32 %v2045, 8388608
  %v2047 = vsub.s32 0, %v2046
  %v2048 = vadd.s32 %v2043, 1
  %vm2049 = vcmp.gt.s32.totalorder %v2048, 0
  %v2050 = vsel %vm2049, %v2048, 0
  %v2051 = vshrl.u32 %v2050, 5
  %v2052 = vand.u32 %v2050, 31
  %v2053 = vsub.s32 32, %v2052
  %v2054 = vshrl.u32 683565275, %v2053
  %v2055 = vshll.u32 683565275, %v2052
  %v2056 = vshrl.u32 2475754826, %v2053
  %v2057 = vor.u32 %v2055, %v2056
  %v2058 = vshll.u32 2475754826, %v2052
  %v2059 = vshrl.u32 2131351028, %v2053
  %v2060 = vor.u32 %v2058, %v2059
  %v2061 = vshll.u32 2131351028, %v2052
  %v2062 = vshrl.u32 2102212464, %v2053
  %v2063 = vor.u32 %v2061, %v2062
  %v2064 = vshll.u32 2102212464, %v2052
  %v2065 = vshrl.u32 920167782, %v2053
  %v2066 = vor.u32 %v2064, %v2065
  %v2067 = vshll.u32 920167782, %v2052
  %v2068 = vshrl.u32 1326507024, %v2053
  %v2069 = vor.u32 %v2067, %v2068
  %vm2070 = vcmp.lt.s32.totalorder %v2051, 1
  %vm2071 = vcmp.lt.s32.totalorder %v2051, 2
  %vm2072 = vcmp.lt.s32.totalorder %v2051, 3
  %vm2073 = vcmp.lt.s32.totalorder %v2051, 4
  %v2074 = vsel %vm2070, %v2054, %v2057
  %v2075 = vsel %vm2073, %v2063, 2102212464
  %v2076 = vsel %vm2072, %v2060, %v2075
  %v2077 = vsel %vm2071, %v2074, %v2076
  %v2078 = vsel %vm2070, %v2057, %v2060
  %v2079 = vsel %vm2073, %v2066, 920167782
  %v2080 = vsel %vm2072, %v2063, %v2079
  %v2081 = vsel %vm2071, %v2078, %v2080
  %v2082 = vsel %vm2070, %v2060, %v2063
  %v2083 = vsel %vm2073, %v2069, 1326507024
  %v2084 = vsel %vm2072, %v2066, %v2083
  %v2085 = vsel %vm2071, %v2082, %v2084
  %v2086 = vshll.u32 %v2046, 8
  %v2087 = vmul.u32.u64.compose %v2086, %v2085
  %v2088 = vextract.low.u32 %v2087
  %v2089 = vextract.high.u32 %v2087
  %v2090 = vmul.u32.u64.compose %v2086, %v2081
  %v2091 = vextract.low.u32 %v2090
  %v2092 = vextract.high.u32 %v2090
  %v2093 = vmul.u32 %v2086, %v2077
  %v2094 = vadd.s32 %v2089, %v2091
  %vm2095 = vc.u32 %v2089, %v2091
  %v2096 = vadd.s32 %v2092, 1
  %v2097 = vsel %vm2095, %v2096, %v2092
  %v2098 = vadd.s32 %v2093, %v2097
  %v2099 = vadd.s32 %v2098, 536870912
  %v2100 = vshrl.u32 %v2099, 30
  %v2101 = vshll.u32 %v2100, 30
  %v2102 = vsub.s32 %v2098, %v2101
  %vm2103 = vcmp.lt.s32.totalorder %v2102, 0
  %v2104 = vsub.s32 0, %v2102
  %v2105 = vsel %vm2103, %v2104, %v2102
  %v2106 = vclz %v2105
  %v2107 = vsub.s32 %v2106, 2
  %vm2108 = vcmp.gt.s32.totalorder 0, %v2107
  %v2109 = vsel %vm2108, 0, %v2107
  %v2110 = vsub.s32 32, %v2109
  %v2111 = vshll.u32 %v2102, %v2109
  %v2112 = vshrl.u32 %v2094, %v2110
  %v2113 = vor.u32 %v2111, %v2112
  %v2114 = vsub.s32 4294967266, %v2109
  %v2115 = vadd.s32 %v2114, 127
  %v2116 = vshll.u32 %v2115, 23
  %v2117 = vor.u32 4788187, %v2116
  %v2118 = vand.u32 2147483647, %v2117
  %v2120 = vcvt.s32.f32 %v2113
  %v2121 = vmul.f32 %v2120, %v2118
  %v2122 = vxor.u32 %v2121, 2147483648
  %v2123 = vsel %vm2040, %v2122, %v2121
  %v2124 = vsub.s32 4, %v2100
  %v2125 = vsel %vm2040, %v2124, %v2100
  %v2126 = vsel %vm2039, %v2037, %v2123
  %v2127 = vsel %vm2039, 0, %v2125
  %v2128 = vcosq.f32.pop %v2126
  %v2129 = vsinq.f32.pop %v2126
  %vm2130 = vweird.f32 %v2037
  %v2131 = vadd.s32 %v2127, 3
  %v2132 = vand.u32 %v2131, 3
  %vm2133 = vcmp.lt.s32.totalorder %v2132, 2
  %vm2134 = vcmp.eq.s32.totalorder %v2132, 0
  %v2135 = vxor.u32 %v2129, 2147483648
  %v2136 = vsel %vm2134, %v2128, %v2135
  %vm2137 = vcmp.eq.s32.totalorder %v2132, 2
  %v2138 = vxor.u32 %v2128, 2147483648
  %v2139 = vsel %vm2137, %v2138, %v2129
  %v2140 = vsel %vm2133, %v2136, %v2139
  %v2141 = vsel %vm2130, nan, %v2140
  %2142 = vst.msk [vmem:[#allocation2 + $0x88] sm:$0xff] %vm1074, %v2141
  %v2143 = vmul.f32 %v29, 0.25
  %v2144 = vlaneseq
  %v2145 = vshrl.u32 %v2144, 7
  %v2146 = vsub.s32 2, %v2145
  %v2147 = vrot.slane %v2143, %v2146
  %v2148 = vadd.f32 %v176, %v2147
  %v2149 = vand.u32 2147483647, %v2148
  %vm2150 = vcmp.le.f32.partialorder %v2149, 0.7853982
  %vm2151 = vcmp.lt.s32.totalorder %v2148, 0
  %v2152 = vand.u32 %v2148, 2139095040
  %v2153 = vshrl.u32 %v2152, 23
  %v2154 = vsub.s32 %v2153, 127
  %v2155 = vand.u32 2147483647, %v2148
  %v2156 = vand.u32 %v2155, 8388607
  %v2157 = vor.u32 %v2156, 8388608
  %v2158 = vsub.s32 0, %v2157
  %v2159 = vadd.s32 %v2154, 1
  %vm2160 = vcmp.gt.s32.totalorder %v2159, 0
  %v2161 = vsel %vm2160, %v2159, 0
  %v2162 = vshrl.u32 %v2161, 5
  %v2163 = vand.u32 %v2161, 31
  %v2164 = vsub.s32 32, %v2163
  %v2165 = vshrl.u32 683565275, %v2164
  %v2166 = vshll.u32 683565275, %v2163
  %v2167 = vshrl.u32 2475754826, %v2164
  %v2168 = vor.u32 %v2166, %v2167
  %v2169 = vshll.u32 2475754826, %v2163
  %v2170 = vshrl.u32 2131351028, %v2164
  %v2171 = vor.u32 %v2169, %v2170
  %v2172 = vshll.u32 2131351028, %v2163
  %v2173 = vshrl.u32 2102212464, %v2164
  %v2174 = vor.u32 %v2172, %v2173
  %v2175 = vshll.u32 2102212464, %v2163
  %v2176 = vshrl.u32 920167782, %v2164
  %v2177 = vor.u32 %v2175, %v2176
  %v2178 = vshll.u32 920167782, %v2163
  %v2179 = vshrl.u32 1326507024, %v2164
  %v2180 = vor.u32 %v2178, %v2179
  %vm2181 = vcmp.lt.s32.totalorder %v2162, 1
  %vm2182 = vcmp.lt.s32.totalorder %v2162, 2
  %vm2183 = vcmp.lt.s32.totalorder %v2162, 3
  %vm2184 = vcmp.lt.s32.totalorder %v2162, 4
  %v2185 = vsel %vm2181, %v2165, %v2168
  %v2186 = vsel %vm2184, %v2174, 2102212464
  %v2187 = vsel %vm2183, %v2171, %v2186
  %v2188 = vsel %vm2182, %v2185, %v2187
  %v2189 = vsel %vm2181, %v2168, %v2171
  %v2190 = vsel %vm2184, %v2177, 920167782
  %v2191 = vsel %vm2183, %v2174, %v2190
  %v2192 = vsel %vm2182, %v2189, %v2191
  %v2193 = vsel %vm2181, %v2171, %v2174
  %v2194 = vsel %vm2184, %v2180, 1326507024
  %v2195 = vsel %vm2183, %v2177, %v2194
  %v2196 = vsel %vm2182, %v2193, %v2195
  %v2197 = vshll.u32 %v2157, 8
  %v2198 = vmul.u32.u64.compose %v2197, %v2196
  %v2199 = vextract.low.u32 %v2198
  %v2200 = vextract.high.u32 %v2198
  %v2201 = vmul.u32.u64.compose %v2197, %v2192
  %v2202 = vextract.low.u32 %v2201
  %v2203 = vextract.high.u32 %v2201
  %v2204 = vmul.u32 %v2197, %v2188
  %v2205 = vadd.s32 %v2200, %v2202
  %vm2206 = vc.u32 %v2200, %v2202
  %v2207 = vadd.s32 %v2203, 1
  %v2208 = vsel %vm2206, %v2207, %v2203
  %v2209 = vadd.s32 %v2204, %v2208
  %v2210 = vadd.s32 %v2209, 536870912
  %v2211 = vshrl.u32 %v2210, 30
  %v2212 = vshll.u32 %v2211, 30
  %v2213 = vsub.s32 %v2209, %v2212
  %vm2214 = vcmp.lt.s32.totalorder %v2213, 0
  %v2215 = vsub.s32 0, %v2213
  %v2216 = vsel %vm2214, %v2215, %v2213
  %v2217 = vclz %v2216
  %v2218 = vsub.s32 %v2217, 2
  %vm2219 = vcmp.gt.s32.totalorder 0, %v2218
  %v2220 = vsel %vm2219, 0, %v2218
  %v2221 = vsub.s32 32, %v2220
  %v2222 = vshll.u32 %v2213, %v2220
  %v2223 = vshrl.u32 %v2205, %v2221
  %v2224 = vor.u32 %v2222, %v2223
  %v2225 = vsub.s32 4294967266, %v2220
  %v2226 = vadd.s32 %v2225, 127
  %v2227 = vshll.u32 %v2226, 23
  %v2228 = vor.u32 4788187, %v2227
  %v2229 = vand.u32 2147483647, %v2228
  %v2231 = vcvt.s32.f32 %v2224
  %v2232 = vmul.f32 %v2231, %v2229
  %v2233 = vxor.u32 %v2232, 2147483648
  %v2234 = vsel %vm2151, %v2233, %v2232
  %v2235 = vsub.s32 4, %v2211
  %v2236 = vsel %vm2151, %v2235, %v2211
  %v2237 = vsel %vm2150, %v2148, %v2234
  %v2238 = vsel %vm2150, 0, %v2236
  %v2239 = vcosq.f32.pop %v2237
  %v2240 = vsinq.f32.pop %v2237
  %vm2241 = vweird.f32 %v2148
  %v2242 = vadd.s32 %v2238, 3
  %v2243 = vand.u32 %v2242, 3
  %vm2244 = vcmp.lt.s32.totalorder %v2243, 2
  %vm2245 = vcmp.eq.s32.totalorder %v2243, 0
  %v2246 = vxor.u32 %v2240, 2147483648
  %v2247 = vsel %vm2245, %v2239, %v2246
  %vm2248 = vcmp.eq.s32.totalorder %v2243, 2
  %v2249 = vxor.u32 %v2239, 2147483648
  %v2250 = vsel %vm2248, %v2249, %v2240
  %v2251 = vsel %vm2244, %v2247, %v2250
  %v2252 = vsel %vm2241, nan, %v2251
  %2253 = vst.msk [vmem:[#allocation2 + $0x90] sm:$0xff] %vm1074, %v2252
  %v2254 = vmul.f32 %v29, -0.75
  %v2255 = vlaneseq
  %v2256 = vshrl.u32 %v2255, 7
  %v2257 = vsub.s32 2, %v2256
  %v2258 = vrot.slane %v2254, %v2257
  %v2259 = vadd.f32 %v189, %v2258
  %v2260 = vand.u32 2147483647, %v2259
  %vm2261 = vcmp.le.f32.partialorder %v2260, 0.7853982
  %vm2262 = vcmp.lt.s32.totalorder %v2259, 0
  %v2263 = vand.u32 %v2259, 2139095040
  %v2264 = vshrl.u32 %v2263, 23
  %v2265 = vsub.s32 %v2264, 127
  %v2266 = vand.u32 2147483647, %v2259
  %v2267 = vand.u32 %v2266, 8388607
  %v2268 = vor.u32 %v2267, 8388608
  %v2269 = vsub.s32 0, %v2268
  %v2270 = vadd.s32 %v2265, 1
  %vm2271 = vcmp.gt.s32.totalorder %v2270, 0
  %v2272 = vsel %vm2271, %v2270, 0
  %v2273 = vshrl.u32 %v2272, 5
  %v2274 = vand.u32 %v2272, 31
  %v2275 = vsub.s32 32, %v2274
  %v2276 = vshrl.u32 683565275, %v2275
  %v2277 = vshll.u32 683565275, %v2274
  %v2278 = vshrl.u32 2475754826, %v2275
  %v2279 = vor.u32 %v2277, %v2278
  %v2280 = vshll.u32 2475754826, %v2274
  %v2281 = vshrl.u32 2131351028, %v2275
  %v2282 = vor.u32 %v2280, %v2281
  %v2283 = vshll.u32 2131351028, %v2274
  %v2284 = vshrl.u32 2102212464, %v2275
  %v2285 = vor.u32 %v2283, %v2284
  %v2286 = vshll.u32 2102212464, %v2274
  %v2287 = vshrl.u32 920167782, %v2275
  %v2288 = vor.u32 %v2286, %v2287
  %v2289 = vshll.u32 920167782, %v2274
  %v2290 = vshrl.u32 1326507024, %v2275
  %v2291 = vor.u32 %v2289, %v2290
  %vm2292 = vcmp.lt.s32.totalorder %v2273, 1
  %vm2293 = vcmp.lt.s32.totalorder %v2273, 2
  %vm2294 = vcmp.lt.s32.totalorder %v2273, 3
  %vm2295 = vcmp.lt.s32.totalorder %v2273, 4
  %v2296 = vsel %vm2292, %v2276, %v2279
  %v2297 = vsel %vm2295, %v2285, 2102212464
  %v2298 = vsel %vm2294, %v2282, %v2297
  %v2299 = vsel %vm2293, %v2296, %v2298
  %v2300 = vsel %vm2292, %v2279, %v2282
  %v2301 = vsel %vm2295, %v2288, 920167782
  %v2302 = vsel %vm2294, %v2285, %v2301
  %v2303 = vsel %vm2293, %v2300, %v2302
  %v2304 = vsel %vm2292, %v2282, %v2285
  %v2305 = vsel %vm2295, %v2291, 1326507024
  %v2306 = vsel %vm2294, %v2288, %v2305
  %v2307 = vsel %vm2293, %v2304, %v2306
  %v2308 = vshll.u32 %v2268, 8
  %v2309 = vmul.u32.u64.compose %v2308, %v2307
  %v2310 = vextract.low.u32 %v2309
  %v2311 = vextract.high.u32 %v2309
  %v2312 = vmul.u32.u64.compose %v2308, %v2303
  %v2313 = vextract.low.u32 %v2312
  %v2314 = vextract.high.u32 %v2312
  %v2315 = vmul.u32 %v2308, %v2299
  %v2316 = vadd.s32 %v2311, %v2313
  %vm2317 = vc.u32 %v2311, %v2313
  %v2318 = vadd.s32 %v2314, 1
  %v2319 = vsel %vm2317, %v2318, %v2314
  %v2320 = vadd.s32 %v2315, %v2319
  %v2321 = vadd.s32 %v2320, 536870912
  %v2322 = vshrl.u32 %v2321, 30
  %v2323 = vshll.u32 %v2322, 30
  %v2324 = vsub.s32 %v2320, %v2323
  %vm2325 = vcmp.lt.s32.totalorder %v2324, 0
  %v2326 = vsub.s32 0, %v2324
  %v2327 = vsel %vm2325, %v2326, %v2324
  %v2328 = vclz %v2327
  %v2329 = vsub.s32 %v2328, 2
  %vm2330 = vcmp.gt.s32.totalorder 0, %v2329
  %v2331 = vsel %vm2330, 0, %v2329
  %v2332 = vsub.s32 32, %v2331
  %v2333 = vshll.u32 %v2324, %v2331
  %v2334 = vshrl.u32 %v2316, %v2332
  %v2335 = vor.u32 %v2333, %v2334
  %v2336 = vsub.s32 4294967266, %v2331
  %v2337 = vadd.s32 %v2336, 127
  %v2338 = vshll.u32 %v2337, 23
  %v2339 = vor.u32 4788187, %v2338
  %v2340 = vand.u32 2147483647, %v2339
  %v2342 = vcvt.s32.f32 %v2335
  %v2343 = vmul.f32 %v2342, %v2340
  %v2344 = vxor.u32 %v2343, 2147483648
  %v2345 = vsel %vm2262, %v2344, %v2343
  %v2346 = vsub.s32 4, %v2322
  %v2347 = vsel %vm2262, %v2346, %v2322
  %v2348 = vsel %vm2261, %v2259, %v2345
  %v2349 = vsel %vm2261, 0, %v2347
  %v2350 = vcosq.f32.pop %v2348
  %v2351 = vsinq.f32.pop %v2348
  %vm2352 = vweird.f32 %v2259
  %v2353 = vadd.s32 %v2349, 3
  %v2354 = vand.u32 %v2353, 3
  %vm2355 = vcmp.lt.s32.totalorder %v2354, 2
  %vm2356 = vcmp.eq.s32.totalorder %v2354, 0
  %v2357 = vxor.u32 %v2351, 2147483648
  %v2358 = vsel %vm2356, %v2350, %v2357
  %vm2359 = vcmp.eq.s32.totalorder %v2354, 2
  %v2360 = vxor.u32 %v2350, 2147483648
  %v2361 = vsel %vm2359, %v2360, %v2351
  %v2362 = vsel %vm2355, %v2358, %v2361
  %v2363 = vsel %vm2352, nan, %v2362
  %2364 = vst.msk [vmem:[#allocation2 + $0x98] sm:$0xff] %vm1074, %v2363
  %v2365 = vmul.f32 %v29, 0.5
  %v2366 = vlaneseq
  %v2367 = vshrl.u32 %v2366, 7
  %v2368 = vsub.s32 2, %v2367
  %v2369 = vrot.slane %v2365, %v2368
  %v2370 = vadd.f32 %v176, %v2369
  %v2371 = vand.u32 2147483647, %v2370
  %vm2372 = vcmp.le.f32.partialorder %v2371, 0.7853982
  %vm2373 = vcmp.lt.s32.totalorder %v2370, 0
  %v2374 = vand.u32 %v2370, 2139095040
  %v2375 = vshrl.u32 %v2374, 23
  %v2376 = vsub.s32 %v2375, 127
  %v2377 = vand.u32 2147483647, %v2370
  %v2378 = vand.u32 %v2377, 8388607
  %v2379 = vor.u32 %v2378, 8388608
  %v2380 = vsub.s32 0, %v2379
  %v2381 = vadd.s32 %v2376, 1
  %vm2382 = vcmp.gt.s32.totalorder %v2381, 0
  %v2383 = vsel %vm2382, %v2381, 0
  %v2384 = vshrl.u32 %v2383, 5
  %v2385 = vand.u32 %v2383, 31
  %v2386 = vsub.s32 32, %v2385
  %v2387 = vshrl.u32 683565275, %v2386
  %v2388 = vshll.u32 683565275, %v2385
  %v2389 = vshrl.u32 2475754826, %v2386
  %v2390 = vor.u32 %v2388, %v2389
  %v2391 = vshll.u32 2475754826, %v2385
  %v2392 = vshrl.u32 2131351028, %v2386
  %v2393 = vor.u32 %v2391, %v2392
  %v2394 = vshll.u32 2131351028, %v2385
  %v2395 = vshrl.u32 2102212464, %v2386
  %v2396 = vor.u32 %v2394, %v2395
  %v2397 = vshll.u32 2102212464, %v2385
  %v2398 = vshrl.u32 920167782, %v2386
  %v2399 = vor.u32 %v2397, %v2398
  %v2400 = vshll.u32 920167782, %v2385
  %v2401 = vshrl.u32 1326507024, %v2386
  %v2402 = vor.u32 %v2400, %v2401
  %vm2403 = vcmp.lt.s32.totalorder %v2384, 1
  %vm2404 = vcmp.lt.s32.totalorder %v2384, 2
  %vm2405 = vcmp.lt.s32.totalorder %v2384, 3
  %vm2406 = vcmp.lt.s32.totalorder %v2384, 4
  %v2407 = vsel %vm2403, %v2387, %v2390
  %v2408 = vsel %vm2406, %v2396, 2102212464
  %v2409 = vsel %vm2405, %v2393, %v2408
  %v2410 = vsel %vm2404, %v2407, %v2409
  %v2411 = vsel %vm2403, %v2390, %v2393
  %v2412 = vsel %vm2406, %v2399, 920167782
  %v2413 = vsel %vm2405, %v2396, %v2412
  %v2414 = vsel %vm2404, %v2411, %v2413
  %v2415 = vsel %vm2403, %v2393, %v2396
  %v2416 = vsel %vm2406, %v2402, 1326507024
  %v2417 = vsel %vm2405, %v2399, %v2416
  %v2418 = vsel %vm2404, %v2415, %v2417
  %v2419 = vshll.u32 %v2379, 8
  %v2420 = vmul.u32.u64.compose %v2419, %v2418
  %v2421 = vextract.low.u32 %v2420
  %v2422 = vextract.high.u32 %v2420
  %v2423 = vmul.u32.u64.compose %v2419, %v2414
  %v2424 = vextract.low.u32 %v2423
  %v2425 = vextract.high.u32 %v2423
  %v2426 = vmul.u32 %v2419, %v2410
  %v2427 = vadd.s32 %v2422, %v2424
  %vm2428 = vc.u32 %v2422, %v2424
  %v2429 = vadd.s32 %v2425, 1
  %v2430 = vsel %vm2428, %v2429, %v2425
  %v2431 = vadd.s32 %v2426, %v2430
  %v2432 = vadd.s32 %v2431, 536870912
  %v2433 = vshrl.u32 %v2432, 30
  %v2434 = vshll.u32 %v2433, 30
  %v2435 = vsub.s32 %v2431, %v2434
  %vm2436 = vcmp.lt.s32.totalorder %v2435, 0
  %v2437 = vsub.s32 0, %v2435
  %v2438 = vsel %vm2436, %v2437, %v2435
  %v2439 = vclz %v2438
  %v2440 = vsub.s32 %v2439, 2
  %vm2441 = vcmp.gt.s32.totalorder 0, %v2440
  %v2442 = vsel %vm2441, 0, %v2440
  %v2443 = vsub.s32 32, %v2442
  %v2444 = vshll.u32 %v2435, %v2442
  %v2445 = vshrl.u32 %v2427, %v2443
  %v2446 = vor.u32 %v2444, %v2445
  %v2447 = vsub.s32 4294967266, %v2442
  %v2448 = vadd.s32 %v2447, 127
  %v2449 = vshll.u32 %v2448, 23
  %v2450 = vor.u32 4788187, %v2449
  %v2451 = vand.u32 2147483647, %v2450
  %v2453 = vcvt.s32.f32 %v2446
  %v2454 = vmul.f32 %v2453, %v2451
  %v2455 = vxor.u32 %v2454, 2147483648
  %v2456 = vsel %vm2373, %v2455, %v2454
  %v2457 = vsub.s32 4, %v2433
  %v2458 = vsel %vm2373, %v2457, %v2433
  %v2459 = vsel %vm2372, %v2370, %v2456
  %v2460 = vsel %vm2372, 0, %v2458
  %v2461 = vcosq.f32.pop %v2459
  %v2462 = vsinq.f32.pop %v2459
  %vm2463 = vweird.f32 %v2370
  %v2464 = vadd.s32 %v2460, 3
  %v2465 = vand.u32 %v2464, 3
  %vm2466 = vcmp.lt.s32.totalorder %v2465, 2
  %vm2467 = vcmp.eq.s32.totalorder %v2465, 0
  %v2468 = vxor.u32 %v2462, 2147483648
  %v2469 = vsel %vm2467, %v2461, %v2468
  %vm2470 = vcmp.eq.s32.totalorder %v2465, 2
  %v2471 = vxor.u32 %v2461, 2147483648
  %v2472 = vsel %vm2470, %v2471, %v2462
  %v2473 = vsel %vm2466, %v2469, %v2472
  %v2474 = vsel %vm2463, nan, %v2473
  %2475 = vst.msk [vmem:[#allocation2 + $0xa0] sm:$0xff] %vm1074, %v2474
  %v2476 = vmul.f32 %v29, -0.5
  %v2477 = vlaneseq
  %v2478 = vshrl.u32 %v2477, 7
  %v2479 = vsub.s32 2, %v2478
  %v2480 = vrot.slane %v2476, %v2479
  %v2481 = vadd.f32 %v189, %v2480
  %v2482 = vand.u32 2147483647, %v2481
  %vm2483 = vcmp.le.f32.partialorder %v2482, 0.7853982
  %vm2484 = vcmp.lt.s32.totalorder %v2481, 0
  %v2485 = vand.u32 %v2481, 2139095040
  %v2486 = vshrl.u32 %v2485, 23
  %v2487 = vsub.s32 %v2486, 127
  %v2488 = vand.u32 2147483647, %v2481
  %v2489 = vand.u32 %v2488, 8388607
  %v2490 = vor.u32 %v2489, 8388608
  %v2491 = vsub.s32 0, %v2490
  %v2492 = vadd.s32 %v2487, 1
  %vm2493 = vcmp.gt.s32.totalorder %v2492, 0
  %v2494 = vsel %vm2493, %v2492, 0
  %v2495 = vshrl.u32 %v2494, 5
  %v2496 = vand.u32 %v2494, 31
  %v2497 = vsub.s32 32, %v2496
  %v2498 = vshrl.u32 683565275, %v2497
  %v2499 = vshll.u32 683565275, %v2496
  %v2500 = vshrl.u32 2475754826, %v2497
  %v2501 = vor.u32 %v2499, %v2500
  %v2502 = vshll.u32 2475754826, %v2496
  %v2503 = vshrl.u32 2131351028, %v2497
  %v2504 = vor.u32 %v2502, %v2503
  %v2505 = vshll.u32 2131351028, %v2496
  %v2506 = vshrl.u32 2102212464, %v2497
  %v2507 = vor.u32 %v2505, %v2506
  %v2508 = vshll.u32 2102212464, %v2496
  %v2509 = vshrl.u32 920167782, %v2497
  %v2510 = vor.u32 %v2508, %v2509
  %v2511 = vshll.u32 920167782, %v2496
  %v2512 = vshrl.u32 1326507024, %v2497
  %v2513 = vor.u32 %v2511, %v2512
  %vm2514 = vcmp.lt.s32.totalorder %v2495, 1
  %vm2515 = vcmp.lt.s32.totalorder %v2495, 2
  %vm2516 = vcmp.lt.s32.totalorder %v2495, 3
  %vm2517 = vcmp.lt.s32.totalorder %v2495, 4
  %v2518 = vsel %vm2514, %v2498, %v2501
  %v2519 = vsel %vm2517, %v2507, 2102212464
  %v2520 = vsel %vm2516, %v2504, %v2519
  %v2521 = vsel %vm2515, %v2518, %v2520
  %v2522 = vsel %vm2514, %v2501, %v2504
  %v2523 = vsel %vm2517, %v2510, 920167782
  %v2524 = vsel %vm2516, %v2507, %v2523
  %v2525 = vsel %vm2515, %v2522, %v2524
  %v2526 = vsel %vm2514, %v2504, %v2507
  %v2527 = vsel %vm2517, %v2513, 1326507024
  %v2528 = vsel %vm2516, %v2510, %v2527
  %v2529 = vsel %vm2515, %v2526, %v2528
  %v2530 = vshll.u32 %v2490, 8
  %v2531 = vmul.u32.u64.compose %v2530, %v2529
  %v2532 = vextract.low.u32 %v2531
  %v2533 = vextract.high.u32 %v2531
  %v2534 = vmul.u32.u64.compose %v2530, %v2525
  %v2535 = vextract.low.u32 %v2534
  %v2536 = vextract.high.u32 %v2534
  %v2537 = vmul.u32 %v2530, %v2521
  %v2538 = vadd.s32 %v2533, %v2535
  %vm2539 = vc.u32 %v2533, %v2535
  %v2540 = vadd.s32 %v2536, 1
  %v2541 = vsel %vm2539, %v2540, %v2536
  %v2542 = vadd.s32 %v2537, %v2541
  %v2543 = vadd.s32 %v2542, 536870912
  %v2544 = vshrl.u32 %v2543, 30
  %v2545 = vshll.u32 %v2544, 30
  %v2546 = vsub.s32 %v2542, %v2545
  %vm2547 = vcmp.lt.s32.totalorder %v2546, 0
  %v2548 = vsub.s32 0, %v2546
  %v2549 = vsel %vm2547, %v2548, %v2546
  %v2550 = vclz %v2549
  %v2551 = vsub.s32 %v2550, 2
  %vm2552 = vcmp.gt.s32.totalorder 0, %v2551
  %v2553 = vsel %vm2552, 0, %v2551
  %v2554 = vsub.s32 32, %v2553
  %v2555 = vshll.u32 %v2546, %v2553
  %v2556 = vshrl.u32 %v2538, %v2554
  %v2557 = vor.u32 %v2555, %v2556
  %v2558 = vsub.s32 4294967266, %v2553
  %v2559 = vadd.s32 %v2558, 127
  %v2560 = vshll.u32 %v2559, 23
  %v2561 = vor.u32 4788187, %v2560
  %v2562 = vand.u32 2147483647, %v2561
  %v2564 = vcvt.s32.f32 %v2557
  %v2565 = vmul.f32 %v2564, %v2562
  %v2566 = vxor.u32 %v2565, 2147483648
  %v2567 = vsel %vm2484, %v2566, %v2565
  %v2568 = vsub.s32 4, %v2544
  %v2569 = vsel %vm2484, %v2568, %v2544
  %v2570 = vsel %vm2483, %v2481, %v2567
  %v2571 = vsel %vm2483, 0, %v2569
  %v2572 = vcosq.f32.pop %v2570
  %v2573 = vsinq.f32.pop %v2570
  %vm2574 = vweird.f32 %v2481
  %v2575 = vadd.s32 %v2571, 3
  %v2576 = vand.u32 %v2575, 3
  %vm2577 = vcmp.lt.s32.totalorder %v2576, 2
  %vm2578 = vcmp.eq.s32.totalorder %v2576, 0
  %v2579 = vxor.u32 %v2573, 2147483648
  %v2580 = vsel %vm2578, %v2572, %v2579
  %vm2581 = vcmp.eq.s32.totalorder %v2576, 2
  %v2582 = vxor.u32 %v2572, 2147483648
  %v2583 = vsel %vm2581, %v2582, %v2573
  %v2584 = vsel %vm2577, %v2580, %v2583
  %v2585 = vsel %vm2574, nan, %v2584
  %2586 = vst.msk [vmem:[#allocation2 + $0xa8] sm:$0xff] %vm1074, %v2585
  %v2587 = vmul.f32 %v29, 0.75
  %v2588 = vlaneseq
  %v2589 = vshrl.u32 %v2588, 7
  %v2590 = vsub.s32 2, %v2589
  %v2591 = vrot.slane %v2587, %v2590
  %v2592 = vadd.f32 %v176, %v2591
  %v2593 = vand.u32 2147483647, %v2592
  %vm2594 = vcmp.le.f32.partialorder %v2593, 0.7853982
  %vm2595 = vcmp.lt.s32.totalorder %v2592, 0
  %v2596 = vand.u32 %v2592, 2139095040
  %v2597 = vshrl.u32 %v2596, 23
  %v2598 = vsub.s32 %v2597, 127
  %v2599 = vand.u32 2147483647, %v2592
  %v2600 = vand.u32 %v2599, 8388607
  %v2601 = vor.u32 %v2600, 8388608
  %v2602 = vsub.s32 0, %v2601
  %v2603 = vadd.s32 %v2598, 1
  %vm2604 = vcmp.gt.s32.totalorder %v2603, 0
  %v2605 = vsel %vm2604, %v2603, 0
  %v2606 = vshrl.u32 %v2605, 5
  %v2607 = vand.u32 %v2605, 31
  %v2608 = vsub.s32 32, %v2607
  %v2609 = vshrl.u32 683565275, %v2608
  %v2610 = vshll.u32 683565275, %v2607
  %v2611 = vshrl.u32 2475754826, %v2608
  %v2612 = vor.u32 %v2610, %v2611
  %v2613 = vshll.u32 2475754826, %v2607
  %v2614 = vshrl.u32 2131351028, %v2608
  %v2615 = vor.u32 %v2613, %v2614
  %v2616 = vshll.u32 2131351028, %v2607
  %v2617 = vshrl.u32 2102212464, %v2608
  %v2618 = vor.u32 %v2616, %v2617
  %v2619 = vshll.u32 2102212464, %v2607
  %v2620 = vshrl.u32 920167782, %v2608
  %v2621 = vor.u32 %v2619, %v2620
  %v2622 = vshll.u32 920167782, %v2607
  %v2623 = vshrl.u32 1326507024, %v2608
  %v2624 = vor.u32 %v2622, %v2623
  %vm2625 = vcmp.lt.s32.totalorder %v2606, 1
  %vm2626 = vcmp.lt.s32.totalorder %v2606, 2
  %vm2627 = vcmp.lt.s32.totalorder %v2606, 3
  %vm2628 = vcmp.lt.s32.totalorder %v2606, 4
  %v2629 = vsel %vm2625, %v2609, %v2612
  %v2630 = vsel %vm2628, %v2618, 2102212464
  %v2631 = vsel %vm2627, %v2615, %v2630
  %v2632 = vsel %vm2626, %v2629, %v2631
  %v2633 = vsel %vm2625, %v2612, %v2615
  %v2634 = vsel %vm2628, %v2621, 920167782
  %v2635 = vsel %vm2627, %v2618, %v2634
  %v2636 = vsel %vm2626, %v2633, %v2635
  %v2637 = vsel %vm2625, %v2615, %v2618
  %v2638 = vsel %vm2628, %v2624, 1326507024
  %v2639 = vsel %vm2627, %v2621, %v2638
  %v2640 = vsel %vm2626, %v2637, %v2639
  %v2641 = vshll.u32 %v2601, 8
  %v2642 = vmul.u32.u64.compose %v2641, %v2640
  %v2643 = vextract.low.u32 %v2642
  %v2644 = vextract.high.u32 %v2642
  %v2645 = vmul.u32.u64.compose %v2641, %v2636
  %v2646 = vextract.low.u32 %v2645
  %v2647 = vextract.high.u32 %v2645
  %v2648 = vmul.u32 %v2641, %v2632
  %v2649 = vadd.s32 %v2644, %v2646
  %vm2650 = vc.u32 %v2644, %v2646
  %v2651 = vadd.s32 %v2647, 1
  %v2652 = vsel %vm2650, %v2651, %v2647
  %v2653 = vadd.s32 %v2648, %v2652
  %v2654 = vadd.s32 %v2653, 536870912
  %v2655 = vshrl.u32 %v2654, 30
  %v2656 = vshll.u32 %v2655, 30
  %v2657 = vsub.s32 %v2653, %v2656
  %vm2658 = vcmp.lt.s32.totalorder %v2657, 0
  %v2659 = vsub.s32 0, %v2657
  %v2660 = vsel %vm2658, %v2659, %v2657
  %v2661 = vclz %v2660
  %v2662 = vsub.s32 %v2661, 2
  %vm2663 = vcmp.gt.s32.totalorder 0, %v2662
  %v2664 = vsel %vm2663, 0, %v2662
  %v2665 = vsub.s32 32, %v2664
  %v2666 = vshll.u32 %v2657, %v2664
  %v2667 = vshrl.u32 %v2649, %v2665
  %v2668 = vor.u32 %v2666, %v2667
  %v2669 = vsub.s32 4294967266, %v2664
  %v2670 = vadd.s32 %v2669, 127
  %v2671 = vshll.u32 %v2670, 23
  %v2672 = vor.u32 4788187, %v2671
  %v2673 = vand.u32 2147483647, %v2672
  %v2675 = vcvt.s32.f32 %v2668
  %v2676 = vmul.f32 %v2675, %v2673
  %v2677 = vxor.u32 %v2676, 2147483648
  %v2678 = vsel %vm2595, %v2677, %v2676
  %v2679 = vsub.s32 4, %v2655
  %v2680 = vsel %vm2595, %v2679, %v2655
  %v2681 = vsel %vm2594, %v2592, %v2678
  %v2682 = vsel %vm2594, 0, %v2680
  %v2683 = vcosq.f32.pop %v2681
  %v2684 = vsinq.f32.pop %v2681
  %vm2685 = vweird.f32 %v2592
  %v2686 = vadd.s32 %v2682, 3
  %v2687 = vand.u32 %v2686, 3
  %vm2688 = vcmp.lt.s32.totalorder %v2687, 2
  %vm2689 = vcmp.eq.s32.totalorder %v2687, 0
  %v2690 = vxor.u32 %v2684, 2147483648
  %v2691 = vsel %vm2689, %v2683, %v2690
  %vm2692 = vcmp.eq.s32.totalorder %v2687, 2
  %v2693 = vxor.u32 %v2683, 2147483648
  %v2694 = vsel %vm2692, %v2693, %v2684
  %v2695 = vsel %vm2688, %v2691, %v2694
  %v2696 = vsel %vm2685, nan, %v2695
  %2697 = vst.msk [vmem:[#allocation2 + $0xb0] sm:$0xff] %vm1074, %v2696
  %v2698 = vmul.f32 %v29, -0.25
  %v2699 = vlaneseq
  %v2700 = vshrl.u32 %v2699, 7
  %v2701 = vsub.s32 2, %v2700
  %v2702 = vrot.slane %v2698, %v2701
  %v2703 = vadd.f32 %v189, %v2702
  %v2704 = vand.u32 2147483647, %v2703
  %vm2705 = vcmp.le.f32.partialorder %v2704, 0.7853982
  %vm2706 = vcmp.lt.s32.totalorder %v2703, 0
  %v2707 = vand.u32 %v2703, 2139095040
  %v2708 = vshrl.u32 %v2707, 23
  %v2709 = vsub.s32 %v2708, 127
  %v2710 = vand.u32 2147483647, %v2703
  %v2711 = vand.u32 %v2710, 8388607
  %v2712 = vor.u32 %v2711, 8388608
  %v2713 = vsub.s32 0, %v2712
  %v2714 = vadd.s32 %v2709, 1
  %vm2715 = vcmp.gt.s32.totalorder %v2714, 0
  %v2716 = vsel %vm2715, %v2714, 0
  %v2717 = vshrl.u32 %v2716, 5
  %v2718 = vand.u32 %v2716, 31
  %v2719 = vsub.s32 32, %v2718
  %v2720 = vshrl.u32 683565275, %v2719
  %v2721 = vshll.u32 683565275, %v2718
  %v2722 = vshrl.u32 2475754826, %v2719
  %v2723 = vor.u32 %v2721, %v2722
  %v2724 = vshll.u32 2475754826, %v2718
  %v2725 = vshrl.u32 2131351028, %v2719
  %v2726 = vor.u32 %v2724, %v2725
  %v2727 = vshll.u32 2131351028, %v2718
  %v2728 = vshrl.u32 2102212464, %v2719
  %v2729 = vor.u32 %v2727, %v2728
  %v2730 = vshll.u32 2102212464, %v2718
  %v2731 = vshrl.u32 920167782, %v2719
  %v2732 = vor.u32 %v2730, %v2731
  %v2733 = vshll.u32 920167782, %v2718
  %v2734 = vshrl.u32 1326507024, %v2719
  %v2735 = vor.u32 %v2733, %v2734
  %vm2736 = vcmp.lt.s32.totalorder %v2717, 1
  %vm2737 = vcmp.lt.s32.totalorder %v2717, 2
  %vm2738 = vcmp.lt.s32.totalorder %v2717, 3
  %vm2739 = vcmp.lt.s32.totalorder %v2717, 4
  %v2740 = vsel %vm2736, %v2720, %v2723
  %v2741 = vsel %vm2739, %v2729, 2102212464
  %v2742 = vsel %vm2738, %v2726, %v2741
  %v2743 = vsel %vm2737, %v2740, %v2742
  %v2744 = vsel %vm2736, %v2723, %v2726
  %v2745 = vsel %vm2739, %v2732, 920167782
  %v2746 = vsel %vm2738, %v2729, %v2745
  %v2747 = vsel %vm2737, %v2744, %v2746
  %v2748 = vsel %vm2736, %v2726, %v2729
  %v2749 = vsel %vm2739, %v2735, 1326507024
  %v2750 = vsel %vm2738, %v2732, %v2749
  %v2751 = vsel %vm2737, %v2748, %v2750
  %v2752 = vshll.u32 %v2712, 8
  %v2753 = vmul.u32.u64.compose %v2752, %v2751
  %v2754 = vextract.low.u32 %v2753
  %v2755 = vextract.high.u32 %v2753
  %v2756 = vmul.u32.u64.compose %v2752, %v2747
  %v2757 = vextract.low.u32 %v2756
  %v2758 = vextract.high.u32 %v2756
  %v2759 = vmul.u32 %v2752, %v2743
  %v2760 = vadd.s32 %v2755, %v2757
  %vm2761 = vc.u32 %v2755, %v2757
  %v2762 = vadd.s32 %v2758, 1
  %v2763 = vsel %vm2761, %v2762, %v2758
  %v2764 = vadd.s32 %v2759, %v2763
  %v2765 = vadd.s32 %v2764, 536870912
  %v2766 = vshrl.u32 %v2765, 30
  %v2767 = vshll.u32 %v2766, 30
  %v2768 = vsub.s32 %v2764, %v2767
  %vm2769 = vcmp.lt.s32.totalorder %v2768, 0
  %v2770 = vsub.s32 0, %v2768
  %v2771 = vsel %vm2769, %v2770, %v2768
  %v2772 = vclz %v2771
  %v2773 = vsub.s32 %v2772, 2
  %vm2774 = vcmp.gt.s32.totalorder 0, %v2773
  %v2775 = vsel %vm2774, 0, %v2773
  %v2776 = vsub.s32 32, %v2775
  %v2777 = vshll.u32 %v2768, %v2775
  %v2778 = vshrl.u32 %v2760, %v2776
  %v2779 = vor.u32 %v2777, %v2778
  %v2780 = vsub.s32 4294967266, %v2775
  %v2781 = vadd.s32 %v2780, 127
  %v2782 = vshll.u32 %v2781, 23
  %v2783 = vor.u32 4788187, %v2782
  %v2784 = vand.u32 2147483647, %v2783
  %v2786 = vcvt.s32.f32 %v2779
  %v2787 = vmul.f32 %v2786, %v2784
  %v2788 = vxor.u32 %v2787, 2147483648
  %v2789 = vsel %vm2706, %v2788, %v2787
  %v2790 = vsub.s32 4, %v2766
  %v2791 = vsel %vm2706, %v2790, %v2766
  %v2792 = vsel %vm2705, %v2703, %v2789
  %v2793 = vsel %vm2705, 0, %v2791
  %v2794 = vcosq.f32.pop %v2792
  %v2795 = vsinq.f32.pop %v2792
  %vm2796 = vweird.f32 %v2703
  %v2797 = vadd.s32 %v2793, 3
  %v2798 = vand.u32 %v2797, 3
  %vm2799 = vcmp.lt.s32.totalorder %v2798, 2
  %vm2800 = vcmp.eq.s32.totalorder %v2798, 0
  %v2801 = vxor.u32 %v2795, 2147483648
  %v2802 = vsel %vm2800, %v2794, %v2801
  %vm2803 = vcmp.eq.s32.totalorder %v2798, 2
  %v2804 = vxor.u32 %v2794, 2147483648
  %v2805 = vsel %vm2803, %v2804, %v2795
  %v2806 = vsel %vm2799, %v2802, %v2805
  %v2807 = vsel %vm2796, nan, %v2806
  %2808 = vst.msk [vmem:[#allocation2 + $0xb8] sm:$0xff] %vm1074, %v2807
  %v2809 = vld [vmem:[#allocation2] sm:$0xff]
  %v2810 = vld [vmem:[#allocation2 + $0x8] sm:$0xff]
  %v2811 = vld [vmem:[#allocation2 + $0x10] sm:$0xff]
  %v2812 = vld [vmem:[#allocation2 + $0x18] sm:$0xff]
  %v2813 = vld [vmem:[#allocation2 + $0x20] sm:$0xff]
  %v2814 = vld [vmem:[#allocation2 + $0x28] sm:$0xff]
  %v2815 = vld [vmem:[#allocation2 + $0x30] sm:$0xff]
  %v2816 = vld [vmem:[#allocation2 + $0x38] sm:$0xff]
  %v2817 = vld [vmem:[#allocation2 + $0x40] sm:$0xff]
  %v2818 = vld [vmem:[#allocation2 + $0x48] sm:$0xff]
  %v2819 = vld [vmem:[#allocation2 + $0x50] sm:$0xff]
  %v2820 = vld [vmem:[#allocation2 + $0x58] sm:$0xff]
  %v2821 = vld [vmem:[#allocation2 + $0x60] sm:$0xff]
  %v2822 = vld [vmem:[#allocation2 + $0x68] sm:$0xff]
  %v2823 = vld [vmem:[#allocation2 + $0x70] sm:$0xff]
  %v2824 = vld [vmem:[#allocation2 + $0x78] sm:$0xff]
  %v2825 = vld [vmem:[#allocation2 + $0x80] sm:$0xff]
  %v2826 = vld [vmem:[#allocation2 + $0x88] sm:$0xff]
  %v2827 = vld [vmem:[#allocation2 + $0x90] sm:$0xff]
  %v2828 = vld [vmem:[#allocation2 + $0x98] sm:$0xff]
  %v2829 = vld [vmem:[#allocation2 + $0xa0] sm:$0xff]
  %v2830 = vld [vmem:[#allocation2 + $0xa8] sm:$0xff]
  %v2831 = vld [vmem:[#allocation2 + $0xb0] sm:$0xff]
  %v2832 = vld [vmem:[#allocation2 + $0xb8] sm:$0xff]
  %v2834 = vlaneseq
  %v2835 = vshrl.u32 %v2834, 7
  %v2836 = vsub.s32 0, %v2835
  %v2837 = vrot.slane %v35, %v2836
  %v2840 = vsel %vm1074, %v2809, 0
  %v2843 = vsel %vm1074, %v2810, 0
  %v2846 = vsel %vm1074, %v2811, 0
  %v2849 = vsel %vm1074, %v2812, 0
  %v2852 = vsel %vm1074, %v2813, 0
  %v2855 = vsel %vm1074, %v2814, 0
  %v2858 = vsel %vm1074, %v2815, 0
  %v2861 = vsel %vm1074, %v2816, 0
  %v2864 = vsel %vm1074, %v2817, 0
  %v2867 = vsel %vm1074, %v2818, 0
  %v2870 = vsel %vm1074, %v2819, 0
  %v2873 = vsel %vm1074, %v2820, 0
  %v2876 = vsel %vm1074, %v2821, 0
  %v2879 = vsel %vm1074, %v2822, 0
  %v2882 = vsel %vm1074, %v2823, 0
  %v2885 = vsel %vm1074, %v2824, 0
  %v2888 = vsel %vm1074, %v2825, 0
  %v2891 = vsel %vm1074, %v2826, 0
  %v2894 = vsel %vm1074, %v2827, 0
  %v2897 = vsel %vm1074, %v2828, 0
  %v2900 = vsel %vm1074, %v2829, 0
  %v2903 = vsel %vm1074, %v2830, 0
  %v2906 = vsel %vm1074, %v2831, 0
  %v2909 = vsel %vm1074, %v2832, 0
  %2911 = vmatprep.subr.mxu0 0.0
  %2912 = vmatpush1.msra.mxu0 %v31
  %2913 = vmatprep.subr.mxu0 0.0
  %2914 = vmatpush1.msra.mxu0 %v32
  %2915 = vmatprep.subr.mxu0 0.0
  %2916 = vmatpush1.msra.mxu0 %v33
  %2917 = vmatprep.subr.mxu0 0.0
  %2918 = vmatpush1.msra.mxu0 %v34
  %2919 = vmatprep.subr.mxu0 0.0
  %2920 = vmatpush1.msra.mxu0 0.0
  %2921 = vmatprep.subr.mxu0 0.0
  %2922 = vmatpush1.msra.mxu0 0.0
  %2923 = vmatprep.subr.mxu0 0.0
  %2924 = vmatpush1.msra.mxu0 0.0
  %2925 = vmatprep.subr.mxu0 0.0
  %2926 = vmatpush1.msra.mxu0 0.0
  %2927 = vmatprep.subr.mxu0 0.0
  %2928 = vmatpush1.msra.mxu0 0.0
  %2929 = vmatprep.subr.mxu0 0.0
  %2930 = vmatpush1.msra.mxu0 0.0
  %2931 = vmatprep.subr.mxu0 0.0
  %2932 = vmatpush1.msra.mxu0 0.0
  %2933 = vmatprep.subr.mxu0 0.0
  %2934 = vmatpush1.msra.mxu0 0.0
  %2935 = vmatprep.subr.mxu0 0.0
  %2936 = vmatpush1.msra.mxu0 0.0
  %2937 = vmatprep.subr.mxu0 0.0
  %2938 = vmatpush1.msra.mxu0 0.0
  %2939 = vmatprep.subr.mxu0 0.0
  %2940 = vmatpush1.msra.mxu0 0.0
  %2941 = vmatprep.subr.mxu0 0.0
  %2942 = vmatpush1.msra.mxu0 0.0
  %2943 = vmatprep.subr.mxu0 0.0
  %2944 = vmatpush1.msra.mxu0 0.0
  %2945 = vmatprep.subr.mxu0 0.0
  %2946 = vmatpush1.msra.mxu0 0.0
  %2947 = vmatprep.subr.mxu0 0.0
  %2948 = vmatpush1.msra.mxu0 0.0
  %2949 = vmatprep.subr.mxu0 0.0
  %2950 = vmatpush1.msra.mxu0 0.0
  %2951 = vmatprep.subr.mxu0 0.0
  %2952 = vmatpush1.msra.mxu0 0.0
  %2953 = vmatprep.subr.mxu0 0.0
  %2954 = vmatpush1.msra.mxu0 0.0
  %2955 = vmatprep.subr.mxu0 0.0
  %2956 = vmatpush1.msra.mxu0 0.0
  %2957 = vmatprep.subr.mxu0 0.0
  %2958 = vmatpush1.msra.mxu0 0.0
  %2959 = vmatprep.subr.mxu0 0.0
  %2960 = vmatpush1.msra.mxu0 0.0
  %2961 = vmatprep.subr.mxu0 0.0
  %2962 = vmatpush1.msra.mxu0 0.0
  %2963 = vmatprep.subr.mxu0 0.0
  %2964 = vmatpush1.msra.mxu0 0.0
  %2965 = vmatprep.subr.mxu0 0.0
  %2966 = vmatpush1.msra.mxu0 0.0
  %2967 = vmatprep.subr.mxu0 0.0
  %2968 = vmatpush1.msra.mxu0 0.0
  %2969 = vmatprep.subr.mxu0 0.0
  %2970 = vmatpush1.msra.mxu0 0.0
  %2971 = vmatprep.subr.mxu0 0.0
  %2972 = vmatpush1.msra.mxu0 0.0
  %2973 = vmatprep.subr.mxu0 0.0
  %2974 = vmatpush1.msra.mxu0 0.0
  %2975 = vmatprep.mubr.f32.mxu0 0.0
  %2976 = vmatmul.mubr.f32.gmra.mrb[0].mxu0 %v2840
  %v2977 = vpop.f32.mrb[0].mxu0
  %v2978 = vadd.f32 %v2837, %v2977
  %v2979 = vpop.f32.mrb[0].mxu0
  %2980 = vmatprep.mubr.f32.mxu0 0.0
  %2981 = vmatmul.mubr.f32.gmra.mrb[0].mxu0 %v2843
  %v2982 = vpop.f32.mrb[0].mxu0
  %v2983 = vadd.f32 %v2837, %v2982
  %v2984 = vpop.f32.mrb[0].mxu0
  %2985 = vmatprep.mubr.f32.mxu0 0.0
  %2986 = vmatmul.mubr.f32.gmra.mrb[0].mxu0 %v2846
  %v2987 = vpop.f32.mrb[0].mxu0
  %v2988 = vadd.f32 %v2837, %v2987
  %v2989 = vpop.f32.mrb[0].mxu0
  %2990 = vmatprep.mubr.f32.mxu0 0.0
  %2991 = vmatmul.mubr.f32.gmra.mrb[0].mxu0 %v2849
  %v2992 = vpop.f32.mrb[0].mxu0
  %v2993 = vadd.f32 %v2837, %v2992
  %v2994 = vpop.f32.mrb[0].mxu0
  %2995 = vmatprep.mubr.f32.mxu0 0.0
  %2996 = vmatmul.mubr.f32.gmra.mrb[0].mxu0 %v2852
  %v2997 = vpop.f32.mrb[0].mxu0
  %v2998 = vadd.f32 %v2837, %v2997
  %v2999 = vpop.f32.mrb[0].mxu0
  %3000 = vmatprep.mubr.f32.mxu0 0.0
  %3001 = vmatmul.mubr.f32.gmra.mrb[0].mxu0 %v2855
  %v3002 = vpop.f32.mrb[0].mxu0
  %v3003 = vadd.f32 %v2837, %v3002
  %v3004 = vpop.f32.mrb[0].mxu0
  %3005 = vmatprep.mubr.f32.mxu0 0.0
  %3006 = vmatmul.mubr.f32.gmra.mrb[0].mxu0 %v2858
  %v3007 = vpop.f32.mrb[0].mxu0
  %v3008 = vadd.f32 %v2837, %v3007
  %v3009 = vpop.f32.mrb[0].mxu0
  %3010 = vmatprep.mubr.f32.mxu0 0.0
  %3011 = vmatmul.mubr.f32.gmra.mrb[0].mxu0 %v2861
  %v3012 = vpop.f32.mrb[0].mxu0
  %v3013 = vadd.f32 %v2837, %v3012
  %v3014 = vpop.f32.mrb[0].mxu0
  %3015 = vmatprep.mubr.f32.mxu0 0.0
  %3016 = vmatmul.mubr.f32.gmra.mrb[0].mxu0 %v2864
  %v3017 = vpop.f32.mrb[0].mxu0
  %v3018 = vadd.f32 %v2837, %v3017
  %v3019 = vpop.f32.mrb[0].mxu0
  %3020 = vmatprep.mubr.f32.mxu0 0.0
  %3021 = vmatmul.mubr.f32.gmra.mrb[0].mxu0 %v2867
  %v3022 = vpop.f32.mrb[0].mxu0
  %v3023 = vadd.f32 %v2837, %v3022
  %v3024 = vpop.f32.mrb[0].mxu0
  %3025 = vmatprep.mubr.f32.mxu0 0.0
  %3026 = vmatmul.mubr.f32.gmra.mrb[0].mxu0 %v2870
  %v3027 = vpop.f32.mrb[0].mxu0
  %v3028 = vadd.f32 %v2837, %v3027
  %v3029 = vpop.f32.mrb[0].mxu0
  %3030 = vmatprep.mubr.f32.mxu0 0.0
  %3031 = vmatmul.mubr.f32.gmra.mrb[0].mxu0 %v2873
  %v3032 = vpop.f32.mrb[0].mxu0
  %v3033 = vadd.f32 %v2837, %v3032
  %v3034 = vpop.f32.mrb[0].mxu0
  %3035 = vmatprep.mubr.f32.mxu0 0.0
  %3036 = vmatmul.mubr.f32.gmra.mrb[0].mxu0 %v2876
  %v3037 = vpop.f32.mrb[0].mxu0
  %v3038 = vadd.f32 %v2837, %v3037
  %v3039 = vpop.f32.mrb[0].mxu0
  %3040 = vmatprep.mubr.f32.mxu0 0.0
  %3041 = vmatmul.mubr.f32.gmra.mrb[0].mxu0 %v2879
  %v3042 = vpop.f32.mrb[0].mxu0
  %v3043 = vadd.f32 %v2837, %v3042
  %v3044 = vpop.f32.mrb[0].mxu0
  %3045 = vmatprep.mubr.f32.mxu0 0.0
  %3046 = vmatmul.mubr.f32.gmra.mrb[0].mxu0 %v2882
  %v3047 = vpop.f32.mrb[0].mxu0
  %v3048 = vadd.f32 %v2837, %v3047
  %v3049 = vpop.f32.mrb[0].mxu0
  %3050 = vmatprep.mubr.f32.mxu0 0.0
  %3051 = vmatmul.mubr.f32.gmra.mrb[0].mxu0 %v2885
  %v3052 = vpop.f32.mrb[0].mxu0
  %v3053 = vadd.f32 %v2837, %v3052
  %v3054 = vpop.f32.mrb[0].mxu0
  %3055 = vmatprep.mubr.f32.mxu0 0.0
  %3056 = vmatmul.mubr.f32.gmra.mrb[0].mxu0 %v2888
  %v3057 = vpop.f32.mrb[0].mxu0
  %v3058 = vadd.f32 %v2837, %v3057
  %v3059 = vpop.f32.mrb[0].mxu0
  %3060 = vmatprep.mubr.f32.mxu0 0.0
  %3061 = vmatmul.mubr.f32.gmra.mrb[0].mxu0 %v2891
  %v3062 = vpop.f32.mrb[0].mxu0
  %v3063 = vadd.f32 %v2837, %v3062
  %v3064 = vpop.f32.mrb[0].mxu0
  %3065 = vmatprep.mubr.f32.mxu0 0.0
  %3066 = vmatmul.mubr.f32.gmra.mrb[0].mxu0 %v2894
  %v3067 = vpop.f32.mrb[0].mxu0
  %v3068 = vadd.f32 %v2837, %v3067
  %v3069 = vpop.f32.mrb[0].mxu0
  %3070 = vmatprep.mubr.f32.mxu0 0.0
  %3071 = vmatmul.mubr.f32.gmra.mrb[0].mxu0 %v2897
  %v3072 = vpop.f32.mrb[0].mxu0
  %v3073 = vadd.f32 %v2837, %v3072
  %v3074 = vpop.f32.mrb[0].mxu0
  %3075 = vmatprep.mubr.f32.mxu0 0.0
  %3076 = vmatmul.mubr.f32.gmra.mrb[0].mxu0 %v2900
  %v3077 = vpop.f32.mrb[0].mxu0
  %v3078 = vadd.f32 %v2837, %v3077
  %v3079 = vpop.f32.mrb[0].mxu0
  %3080 = vmatprep.mubr.f32.mxu0 0.0
  %3081 = vmatmul.mubr.f32.gmra.mrb[0].mxu0 %v2903
  %v3082 = vpop.f32.mrb[0].mxu0
  %v3083 = vadd.f32 %v2837, %v3082
  %v3084 = vpop.f32.mrb[0].mxu0
  %3085 = vmatprep.mubr.f32.mxu0 0.0
  %3086 = vmatmul.mubr.f32.gmra.mrb[0].mxu0 %v2906
  %v3087 = vpop.f32.mrb[0].mxu0
  %v3088 = vadd.f32 %v2837, %v3087
  %v3089 = vpop.f32.mrb[0].mxu0
  %3090 = vmatprep.mubr.f32.mxu0 0.0
  %3091 = vmatmul.mubr.f32.gmra.mrb[0].mxu0 %v2909
  %v3092 = vpop.f32.mrb[0].mxu0
  %v3093 = vadd.f32 %v2837, %v3092
  %v3094 = vpop.f32.mrb[0].mxu0
  %3095 = vdwg.mxu0
  %v3096 = vld [vmem:[%s7] sm:$0xff]
  %v3097 = vld [vmem:[%s7 + $0x8] sm:$0xff]
  %v3098 = vld [vmem:[%s7 + $0x10] sm:$0xff]
  %v3099 = vld [vmem:[%s7 + $0x18] sm:$0xff]
  %3100 = vmatprep.subr.mxu0 0.0
  %3101 = vmatpush1.msra.mxu0 %v3096
  %3102 = vmatprep.subr.mxu0 0.0
  %3103 = vmatpush1.msra.mxu0 %v3097
  %3104 = vmatprep.subr.mxu0 0.0
  %3105 = vmatpush1.msra.mxu0 %v3098
  %3106 = vmatprep.subr.mxu0 0.0
  %3107 = vmatpush1.msra.mxu0 %v3099
  %3108 = vmatprep.subr.mxu0 0.0
  %3109 = vmatpush1.msra.mxu0 0.0
  %3110 = vmatprep.subr.mxu0 0.0
  %3111 = vmatpush1.msra.mxu0 0.0
  %3112 = vmatprep.subr.mxu0 0.0
  %3113 = vmatpush1.msra.mxu0 0.0
  %3114 = vmatprep.subr.mxu0 0.0
  %3115 = vmatpush1.msra.mxu0 0.0
  %3116 = vmatprep.subr.mxu0 0.0
  %3117 = vmatpush1.msra.mxu0 0.0
  %3118 = vmatprep.subr.mxu0 0.0
  %3119 = vmatpush1.msra.mxu0 0.0
  %3120 = vmatprep.subr.mxu0 0.0
  %3121 = vmatpush1.msra.mxu0 0.0
  %3122 = vmatprep.subr.mxu0 0.0
  %3123 = vmatpush1.msra.mxu0 0.0
  %3124 = vmatprep.subr.mxu0 0.0
  %3125 = vmatpush1.msra.mxu0 0.0
  %3126 = vmatprep.subr.mxu0 0.0
  %3127 = vmatpush1.msra.mxu0 0.0
  %3128 = vmatprep.subr.mxu0 0.0
  %3129 = vmatpush1.msra.mxu0 0.0
  %3130 = vmatprep.subr.mxu0 0.0
  %3131 = vmatpush1.msra.mxu0 0.0
  %3132 = vmatprep.subr.mxu0 0.0
  %3133 = vmatpush1.msra.mxu0 0.0
  %3134 = vmatprep.subr.mxu0 0.0
  %3135 = vmatpush1.msra.mxu0 0.0
  %3136 = vmatprep.subr.mxu0 0.0
  %3137 = vmatpush1.msra.mxu0 0.0
  %3138 = vmatprep.subr.mxu0 0.0
  %3139 = vmatpush1.msra.mxu0 0.0
  %3140 = vmatprep.subr.mxu0 0.0
  %3141 = vmatpush1.msra.mxu0 0.0
  %3142 = vmatprep.subr.mxu0 0.0
  %3143 = vmatpush1.msra.mxu0 0.0
  %3144 = vmatprep.subr.mxu0 0.0
  %3145 = vmatpush1.msra.mxu0 0.0
  %3146 = vmatprep.subr.mxu0 0.0
  %3147 = vmatpush1.msra.mxu0 0.0
  %3148 = vmatprep.subr.mxu0 0.0
  %3149 = vmatpush1.msra.mxu0 0.0
  %3150 = vmatprep.subr.mxu0 0.0
  %3151 = vmatpush1.msra.mxu0 0.0
  %3152 = vmatprep.subr.mxu0 0.0
  %3153 = vmatpush1.msra.mxu0 0.0
  %3154 = vmatprep.subr.mxu0 0.0
  %3155 = vmatpush1.msra.mxu0 0.0
  %3156 = vmatprep.subr.mxu0 0.0
  %3157 = vmatpush1.msra.mxu0 0.0
  %3158 = vmatprep.subr.mxu0 0.0
  %3159 = vmatpush1.msra.mxu0 0.0
  %3160 = vmatprep.subr.mxu0 0.0
  %3161 = vmatpush1.msra.mxu0 0.0
  %3162 = vmatprep.subr.mxu0 0.0
  %3163 = vmatpush1.msra.mxu0 0.0
  %3164 = vmatprep.mubr.f32.mxu0 0.0
  %3165 = vmatmul.mubr.f32.gmra.mrb[0].mxu0 %v2840
  %v3166 = vpop.f32.mrb[0].mxu0
  %v3167 = vadd.f32 0.0, %v3166
  %v3168 = vpop.f32.mrb[0].mxu0
  %3169 = vmatprep.mubr.f32.mxu0 0.0
  %3170 = vmatmul.mubr.f32.gmra.mrb[0].mxu0 %v2843
  %v3171 = vpop.f32.mrb[0].mxu0
  %v3172 = vadd.f32 0.0, %v3171
  %v3173 = vpop.f32.mrb[0].mxu0
  %3174 = vmatprep.mubr.f32.mxu0 0.0
  %3175 = vmatmul.mubr.f32.gmra.mrb[0].mxu0 %v2846
  %v3176 = vpop.f32.mrb[0].mxu0
  %v3177 = vadd.f32 0.0, %v3176
  %v3178 = vpop.f32.mrb[0].mxu0
  %3179 = vmatprep.mubr.f32.mxu0 0.0
  %3180 = vmatmul.mubr.f32.gmra.mrb[0].mxu0 %v2849
  %v3181 = vpop.f32.mrb[0].mxu0
  %v3182 = vadd.f32 0.0, %v3181
  %v3183 = vpop.f32.mrb[0].mxu0
  %3184 = vmatprep.mubr.f32.mxu0 0.0
  %3185 = vmatmul.mubr.f32.gmra.mrb[0].mxu0 %v2852
  %v3186 = vpop.f32.mrb[0].mxu0
  %v3187 = vadd.f32 0.0, %v3186
  %v3188 = vpop.f32.mrb[0].mxu0
  %3189 = vmatprep.mubr.f32.mxu0 0.0
  %3190 = vmatmul.mubr.f32.gmra.mrb[0].mxu0 %v2855
  %v3191 = vpop.f32.mrb[0].mxu0
  %v3192 = vadd.f32 0.0, %v3191
  %v3193 = vpop.f32.mrb[0].mxu0
  %3194 = vmatprep.mubr.f32.mxu0 0.0
  %3195 = vmatmul.mubr.f32.gmra.mrb[0].mxu0 %v2858
  %v3196 = vpop.f32.mrb[0].mxu0
  %v3197 = vadd.f32 0.0, %v3196
  %v3198 = vpop.f32.mrb[0].mxu0
  %3199 = vmatprep.mubr.f32.mxu0 0.0
  %3200 = vmatmul.mubr.f32.gmra.mrb[0].mxu0 %v2861
  %v3201 = vpop.f32.mrb[0].mxu0
  %v3202 = vadd.f32 0.0, %v3201
  %v3203 = vpop.f32.mrb[0].mxu0
  %3204 = vdwg.mxu0
  %v3205 = vmul.f32 %v3167, %v3167
  %v3206 = vmul.f32 %v3172, %v3172
  %v3207 = vmul.f32 %v3177, %v3177
  %v3208 = vmul.f32 %v3182, %v3182
  %v3209 = vmul.f32 %v3187, %v3187
  %v3210 = vmul.f32 %v3192, %v3192
  %v3211 = vmul.f32 %v3197, %v3197
  %v3212 = vmul.f32 %v3202, %v3202
  %vm3213 = vcmask 146432
  %v3214 = vsel %vm3213, %v3205, 0.0
  %v3215 = vsel %vm3213, %v3206, 0.0
  %v3216 = vadd.f32 %v3214, %v3215
  %v3217 = vsel %vm3213, %v3207, 0.0
  %v3218 = vadd.f32 %v3216, %v3217
  %v3219 = vsel %vm3213, %v3208, 0.0
  %v3220 = vadd.f32 %v3218, %v3219
  %v3221 = vsel %vm3213, %v3209, 0.0
  %v3222 = vadd.f32 %v3220, %v3221
  %v3223 = vsel %vm3213, %v3210, 0.0
  %v3224 = vadd.f32 %v3222, %v3223
  %v3225 = vsel %vm3213, %v3211, 0.0
  %v3226 = vadd.f32 %v3224, %v3225
  %v3227 = vsel %vm3213, %v3212, 0.0
  %v3228 = vadd.f32 %v3226, %v3227
  %3229 = vadd.xlane.f32.xlu0 %v3228
  %v3230 = vpop.xlane.xlu0 %3229
  %v3231 = vrot.slane %v3230, 4
  %v3232 = vadd.f32 %v3230, %v3231
  %v3233 = vrot.slane %v3232, 2
  %v3234 = vadd.f32 %v3232, %v3233
  %v3235 = vrot.slane %v3234, 1
  %v3236 = vadd.f32 %v3234, %v3235
  %s3237 = vtos %v3236
  %v3238 = vsub.f32 %v45, %v3058
  %v3239 = vsub.f32 %v44, %v3063
  %v3240 = vmul.f32 %v3238, %v3238
  %vm3241 = vcmask 15360
  %v3242 = vsel %vm3241, %v3240, 0.0
  %3243 = vadd.xlane.f32.xlu0 %v3242
  %v3244 = vpop.xlane.xlu0 %3243
  %v3245 = vrot.slane %v3244, 4
  %v3246 = vadd.f32 %v3244, %v3245
  %v3247 = vrot.slane %v3246, 2
  %v3248 = vadd.f32 %v3246, %v3247
  %v3249 = vrot.slane %v3248, 1
  %v3250 = vadd.f32 %v3248, %v3249
  %s3251 = vtos %v3250
  %v3252 = vmul.f32 %v3239, %v3239
  %v3253 = vsel %vm3241, %v3252, 0.0
  %3254 = vadd.xlane.f32.xlu0 %v3253
  %v3255 = vpop.xlane.xlu0 %3254
  %v3256 = vrot.slane %v3255, 4
  %v3257 = vadd.f32 %v3255, %v3256
  %v3258 = vrot.slane %v3257, 2
  %v3259 = vadd.f32 %v3257, %v3258
  %v3260 = vrot.slane %v3259, 1
  %v3261 = vadd.f32 %v3259, %v3260
  %s3262 = vtos %v3261
  %s3263 = sadd.f32 %s3251, %s3262
  %s3264 = smul.f32 %s3263, 100.0
  %v3265 = vsub.f32 %v3068, %v3073
  %v3266 = vmul.f32 %v3265, %v3265
  %v3267 = vsel %vm3241, %v3266, 0.0
  %3268 = vadd.xlane.f32.xlu0 %v3267
  %v3269 = vpop.xlane.xlu0 %3268
  %v3270 = vrot.slane %v3269, 4
  %v3271 = vadd.f32 %v3269, %v3270
  %v3272 = vrot.slane %v3271, 2
  %v3273 = vadd.f32 %v3271, %v3272
  %v3274 = vrot.slane %v3273, 1
  %v3275 = vadd.f32 %v3273, %v3274
  %s3276 = vtos %v3275
  %s3277 = smul.f32 %s3276, 50.0
  %s3278 = sadd.f32 %s3264, %s3277
  %v3279 = vsub.f32 %v3078, %v3083
  %v3280 = vmul.f32 %v3279, %v3279
  %v3281 = vsel %vm3241, %v3280, 0.0
  %3282 = vadd.xlane.f32.xlu0 %v3281
  %v3283 = vpop.xlane.xlu0 %3282
  %v3284 = vrot.slane %v3283, 4
  %v3285 = vadd.f32 %v3283, %v3284
  %v3286 = vrot.slane %v3285, 2
  %v3287 = vadd.f32 %v3285, %v3286
  %v3288 = vrot.slane %v3287, 1
  %v3289 = vadd.f32 %v3287, %v3288
  %s3290 = vtos %v3289
  %s3291 = smul.f32 %s3290, 50.0
  %s3292 = sadd.f32 %s3278, %s3291
  %v3293 = vsub.f32 %v3088, %v3093
  %v3294 = vmul.f32 %v3293, %v3293
  %v3295 = vsel %vm3241, %v3294, 0.0
  %3296 = vadd.xlane.f32.xlu0 %v3295
  %v3297 = vpop.xlane.xlu0 %3296
  %v3298 = vrot.slane %v3297, 4
  %v3299 = vadd.f32 %v3297, %v3298
  %v3300 = vrot.slane %v3299, 2
  %v3301 = vadd.f32 %v3299, %v3300
  %v3302 = vrot.slane %v3301, 1
  %v3303 = vadd.f32 %v3301, %v3302
  %s3304 = vtos %v3303
  %s3305 = smul.f32 %s3304, 50.0
  %s3306 = sadd.f32 %s3292, %s3305
  %vm3307 = vcmp.eq.f32.partialorder %v36, 0.0
  %vm3308 = vcmp.eq.f32.partialorder %v37, 0.0
  %vm3309 = vcmp.eq.f32.partialorder %v38, 0.0
  %vm3310 = vcmp.eq.f32.partialorder %v39, 0.0
  %vm3311 = vcmp.eq.f32.partialorder %v40, 0.0
  %vm3312 = vcmp.eq.f32.partialorder %v41, 0.0
  %vm3313 = vcmp.eq.f32.partialorder %v42, 0.0
  %vm3314 = vcmp.eq.f32.partialorder %v43, 0.0
  %v3315 = vsel %vm3307, 1, 0
  %v3316 = vsel %vm3308, 1, 0
  %v3317 = vsel %vm3309, 1, 0
  %v3318 = vsel %vm3310, 1, 0
  %v3319 = vsel %vm3311, 1, 0
  %v3320 = vsel %vm3312, 1, 0
  %v3321 = vsel %vm3313, 1, 0
  %v3322 = vsel %vm3314, 1, 0
  %v3323 = vcvt.s32.f32 %v3315
  %v3324 = vcvt.s32.f32 %v3316
  %v3325 = vcvt.s32.f32 %v3317
  %v3326 = vcvt.s32.f32 %v3318
  %v3327 = vcvt.s32.f32 %v3319
  %v3328 = vcvt.s32.f32 %v3320
  %v3329 = vcvt.s32.f32 %v3321
  %v3330 = vcvt.s32.f32 %v3322
  %v3331 = vsub.f32 %v2978, %v36
  %v3332 = vsub.f32 %v2983, %v37
  %v3333 = vsub.f32 %v2988, %v38
  %v3334 = vsub.f32 %v2993, %v39
  %v3335 = vsub.f32 %v2998, %v40
  %v3336 = vsub.f32 %v3003, %v41
  %v3337 = vsub.f32 %v3008, %v42
  %v3338 = vsub.f32 %v3013, %v43
  %v3339 = vmul.f32 %v3331, %v3331
  %v3340 = vmul.f32 %v3332, %v3332
  %v3341 = vmul.f32 %v3333, %v3333
  %v3342 = vmul.f32 %v3334, %v3334
  %v3343 = vmul.f32 %v3335, %v3335
  %v3344 = vmul.f32 %v3336, %v3336
  %v3345 = vmul.f32 %v3337, %v3337
  %v3346 = vmul.f32 %v3338, %v3338
  %3348 = vset.pattern.permute.xlu0 2
  %3349 = vperm.xlu0 %3348, %v3323
  %v3350 = vpop.permute.xlu0 %3349
  %3353 = vset.pattern.permute.xlu0 2
  %3354 = vperm.xlu0 %3353, %v3324
  %v3355 = vpop.permute.xlu0 %3354
  %3358 = vset.pattern.permute.xlu0 2
  %3359 = vperm.xlu0 %3358, %v3325
  %v3360 = vpop.permute.xlu0 %3359
  %3363 = vset.pattern.permute.xlu0 2
  %3364 = vperm.xlu0 %3363, %v3326
  %v3365 = vpop.permute.xlu0 %3364
  %3368 = vset.pattern.permute.xlu0 2
  %3369 = vperm.xlu0 %3368, %v3327
  %v3370 = vpop.permute.xlu0 %3369
  %3373 = vset.pattern.permute.xlu0 2
  %3374 = vperm.xlu0 %3373, %v3328
  %v3375 = vpop.permute.xlu0 %3374
  %3378 = vset.pattern.permute.xlu0 2
  %3379 = vperm.xlu0 %3378, %v3329
  %v3380 = vpop.permute.xlu0 %3379
  %3383 = vset.pattern.permute.xlu0 2
  %3384 = vperm.xlu0 %3383, %v3330
  %v3385 = vpop.permute.xlu0 %3384
  %v3387 = vmul.f32 %v3350, %v3339
  %v3388 = vmul.f32 %v3355, %v3340
  %v3389 = vmul.f32 %v3360, %v3341
  %v3390 = vmul.f32 %v3365, %v3342
  %v3391 = vmul.f32 %v3370, %v3343
  %v3392 = vmul.f32 %v3375, %v3344
  %v3393 = vmul.f32 %v3380, %v3345
  %v3394 = vmul.f32 %v3385, %v3346
  %v3395 = vsel %vm3241, %v3387, 0.0
  %v3396 = vsel %vm3241, %v3388, 0.0
  %v3397 = vadd.f32 %v3395, %v3396
  %v3398 = vsel %vm3241, %v3389, 0.0
  %v3399 = vadd.f32 %v3397, %v3398
  %v3400 = vsel %vm3241, %v3390, 0.0
  %v3401 = vadd.f32 %v3399, %v3400
  %v3402 = vsel %vm3241, %v3391, 0.0
  %v3403 = vadd.f32 %v3401, %v3402
  %v3404 = vsel %vm3241, %v3392, 0.0
  %v3405 = vadd.f32 %v3403, %v3404
  %v3406 = vsel %vm3241, %v3393, 0.0
  %v3407 = vadd.f32 %v3405, %v3406
  %v3408 = vsel %vm3241, %v3394, 0.0
  %v3409 = vadd.f32 %v3407, %v3408
  %3410 = vadd.xlane.f32.xlu0 %v3409
  %v3411 = vpop.xlane.xlu0 %3410
  %v3412 = vrot.slane %v3411, 4
  %v3413 = vadd.f32 %v3411, %v3412
  %v3414 = vrot.slane %v3413, 2
  %v3415 = vadd.f32 %v3413, %v3414
  %v3416 = vrot.slane %v3415, 1
  %v3417 = vadd.f32 %v3415, %v3416
  %s3418 = vtos %v3417
  %3420 = vset.pattern.permute.xlu0 0
  %3421 = vperm.xlu0 %3420, %v2978
  %v3422 = vpop.permute.xlu0 %3421
  %3425 = vset.pattern.permute.xlu0 0
  %3426 = vperm.xlu0 %3425, %v2983
  %v3427 = vpop.permute.xlu0 %3426
  %3430 = vset.pattern.permute.xlu0 0
  %3431 = vperm.xlu0 %3430, %v2988
  %v3432 = vpop.permute.xlu0 %3431
  %3435 = vset.pattern.permute.xlu0 0
  %3436 = vperm.xlu0 %3435, %v2993
  %v3437 = vpop.permute.xlu0 %3436
  %3440 = vset.pattern.permute.xlu0 0
  %3441 = vperm.xlu0 %3440, %v2998
  %v3442 = vpop.permute.xlu0 %3441
  %3445 = vset.pattern.permute.xlu0 0
  %3446 = vperm.xlu0 %3445, %v3003
  %v3447 = vpop.permute.xlu0 %3446
  %3450 = vset.pattern.permute.xlu0 0
  %3451 = vperm.xlu0 %3450, %v3008
  %v3452 = vpop.permute.xlu0 %3451
  %3455 = vset.pattern.permute.xlu0 0
  %3456 = vperm.xlu0 %3455, %v3013
  %v3457 = vpop.permute.xlu0 %3456
  %v3459 = vmul.f32 %v3422, %v89
  %v3460 = vmul.f32 %v3427, %v89
  %v3461 = vmul.f32 %v3432, %v89
  %v3462 = vmul.f32 %v3437, %v89
  %v3463 = vmul.f32 %v3442, %v89
  %v3464 = vmul.f32 %v3447, %v89
  %v3465 = vmul.f32 %v3452, %v89
  %v3466 = vmul.f32 %v3457, %v89
  %3467 = vset.pattern.permute.xlu0 1
  %3468 = vperm.xlu0 %3467, %v2978
  %v3469 = vpop.permute.xlu0 %3468
  %3471 = vset.pattern.permute.xlu0 1
  %3472 = vperm.xlu0 %3471, %v2983
  %v3473 = vpop.permute.xlu0 %3472
  %3475 = vset.pattern.permute.xlu0 1
  %3476 = vperm.xlu0 %3475, %v2988
  %v3477 = vpop.permute.xlu0 %3476
  %3479 = vset.pattern.permute.xlu0 1
  %3480 = vperm.xlu0 %3479, %v2993
  %v3481 = vpop.permute.xlu0 %3480
  %3483 = vset.pattern.permute.xlu0 1
  %3484 = vperm.xlu0 %3483, %v2998
  %v3485 = vpop.permute.xlu0 %3484
  %3487 = vset.pattern.permute.xlu0 1
  %3488 = vperm.xlu0 %3487, %v3003
  %v3489 = vpop.permute.xlu0 %3488
  %3491 = vset.pattern.permute.xlu0 1
  %3492 = vperm.xlu0 %3491, %v3008
  %v3493 = vpop.permute.xlu0 %3492
  %3495 = vset.pattern.permute.xlu0 1
  %3496 = vperm.xlu0 %3495, %v3013
  %v3497 = vpop.permute.xlu0 %3496
  %v3499 = vmul.f32 %v3469, %v133
  %v3500 = vmul.f32 %v3473, %v133
  %v3501 = vmul.f32 %v3477, %v133
  %v3502 = vmul.f32 %v3481, %v133
  %v3503 = vmul.f32 %v3485, %v133
  %v3504 = vmul.f32 %v3489, %v133
  %v3505 = vmul.f32 %v3493, %v133
  %v3506 = vmul.f32 %v3497, %v133
  %v3507 = vadd.f32 %v3459, %v3499
  %v3508 = vadd.f32 %v3460, %v3500
  %v3509 = vadd.f32 %v3461, %v3501
  %v3510 = vadd.f32 %v3462, %v3502
  %v3511 = vadd.f32 %v3463, %v3503
  %v3512 = vadd.f32 %v3464, %v3504
  %v3513 = vadd.f32 %v3465, %v3505
  %v3514 = vadd.f32 %v3466, %v3506
  %v3515 = vadd.f32 %v3507, %v154
  %v3516 = vadd.f32 %v3508, %v154
  %v3517 = vadd.f32 %v3509, %v154
  %v3518 = vadd.f32 %v3510, %v154
  %v3519 = vadd.f32 %v3511, %v154
  %v3520 = vadd.f32 %v3512, %v154
  %v3521 = vadd.f32 %v3513, %v154
  %v3522 = vadd.f32 %v3514, %v154
  %v3523 = vsub.f32 %v3515, %v226
  %v3524 = vsub.f32 %v3516, %v227
  %v3525 = vsub.f32 %v3517, %v228
  %v3526 = vsub.f32 %v3518, %v229
  %v3527 = vsub.f32 %v3519, %v230
  %v3528 = vsub.f32 %v3520, %v231
  %v3529 = vsub.f32 %v3521, %v232
  %v3530 = vsub.f32 %v3522, %v233
  %v3531 = vand.u32 2147483647, %v3523
  %vm3532 = vcmp.le.f32.partialorder %v3531, 0.7853982
  %vm3533 = vcmp.lt.s32.totalorder %v3523, 0
  %v3534 = vand.u32 %v3523, 2139095040
  %v3535 = vshrl.u32 %v3534, 23
  %v3536 = vsub.s32 %v3535, 127
  %v3537 = vand.u32 2147483647, %v3523
  %v3538 = vand.u32 %v3537, 8388607
  %v3539 = vor.u32 %v3538, 8388608
  %v3540 = vsub.s32 0, %v3539
  %v3541 = vadd.s32 %v3536, 1
  %vm3542 = vcmp.gt.s32.totalorder %v3541, 0
  %v3543 = vsel %vm3542, %v3541, 0
  %v3544 = vshrl.u32 %v3543, 5
  %v3545 = vand.u32 %v3543, 31
  %v3546 = vsub.s32 32, %v3545
  %v3547 = vshrl.u32 683565275, %v3546
  %v3548 = vshll.u32 683565275, %v3545
  %v3549 = vshrl.u32 2475754826, %v3546
  %v3550 = vor.u32 %v3548, %v3549
  %v3551 = vshll.u32 2475754826, %v3545
  %v3552 = vshrl.u32 2131351028, %v3546
  %v3553 = vor.u32 %v3551, %v3552
  %v3554 = vshll.u32 2131351028, %v3545
  %v3555 = vshrl.u32 2102212464, %v3546
  %v3556 = vor.u32 %v3554, %v3555
  %v3557 = vshll.u32 2102212464, %v3545
  %v3558 = vshrl.u32 920167782, %v3546
  %v3559 = vor.u32 %v3557, %v3558
  %v3560 = vshll.u32 920167782, %v3545
  %v3561 = vshrl.u32 1326507024, %v3546
  %v3562 = vor.u32 %v3560, %v3561
  %vm3563 = vcmp.lt.s32.totalorder %v3544, 1
  %vm3564 = vcmp.lt.s32.totalorder %v3544, 2
  %vm3565 = vcmp.lt.s32.totalorder %v3544, 3
  %vm3566 = vcmp.lt.s32.totalorder %v3544, 4
  %v3567 = vsel %vm3563, %v3547, %v3550
  %v3568 = vsel %vm3566, %v3556, 2102212464
  %v3569 = vsel %vm3565, %v3553, %v3568
  %v3570 = vsel %vm3564, %v3567, %v3569
  %v3571 = vsel %vm3563, %v3550, %v3553
  %v3572 = vsel %vm3566, %v3559, 920167782
  %v3573 = vsel %vm3565, %v3556, %v3572
  %v3574 = vsel %vm3564, %v3571, %v3573
  %v3575 = vsel %vm3563, %v3553, %v3556
  %v3576 = vsel %vm3566, %v3562, 1326507024
  %v3577 = vsel %vm3565, %v3559, %v3576
  %v3578 = vsel %vm3564, %v3575, %v3577
  %v3579 = vshll.u32 %v3539, 8
  %v3580 = vmul.u32.u64.compose %v3579, %v3578
  %v3581 = vextract.low.u32 %v3580
  %v3582 = vextract.high.u32 %v3580
  %v3583 = vmul.u32.u64.compose %v3579, %v3574
  %v3584 = vextract.low.u32 %v3583
  %v3585 = vextract.high.u32 %v3583
  %v3586 = vmul.u32 %v3579, %v3570
  %v3587 = vadd.s32 %v3582, %v3584
  %vm3588 = vc.u32 %v3582, %v3584
  %v3589 = vadd.s32 %v3585, 1
  %v3590 = vsel %vm3588, %v3589, %v3585
  %v3591 = vadd.s32 %v3586, %v3590
  %v3592 = vadd.s32 %v3591, 536870912
  %v3593 = vshrl.u32 %v3592, 30
  %v3594 = vshll.u32 %v3593, 30
  %v3595 = vsub.s32 %v3591, %v3594
  %vm3596 = vcmp.lt.s32.totalorder %v3595, 0
  %v3597 = vsub.s32 0, %v3595
  %v3598 = vsel %vm3596, %v3597, %v3595
  %v3599 = vclz %v3598
  %v3600 = vsub.s32 %v3599, 2
  %vm3601 = vcmp.gt.s32.totalorder 0, %v3600
  %v3602 = vsel %vm3601, 0, %v3600
  %v3603 = vsub.s32 32, %v3602
  %v3604 = vshll.u32 %v3595, %v3602
  %v3605 = vshrl.u32 %v3587, %v3603
  %v3606 = vor.u32 %v3604, %v3605
  %v3607 = vsub.s32 4294967266, %v3602
  %v3608 = vadd.s32 %v3607, 127
  %v3609 = vshll.u32 %v3608, 23
  %v3610 = vor.u32 4788187, %v3609
  %v3611 = vand.u32 2147483647, %v3610
  %v3613 = vcvt.s32.f32 %v3606
  %v3614 = vmul.f32 %v3613, %v3611
  %v3615 = vxor.u32 %v3614, 2147483648
  %v3616 = vsel %vm3533, %v3615, %v3614
  %v3617 = vsub.s32 4, %v3593
  %v3618 = vsel %vm3533, %v3617, %v3593
  %v3619 = vsel %vm3532, %v3523, %v3616
  %v3620 = vsel %vm3532, 0, %v3618
  %v3621 = vcosq.f32.pop %v3619
  %v3622 = vsinq.f32.pop %v3619
  %vm3623 = vweird.f32 %v3523
  %v3624 = vadd.s32 %v3620, 3
  %v3625 = vand.u32 %v3624, 3
  %vm3626 = vcmp.lt.s32.totalorder %v3625, 2
  %vm3627 = vcmp.eq.s32.totalorder %v3625, 0
  %v3628 = vxor.u32 %v3622, 2147483648
  %v3629 = vsel %vm3627, %v3621, %v3628
  %vm3630 = vcmp.eq.s32.totalorder %v3625, 2
  %v3631 = vxor.u32 %v3621, 2147483648
  %v3632 = vsel %vm3630, %v3631, %v3622
  %v3633 = vsel %vm3626, %v3629, %v3632
  %v3634 = vsel %vm3623, nan, %v3633
  %v3635 = vand.u32 2147483647, %v3524
  %vm3636 = vcmp.le.f32.partialorder %v3635, 0.7853982
  %vm3637 = vcmp.lt.s32.totalorder %v3524, 0
  %v3638 = vand.u32 %v3524, 2139095040
  %v3639 = vshrl.u32 %v3638, 23
  %v3640 = vsub.s32 %v3639, 127
  %v3641 = vand.u32 2147483647, %v3524
  %v3642 = vand.u32 %v3641, 8388607
  %v3643 = vor.u32 %v3642, 8388608
  %v3644 = vsub.s32 0, %v3643
  %v3645 = vadd.s32 %v3640, 1
  %vm3646 = vcmp.gt.s32.totalorder %v3645, 0
  %v3647 = vsel %vm3646, %v3645, 0
  %v3648 = vshrl.u32 %v3647, 5
  %v3649 = vand.u32 %v3647, 31
  %v3650 = vsub.s32 32, %v3649
  %v3651 = vshrl.u32 683565275, %v3650
  %v3652 = vshll.u32 683565275, %v3649
  %v3653 = vshrl.u32 2475754826, %v3650
  %v3654 = vor.u32 %v3652, %v3653
  %v3655 = vshll.u32 2475754826, %v3649
  %v3656 = vshrl.u32 2131351028, %v3650
  %v3657 = vor.u32 %v3655, %v3656
  %v3658 = vshll.u32 2131351028, %v3649
  %v3659 = vshrl.u32 2102212464, %v3650
  %v3660 = vor.u32 %v3658, %v3659
  %v3661 = vshll.u32 2102212464, %v3649
  %v3662 = vshrl.u32 920167782, %v3650
  %v3663 = vor.u32 %v3661, %v3662
  %v3664 = vshll.u32 920167782, %v3649
  %v3665 = vshrl.u32 1326507024, %v3650
  %v3666 = vor.u32 %v3664, %v3665
  %vm3667 = vcmp.lt.s32.totalorder %v3648, 1
  %vm3668 = vcmp.lt.s32.totalorder %v3648, 2
  %vm3669 = vcmp.lt.s32.totalorder %v3648, 3
  %vm3670 = vcmp.lt.s32.totalorder %v3648, 4
  %v3671 = vsel %vm3667, %v3651, %v3654
  %v3672 = vsel %vm3670, %v3660, 2102212464
  %v3673 = vsel %vm3669, %v3657, %v3672
  %v3674 = vsel %vm3668, %v3671, %v3673
  %v3675 = vsel %vm3667, %v3654, %v3657
  %v3676 = vsel %vm3670, %v3663, 920167782
  %v3677 = vsel %vm3669, %v3660, %v3676
  %v3678 = vsel %vm3668, %v3675, %v3677
  %v3679 = vsel %vm3667, %v3657, %v3660
  %v3680 = vsel %vm3670, %v3666, 1326507024
  %v3681 = vsel %vm3669, %v3663, %v3680
  %v3682 = vsel %vm3668, %v3679, %v3681
  %v3683 = vshll.u32 %v3643, 8
  %v3684 = vmul.u32.u64.compose %v3683, %v3682
  %v3685 = vextract.low.u32 %v3684
  %v3686 = vextract.high.u32 %v3684
  %v3687 = vmul.u32.u64.compose %v3683, %v3678
  %v3688 = vextract.low.u32 %v3687
  %v3689 = vextract.high.u32 %v3687
  %v3690 = vmul.u32 %v3683, %v3674
  %v3691 = vadd.s32 %v3686, %v3688
  %vm3692 = vc.u32 %v3686, %v3688
  %v3693 = vadd.s32 %v3689, 1
  %v3694 = vsel %vm3692, %v3693, %v3689
  %v3695 = vadd.s32 %v3690, %v3694
  %v3696 = vadd.s32 %v3695, 536870912
  %v3697 = vshrl.u32 %v3696, 30
  %v3698 = vshll.u32 %v3697, 30
  %v3699 = vsub.s32 %v3695, %v3698
  %vm3700 = vcmp.lt.s32.totalorder %v3699, 0
  %v3701 = vsub.s32 0, %v3699
  %v3702 = vsel %vm3700, %v3701, %v3699
  %v3703 = vclz %v3702
  %v3704 = vsub.s32 %v3703, 2
  %vm3705 = vcmp.gt.s32.totalorder 0, %v3704
  %v3706 = vsel %vm3705, 0, %v3704
  %v3707 = vsub.s32 32, %v3706
  %v3708 = vshll.u32 %v3699, %v3706
  %v3709 = vshrl.u32 %v3691, %v3707
  %v3710 = vor.u32 %v3708, %v3709
  %v3711 = vsub.s32 4294967266, %v3706
  %v3712 = vadd.s32 %v3711, 127
  %v3713 = vshll.u32 %v3712, 23
  %v3714 = vor.u32 4788187, %v3713
  %v3715 = vand.u32 2147483647, %v3714
  %v3717 = vcvt.s32.f32 %v3710
  %v3718 = vmul.f32 %v3717, %v3715
  %v3719 = vxor.u32 %v3718, 2147483648
  %v3720 = vsel %vm3637, %v3719, %v3718
  %v3721 = vsub.s32 4, %v3697
  %v3722 = vsel %vm3637, %v3721, %v3697
  %v3723 = vsel %vm3636, %v3524, %v3720
  %v3724 = vsel %vm3636, 0, %v3722
  %v3725 = vcosq.f32.pop %v3723
  %v3726 = vsinq.f32.pop %v3723
  %vm3727 = vweird.f32 %v3524
  %v3728 = vadd.s32 %v3724, 3
  %v3729 = vand.u32 %v3728, 3
  %vm3730 = vcmp.lt.s32.totalorder %v3729, 2
  %vm3731 = vcmp.eq.s32.totalorder %v3729, 0
  %v3732 = vxor.u32 %v3726, 2147483648
  %v3733 = vsel %vm3731, %v3725, %v3732
  %vm3734 = vcmp.eq.s32.totalorder %v3729, 2
  %v3735 = vxor.u32 %v3725, 2147483648
  %v3736 = vsel %vm3734, %v3735, %v3726
  %v3737 = vsel %vm3730, %v3733, %v3736
  %v3738 = vsel %vm3727, nan, %v3737
  %v3739 = vand.u32 2147483647, %v3525
  %vm3740 = vcmp.le.f32.partialorder %v3739, 0.7853982
  %vm3741 = vcmp.lt.s32.totalorder %v3525, 0
  %v3742 = vand.u32 %v3525, 2139095040
  %v3743 = vshrl.u32 %v3742, 23
  %v3744 = vsub.s32 %v3743, 127
  %v3745 = vand.u32 2147483647, %v3525
  %v3746 = vand.u32 %v3745, 8388607
  %v3747 = vor.u32 %v3746, 8388608
  %v3748 = vsub.s32 0, %v3747
  %v3749 = vadd.s32 %v3744, 1
  %vm3750 = vcmp.gt.s32.totalorder %v3749, 0
  %v3751 = vsel %vm3750, %v3749, 0
  %v3752 = vshrl.u32 %v3751, 5
  %v3753 = vand.u32 %v3751, 31
  %v3754 = vsub.s32 32, %v3753
  %v3755 = vshrl.u32 683565275, %v3754
  %v3756 = vshll.u32 683565275, %v3753
  %v3757 = vshrl.u32 2475754826, %v3754
  %v3758 = vor.u32 %v3756, %v3757
  %v3759 = vshll.u32 2475754826, %v3753
  %v3760 = vshrl.u32 2131351028, %v3754
  %v3761 = vor.u32 %v3759, %v3760
  %v3762 = vshll.u32 2131351028, %v3753
  %v3763 = vshrl.u32 2102212464, %v3754
  %v3764 = vor.u32 %v3762, %v3763
  %v3765 = vshll.u32 2102212464, %v3753
  %v3766 = vshrl.u32 920167782, %v3754
  %v3767 = vor.u32 %v3765, %v3766
  %v3768 = vshll.u32 920167782, %v3753
  %v3769 = vshrl.u32 1326507024, %v3754
  %v3770 = vor.u32 %v3768, %v3769
  %vm3771 = vcmp.lt.s32.totalorder %v3752, 1
  %vm3772 = vcmp.lt.s32.totalorder %v3752, 2
  %vm3773 = vcmp.lt.s32.totalorder %v3752, 3
  %vm3774 = vcmp.lt.s32.totalorder %v3752, 4
  %v3775 = vsel %vm3771, %v3755, %v3758
  %v3776 = vsel %vm3774, %v3764, 2102212464
  %v3777 = vsel %vm3773, %v3761, %v3776
  %v3778 = vsel %vm3772, %v3775, %v3777
  %v3779 = vsel %vm3771, %v3758, %v3761
  %v3780 = vsel %vm3774, %v3767, 920167782
  %v3781 = vsel %vm3773, %v3764, %v3780
  %v3782 = vsel %vm3772, %v3779, %v3781
  %v3783 = vsel %vm3771, %v3761, %v3764
  %v3784 = vsel %vm3774, %v3770, 1326507024
  %v3785 = vsel %vm3773, %v3767, %v3784
  %v3786 = vsel %vm3772, %v3783, %v3785
  %v3787 = vshll.u32 %v3747, 8
  %v3788 = vmul.u32.u64.compose %v3787, %v3786
  %v3789 = vextract.low.u32 %v3788
  %v3790 = vextract.high.u32 %v3788
  %v3791 = vmul.u32.u64.compose %v3787, %v3782
  %v3792 = vextract.low.u32 %v3791
  %v3793 = vextract.high.u32 %v3791
  %v3794 = vmul.u32 %v3787, %v3778
  %v3795 = vadd.s32 %v3790, %v3792
  %vm3796 = vc.u32 %v3790, %v3792
  %v3797 = vadd.s32 %v3793, 1
  %v3798 = vsel %vm3796, %v3797, %v3793
  %v3799 = vadd.s32 %v3794, %v3798
  %v3800 = vadd.s32 %v3799, 536870912
  %v3801 = vshrl.u32 %v3800, 30
  %v3802 = vshll.u32 %v3801, 30
  %v3803 = vsub.s32 %v3799, %v3802
  %vm3804 = vcmp.lt.s32.totalorder %v3803, 0
  %v3805 = vsub.s32 0, %v3803
  %v3806 = vsel %vm3804, %v3805, %v3803
  %v3807 = vclz %v3806
  %v3808 = vsub.s32 %v3807, 2
  %vm3809 = vcmp.gt.s32.totalorder 0, %v3808
  %v3810 = vsel %vm3809, 0, %v3808
  %v3811 = vsub.s32 32, %v3810
  %v3812 = vshll.u32 %v3803, %v3810
  %v3813 = vshrl.u32 %v3795, %v3811
  %v3814 = vor.u32 %v3812, %v3813
  %v3815 = vsub.s32 4294967266, %v3810
  %v3816 = vadd.s32 %v3815, 127
  %v3817 = vshll.u32 %v3816, 23
  %v3818 = vor.u32 4788187, %v3817
  %v3819 = vand.u32 2147483647, %v3818
  %v3821 = vcvt.s32.f32 %v3814
  %v3822 = vmul.f32 %v3821, %v3819
  %v3823 = vxor.u32 %v3822, 2147483648
  %v3824 = vsel %vm3741, %v3823, %v3822
  %v3825 = vsub.s32 4, %v3801
  %v3826 = vsel %vm3741, %v3825, %v3801
  %v3827 = vsel %vm3740, %v3525, %v3824
  %v3828 = vsel %vm3740, 0, %v3826
  %v3829 = vcosq.f32.pop %v3827
  %v3830 = vsinq.f32.pop %v3827
  %vm3831 = vweird.f32 %v3525
  %v3832 = vadd.s32 %v3828, 3
  %v3833 = vand.u32 %v3832, 3
  %vm3834 = vcmp.lt.s32.totalorder %v3833, 2
  %vm3835 = vcmp.eq.s32.totalorder %v3833, 0
  %v3836 = vxor.u32 %v3830, 2147483648
  %v3837 = vsel %vm3835, %v3829, %v3836
  %vm3838 = vcmp.eq.s32.totalorder %v3833, 2
  %v3839 = vxor.u32 %v3829, 2147483648
  %v3840 = vsel %vm3838, %v3839, %v3830
  %v3841 = vsel %vm3834, %v3837, %v3840
  %v3842 = vsel %vm3831, nan, %v3841
  %v3843 = vand.u32 2147483647, %v3526
  %vm3844 = vcmp.le.f32.partialorder %v3843, 0.7853982
  %vm3845 = vcmp.lt.s32.totalorder %v3526, 0
  %v3846 = vand.u32 %v3526, 2139095040
  %v3847 = vshrl.u32 %v3846, 23
  %v3848 = vsub.s32 %v3847, 127
  %v3849 = vand.u32 2147483647, %v3526
  %v3850 = vand.u32 %v3849, 8388607
  %v3851 = vor.u32 %v3850, 8388608
  %v3852 = vsub.s32 0, %v3851
  %v3853 = vadd.s32 %v3848, 1
  %vm3854 = vcmp.gt.s32.totalorder %v3853, 0
  %v3855 = vsel %vm3854, %v3853, 0
  %v3856 = vshrl.u32 %v3855, 5
  %v3857 = vand.u32 %v3855, 31
  %v3858 = vsub.s32 32, %v3857
  %v3859 = vshrl.u32 683565275, %v3858
  %v3860 = vshll.u32 683565275, %v3857
  %v3861 = vshrl.u32 2475754826, %v3858
  %v3862 = vor.u32 %v3860, %v3861
  %v3863 = vshll.u32 2475754826, %v3857
  %v3864 = vshrl.u32 2131351028, %v3858
  %v3865 = vor.u32 %v3863, %v3864
  %v3866 = vshll.u32 2131351028, %v3857
  %v3867 = vshrl.u32 2102212464, %v3858
  %v3868 = vor.u32 %v3866, %v3867
  %v3869 = vshll.u32 2102212464, %v3857
  %v3870 = vshrl.u32 920167782, %v3858
  %v3871 = vor.u32 %v3869, %v3870
  %v3872 = vshll.u32 920167782, %v3857
  %v3873 = vshrl.u32 1326507024, %v3858
  %v3874 = vor.u32 %v3872, %v3873
  %vm3875 = vcmp.lt.s32.totalorder %v3856, 1
  %vm3876 = vcmp.lt.s32.totalorder %v3856, 2
  %vm3877 = vcmp.lt.s32.totalorder %v3856, 3
  %vm3878 = vcmp.lt.s32.totalorder %v3856, 4
  %v3879 = vsel %vm3875, %v3859, %v3862
  %v3880 = vsel %vm3878, %v3868, 2102212464
  %v3881 = vsel %vm3877, %v3865, %v3880
  %v3882 = vsel %vm3876, %v3879, %v3881
  %v3883 = vsel %vm3875, %v3862, %v3865
  %v3884 = vsel %vm3878, %v3871, 920167782
  %v3885 = vsel %vm3877, %v3868, %v3884
  %v3886 = vsel %vm3876, %v3883, %v3885
  %v3887 = vsel %vm3875, %v3865, %v3868
  %v3888 = vsel %vm3878, %v3874, 1326507024
  %v3889 = vsel %vm3877, %v3871, %v3888
  %v3890 = vsel %vm3876, %v3887, %v3889
  %v3891 = vshll.u32 %v3851, 8
  %v3892 = vmul.u32.u64.compose %v3891, %v3890
  %v3893 = vextract.low.u32 %v3892
  %v3894 = vextract.high.u32 %v3892
  %v3895 = vmul.u32.u64.compose %v3891, %v3886
  %v3896 = vextract.low.u32 %v3895
  %v3897 = vextract.high.u32 %v3895
  %v3898 = vmul.u32 %v3891, %v3882
  %v3899 = vadd.s32 %v3894, %v3896
  %vm3900 = vc.u32 %v3894, %v3896
  %v3901 = vadd.s32 %v3897, 1
  %v3902 = vsel %vm3900, %v3901, %v3897
  %v3903 = vadd.s32 %v3898, %v3902
  %v3904 = vadd.s32 %v3903, 536870912
  %v3905 = vshrl.u32 %v3904, 30
  %v3906 = vshll.u32 %v3905, 30
  %v3907 = vsub.s32 %v3903, %v3906
  %vm3908 = vcmp.lt.s32.totalorder %v3907, 0
  %v3909 = vsub.s32 0, %v3907
  %v3910 = vsel %vm3908, %v3909, %v3907
  %v3911 = vclz %v3910
  %v3912 = vsub.s32 %v3911, 2
  %vm3913 = vcmp.gt.s32.totalorder 0, %v3912
  %v3914 = vsel %vm3913, 0, %v3912
  %v3915 = vsub.s32 32, %v3914
  %v3916 = vshll.u32 %v3907, %v3914
  %v3917 = vshrl.u32 %v3899, %v3915
  %v3918 = vor.u32 %v3916, %v3917
  %v3919 = vsub.s32 4294967266, %v3914
  %v3920 = vadd.s32 %v3919, 127
  %v3921 = vshll.u32 %v3920, 23
  %v3922 = vor.u32 4788187, %v3921
  %v3923 = vand.u32 2147483647, %v3922
  %v3925 = vcvt.s32.f32 %v3918
  %v3926 = vmul.f32 %v3925, %v3923
  %v3927 = vxor.u32 %v3926, 2147483648
  %v3928 = vsel %vm3845, %v3927, %v3926
  %v3929 = vsub.s32 4, %v3905
  %v3930 = vsel %vm3845, %v3929, %v3905
  %v3931 = vsel %vm3844, %v3526, %v3928
  %v3932 = vsel %vm3844, 0, %v3930
  %v3933 = vcosq.f32.pop %v3931
  %v3934 = vsinq.f32.pop %v3931
  %vm3935 = vweird.f32 %v3526
  %v3936 = vadd.s32 %v3932, 3
  %v3937 = vand.u32 %v3936, 3
  %vm3938 = vcmp.lt.s32.totalorder %v3937, 2
  %vm3939 = vcmp.eq.s32.totalorder %v3937, 0
  %v3940 = vxor.u32 %v3934, 2147483648
  %v3941 = vsel %vm3939, %v3933, %v3940
  %vm3942 = vcmp.eq.s32.totalorder %v3937, 2
  %v3943 = vxor.u32 %v3933, 2147483648
  %v3944 = vsel %vm3942, %v3943, %v3934
  %v3945 = vsel %vm3938, %v3941, %v3944
  %v3946 = vsel %vm3935, nan, %v3945
  %v3947 = vand.u32 2147483647, %v3527
  %vm3948 = vcmp.le.f32.partialorder %v3947, 0.7853982
  %vm3949 = vcmp.lt.s32.totalorder %v3527, 0
  %v3950 = vand.u32 %v3527, 2139095040
  %v3951 = vshrl.u32 %v3950, 23
  %v3952 = vsub.s32 %v3951, 127
  %v3953 = vand.u32 2147483647, %v3527
  %v3954 = vand.u32 %v3953, 8388607
  %v3955 = vor.u32 %v3954, 8388608
  %v3956 = vsub.s32 0, %v3955
  %v3957 = vadd.s32 %v3952, 1
  %vm3958 = vcmp.gt.s32.totalorder %v3957, 0
  %v3959 = vsel %vm3958, %v3957, 0
  %v3960 = vshrl.u32 %v3959, 5
  %v3961 = vand.u32 %v3959, 31
  %v3962 = vsub.s32 32, %v3961
  %v3963 = vshrl.u32 683565275, %v3962
  %v3964 = vshll.u32 683565275, %v3961
  %v3965 = vshrl.u32 2475754826, %v3962
  %v3966 = vor.u32 %v3964, %v3965
  %v3967 = vshll.u32 2475754826, %v3961
  %v3968 = vshrl.u32 2131351028, %v3962
  %v3969 = vor.u32 %v3967, %v3968
  %v3970 = vshll.u32 2131351028, %v3961
  %v3971 = vshrl.u32 2102212464, %v3962
  %v3972 = vor.u32 %v3970, %v3971
  %v3973 = vshll.u32 2102212464, %v3961
  %v3974 = vshrl.u32 920167782, %v3962
  %v3975 = vor.u32 %v3973, %v3974
  %v3976 = vshll.u32 920167782, %v3961
  %v3977 = vshrl.u32 1326507024, %v3962
  %v3978 = vor.u32 %v3976, %v3977
  %vm3979 = vcmp.lt.s32.totalorder %v3960, 1
  %vm3980 = vcmp.lt.s32.totalorder %v3960, 2
  %vm3981 = vcmp.lt.s32.totalorder %v3960, 3
  %vm3982 = vcmp.lt.s32.totalorder %v3960, 4
  %v3983 = vsel %vm3979, %v3963, %v3966
  %v3984 = vsel %vm3982, %v3972, 2102212464
  %v3985 = vsel %vm3981, %v3969, %v3984
  %v3986 = vsel %vm3980, %v3983, %v3985
  %v3987 = vsel %vm3979, %v3966, %v3969
  %v3988 = vsel %vm3982, %v3975, 920167782
  %v3989 = vsel %vm3981, %v3972, %v3988
  %v3990 = vsel %vm3980, %v3987, %v3989
  %v3991 = vsel %vm3979, %v3969, %v3972
  %v3992 = vsel %vm3982, %v3978, 1326507024
  %v3993 = vsel %vm3981, %v3975, %v3992
  %v3994 = vsel %vm3980, %v3991, %v3993
  %v3995 = vshll.u32 %v3955, 8
  %v3996 = vmul.u32.u64.compose %v3995, %v3994
  %v3997 = vextract.low.u32 %v3996
  %v3998 = vextract.high.u32 %v3996
  %v3999 = vmul.u32.u64.compose %v3995, %v3990
  %v4000 = vextract.low.u32 %v3999
  %v4001 = vextract.high.u32 %v3999
  %v4002 = vmul.u32 %v3995, %v3986
  %v4003 = vadd.s32 %v3998, %v4000
  %vm4004 = vc.u32 %v3998, %v4000
  %v4005 = vadd.s32 %v4001, 1
  %v4006 = vsel %vm4004, %v4005, %v4001
  %v4007 = vadd.s32 %v4002, %v4006
  %v4008 = vadd.s32 %v4007, 536870912
  %v4009 = vshrl.u32 %v4008, 30
  %v4010 = vshll.u32 %v4009, 30
  %v4011 = vsub.s32 %v4007, %v4010
  %vm4012 = vcmp.lt.s32.totalorder %v4011, 0
  %v4013 = vsub.s32 0, %v4011
  %v4014 = vsel %vm4012, %v4013, %v4011
  %v4015 = vclz %v4014
  %v4016 = vsub.s32 %v4015, 2
  %vm4017 = vcmp.gt.s32.totalorder 0, %v4016
  %v4018 = vsel %vm4017, 0, %v4016
  %v4019 = vsub.s32 32, %v4018
  %v4020 = vshll.u32 %v4011, %v4018
  %v4021 = vshrl.u32 %v4003, %v4019
  %v4022 = vor.u32 %v4020, %v4021
  %v4023 = vsub.s32 4294967266, %v4018
  %v4024 = vadd.s32 %v4023, 127
  %v4025 = vshll.u32 %v4024, 23
  %v4026 = vor.u32 4788187, %v4025
  %v4027 = vand.u32 2147483647, %v4026
  %v4029 = vcvt.s32.f32 %v4022
  %v4030 = vmul.f32 %v4029, %v4027
  %v4031 = vxor.u32 %v4030, 2147483648
  %v4032 = vsel %vm3949, %v4031, %v4030
  %v4033 = vsub.s32 4, %v4009
  %v4034 = vsel %vm3949, %v4033, %v4009
  %v4035 = vsel %vm3948, %v3527, %v4032
  %v4036 = vsel %vm3948, 0, %v4034
  %v4037 = vcosq.f32.pop %v4035
  %v4038 = vsinq.f32.pop %v4035
  %vm4039 = vweird.f32 %v3527
  %v4040 = vadd.s32 %v4036, 3
  %v4041 = vand.u32 %v4040, 3
  %vm4042 = vcmp.lt.s32.totalorder %v4041, 2
  %vm4043 = vcmp.eq.s32.totalorder %v4041, 0
  %v4044 = vxor.u32 %v4038, 2147483648
  %v4045 = vsel %vm4043, %v4037, %v4044
  %vm4046 = vcmp.eq.s32.totalorder %v4041, 2
  %v4047 = vxor.u32 %v4037, 2147483648
  %v4048 = vsel %vm4046, %v4047, %v4038
  %v4049 = vsel %vm4042, %v4045, %v4048
  %v4050 = vsel %vm4039, nan, %v4049
  %v4051 = vand.u32 2147483647, %v3528
  %vm4052 = vcmp.le.f32.partialorder %v4051, 0.7853982
  %vm4053 = vcmp.lt.s32.totalorder %v3528, 0
  %v4054 = vand.u32 %v3528, 2139095040
  %v4055 = vshrl.u32 %v4054, 23
  %v4056 = vsub.s32 %v4055, 127
  %v4057 = vand.u32 2147483647, %v3528
  %v4058 = vand.u32 %v4057, 8388607
  %v4059 = vor.u32 %v4058, 8388608
  %v4060 = vsub.s32 0, %v4059
  %v4061 = vadd.s32 %v4056, 1
  %vm4062 = vcmp.gt.s32.totalorder %v4061, 0
  %v4063 = vsel %vm4062, %v4061, 0
  %v4064 = vshrl.u32 %v4063, 5
  %v4065 = vand.u32 %v4063, 31
  %v4066 = vsub.s32 32, %v4065
  %v4067 = vshrl.u32 683565275, %v4066
  %v4068 = vshll.u32 683565275, %v4065
  %v4069 = vshrl.u32 2475754826, %v4066
  %v4070 = vor.u32 %v4068, %v4069
  %v4071 = vshll.u32 2475754826, %v4065
  %v4072 = vshrl.u32 2131351028, %v4066
  %v4073 = vor.u32 %v4071, %v4072
  %v4074 = vshll.u32 2131351028, %v4065
  %v4075 = vshrl.u32 2102212464, %v4066
  %v4076 = vor.u32 %v4074, %v4075
  %v4077 = vshll.u32 2102212464, %v4065
  %v4078 = vshrl.u32 920167782, %v4066
  %v4079 = vor.u32 %v4077, %v4078
  %v4080 = vshll.u32 920167782, %v4065
  %v4081 = vshrl.u32 1326507024, %v4066
  %v4082 = vor.u32 %v4080, %v4081
  %vm4083 = vcmp.lt.s32.totalorder %v4064, 1
  %vm4084 = vcmp.lt.s32.totalorder %v4064, 2
  %vm4085 = vcmp.lt.s32.totalorder %v4064, 3
  %vm4086 = vcmp.lt.s32.totalorder %v4064, 4
  %v4087 = vsel %vm4083, %v4067, %v4070
  %v4088 = vsel %vm4086, %v4076, 2102212464
  %v4089 = vsel %vm4085, %v4073, %v4088
  %v4090 = vsel %vm4084, %v4087, %v4089
  %v4091 = vsel %vm4083, %v4070, %v4073
  %v4092 = vsel %vm4086, %v4079, 920167782
  %v4093 = vsel %vm4085, %v4076, %v4092
  %v4094 = vsel %vm4084, %v4091, %v4093
  %v4095 = vsel %vm4083, %v4073, %v4076
  %v4096 = vsel %vm4086, %v4082, 1326507024
  %v4097 = vsel %vm4085, %v4079, %v4096
  %v4098 = vsel %vm4084, %v4095, %v4097
  %v4099 = vshll.u32 %v4059, 8
  %v4100 = vmul.u32.u64.compose %v4099, %v4098
  %v4101 = vextract.low.u32 %v4100
  %v4102 = vextract.high.u32 %v4100
  %v4103 = vmul.u32.u64.compose %v4099, %v4094
  %v4104 = vextract.low.u32 %v4103
  %v4105 = vextract.high.u32 %v4103
  %v4106 = vmul.u32 %v4099, %v4090
  %v4107 = vadd.s32 %v4102, %v4104
  %vm4108 = vc.u32 %v4102, %v4104
  %v4109 = vadd.s32 %v4105, 1
  %v4110 = vsel %vm4108, %v4109, %v4105
  %v4111 = vadd.s32 %v4106, %v4110
  %v4112 = vadd.s32 %v4111, 536870912
  %v4113 = vshrl.u32 %v4112, 30
  %v4114 = vshll.u32 %v4113, 30
  %v4115 = vsub.s32 %v4111, %v4114
  %vm4116 = vcmp.lt.s32.totalorder %v4115, 0
  %v4117 = vsub.s32 0, %v4115
  %v4118 = vsel %vm4116, %v4117, %v4115
  %v4119 = vclz %v4118
  %v4120 = vsub.s32 %v4119, 2
  %vm4121 = vcmp.gt.s32.totalorder 0, %v4120
  %v4122 = vsel %vm4121, 0, %v4120
  %v4123 = vsub.s32 32, %v4122
  %v4124 = vshll.u32 %v4115, %v4122
  %v4125 = vshrl.u32 %v4107, %v4123
  %v4126 = vor.u32 %v4124, %v4125
  %v4127 = vsub.s32 4294967266, %v4122
  %v4128 = vadd.s32 %v4127, 127
  %v4129 = vshll.u32 %v4128, 23
  %v4130 = vor.u32 4788187, %v4129
  %v4131 = vand.u32 2147483647, %v4130
  %v4133 = vcvt.s32.f32 %v4126
  %v4134 = vmul.f32 %v4133, %v4131
  %v4135 = vxor.u32 %v4134, 2147483648
  %v4136 = vsel %vm4053, %v4135, %v4134
  %v4137 = vsub.s32 4, %v4113
  %v4138 = vsel %vm4053, %v4137, %v4113
  %v4139 = vsel %vm4052, %v3528, %v4136
  %v4140 = vsel %vm4052, 0, %v4138
  %v4141 = vcosq.f32.pop %v4139
  %v4142 = vsinq.f32.pop %v4139
  %vm4143 = vweird.f32 %v3528
  %v4144 = vadd.s32 %v4140, 3
  %v4145 = vand.u32 %v4144, 3
  %vm4146 = vcmp.lt.s32.totalorder %v4145, 2
  %vm4147 = vcmp.eq.s32.totalorder %v4145, 0
  %v4148 = vxor.u32 %v4142, 2147483648
  %v4149 = vsel %vm4147, %v4141, %v4148
  %vm4150 = vcmp.eq.s32.totalorder %v4145, 2
  %v4151 = vxor.u32 %v4141, 2147483648
  %v4152 = vsel %vm4150, %v4151, %v4142
  %v4153 = vsel %vm4146, %v4149, %v4152
  %v4154 = vsel %vm4143, nan, %v4153
  %v4155 = vand.u32 2147483647, %v3529
  %vm4156 = vcmp.le.f32.partialorder %v4155, 0.7853982
  %vm4157 = vcmp.lt.s32.totalorder %v3529, 0
  %v4158 = vand.u32 %v3529, 2139095040
  %v4159 = vshrl.u32 %v4158, 23
  %v4160 = vsub.s32 %v4159, 127
  %v4161 = vand.u32 2147483647, %v3529
  %v4162 = vand.u32 %v4161, 8388607
  %v4163 = vor.u32 %v4162, 8388608
  %v4164 = vsub.s32 0, %v4163
  %v4165 = vadd.s32 %v4160, 1
  %vm4166 = vcmp.gt.s32.totalorder %v4165, 0
  %v4167 = vsel %vm4166, %v4165, 0
  %v4168 = vshrl.u32 %v4167, 5
  %v4169 = vand.u32 %v4167, 31
  %v4170 = vsub.s32 32, %v4169
  %v4171 = vshrl.u32 683565275, %v4170
  %v4172 = vshll.u32 683565275, %v4169
  %v4173 = vshrl.u32 2475754826, %v4170
  %v4174 = vor.u32 %v4172, %v4173
  %v4175 = vshll.u32 2475754826, %v4169
  %v4176 = vshrl.u32 2131351028, %v4170
  %v4177 = vor.u32 %v4175, %v4176
  %v4178 = vshll.u32 2131351028, %v4169
  %v4179 = vshrl.u32 2102212464, %v4170
  %v4180 = vor.u32 %v4178, %v4179
  %v4181 = vshll.u32 2102212464, %v4169
  %v4182 = vshrl.u32 920167782, %v4170
  %v4183 = vor.u32 %v4181, %v4182
  %v4184 = vshll.u32 920167782, %v4169
  %v4185 = vshrl.u32 1326507024, %v4170
  %v4186 = vor.u32 %v4184, %v4185
  %vm4187 = vcmp.lt.s32.totalorder %v4168, 1
  %vm4188 = vcmp.lt.s32.totalorder %v4168, 2
  %vm4189 = vcmp.lt.s32.totalorder %v4168, 3
  %vm4190 = vcmp.lt.s32.totalorder %v4168, 4
  %v4191 = vsel %vm4187, %v4171, %v4174
  %v4192 = vsel %vm4190, %v4180, 2102212464
  %v4193 = vsel %vm4189, %v4177, %v4192
  %v4194 = vsel %vm4188, %v4191, %v4193
  %v4195 = vsel %vm4187, %v4174, %v4177
  %v4196 = vsel %vm4190, %v4183, 920167782
  %v4197 = vsel %vm4189, %v4180, %v4196
  %v4198 = vsel %vm4188, %v4195, %v4197
  %v4199 = vsel %vm4187, %v4177, %v4180
  %v4200 = vsel %vm4190, %v4186, 1326507024
  %v4201 = vsel %vm4189, %v4183, %v4200
  %v4202 = vsel %vm4188, %v4199, %v4201
  %v4203 = vshll.u32 %v4163, 8
  %v4204 = vmul.u32.u64.compose %v4203, %v4202
  %v4205 = vextract.low.u32 %v4204
  %v4206 = vextract.high.u32 %v4204
  %v4207 = vmul.u32.u64.compose %v4203, %v4198
  %v4208 = vextract.low.u32 %v4207
  %v4209 = vextract.high.u32 %v4207
  %v4210 = vmul.u32 %v4203, %v4194
  %v4211 = vadd.s32 %v4206, %v4208
  %vm4212 = vc.u32 %v4206, %v4208
  %v4213 = vadd.s32 %v4209, 1
  %v4214 = vsel %vm4212, %v4213, %v4209
  %v4215 = vadd.s32 %v4210, %v4214
  %v4216 = vadd.s32 %v4215, 536870912
  %v4217 = vshrl.u32 %v4216, 30
  %v4218 = vshll.u32 %v4217, 30
  %v4219 = vsub.s32 %v4215, %v4218
  %vm4220 = vcmp.lt.s32.totalorder %v4219, 0
  %v4221 = vsub.s32 0, %v4219
  %v4222 = vsel %vm4220, %v4221, %v4219
  %v4223 = vclz %v4222
  %v4224 = vsub.s32 %v4223, 2
  %vm4225 = vcmp.gt.s32.totalorder 0, %v4224
  %v4226 = vsel %vm4225, 0, %v4224
  %v4227 = vsub.s32 32, %v4226
  %v4228 = vshll.u32 %v4219, %v4226
  %v4229 = vshrl.u32 %v4211, %v4227
  %v4230 = vor.u32 %v4228, %v4229
  %v4231 = vsub.s32 4294967266, %v4226
  %v4232 = vadd.s32 %v4231, 127
  %v4233 = vshll.u32 %v4232, 23
  %v4234 = vor.u32 4788187, %v4233
  %v4235 = vand.u32 2147483647, %v4234
  %v4237 = vcvt.s32.f32 %v4230
  %v4238 = vmul.f32 %v4237, %v4235
  %v4239 = vxor.u32 %v4238, 2147483648
  %v4240 = vsel %vm4157, %v4239, %v4238
  %v4241 = vsub.s32 4, %v4217
  %v4242 = vsel %vm4157, %v4241, %v4217
  %v4243 = vsel %vm4156, %v3529, %v4240
  %v4244 = vsel %vm4156, 0, %v4242
  %v4245 = vcosq.f32.pop %v4243
  %v4246 = vsinq.f32.pop %v4243
  %vm4247 = vweird.f32 %v3529
  %v4248 = vadd.s32 %v4244, 3
  %v4249 = vand.u32 %v4248, 3
  %vm4250 = vcmp.lt.s32.totalorder %v4249, 2
  %vm4251 = vcmp.eq.s32.totalorder %v4249, 0
  %v4252 = vxor.u32 %v4246, 2147483648
  %v4253 = vsel %vm4251, %v4245, %v4252
  %vm4254 = vcmp.eq.s32.totalorder %v4249, 2
  %v4255 = vxor.u32 %v4245, 2147483648
  %v4256 = vsel %vm4254, %v4255, %v4246
  %v4257 = vsel %vm4250, %v4253, %v4256
  %v4258 = vsel %vm4247, nan, %v4257
  %v4259 = vand.u32 2147483647, %v3530
  %vm4260 = vcmp.le.f32.partialorder %v4259, 0.7853982
  %vm4261 = vcmp.lt.s32.totalorder %v3530, 0
  %v4262 = vand.u32 %v3530, 2139095040
  %v4263 = vshrl.u32 %v4262, 23
  %v4264 = vsub.s32 %v4263, 127
  %v4265 = vand.u32 2147483647, %v3530
  %v4266 = vand.u32 %v4265, 8388607
  %v4267 = vor.u32 %v4266, 8388608
  %v4268 = vsub.s32 0, %v4267
  %v4269 = vadd.s32 %v4264, 1
  %vm4270 = vcmp.gt.s32.totalorder %v4269, 0
  %v4271 = vsel %vm4270, %v4269, 0
  %v4272 = vshrl.u32 %v4271, 5
  %v4273 = vand.u32 %v4271, 31
  %v4274 = vsub.s32 32, %v4273
  %v4275 = vshrl.u32 683565275, %v4274
  %v4276 = vshll.u32 683565275, %v4273
  %v4277 = vshrl.u32 2475754826, %v4274
  %v4278 = vor.u32 %v4276, %v4277
  %v4279 = vshll.u32 2475754826, %v4273
  %v4280 = vshrl.u32 2131351028, %v4274
  %v4281 = vor.u32 %v4279, %v4280
  %v4282 = vshll.u32 2131351028, %v4273
  %v4283 = vshrl.u32 2102212464, %v4274
  %v4284 = vor.u32 %v4282, %v4283
  %v4285 = vshll.u32 2102212464, %v4273
  %v4286 = vshrl.u32 920167782, %v4274
  %v4287 = vor.u32 %v4285, %v4286
  %v4288 = vshll.u32 920167782, %v4273
  %v4289 = vshrl.u32 1326507024, %v4274
  %v4290 = vor.u32 %v4288, %v4289
  %vm4291 = vcmp.lt.s32.totalorder %v4272, 1
  %vm4292 = vcmp.lt.s32.totalorder %v4272, 2
  %vm4293 = vcmp.lt.s32.totalorder %v4272, 3
  %vm4294 = vcmp.lt.s32.totalorder %v4272, 4
  %v4295 = vsel %vm4291, %v4275, %v4278
  %v4296 = vsel %vm4294, %v4284, 2102212464
  %v4297 = vsel %vm4293, %v4281, %v4296
  %v4298 = vsel %vm4292, %v4295, %v4297
  %v4299 = vsel %vm4291, %v4278, %v4281
  %v4300 = vsel %vm4294, %v4287, 920167782
  %v4301 = vsel %vm4293, %v4284, %v4300
  %v4302 = vsel %vm4292, %v4299, %v4301
  %v4303 = vsel %vm4291, %v4281, %v4284
  %v4304 = vsel %vm4294, %v4290, 1326507024
  %v4305 = vsel %vm4293, %v4287, %v4304
  %v4306 = vsel %vm4292, %v4303, %v4305
  %v4307 = vshll.u32 %v4267, 8
  %v4308 = vmul.u32.u64.compose %v4307, %v4306
  %v4309 = vextract.low.u32 %v4308
  %v4310 = vextract.high.u32 %v4308
  %v4311 = vmul.u32.u64.compose %v4307, %v4302
  %v4312 = vextract.low.u32 %v4311
  %v4313 = vextract.high.u32 %v4311
  %v4314 = vmul.u32 %v4307, %v4298
  %v4315 = vadd.s32 %v4310, %v4312
  %vm4316 = vc.u32 %v4310, %v4312
  %v4317 = vadd.s32 %v4313, 1
  %v4318 = vsel %vm4316, %v4317, %v4313
  %v4319 = vadd.s32 %v4314, %v4318
  %v4320 = vadd.s32 %v4319, 536870912
  %v4321 = vshrl.u32 %v4320, 30
  %v4322 = vshll.u32 %v4321, 30
  %v4323 = vsub.s32 %v4319, %v4322
  %vm4324 = vcmp.lt.s32.totalorder %v4323, 0
  %v4325 = vsub.s32 0, %v4323
  %v4326 = vsel %vm4324, %v4325, %v4323
  %v4327 = vclz %v4326
  %v4328 = vsub.s32 %v4327, 2
  %vm4329 = vcmp.gt.s32.totalorder 0, %v4328
  %v4330 = vsel %vm4329, 0, %v4328
  %v4331 = vsub.s32 32, %v4330
  %v4332 = vshll.u32 %v4323, %v4330
  %v4333 = vshrl.u32 %v4315, %v4331
  %v4334 = vor.u32 %v4332, %v4333
  %v4335 = vsub.s32 4294967266, %v4330
  %v4336 = vadd.s32 %v4335, 127
  %v4337 = vshll.u32 %v4336, 23
  %v4338 = vor.u32 4788187, %v4337
  %v4339 = vand.u32 2147483647, %v4338
  %v4341 = vcvt.s32.f32 %v4334
  %v4342 = vmul.f32 %v4341, %v4339
  %v4343 = vxor.u32 %v4342, 2147483648
  %v4344 = vsel %vm4261, %v4343, %v4342
  %v4345 = vsub.s32 4, %v4321
  %v4346 = vsel %vm4261, %v4345, %v4321
  %v4347 = vsel %vm4260, %v3530, %v4344
  %v4348 = vsel %vm4260, 0, %v4346
  %v4349 = vcosq.f32.pop %v4347
  %v4350 = vsinq.f32.pop %v4347
  %vm4351 = vweird.f32 %v3530
  %v4352 = vadd.s32 %v4348, 3
  %v4353 = vand.u32 %v4352, 3
  %vm4354 = vcmp.lt.s32.totalorder %v4353, 2
  %vm4355 = vcmp.eq.s32.totalorder %v4353, 0
  %v4356 = vxor.u32 %v4350, 2147483648
  %v4357 = vsel %vm4355, %v4349, %v4356
  %vm4358 = vcmp.eq.s32.totalorder %v4353, 2
  %v4359 = vxor.u32 %v4349, 2147483648
  %v4360 = vsel %vm4358, %v4359, %v4350
  %v4361 = vsel %vm4354, %v4357, %v4360
  %v4362 = vsel %vm4351, nan, %v4361
  %4363 = vst.msk [vmem:[#allocation2] sm:$0xff] %vm1074, %v3634
  %4364 = vst.msk [vmem:[#allocation2 + $0x8] sm:$0xff] %vm1074, %v3738
  %4365 = vst.msk [vmem:[#allocation2 + $0x10] sm:$0xff] %vm1074, %v3842
  %4366 = vst.msk [vmem:[#allocation2 + $0x18] sm:$0xff] %vm1074, %v3946
  %4367 = vst.msk [vmem:[#allocation2 + $0x20] sm:$0xff] %vm1074, %v4050
  %4368 = vst.msk [vmem:[#allocation2 + $0x28] sm:$0xff] %vm1074, %v4154
  %4369 = vst.msk [vmem:[#allocation2 + $0x30] sm:$0xff] %vm1074, %v4258
  %4370 = vst.msk [vmem:[#allocation2 + $0x38] sm:$0xff] %vm1074, %v4362
  %v4371 = vsub.f32 1.0, %v36
  %v4372 = vsub.f32 1.0, %v37
  %v4373 = vsub.f32 1.0, %v38
  %v4374 = vsub.f32 1.0, %v39
  %v4375 = vsub.f32 1.0, %v40
  %v4376 = vsub.f32 1.0, %v41
  %v4377 = vsub.f32 1.0, %v42
  %v4378 = vsub.f32 1.0, %v43
  %4380 = vset.pattern.permute.xlu0 2
  %4381 = vperm.xlu0 %4380, %v4371
  %v4382 = vpop.permute.xlu0 %4381
  %4385 = vset.pattern.permute.xlu0 2
  %4386 = vperm.xlu0 %4385, %v4372
  %v4387 = vpop.permute.xlu0 %4386
  %4390 = vset.pattern.permute.xlu0 2
  %4391 = vperm.xlu0 %4390, %v4373
  %v4392 = vpop.permute.xlu0 %4391
  %4395 = vset.pattern.permute.xlu0 2
  %4396 = vperm.xlu0 %4395, %v4374
  %v4397 = vpop.permute.xlu0 %4396
  %4400 = vset.pattern.permute.xlu0 2
  %4401 = vperm.xlu0 %4400, %v4375
  %v4402 = vpop.permute.xlu0 %4401
  %4405 = vset.pattern.permute.xlu0 2
  %4406 = vperm.xlu0 %4405, %v4376
  %v4407 = vpop.permute.xlu0 %4406
  %4410 = vset.pattern.permute.xlu0 2
  %4411 = vperm.xlu0 %4410, %v4377
  %v4412 = vpop.permute.xlu0 %4411
  %4415 = vset.pattern.permute.xlu0 2
  %4416 = vperm.xlu0 %4415, %v4378
  %v4417 = vpop.permute.xlu0 %4416
  %v4419 = vmul.f32 %v4382, %v225
  %v4420 = vmul.f32 %v4387, %v225
  %v4421 = vmul.f32 %v4392, %v225
  %v4422 = vmul.f32 %v4397, %v225
  %v4423 = vmul.f32 %v4402, %v225
  %v4424 = vmul.f32 %v4407, %v225
  %v4425 = vmul.f32 %v4412, %v225
  %v4426 = vmul.f32 %v4417, %v225
  %v4427 = vadd.f32 %v3515, %v4419
  %v4428 = vadd.f32 %v3516, %v4420
  %v4429 = vadd.f32 %v3517, %v4421
  %v4430 = vadd.f32 %v3518, %v4422
  %v4431 = vadd.f32 %v3519, %v4423
  %v4432 = vadd.f32 %v3520, %v4424
  %v4433 = vadd.f32 %v3521, %v4425
  %v4434 = vadd.f32 %v3522, %v4426
  %v4435 = vand.u32 2147483647, %v4427
  %vm4436 = vcmp.le.f32.partialorder %v4435, 0.7853982
  %vm4437 = vcmp.lt.s32.totalorder %v4427, 0
  %v4438 = vand.u32 %v4427, 2139095040
  %v4439 = vshrl.u32 %v4438, 23
  %v4440 = vsub.s32 %v4439, 127
  %v4441 = vand.u32 2147483647, %v4427
  %v4442 = vand.u32 %v4441, 8388607
  %v4443 = vor.u32 %v4442, 8388608
  %v4444 = vsub.s32 0, %v4443
  %v4445 = vadd.s32 %v4440, 1
  %vm4446 = vcmp.gt.s32.totalorder %v4445, 0
  %v4447 = vsel %vm4446, %v4445, 0
  %v4448 = vshrl.u32 %v4447, 5
  %v4449 = vand.u32 %v4447, 31
  %v4450 = vsub.s32 32, %v4449
  %v4451 = vshrl.u32 683565275, %v4450
  %v4452 = vshll.u32 683565275, %v4449
  %v4453 = vshrl.u32 2475754826, %v4450
  %v4454 = vor.u32 %v4452, %v4453
  %v4455 = vshll.u32 2475754826, %v4449
  %v4456 = vshrl.u32 2131351028, %v4450
  %v4457 = vor.u32 %v4455, %v4456
  %v4458 = vshll.u32 2131351028, %v4449
  %v4459 = vshrl.u32 2102212464, %v4450
  %v4460 = vor.u32 %v4458, %v4459
  %v4461 = vshll.u32 2102212464, %v4449
  %v4462 = vshrl.u32 920167782, %v4450
  %v4463 = vor.u32 %v4461, %v4462
  %v4464 = vshll.u32 920167782, %v4449
  %v4465 = vshrl.u32 1326507024, %v4450
  %v4466 = vor.u32 %v4464, %v4465
  %vm4467 = vcmp.lt.s32.totalorder %v4448, 1
  %vm4468 = vcmp.lt.s32.totalorder %v4448, 2
  %vm4469 = vcmp.lt.s32.totalorder %v4448, 3
  %vm4470 = vcmp.lt.s32.totalorder %v4448, 4
  %v4471 = vsel %vm4467, %v4451, %v4454
  %v4472 = vsel %vm4470, %v4460, 2102212464
  %v4473 = vsel %vm4469, %v4457, %v4472
  %v4474 = vsel %vm4468, %v4471, %v4473
  %v4475 = vsel %vm4467, %v4454, %v4457
  %v4476 = vsel %vm4470, %v4463, 920167782
  %v4477 = vsel %vm4469, %v4460, %v4476
  %v4478 = vsel %vm4468, %v4475, %v4477
  %v4479 = vsel %vm4467, %v4457, %v4460
  %v4480 = vsel %vm4470, %v4466, 1326507024
  %v4481 = vsel %vm4469, %v4463, %v4480
  %v4482 = vsel %vm4468, %v4479, %v4481
  %v4483 = vshll.u32 %v4443, 8
  %v4484 = vmul.u32.u64.compose %v4483, %v4482
  %v4485 = vextract.low.u32 %v4484
  %v4486 = vextract.high.u32 %v4484
  %v4487 = vmul.u32.u64.compose %v4483, %v4478
  %v4488 = vextract.low.u32 %v4487
  %v4489 = vextract.high.u32 %v4487
  %v4490 = vmul.u32 %v4483, %v4474
  %v4491 = vadd.s32 %v4486, %v4488
  %vm4492 = vc.u32 %v4486, %v4488
  %v4493 = vadd.s32 %v4489, 1
  %v4494 = vsel %vm4492, %v4493, %v4489
  %v4495 = vadd.s32 %v4490, %v4494
  %v4496 = vadd.s32 %v4495, 536870912
  %v4497 = vshrl.u32 %v4496, 30
  %v4498 = vshll.u32 %v4497, 30
  %v4499 = vsub.s32 %v4495, %v4498
  %vm4500 = vcmp.lt.s32.totalorder %v4499, 0
  %v4501 = vsub.s32 0, %v4499
  %v4502 = vsel %vm4500, %v4501, %v4499
  %v4503 = vclz %v4502
  %v4504 = vsub.s32 %v4503, 2
  %vm4505 = vcmp.gt.s32.totalorder 0, %v4504
  %v4506 = vsel %vm4505, 0, %v4504
  %v4507 = vsub.s32 32, %v4506
  %v4508 = vshll.u32 %v4499, %v4506
  %v4509 = vshrl.u32 %v4491, %v4507
  %v4510 = vor.u32 %v4508, %v4509
  %v4511 = vsub.s32 4294967266, %v4506
  %v4512 = vadd.s32 %v4511, 127
  %v4513 = vshll.u32 %v4512, 23
  %v4514 = vor.u32 4788187, %v4513
  %v4515 = vand.u32 2147483647, %v4514
  %v4517 = vcvt.s32.f32 %v4510
  %v4518 = vmul.f32 %v4517, %v4515
  %v4519 = vxor.u32 %v4518, 2147483648
  %v4520 = vsel %vm4437, %v4519, %v4518
  %v4521 = vsub.s32 4, %v4497
  %v4522 = vsel %vm4437, %v4521, %v4497
  %v4523 = vsel %vm4436, %v4427, %v4520
  %v4524 = vsel %vm4436, 0, %v4522
  %v4525 = vcosq.f32.pop %v4523
  %v4526 = vsinq.f32.pop %v4523
  %vm4527 = vweird.f32 %v4427
  %v4528 = vadd.s32 %v4524, 3
  %v4529 = vand.u32 %v4528, 3
  %vm4530 = vcmp.lt.s32.totalorder %v4529, 2
  %vm4531 = vcmp.eq.s32.totalorder %v4529, 0
  %v4532 = vxor.u32 %v4526, 2147483648
  %v4533 = vsel %vm4531, %v4525, %v4532
  %vm4534 = vcmp.eq.s32.totalorder %v4529, 2
  %v4535 = vxor.u32 %v4525, 2147483648
  %v4536 = vsel %vm4534, %v4535, %v4526
  %v4537 = vsel %vm4530, %v4533, %v4536
  %v4538 = vsel %vm4527, nan, %v4537
  %v4539 = vand.u32 2147483647, %v4428
  %vm4540 = vcmp.le.f32.partialorder %v4539, 0.7853982
  %vm4541 = vcmp.lt.s32.totalorder %v4428, 0
  %v4542 = vand.u32 %v4428, 2139095040
  %v4543 = vshrl.u32 %v4542, 23
  %v4544 = vsub.s32 %v4543, 127
  %v4545 = vand.u32 2147483647, %v4428
  %v4546 = vand.u32 %v4545, 8388607
  %v4547 = vor.u32 %v4546, 8388608
  %v4548 = vsub.s32 0, %v4547
  %v4549 = vadd.s32 %v4544, 1
  %vm4550 = vcmp.gt.s32.totalorder %v4549, 0
  %v4551 = vsel %vm4550, %v4549, 0
  %v4552 = vshrl.u32 %v4551, 5
  %v4553 = vand.u32 %v4551, 31
  %v4554 = vsub.s32 32, %v4553
  %v4555 = vshrl.u32 683565275, %v4554
  %v4556 = vshll.u32 683565275, %v4553
  %v4557 = vshrl.u32 2475754826, %v4554
  %v4558 = vor.u32 %v4556, %v4557
  %v4559 = vshll.u32 2475754826, %v4553
  %v4560 = vshrl.u32 2131351028, %v4554
  %v4561 = vor.u32 %v4559, %v4560
  %v4562 = vshll.u32 2131351028, %v4553
  %v4563 = vshrl.u32 2102212464, %v4554
  %v4564 = vor.u32 %v4562, %v4563
  %v4565 = vshll.u32 2102212464, %v4553
  %v4566 = vshrl.u32 920167782, %v4554
  %v4567 = vor.u32 %v4565, %v4566
  %v4568 = vshll.u32 920167782, %v4553
  %v4569 = vshrl.u32 1326507024, %v4554
  %v4570 = vor.u32 %v4568, %v4569
  %vm4571 = vcmp.lt.s32.totalorder %v4552, 1
  %vm4572 = vcmp.lt.s32.totalorder %v4552, 2
  %vm4573 = vcmp.lt.s32.totalorder %v4552, 3
  %vm4574 = vcmp.lt.s32.totalorder %v4552, 4
  %v4575 = vsel %vm4571, %v4555, %v4558
  %v4576 = vsel %vm4574, %v4564, 2102212464
  %v4577 = vsel %vm4573, %v4561, %v4576
  %v4578 = vsel %vm4572, %v4575, %v4577
  %v4579 = vsel %vm4571, %v4558, %v4561
  %v4580 = vsel %vm4574, %v4567, 920167782
  %v4581 = vsel %vm4573, %v4564, %v4580
  %v4582 = vsel %vm4572, %v4579, %v4581
  %v4583 = vsel %vm4571, %v4561, %v4564
  %v4584 = vsel %vm4574, %v4570, 1326507024
  %v4585 = vsel %vm4573, %v4567, %v4584
  %v4586 = vsel %vm4572, %v4583, %v4585
  %v4587 = vshll.u32 %v4547, 8
  %v4588 = vmul.u32.u64.compose %v4587, %v4586
  %v4589 = vextract.low.u32 %v4588
  %v4590 = vextract.high.u32 %v4588
  %v4591 = vmul.u32.u64.compose %v4587, %v4582
  %v4592 = vextract.low.u32 %v4591
  %v4593 = vextract.high.u32 %v4591
  %v4594 = vmul.u32 %v4587, %v4578
  %v4595 = vadd.s32 %v4590, %v4592
  %vm4596 = vc.u32 %v4590, %v4592
  %v4597 = vadd.s32 %v4593, 1
  %v4598 = vsel %vm4596, %v4597, %v4593
  %v4599 = vadd.s32 %v4594, %v4598
  %v4600 = vadd.s32 %v4599, 536870912
  %v4601 = vshrl.u32 %v4600, 30
  %v4602 = vshll.u32 %v4601, 30
  %v4603 = vsub.s32 %v4599, %v4602
  %vm4604 = vcmp.lt.s32.totalorder %v4603, 0
  %v4605 = vsub.s32 0, %v4603
  %v4606 = vsel %vm4604, %v4605, %v4603
  %v4607 = vclz %v4606
  %v4608 = vsub.s32 %v4607, 2
  %vm4609 = vcmp.gt.s32.totalorder 0, %v4608
  %v4610 = vsel %vm4609, 0, %v4608
  %v4611 = vsub.s32 32, %v4610
  %v4612 = vshll.u32 %v4603, %v4610
  %v4613 = vshrl.u32 %v4595, %v4611
  %v4614 = vor.u32 %v4612, %v4613
  %v4615 = vsub.s32 4294967266, %v4610
  %v4616 = vadd.s32 %v4615, 127
  %v4617 = vshll.u32 %v4616, 23
  %v4618 = vor.u32 4788187, %v4617
  %v4619 = vand.u32 2147483647, %v4618
  %v4621 = vcvt.s32.f32 %v4614
  %v4622 = vmul.f32 %v4621, %v4619
  %v4623 = vxor.u32 %v4622, 2147483648
  %v4624 = vsel %vm4541, %v4623, %v4622
  %v4625 = vsub.s32 4, %v4601
  %v4626 = vsel %vm4541, %v4625, %v4601
  %v4627 = vsel %vm4540, %v4428, %v4624
  %v4628 = vsel %vm4540, 0, %v4626
  %v4629 = vcosq.f32.pop %v4627
  %v4630 = vsinq.f32.pop %v4627
  %vm4631 = vweird.f32 %v4428
  %v4632 = vadd.s32 %v4628, 3
  %v4633 = vand.u32 %v4632, 3
  %vm4634 = vcmp.lt.s32.totalorder %v4633, 2
  %vm4635 = vcmp.eq.s32.totalorder %v4633, 0
  %v4636 = vxor.u32 %v4630, 2147483648
  %v4637 = vsel %vm4635, %v4629, %v4636
  %vm4638 = vcmp.eq.s32.totalorder %v4633, 2
  %v4639 = vxor.u32 %v4629, 2147483648
  %v4640 = vsel %vm4638, %v4639, %v4630
  %v4641 = vsel %vm4634, %v4637, %v4640
  %v4642 = vsel %vm4631, nan, %v4641
  %v4643 = vand.u32 2147483647, %v4429
  %vm4644 = vcmp.le.f32.partialorder %v4643, 0.7853982
  %vm4645 = vcmp.lt.s32.totalorder %v4429, 0
  %v4646 = vand.u32 %v4429, 2139095040
  %v4647 = vshrl.u32 %v4646, 23
  %v4648 = vsub.s32 %v4647, 127
  %v4649 = vand.u32 2147483647, %v4429
  %v4650 = vand.u32 %v4649, 8388607
  %v4651 = vor.u32 %v4650, 8388608
  %v4652 = vsub.s32 0, %v4651
  %v4653 = vadd.s32 %v4648, 1
  %vm4654 = vcmp.gt.s32.totalorder %v4653, 0
  %v4655 = vsel %vm4654, %v4653, 0
  %v4656 = vshrl.u32 %v4655, 5
  %v4657 = vand.u32 %v4655, 31
  %v4658 = vsub.s32 32, %v4657
  %v4659 = vshrl.u32 683565275, %v4658
  %v4660 = vshll.u32 683565275, %v4657
  %v4661 = vshrl.u32 2475754826, %v4658
  %v4662 = vor.u32 %v4660, %v4661
  %v4663 = vshll.u32 2475754826, %v4657
  %v4664 = vshrl.u32 2131351028, %v4658
  %v4665 = vor.u32 %v4663, %v4664
  %v4666 = vshll.u32 2131351028, %v4657
  %v4667 = vshrl.u32 2102212464, %v4658
  %v4668 = vor.u32 %v4666, %v4667
  %v4669 = vshll.u32 2102212464, %v4657
  %v4670 = vshrl.u32 920167782, %v4658
  %v4671 = vor.u32 %v4669, %v4670
  %v4672 = vshll.u32 920167782, %v4657
  %v4673 = vshrl.u32 1326507024, %v4658
  %v4674 = vor.u32 %v4672, %v4673
  %vm4675 = vcmp.lt.s32.totalorder %v4656, 1
  %vm4676 = vcmp.lt.s32.totalorder %v4656, 2
  %vm4677 = vcmp.lt.s32.totalorder %v4656, 3
  %vm4678 = vcmp.lt.s32.totalorder %v4656, 4
  %v4679 = vsel %vm4675, %v4659, %v4662
  %v4680 = vsel %vm4678, %v4668, 2102212464
  %v4681 = vsel %vm4677, %v4665, %v4680
  %v4682 = vsel %vm4676, %v4679, %v4681
  %v4683 = vsel %vm4675, %v4662, %v4665
  %v4684 = vsel %vm4678, %v4671, 920167782
  %v4685 = vsel %vm4677, %v4668, %v4684
  %v4686 = vsel %vm4676, %v4683, %v4685
  %v4687 = vsel %vm4675, %v4665, %v4668
  %v4688 = vsel %vm4678, %v4674, 1326507024
  %v4689 = vsel %vm4677, %v4671, %v4688
  %v4690 = vsel %vm4676, %v4687, %v4689
  %v4691 = vshll.u32 %v4651, 8
  %v4692 = vmul.u32.u64.compose %v4691, %v4690
  %v4693 = vextract.low.u32 %v4692
  %v4694 = vextract.high.u32 %v4692
  %v4695 = vmul.u32.u64.compose %v4691, %v4686
  %v4696 = vextract.low.u32 %v4695
  %v4697 = vextract.high.u32 %v4695
  %v4698 = vmul.u32 %v4691, %v4682
  %v4699 = vadd.s32 %v4694, %v4696
  %vm4700 = vc.u32 %v4694, %v4696
  %v4701 = vadd.s32 %v4697, 1
  %v4702 = vsel %vm4700, %v4701, %v4697
  %v4703 = vadd.s32 %v4698, %v4702
  %v4704 = vadd.s32 %v4703, 536870912
  %v4705 = vshrl.u32 %v4704, 30
  %v4706 = vshll.u32 %v4705, 30
  %v4707 = vsub.s32 %v4703, %v4706
  %vm4708 = vcmp.lt.s32.totalorder %v4707, 0
  %v4709 = vsub.s32 0, %v4707
  %v4710 = vsel %vm4708, %v4709, %v4707
  %v4711 = vclz %v4710
  %v4712 = vsub.s32 %v4711, 2
  %vm4713 = vcmp.gt.s32.totalorder 0, %v4712
  %v4714 = vsel %vm4713, 0, %v4712
  %v4715 = vsub.s32 32, %v4714
  %v4716 = vshll.u32 %v4707, %v4714
  %v4717 = vshrl.u32 %v4699, %v4715
  %v4718 = vor.u32 %v4716, %v4717
  %v4719 = vsub.s32 4294967266, %v4714
  %v4720 = vadd.s32 %v4719, 127
  %v4721 = vshll.u32 %v4720, 23
  %v4722 = vor.u32 4788187, %v4721
  %v4723 = vand.u32 2147483647, %v4722
  %v4725 = vcvt.s32.f32 %v4718
  %v4726 = vmul.f32 %v4725, %v4723
  %v4727 = vxor.u32 %v4726, 2147483648
  %v4728 = vsel %vm4645, %v4727, %v4726
  %v4729 = vsub.s32 4, %v4705
  %v4730 = vsel %vm4645, %v4729, %v4705
  %v4731 = vsel %vm4644, %v4429, %v4728
  %v4732 = vsel %vm4644, 0, %v4730
  %v4733 = vcosq.f32.pop %v4731
  %v4734 = vsinq.f32.pop %v4731
  %vm4735 = vweird.f32 %v4429
  %v4736 = vadd.s32 %v4732, 3
  %v4737 = vand.u32 %v4736, 3
  %vm4738 = vcmp.lt.s32.totalorder %v4737, 2
  %vm4739 = vcmp.eq.s32.totalorder %v4737, 0
  %v4740 = vxor.u32 %v4734, 2147483648
  %v4741 = vsel %vm4739, %v4733, %v4740
  %vm4742 = vcmp.eq.s32.totalorder %v4737, 2
  %v4743 = vxor.u32 %v4733, 2147483648
  %v4744 = vsel %vm4742, %v4743, %v4734
  %v4745 = vsel %vm4738, %v4741, %v4744
  %v4746 = vsel %vm4735, nan, %v4745
  %v4747 = vand.u32 2147483647, %v4430
  %vm4748 = vcmp.le.f32.partialorder %v4747, 0.7853982
  %vm4749 = vcmp.lt.s32.totalorder %v4430, 0
  %v4750 = vand.u32 %v4430, 2139095040
  %v4751 = vshrl.u32 %v4750, 23
  %v4752 = vsub.s32 %v4751, 127
  %v4753 = vand.u32 2147483647, %v4430
  %v4754 = vand.u32 %v4753, 8388607
  %v4755 = vor.u32 %v4754, 8388608
  %v4756 = vsub.s32 0, %v4755
  %v4757 = vadd.s32 %v4752, 1
  %vm4758 = vcmp.gt.s32.totalorder %v4757, 0
  %v4759 = vsel %vm4758, %v4757, 0
  %v4760 = vshrl.u32 %v4759, 5
  %v4761 = vand.u32 %v4759, 31
  %v4762 = vsub.s32 32, %v4761
  %v4763 = vshrl.u32 683565275, %v4762
  %v4764 = vshll.u32 683565275, %v4761
  %v4765 = vshrl.u32 2475754826, %v4762
  %v4766 = vor.u32 %v4764, %v4765
  %v4767 = vshll.u32 2475754826, %v4761
  %v4768 = vshrl.u32 2131351028, %v4762
  %v4769 = vor.u32 %v4767, %v4768
  %v4770 = vshll.u32 2131351028, %v4761
  %v4771 = vshrl.u32 2102212464, %v4762
  %v4772 = vor.u32 %v4770, %v4771
  %v4773 = vshll.u32 2102212464, %v4761
  %v4774 = vshrl.u32 920167782, %v4762
  %v4775 = vor.u32 %v4773, %v4774
  %v4776 = vshll.u32 920167782, %v4761
  %v4777 = vshrl.u32 1326507024, %v4762
  %v4778 = vor.u32 %v4776, %v4777
  %vm4779 = vcmp.lt.s32.totalorder %v4760, 1
  %vm4780 = vcmp.lt.s32.totalorder %v4760, 2
  %vm4781 = vcmp.lt.s32.totalorder %v4760, 3
  %vm4782 = vcmp.lt.s32.totalorder %v4760, 4
  %v4783 = vsel %vm4779, %v4763, %v4766
  %v4784 = vsel %vm4782, %v4772, 2102212464
  %v4785 = vsel %vm4781, %v4769, %v4784
  %v4786 = vsel %vm4780, %v4783, %v4785
  %v4787 = vsel %vm4779, %v4766, %v4769
  %v4788 = vsel %vm4782, %v4775, 920167782
  %v4789 = vsel %vm4781, %v4772, %v4788
  %v4790 = vsel %vm4780, %v4787, %v4789
  %v4791 = vsel %vm4779, %v4769, %v4772
  %v4792 = vsel %vm4782, %v4778, 1326507024
  %v4793 = vsel %vm4781, %v4775, %v4792
  %v4794 = vsel %vm4780, %v4791, %v4793
  %v4795 = vshll.u32 %v4755, 8
  %v4796 = vmul.u32.u64.compose %v4795, %v4794
  %v4797 = vextract.low.u32 %v4796
  %v4798 = vextract.high.u32 %v4796
  %v4799 = vmul.u32.u64.compose %v4795, %v4790
  %v4800 = vextract.low.u32 %v4799
  %v4801 = vextract.high.u32 %v4799
  %v4802 = vmul.u32 %v4795, %v4786
  %v4803 = vadd.s32 %v4798, %v4800
  %vm4804 = vc.u32 %v4798, %v4800
  %v4805 = vadd.s32 %v4801, 1
  %v4806 = vsel %vm4804, %v4805, %v4801
  %v4807 = vadd.s32 %v4802, %v4806
  %v4808 = vadd.s32 %v4807, 536870912
  %v4809 = vshrl.u32 %v4808, 30
  %v4810 = vshll.u32 %v4809, 30
  %v4811 = vsub.s32 %v4807, %v4810
  %vm4812 = vcmp.lt.s32.totalorder %v4811, 0
  %v4813 = vsub.s32 0, %v4811
  %v4814 = vsel %vm4812, %v4813, %v4811
  %v4815 = vclz %v4814
  %v4816 = vsub.s32 %v4815, 2
  %vm4817 = vcmp.gt.s32.totalorder 0, %v4816
  %v4818 = vsel %vm4817, 0, %v4816
  %v4819 = vsub.s32 32, %v4818
  %v4820 = vshll.u32 %v4811, %v4818
  %v4821 = vshrl.u32 %v4803, %v4819
  %v4822 = vor.u32 %v4820, %v4821
  %v4823 = vsub.s32 4294967266, %v4818
  %v4824 = vadd.s32 %v4823, 127
  %v4825 = vshll.u32 %v4824, 23
  %v4826 = vor.u32 4788187, %v4825
  %v4827 = vand.u32 2147483647, %v4826
  %v4829 = vcvt.s32.f32 %v4822
  %v4830 = vmul.f32 %v4829, %v4827
  %v4831 = vxor.u32 %v4830, 2147483648
  %v4832 = vsel %vm4749, %v4831, %v4830
  %v4833 = vsub.s32 4, %v4809
  %v4834 = vsel %vm4749, %v4833, %v4809
  %v4835 = vsel %vm4748, %v4430, %v4832
  %v4836 = vsel %vm4748, 0, %v4834
  %v4837 = vcosq.f32.pop %v4835
  %v4838 = vsinq.f32.pop %v4835
  %vm4839 = vweird.f32 %v4430
  %v4840 = vadd.s32 %v4836, 3
  %v4841 = vand.u32 %v4840, 3
  %vm4842 = vcmp.lt.s32.totalorder %v4841, 2
  %vm4843 = vcmp.eq.s32.totalorder %v4841, 0
  %v4844 = vxor.u32 %v4838, 2147483648
  %v4845 = vsel %vm4843, %v4837, %v4844
  %vm4846 = vcmp.eq.s32.totalorder %v4841, 2
  %v4847 = vxor.u32 %v4837, 2147483648
  %v4848 = vsel %vm4846, %v4847, %v4838
  %v4849 = vsel %vm4842, %v4845, %v4848
  %v4850 = vsel %vm4839, nan, %v4849
  %v4851 = vand.u32 2147483647, %v4431
  %vm4852 = vcmp.le.f32.partialorder %v4851, 0.7853982
  %vm4853 = vcmp.lt.s32.totalorder %v4431, 0
  %v4854 = vand.u32 %v4431, 2139095040
  %v4855 = vshrl.u32 %v4854, 23
  %v4856 = vsub.s32 %v4855, 127
  %v4857 = vand.u32 2147483647, %v4431
  %v4858 = vand.u32 %v4857, 8388607
  %v4859 = vor.u32 %v4858, 8388608
  %v4860 = vsub.s32 0, %v4859
  %v4861 = vadd.s32 %v4856, 1
  %vm4862 = vcmp.gt.s32.totalorder %v4861, 0
  %v4863 = vsel %vm4862, %v4861, 0
  %v4864 = vshrl.u32 %v4863, 5
  %v4865 = vand.u32 %v4863, 31
  %v4866 = vsub.s32 32, %v4865
  %v4867 = vshrl.u32 683565275, %v4866
  %v4868 = vshll.u32 683565275, %v4865
  %v4869 = vshrl.u32 2475754826, %v4866
  %v4870 = vor.u32 %v4868, %v4869
  %v4871 = vshll.u32 2475754826, %v4865
  %v4872 = vshrl.u32 2131351028, %v4866
  %v4873 = vor.u32 %v4871, %v4872
  %v4874 = vshll.u32 2131351028, %v4865
  %v4875 = vshrl.u32 2102212464, %v4866
  %v4876 = vor.u32 %v4874, %v4875
  %v4877 = vshll.u32 2102212464, %v4865
  %v4878 = vshrl.u32 920167782, %v4866
  %v4879 = vor.u32 %v4877, %v4878
  %v4880 = vshll.u32 920167782, %v4865
  %v4881 = vshrl.u32 1326507024, %v4866
  %v4882 = vor.u32 %v4880, %v4881
  %vm4883 = vcmp.lt.s32.totalorder %v4864, 1
  %vm4884 = vcmp.lt.s32.totalorder %v4864, 2
  %vm4885 = vcmp.lt.s32.totalorder %v4864, 3
  %vm4886 = vcmp.lt.s32.totalorder %v4864, 4
  %v4887 = vsel %vm4883, %v4867, %v4870
  %v4888 = vsel %vm4886, %v4876, 2102212464
  %v4889 = vsel %vm4885, %v4873, %v4888
  %v4890 = vsel %vm4884, %v4887, %v4889
  %v4891 = vsel %vm4883, %v4870, %v4873
  %v4892 = vsel %vm4886, %v4879, 920167782
  %v4893 = vsel %vm4885, %v4876, %v4892
  %v4894 = vsel %vm4884, %v4891, %v4893
  %v4895 = vsel %vm4883, %v4873, %v4876
  %v4896 = vsel %vm4886, %v4882, 1326507024
  %v4897 = vsel %vm4885, %v4879, %v4896
  %v4898 = vsel %vm4884, %v4895, %v4897
  %v4899 = vshll.u32 %v4859, 8
  %v4900 = vmul.u32.u64.compose %v4899, %v4898
  %v4901 = vextract.low.u32 %v4900
  %v4902 = vextract.high.u32 %v4900
  %v4903 = vmul.u32.u64.compose %v4899, %v4894
  %v4904 = vextract.low.u32 %v4903
  %v4905 = vextract.high.u32 %v4903
  %v4906 = vmul.u32 %v4899, %v4890
  %v4907 = vadd.s32 %v4902, %v4904
  %vm4908 = vc.u32 %v4902, %v4904
  %v4909 = vadd.s32 %v4905, 1
  %v4910 = vsel %vm4908, %v4909, %v4905
  %v4911 = vadd.s32 %v4906, %v4910
  %v4912 = vadd.s32 %v4911, 536870912
  %v4913 = vshrl.u32 %v4912, 30
  %v4914 = vshll.u32 %v4913, 30
  %v4915 = vsub.s32 %v4911, %v4914
  %vm4916 = vcmp.lt.s32.totalorder %v4915, 0
  %v4917 = vsub.s32 0, %v4915
  %v4918 = vsel %vm4916, %v4917, %v4915
  %v4919 = vclz %v4918
  %v4920 = vsub.s32 %v4919, 2
  %vm4921 = vcmp.gt.s32.totalorder 0, %v4920
  %v4922 = vsel %vm4921, 0, %v4920
  %v4923 = vsub.s32 32, %v4922
  %v4924 = vshll.u32 %v4915, %v4922
  %v4925 = vshrl.u32 %v4907, %v4923
  %v4926 = vor.u32 %v4924, %v4925
  %v4927 = vsub.s32 4294967266, %v4922
  %v4928 = vadd.s32 %v4927, 127
  %v4929 = vshll.u32 %v4928, 23
  %v4930 = vor.u32 4788187, %v4929
  %v4931 = vand.u32 2147483647, %v4930
  %v4933 = vcvt.s32.f32 %v4926
  %v4934 = vmul.f32 %v4933, %v4931
  %v4935 = vxor.u32 %v4934, 2147483648
  %v4936 = vsel %vm4853, %v4935, %v4934
  %v4937 = vsub.s32 4, %v4913
  %v4938 = vsel %vm4853, %v4937, %v4913
  %v4939 = vsel %vm4852, %v4431, %v4936
  %v4940 = vsel %vm4852, 0, %v4938
  %v4941 = vcosq.f32.pop %v4939
  %v4942 = vsinq.f32.pop %v4939
  %vm4943 = vweird.f32 %v4431
  %v4944 = vadd.s32 %v4940, 3
  %v4945 = vand.u32 %v4944, 3
  %vm4946 = vcmp.lt.s32.totalorder %v4945, 2
  %vm4947 = vcmp.eq.s32.totalorder %v4945, 0
  %v4948 = vxor.u32 %v4942, 2147483648
  %v4949 = vsel %vm4947, %v4941, %v4948
  %vm4950 = vcmp.eq.s32.totalorder %v4945, 2
  %v4951 = vxor.u32 %v4941, 2147483648
  %v4952 = vsel %vm4950, %v4951, %v4942
  %v4953 = vsel %vm4946, %v4949, %v4952
  %v4954 = vsel %vm4943, nan, %v4953
  %v4955 = vand.u32 2147483647, %v4432
  %vm4956 = vcmp.le.f32.partialorder %v4955, 0.7853982
  %vm4957 = vcmp.lt.s32.totalorder %v4432, 0
  %v4958 = vand.u32 %v4432, 2139095040
  %v4959 = vshrl.u32 %v4958, 23
  %v4960 = vsub.s32 %v4959, 127
  %v4961 = vand.u32 2147483647, %v4432
  %v4962 = vand.u32 %v4961, 8388607
  %v4963 = vor.u32 %v4962, 8388608
  %v4964 = vsub.s32 0, %v4963
  %v4965 = vadd.s32 %v4960, 1
  %vm4966 = vcmp.gt.s32.totalorder %v4965, 0
  %v4967 = vsel %vm4966, %v4965, 0
  %v4968 = vshrl.u32 %v4967, 5
  %v4969 = vand.u32 %v4967, 31
  %v4970 = vsub.s32 32, %v4969
  %v4971 = vshrl.u32 683565275, %v4970
  %v4972 = vshll.u32 683565275, %v4969
  %v4973 = vshrl.u32 2475754826, %v4970
  %v4974 = vor.u32 %v4972, %v4973
  %v4975 = vshll.u32 2475754826, %v4969
  %v4976 = vshrl.u32 2131351028, %v4970
  %v4977 = vor.u32 %v4975, %v4976
  %v4978 = vshll.u32 2131351028, %v4969
  %v4979 = vshrl.u32 2102212464, %v4970
  %v4980 = vor.u32 %v4978, %v4979
  %v4981 = vshll.u32 2102212464, %v4969
  %v4982 = vshrl.u32 920167782, %v4970
  %v4983 = vor.u32 %v4981, %v4982
  %v4984 = vshll.u32 920167782, %v4969
  %v4985 = vshrl.u32 1326507024, %v4970
  %v4986 = vor.u32 %v4984, %v4985
  %vm4987 = vcmp.lt.s32.totalorder %v4968, 1
  %vm4988 = vcmp.lt.s32.totalorder %v4968, 2
  %vm4989 = vcmp.lt.s32.totalorder %v4968, 3
  %vm4990 = vcmp.lt.s32.totalorder %v4968, 4
  %v4991 = vsel %vm4987, %v4971, %v4974
  %v4992 = vsel %vm4990, %v4980, 2102212464
  %v4993 = vsel %vm4989, %v4977, %v4992
  %v4994 = vsel %vm4988, %v4991, %v4993
  %v4995 = vsel %vm4987, %v4974, %v4977
  %v4996 = vsel %vm4990, %v4983, 920167782
  %v4997 = vsel %vm4989, %v4980, %v4996
  %v4998 = vsel %vm4988, %v4995, %v4997
  %v4999 = vsel %vm4987, %v4977, %v4980
  %v5000 = vsel %vm4990, %v4986, 1326507024
  %v5001 = vsel %vm4989, %v4983, %v5000
  %v5002 = vsel %vm4988, %v4999, %v5001
  %v5003 = vshll.u32 %v4963, 8
  %v5004 = vmul.u32.u64.compose %v5003, %v5002
  %v5005 = vextract.low.u32 %v5004
  %v5006 = vextract.high.u32 %v5004
  %v5007 = vmul.u32.u64.compose %v5003, %v4998
  %v5008 = vextract.low.u32 %v5007
  %v5009 = vextract.high.u32 %v5007
  %v5010 = vmul.u32 %v5003, %v4994
  %v5011 = vadd.s32 %v5006, %v5008
  %vm5012 = vc.u32 %v5006, %v5008
  %v5013 = vadd.s32 %v5009, 1
  %v5014 = vsel %vm5012, %v5013, %v5009
  %v5015 = vadd.s32 %v5010, %v5014
  %v5016 = vadd.s32 %v5015, 536870912
  %v5017 = vshrl.u32 %v5016, 30
  %v5018 = vshll.u32 %v5017, 30
  %v5019 = vsub.s32 %v5015, %v5018
  %vm5020 = vcmp.lt.s32.totalorder %v5019, 0
  %v5021 = vsub.s32 0, %v5019
  %v5022 = vsel %vm5020, %v5021, %v5019
  %v5023 = vclz %v5022
  %v5024 = vsub.s32 %v5023, 2
  %vm5025 = vcmp.gt.s32.totalorder 0, %v5024
  %v5026 = vsel %vm5025, 0, %v5024
  %v5027 = vsub.s32 32, %v5026
  %v5028 = vshll.u32 %v5019, %v5026
  %v5029 = vshrl.u32 %v5011, %v5027
  %v5030 = vor.u32 %v5028, %v5029
  %v5031 = vsub.s32 4294967266, %v5026
  %v5032 = vadd.s32 %v5031, 127
  %v5033 = vshll.u32 %v5032, 23
  %v5034 = vor.u32 4788187, %v5033
  %v5035 = vand.u32 2147483647, %v5034
  %v5037 = vcvt.s32.f32 %v5030
  %v5038 = vmul.f32 %v5037, %v5035
  %v5039 = vxor.u32 %v5038, 2147483648
  %v5040 = vsel %vm4957, %v5039, %v5038
  %v5041 = vsub.s32 4, %v5017
  %v5042 = vsel %vm4957, %v5041, %v5017
  %v5043 = vsel %vm4956, %v4432, %v5040
  %v5044 = vsel %vm4956, 0, %v5042
  %v5045 = vcosq.f32.pop %v5043
  %v5046 = vsinq.f32.pop %v5043
  %vm5047 = vweird.f32 %v4432
  %v5048 = vadd.s32 %v5044, 3
  %v5049 = vand.u32 %v5048, 3
  %vm5050 = vcmp.lt.s32.totalorder %v5049, 2
  %vm5051 = vcmp.eq.s32.totalorder %v5049, 0
  %v5052 = vxor.u32 %v5046, 2147483648
  %v5053 = vsel %vm5051, %v5045, %v5052
  %vm5054 = vcmp.eq.s32.totalorder %v5049, 2
  %v5055 = vxor.u32 %v5045, 2147483648
  %v5056 = vsel %vm5054, %v5055, %v5046
  %v5057 = vsel %vm5050, %v5053, %v5056
  %v5058 = vsel %vm5047, nan, %v5057
  %v5059 = vand.u32 2147483647, %v4433
  %vm5060 = vcmp.le.f32.partialorder %v5059, 0.7853982
  %vm5061 = vcmp.lt.s32.totalorder %v4433, 0
  %v5062 = vand.u32 %v4433, 2139095040
  %v5063 = vshrl.u32 %v5062, 23
  %v5064 = vsub.s32 %v5063, 127
  %v5065 = vand.u32 2147483647, %v4433
  %v5066 = vand.u32 %v5065, 8388607
  %v5067 = vor.u32 %v5066, 8388608
  %v5068 = vsub.s32 0, %v5067
  %v5069 = vadd.s32 %v5064, 1
  %vm5070 = vcmp.gt.s32.totalorder %v5069, 0
  %v5071 = vsel %vm5070, %v5069, 0
  %v5072 = vshrl.u32 %v5071, 5
  %v5073 = vand.u32 %v5071, 31
  %v5074 = vsub.s32 32, %v5073
  %v5075 = vshrl.u32 683565275, %v5074
  %v5076 = vshll.u32 683565275, %v5073
  %v5077 = vshrl.u32 2475754826, %v5074
  %v5078 = vor.u32 %v5076, %v5077
  %v5079 = vshll.u32 2475754826, %v5073
  %v5080 = vshrl.u32 2131351028, %v5074
  %v5081 = vor.u32 %v5079, %v5080
  %v5082 = vshll.u32 2131351028, %v5073
  %v5083 = vshrl.u32 2102212464, %v5074
  %v5084 = vor.u32 %v5082, %v5083
  %v5085 = vshll.u32 2102212464, %v5073
  %v5086 = vshrl.u32 920167782, %v5074
  %v5087 = vor.u32 %v5085, %v5086
  %v5088 = vshll.u32 920167782, %v5073
  %v5089 = vshrl.u32 1326507024, %v5074
  %v5090 = vor.u32 %v5088, %v5089
  %vm5091 = vcmp.lt.s32.totalorder %v5072, 1
  %vm5092 = vcmp.lt.s32.totalorder %v5072, 2
  %vm5093 = vcmp.lt.s32.totalorder %v5072, 3
  %vm5094 = vcmp.lt.s32.totalorder %v5072, 4
  %v5095 = vsel %vm5091, %v5075, %v5078
  %v5096 = vsel %vm5094, %v5084, 2102212464
  %v5097 = vsel %vm5093, %v5081, %v5096
  %v5098 = vsel %vm5092, %v5095, %v5097
  %v5099 = vsel %vm5091, %v5078, %v5081
  %v5100 = vsel %vm5094, %v5087, 920167782
  %v5101 = vsel %vm5093, %v5084, %v5100
  %v5102 = vsel %vm5092, %v5099, %v5101
  %v5103 = vsel %vm5091, %v5081, %v5084
  %v5104 = vsel %vm5094, %v5090, 1326507024
  %v5105 = vsel %vm5093, %v5087, %v5104
  %v5106 = vsel %vm5092, %v5103, %v5105
  %v5107 = vshll.u32 %v5067, 8
  %v5108 = vmul.u32.u64.compose %v5107, %v5106
  %v5109 = vextract.low.u32 %v5108
  %v5110 = vextract.high.u32 %v5108
  %v5111 = vmul.u32.u64.compose %v5107, %v5102
  %v5112 = vextract.low.u32 %v5111
  %v5113 = vextract.high.u32 %v5111
  %v5114 = vmul.u32 %v5107, %v5098
  %v5115 = vadd.s32 %v5110, %v5112
  %vm5116 = vc.u32 %v5110, %v5112
  %v5117 = vadd.s32 %v5113, 1
  %v5118 = vsel %vm5116, %v5117, %v5113
  %v5119 = vadd.s32 %v5114, %v5118
  %v5120 = vadd.s32 %v5119, 536870912
  %v5121 = vshrl.u32 %v5120, 30
  %v5122 = vshll.u32 %v5121, 30
  %v5123 = vsub.s32 %v5119, %v5122
  %vm5124 = vcmp.lt.s32.totalorder %v5123, 0
  %v5125 = vsub.s32 0, %v5123
  %v5126 = vsel %vm5124, %v5125, %v5123
  %v5127 = vclz %v5126
  %v5128 = vsub.s32 %v5127, 2
  %vm5129 = vcmp.gt.s32.totalorder 0, %v5128
  %v5130 = vsel %vm5129, 0, %v5128
  %v5131 = vsub.s32 32, %v5130
  %v5132 = vshll.u32 %v5123, %v5130
  %v5133 = vshrl.u32 %v5115, %v5131
  %v5134 = vor.u32 %v5132, %v5133
  %v5135 = vsub.s32 4294967266, %v5130
  %v5136 = vadd.s32 %v5135, 127
  %v5137 = vshll.u32 %v5136, 23
  %v5138 = vor.u32 4788187, %v5137
  %v5139 = vand.u32 2147483647, %v5138
  %v5141 = vcvt.s32.f32 %v5134
  %v5142 = vmul.f32 %v5141, %v5139
  %v5143 = vxor.u32 %v5142, 2147483648
  %v5144 = vsel %vm5061, %v5143, %v5142
  %v5145 = vsub.s32 4, %v5121
  %v5146 = vsel %vm5061, %v5145, %v5121
  %v5147 = vsel %vm5060, %v4433, %v5144
  %v5148 = vsel %vm5060, 0, %v5146
  %v5149 = vcosq.f32.pop %v5147
  %v5150 = vsinq.f32.pop %v5147
  %vm5151 = vweird.f32 %v4433
  %v5152 = vadd.s32 %v5148, 3
  %v5153 = vand.u32 %v5152, 3
  %vm5154 = vcmp.lt.s32.totalorder %v5153, 2
  %vm5155 = vcmp.eq.s32.totalorder %v5153, 0
  %v5156 = vxor.u32 %v5150, 2147483648
  %v5157 = vsel %vm5155, %v5149, %v5156
  %vm5158 = vcmp.eq.s32.totalorder %v5153, 2
  %v5159 = vxor.u32 %v5149, 2147483648
  %v5160 = vsel %vm5158, %v5159, %v5150
  %v5161 = vsel %vm5154, %v5157, %v5160
  %v5162 = vsel %vm5151, nan, %v5161
  %v5163 = vand.u32 2147483647, %v4434
  %vm5164 = vcmp.le.f32.partialorder %v5163, 0.7853982
  %vm5165 = vcmp.lt.s32.totalorder %v4434, 0
  %v5166 = vand.u32 %v4434, 2139095040
  %v5167 = vshrl.u32 %v5166, 23
  %v5168 = vsub.s32 %v5167, 127
  %v5169 = vand.u32 2147483647, %v4434
  %v5170 = vand.u32 %v5169, 8388607
  %v5171 = vor.u32 %v5170, 8388608
  %v5172 = vsub.s32 0, %v5171
  %v5173 = vadd.s32 %v5168, 1
  %vm5174 = vcmp.gt.s32.totalorder %v5173, 0
  %v5175 = vsel %vm5174, %v5173, 0
  %v5176 = vshrl.u32 %v5175, 5
  %v5177 = vand.u32 %v5175, 31
  %v5178 = vsub.s32 32, %v5177
  %v5179 = vshrl.u32 683565275, %v5178
  %v5180 = vshll.u32 683565275, %v5177
  %v5181 = vshrl.u32 2475754826, %v5178
  %v5182 = vor.u32 %v5180, %v5181
  %v5183 = vshll.u32 2475754826, %v5177
  %v5184 = vshrl.u32 2131351028, %v5178
  %v5185 = vor.u32 %v5183, %v5184
  %v5186 = vshll.u32 2131351028, %v5177
  %v5187 = vshrl.u32 2102212464, %v5178
  %v5188 = vor.u32 %v5186, %v5187
  %v5189 = vshll.u32 2102212464, %v5177
  %v5190 = vshrl.u32 920167782, %v5178
  %v5191 = vor.u32 %v5189, %v5190
  %v5192 = vshll.u32 920167782, %v5177
  %v5193 = vshrl.u32 1326507024, %v5178
  %v5194 = vor.u32 %v5192, %v5193
  %vm5195 = vcmp.lt.s32.totalorder %v5176, 1
  %vm5196 = vcmp.lt.s32.totalorder %v5176, 2
  %vm5197 = vcmp.lt.s32.totalorder %v5176, 3
  %vm5198 = vcmp.lt.s32.totalorder %v5176, 4
  %v5199 = vsel %vm5195, %v5179, %v5182
  %v5200 = vsel %vm5198, %v5188, 2102212464
  %v5201 = vsel %vm5197, %v5185, %v5200
  %v5202 = vsel %vm5196, %v5199, %v5201
  %v5203 = vsel %vm5195, %v5182, %v5185
  %v5204 = vsel %vm5198, %v5191, 920167782
  %v5205 = vsel %vm5197, %v5188, %v5204
  %v5206 = vsel %vm5196, %v5203, %v5205
  %v5207 = vsel %vm5195, %v5185, %v5188
  %v5208 = vsel %vm5198, %v5194, 1326507024
  %v5209 = vsel %vm5197, %v5191, %v5208
  %v5210 = vsel %vm5196, %v5207, %v5209
  %v5211 = vshll.u32 %v5171, 8
  %v5212 = vmul.u32.u64.compose %v5211, %v5210
  %v5213 = vextract.low.u32 %v5212
  %v5214 = vextract.high.u32 %v5212
  %v5215 = vmul.u32.u64.compose %v5211, %v5206
  %v5216 = vextract.low.u32 %v5215
  %v5217 = vextract.high.u32 %v5215
  %v5218 = vmul.u32 %v5211, %v5202
  %v5219 = vadd.s32 %v5214, %v5216
  %vm5220 = vc.u32 %v5214, %v5216
  %v5221 = vadd.s32 %v5217, 1
  %v5222 = vsel %vm5220, %v5221, %v5217
  %v5223 = vadd.s32 %v5218, %v5222
  %v5224 = vadd.s32 %v5223, 536870912
  %v5225 = vshrl.u32 %v5224, 30
  %v5226 = vshll.u32 %v5225, 30
  %v5227 = vsub.s32 %v5223, %v5226
  %vm5228 = vcmp.lt.s32.totalorder %v5227, 0
  %v5229 = vsub.s32 0, %v5227
  %v5230 = vsel %vm5228, %v5229, %v5227
  %v5231 = vclz %v5230
  %v5232 = vsub.s32 %v5231, 2
  %vm5233 = vcmp.gt.s32.totalorder 0, %v5232
  %v5234 = vsel %vm5233, 0, %v5232
  %v5235 = vsub.s32 32, %v5234
  %v5236 = vshll.u32 %v5227, %v5234
  %v5237 = vshrl.u32 %v5219, %v5235
  %v5238 = vor.u32 %v5236, %v5237
  %v5239 = vsub.s32 4294967266, %v5234
  %v5240 = vadd.s32 %v5239, 127
  %v5241 = vshll.u32 %v5240, 23
  %v5242 = vor.u32 4788187, %v5241
  %v5243 = vand.u32 2147483647, %v5242
  %v5245 = vcvt.s32.f32 %v5238
  %v5246 = vmul.f32 %v5245, %v5243
  %v5247 = vxor.u32 %v5246, 2147483648
  %v5248 = vsel %vm5165, %v5247, %v5246
  %v5249 = vsub.s32 4, %v5225
  %v5250 = vsel %vm5165, %v5249, %v5225
  %v5251 = vsel %vm5164, %v4434, %v5248
  %v5252 = vsel %vm5164, 0, %v5250
  %v5253 = vcosq.f32.pop %v5251
  %v5254 = vsinq.f32.pop %v5251
  %vm5255 = vweird.f32 %v4434
  %v5256 = vadd.s32 %v5252, 3
  %v5257 = vand.u32 %v5256, 3
  %vm5258 = vcmp.lt.s32.totalorder %v5257, 2
  %vm5259 = vcmp.eq.s32.totalorder %v5257, 0
  %v5260 = vxor.u32 %v5254, 2147483648
  %v5261 = vsel %vm5259, %v5253, %v5260
  %vm5262 = vcmp.eq.s32.totalorder %v5257, 2
  %v5263 = vxor.u32 %v5253, 2147483648
  %v5264 = vsel %vm5262, %v5263, %v5254
  %v5265 = vsel %vm5258, %v5261, %v5264
  %v5266 = vsel %vm5255, nan, %v5265
  %5267 = vst.msk [vmem:[#allocation2 + $0x40] sm:$0xff] %vm1074, %v4538
  %5268 = vst.msk [vmem:[#allocation2 + $0x48] sm:$0xff] %vm1074, %v4642
  %5269 = vst.msk [vmem:[#allocation2 + $0x50] sm:$0xff] %vm1074, %v4746
  %5270 = vst.msk [vmem:[#allocation2 + $0x58] sm:$0xff] %vm1074, %v4850
  %5271 = vst.msk [vmem:[#allocation2 + $0x60] sm:$0xff] %vm1074, %v4954
  %5272 = vst.msk [vmem:[#allocation2 + $0x68] sm:$0xff] %vm1074, %v5058
  %5273 = vst.msk [vmem:[#allocation2 + $0x70] sm:$0xff] %vm1074, %v5162
  %5274 = vst.msk [vmem:[#allocation2 + $0x78] sm:$0xff] %vm1074, %v5266
  %5276 = vset.pattern.permute.xlu0 0
  %5277 = vperm.xlu0 %5276, %v3068
  %v5278 = vpop.permute.xlu0 %5277
  %v5280 = vmul.f32 %v5278, %v89
  %5281 = vset.pattern.permute.xlu0 1
  %5282 = vperm.xlu0 %5281, %v3068
  %v5283 = vpop.permute.xlu0 %5282
  %v5285 = vmul.f32 %v5283, %v133
  %v5286 = vadd.f32 %v5280, %v5285
  %v5287 = vadd.f32 %v5286, %v154
  %v5288 = vsub.f32 %v5287, %v2147
  %v5289 = vand.u32 2147483647, %v5288
  %vm5290 = vcmp.le.f32.partialorder %v5289, 0.7853982
  %vm5291 = vcmp.lt.s32.totalorder %v5288, 0
  %v5292 = vand.u32 %v5288, 2139095040
  %v5293 = vshrl.u32 %v5292, 23
  %v5294 = vsub.s32 %v5293, 127
  %v5295 = vand.u32 2147483647, %v5288
  %v5296 = vand.u32 %v5295, 8388607
  %v5297 = vor.u32 %v5296, 8388608
  %v5298 = vsub.s32 0, %v5297
  %v5299 = vadd.s32 %v5294, 1
  %vm5300 = vcmp.gt.s32.totalorder %v5299, 0
  %v5301 = vsel %vm5300, %v5299, 0
  %v5302 = vshrl.u32 %v5301, 5
  %v5303 = vand.u32 %v5301, 31
  %v5304 = vsub.s32 32, %v5303
  %v5305 = vshrl.u32 683565275, %v5304
  %v5306 = vshll.u32 683565275, %v5303
  %v5307 = vshrl.u32 2475754826, %v5304
  %v5308 = vor.u32 %v5306, %v5307
  %v5309 = vshll.u32 2475754826, %v5303
  %v5310 = vshrl.u32 2131351028, %v5304
  %v5311 = vor.u32 %v5309, %v5310
  %v5312 = vshll.u32 2131351028, %v5303
  %v5313 = vshrl.u32 2102212464, %v5304
  %v5314 = vor.u32 %v5312, %v5313
  %v5315 = vshll.u32 2102212464, %v5303
  %v5316 = vshrl.u32 920167782, %v5304
  %v5317 = vor.u32 %v5315, %v5316
  %v5318 = vshll.u32 920167782, %v5303
  %v5319 = vshrl.u32 1326507024, %v5304
  %v5320 = vor.u32 %v5318, %v5319
  %vm5321 = vcmp.lt.s32.totalorder %v5302, 1
  %vm5322 = vcmp.lt.s32.totalorder %v5302, 2
  %vm5323 = vcmp.lt.s32.totalorder %v5302, 3
  %vm5324 = vcmp.lt.s32.totalorder %v5302, 4
  %v5325 = vsel %vm5321, %v5305, %v5308
  %v5326 = vsel %vm5324, %v5314, 2102212464
  %v5327 = vsel %vm5323, %v5311, %v5326
  %v5328 = vsel %vm5322, %v5325, %v5327
  %v5329 = vsel %vm5321, %v5308, %v5311
  %v5330 = vsel %vm5324, %v5317, 920167782
  %v5331 = vsel %vm5323, %v5314, %v5330
  %v5332 = vsel %vm5322, %v5329, %v5331
  %v5333 = vsel %vm5321, %v5311, %v5314
  %v5334 = vsel %vm5324, %v5320, 1326507024
  %v5335 = vsel %vm5323, %v5317, %v5334
  %v5336 = vsel %vm5322, %v5333, %v5335
  %v5337 = vshll.u32 %v5297, 8
  %v5338 = vmul.u32.u64.compose %v5337, %v5336
  %v5339 = vextract.low.u32 %v5338
  %v5340 = vextract.high.u32 %v5338
  %v5341 = vmul.u32.u64.compose %v5337, %v5332
  %v5342 = vextract.low.u32 %v5341
  %v5343 = vextract.high.u32 %v5341
  %v5344 = vmul.u32 %v5337, %v5328
  %v5345 = vadd.s32 %v5340, %v5342
  %vm5346 = vc.u32 %v5340, %v5342
  %v5347 = vadd.s32 %v5343, 1
  %v5348 = vsel %vm5346, %v5347, %v5343
  %v5349 = vadd.s32 %v5344, %v5348
  %v5350 = vadd.s32 %v5349, 536870912
  %v5351 = vshrl.u32 %v5350, 30
  %v5352 = vshll.u32 %v5351, 30
  %v5353 = vsub.s32 %v5349, %v5352
  %vm5354 = vcmp.lt.s32.totalorder %v5353, 0
  %v5355 = vsub.s32 0, %v5353
  %v5356 = vsel %vm5354, %v5355, %v5353
  %v5357 = vclz %v5356
  %v5358 = vsub.s32 %v5357, 2
  %vm5359 = vcmp.gt.s32.totalorder 0, %v5358
  %v5360 = vsel %vm5359, 0, %v5358
  %v5361 = vsub.s32 32, %v5360
  %v5362 = vshll.u32 %v5353, %v5360
  %v5363 = vshrl.u32 %v5345, %v5361
  %v5364 = vor.u32 %v5362, %v5363
  %v5365 = vsub.s32 4294967266, %v5360
  %v5366 = vadd.s32 %v5365, 127
  %v5367 = vshll.u32 %v5366, 23
  %v5368 = vor.u32 4788187, %v5367
  %v5369 = vand.u32 2147483647, %v5368
  %v5371 = vcvt.s32.f32 %v5364
  %v5372 = vmul.f32 %v5371, %v5369
  %v5373 = vxor.u32 %v5372, 2147483648
  %v5374 = vsel %vm5291, %v5373, %v5372
  %v5375 = vsub.s32 4, %v5351
  %v5376 = vsel %vm5291, %v5375, %v5351
  %v5377 = vsel %vm5290, %v5288, %v5374
  %v5378 = vsel %vm5290, 0, %v5376
  %v5379 = vcosq.f32.pop %v5377
  %v5380 = vsinq.f32.pop %v5377
  %vm5381 = vweird.f32 %v5288
  %v5382 = vadd.s32 %v5378, 3
  %v5383 = vand.u32 %v5382, 3
  %vm5384 = vcmp.lt.s32.totalorder %v5383, 2
  %vm5385 = vcmp.eq.s32.totalorder %v5383, 0
  %v5386 = vxor.u32 %v5380, 2147483648
  %v5387 = vsel %vm5385, %v5379, %v5386
  %vm5388 = vcmp.eq.s32.totalorder %v5383, 2
  %v5389 = vxor.u32 %v5379, 2147483648
  %v5390 = vsel %vm5388, %v5389, %v5380
  %v5391 = vsel %vm5384, %v5387, %v5390
  %v5392 = vsel %vm5381, nan, %v5391
  %5393 = vst.msk [vmem:[#allocation2 + $0x80] sm:$0xff] %vm1074, %v5392
  %5395 = vset.pattern.permute.xlu0 0
  %5396 = vperm.xlu0 %5395, %v3073
  %v5397 = vpop.permute.xlu0 %5396
  %v5399 = vmul.f32 %v5397, %v89
  %5400 = vset.pattern.permute.xlu0 1
  %5401 = vperm.xlu0 %5400, %v3073
  %v5402 = vpop.permute.xlu0 %5401
  %v5404 = vmul.f32 %v5402, %v133
  %v5405 = vadd.f32 %v5399, %v5404
  %v5406 = vadd.f32 %v5405, %v154
  %v5407 = vadd.f32 %v5406, %v2591
  %v5408 = vand.u32 2147483647, %v5407
  %vm5409 = vcmp.le.f32.partialorder %v5408, 0.7853982
  %vm5410 = vcmp.lt.s32.totalorder %v5407, 0
  %v5411 = vand.u32 %v5407, 2139095040
  %v5412 = vshrl.u32 %v5411, 23
  %v5413 = vsub.s32 %v5412, 127
  %v5414 = vand.u32 2147483647, %v5407
  %v5415 = vand.u32 %v5414, 8388607
  %v5416 = vor.u32 %v5415, 8388608
  %v5417 = vsub.s32 0, %v5416
  %v5418 = vadd.s32 %v5413, 1
  %vm5419 = vcmp.gt.s32.totalorder %v5418, 0
  %v5420 = vsel %vm5419, %v5418, 0
  %v5421 = vshrl.u32 %v5420, 5
  %v5422 = vand.u32 %v5420, 31
  %v5423 = vsub.s32 32, %v5422
  %v5424 = vshrl.u32 683565275, %v5423
  %v5425 = vshll.u32 683565275, %v5422
  %v5426 = vshrl.u32 2475754826, %v5423
  %v5427 = vor.u32 %v5425, %v5426
  %v5428 = vshll.u32 2475754826, %v5422
  %v5429 = vshrl.u32 2131351028, %v5423
  %v5430 = vor.u32 %v5428, %v5429
  %v5431 = vshll.u32 2131351028, %v5422
  %v5432 = vshrl.u32 2102212464, %v5423
  %v5433 = vor.u32 %v5431, %v5432
  %v5434 = vshll.u32 2102212464, %v5422
  %v5435 = vshrl.u32 920167782, %v5423
  %v5436 = vor.u32 %v5434, %v5435
  %v5437 = vshll.u32 920167782, %v5422
  %v5438 = vshrl.u32 1326507024, %v5423
  %v5439 = vor.u32 %v5437, %v5438
  %vm5440 = vcmp.lt.s32.totalorder %v5421, 1
  %vm5441 = vcmp.lt.s32.totalorder %v5421, 2
  %vm5442 = vcmp.lt.s32.totalorder %v5421, 3
  %vm5443 = vcmp.lt.s32.totalorder %v5421, 4
  %v5444 = vsel %vm5440, %v5424, %v5427
  %v5445 = vsel %vm5443, %v5433, 2102212464
  %v5446 = vsel %vm5442, %v5430, %v5445
  %v5447 = vsel %vm5441, %v5444, %v5446
  %v5448 = vsel %vm5440, %v5427, %v5430
  %v5449 = vsel %vm5443, %v5436, 920167782
  %v5450 = vsel %vm5442, %v5433, %v5449
  %v5451 = vsel %vm5441, %v5448, %v5450
  %v5452 = vsel %vm5440, %v5430, %v5433
  %v5453 = vsel %vm5443, %v5439, 1326507024
  %v5454 = vsel %vm5442, %v5436, %v5453
  %v5455 = vsel %vm5441, %v5452, %v5454
  %v5456 = vshll.u32 %v5416, 8
  %v5457 = vmul.u32.u64.compose %v5456, %v5455
  %v5458 = vextract.low.u32 %v5457
  %v5459 = vextract.high.u32 %v5457
  %v5460 = vmul.u32.u64.compose %v5456, %v5451
  %v5461 = vextract.low.u32 %v5460
  %v5462 = vextract.high.u32 %v5460
  %v5463 = vmul.u32 %v5456, %v5447
  %v5464 = vadd.s32 %v5459, %v5461
  %vm5465 = vc.u32 %v5459, %v5461
  %v5466 = vadd.s32 %v5462, 1
  %v5467 = vsel %vm5465, %v5466, %v5462
  %v5468 = vadd.s32 %v5463, %v5467
  %v5469 = vadd.s32 %v5468, 536870912
  %v5470 = vshrl.u32 %v5469, 30
  %v5471 = vshll.u32 %v5470, 30
  %v5472 = vsub.s32 %v5468, %v5471
  %vm5473 = vcmp.lt.s32.totalorder %v5472, 0
  %v5474 = vsub.s32 0, %v5472
  %v5475 = vsel %vm5473, %v5474, %v5472
  %v5476 = vclz %v5475
  %v5477 = vsub.s32 %v5476, 2
  %vm5478 = vcmp.gt.s32.totalorder 0, %v5477
  %v5479 = vsel %vm5478, 0, %v5477
  %v5480 = vsub.s32 32, %v5479
  %v5481 = vshll.u32 %v5472, %v5479
  %v5482 = vshrl.u32 %v5464, %v5480
  %v5483 = vor.u32 %v5481, %v5482
  %v5484 = vsub.s32 4294967266, %v5479
  %v5485 = vadd.s32 %v5484, 127
  %v5486 = vshll.u32 %v5485, 23
  %v5487 = vor.u32 4788187, %v5486
  %v5488 = vand.u32 2147483647, %v5487
  %v5490 = vcvt.s32.f32 %v5483
  %v5491 = vmul.f32 %v5490, %v5488
  %v5492 = vxor.u32 %v5491, 2147483648
  %v5493 = vsel %vm5410, %v5492, %v5491
  %v5494 = vsub.s32 4, %v5470
  %v5495 = vsel %vm5410, %v5494, %v5470
  %v5496 = vsel %vm5409, %v5407, %v5493
  %v5497 = vsel %vm5409, 0, %v5495
  %v5498 = vcosq.f32.pop %v5496
  %v5499 = vsinq.f32.pop %v5496
  %vm5500 = vweird.f32 %v5407
  %v5501 = vadd.s32 %v5497, 3
  %v5502 = vand.u32 %v5501, 3
  %vm5503 = vcmp.lt.s32.totalorder %v5502, 2
  %vm5504 = vcmp.eq.s32.totalorder %v5502, 0
  %v5505 = vxor.u32 %v5499, 2147483648
  %v5506 = vsel %vm5504, %v5498, %v5505
  %vm5507 = vcmp.eq.s32.totalorder %v5502, 2
  %v5508 = vxor.u32 %v5498, 2147483648
  %v5509 = vsel %vm5507, %v5508, %v5499
  %v5510 = vsel %vm5503, %v5506, %v5509
  %v5511 = vsel %vm5500, nan, %v5510
  %5512 = vst.msk [vmem:[#allocation2 + $0x88] sm:$0xff] %vm1074, %v5511
  %5514 = vset.pattern.permute.xlu0 0
  %5515 = vperm.xlu0 %5514, %v3078
  %v5516 = vpop.permute.xlu0 %5515
  %v5518 = vmul.f32 %v5516, %v89
  %5519 = vset.pattern.permute.xlu0 1
  %5520 = vperm.xlu0 %5519, %v3078
  %v5521 = vpop.permute.xlu0 %5520
  %v5523 = vmul.f32 %v5521, %v133
  %v5524 = vadd.f32 %v5518, %v5523
  %v5525 = vadd.f32 %v5524, %v154
  %v5526 = vsub.f32 %v5525, %v2369
  %v5527 = vand.u32 2147483647, %v5526
  %vm5528 = vcmp.le.f32.partialorder %v5527, 0.7853982
  %vm5529 = vcmp.lt.s32.totalorder %v5526, 0
  %v5530 = vand.u32 %v5526, 2139095040
  %v5531 = vshrl.u32 %v5530, 23
  %v5532 = vsub.s32 %v5531, 127
  %v5533 = vand.u32 2147483647, %v5526
  %v5534 = vand.u32 %v5533, 8388607
  %v5535 = vor.u32 %v5534, 8388608
  %v5536 = vsub.s32 0, %v5535
  %v5537 = vadd.s32 %v5532, 1
  %vm5538 = vcmp.gt.s32.totalorder %v5537, 0
  %v5539 = vsel %vm5538, %v5537, 0
  %v5540 = vshrl.u32 %v5539, 5
  %v5541 = vand.u32 %v5539, 31
  %v5542 = vsub.s32 32, %v5541
  %v5543 = vshrl.u32 683565275, %v5542
  %v5544 = vshll.u32 683565275, %v5541
  %v5545 = vshrl.u32 2475754826, %v5542
  %v5546 = vor.u32 %v5544, %v5545
  %v5547 = vshll.u32 2475754826, %v5541
  %v5548 = vshrl.u32 2131351028, %v5542
  %v5549 = vor.u32 %v5547, %v5548
  %v5550 = vshll.u32 2131351028, %v5541
  %v5551 = vshrl.u32 2102212464, %v5542
  %v5552 = vor.u32 %v5550, %v5551
  %v5553 = vshll.u32 2102212464, %v5541
  %v5554 = vshrl.u32 920167782, %v5542
  %v5555 = vor.u32 %v5553, %v5554
  %v5556 = vshll.u32 920167782, %v5541
  %v5557 = vshrl.u32 1326507024, %v5542
  %v5558 = vor.u32 %v5556, %v5557
  %vm5559 = vcmp.lt.s32.totalorder %v5540, 1
  %vm5560 = vcmp.lt.s32.totalorder %v5540, 2
  %vm5561 = vcmp.lt.s32.totalorder %v5540, 3
  %vm5562 = vcmp.lt.s32.totalorder %v5540, 4
  %v5563 = vsel %vm5559, %v5543, %v5546
  %v5564 = vsel %vm5562, %v5552, 2102212464
  %v5565 = vsel %vm5561, %v5549, %v5564
  %v5566 = vsel %vm5560, %v5563, %v5565
  %v5567 = vsel %vm5559, %v5546, %v5549
  %v5568 = vsel %vm5562, %v5555, 920167782
  %v5569 = vsel %vm5561, %v5552, %v5568
  %v5570 = vsel %vm5560, %v5567, %v5569
  %v5571 = vsel %vm5559, %v5549, %v5552
  %v5572 = vsel %vm5562, %v5558, 1326507024
  %v5573 = vsel %vm5561, %v5555, %v5572
  %v5574 = vsel %vm5560, %v5571, %v5573
  %v5575 = vshll.u32 %v5535, 8
  %v5576 = vmul.u32.u64.compose %v5575, %v5574
  %v5577 = vextract.low.u32 %v5576
  %v5578 = vextract.high.u32 %v5576
  %v5579 = vmul.u32.u64.compose %v5575, %v5570
  %v5580 = vextract.low.u32 %v5579
  %v5581 = vextract.high.u32 %v5579
  %v5582 = vmul.u32 %v5575, %v5566
  %v5583 = vadd.s32 %v5578, %v5580
  %vm5584 = vc.u32 %v5578, %v5580
  %v5585 = vadd.s32 %v5581, 1
  %v5586 = vsel %vm5584, %v5585, %v5581
  %v5587 = vadd.s32 %v5582, %v5586
  %v5588 = vadd.s32 %v5587, 536870912
  %v5589 = vshrl.u32 %v5588, 30
  %v5590 = vshll.u32 %v5589, 30
  %v5591 = vsub.s32 %v5587, %v5590
  %vm5592 = vcmp.lt.s32.totalorder %v5591, 0
  %v5593 = vsub.s32 0, %v5591
  %v5594 = vsel %vm5592, %v5593, %v5591
  %v5595 = vclz %v5594
  %v5596 = vsub.s32 %v5595, 2
  %vm5597 = vcmp.gt.s32.totalorder 0, %v5596
  %v5598 = vsel %vm5597, 0, %v5596
  %v5599 = vsub.s32 32, %v5598
  %v5600 = vshll.u32 %v5591, %v5598
  %v5601 = vshrl.u32 %v5583, %v5599
  %v5602 = vor.u32 %v5600, %v5601
  %v5603 = vsub.s32 4294967266, %v5598
  %v5604 = vadd.s32 %v5603, 127
  %v5605 = vshll.u32 %v5604, 23
  %v5606 = vor.u32 4788187, %v5605
  %v5607 = vand.u32 2147483647, %v5606
  %v5609 = vcvt.s32.f32 %v5602
  %v5610 = vmul.f32 %v5609, %v5607
  %v5611 = vxor.u32 %v5610, 2147483648
  %v5612 = vsel %vm5529, %v5611, %v5610
  %v5613 = vsub.s32 4, %v5589
  %v5614 = vsel %vm5529, %v5613, %v5589
  %v5615 = vsel %vm5528, %v5526, %v5612
  %v5616 = vsel %vm5528, 0, %v5614
  %v5617 = vcosq.f32.pop %v5615
  %v5618 = vsinq.f32.pop %v5615
  %vm5619 = vweird.f32 %v5526
  %v5620 = vadd.s32 %v5616, 3
  %v5621 = vand.u32 %v5620, 3
  %vm5622 = vcmp.lt.s32.totalorder %v5621, 2
  %vm5623 = vcmp.eq.s32.totalorder %v5621, 0
  %v5624 = vxor.u32 %v5618, 2147483648
  %v5625 = vsel %vm5623, %v5617, %v5624
  %vm5626 = vcmp.eq.s32.totalorder %v5621, 2
  %v5627 = vxor.u32 %v5617, 2147483648
  %v5628 = vsel %vm5626, %v5627, %v5618
  %v5629 = vsel %vm5622, %v5625, %v5628
  %v5630 = vsel %vm5619, nan, %v5629
  %5631 = vst.msk [vmem:[#allocation2 + $0x90] sm:$0xff] %vm1074, %v5630
  %5633 = vset.pattern.permute.xlu0 0
  %5634 = vperm.xlu0 %5633, %v3083
  %v5635 = vpop.permute.xlu0 %5634
  %v5637 = vmul.f32 %v5635, %v89
  %5638 = vset.pattern.permute.xlu0 1
  %5639 = vperm.xlu0 %5638, %v3083
  %v5640 = vpop.permute.xlu0 %5639
  %v5642 = vmul.f32 %v5640, %v133
  %v5643 = vadd.f32 %v5637, %v5642
  %v5644 = vadd.f32 %v5643, %v154
  %v5645 = vadd.f32 %v5644, %v2369
  %v5646 = vand.u32 2147483647, %v5645
  %vm5647 = vcmp.le.f32.partialorder %v5646, 0.7853982
  %vm5648 = vcmp.lt.s32.totalorder %v5645, 0
  %v5649 = vand.u32 %v5645, 2139095040
  %v5650 = vshrl.u32 %v5649, 23
  %v5651 = vsub.s32 %v5650, 127
  %v5652 = vand.u32 2147483647, %v5645
  %v5653 = vand.u32 %v5652, 8388607
  %v5654 = vor.u32 %v5653, 8388608
  %v5655 = vsub.s32 0, %v5654
  %v5656 = vadd.s32 %v5651, 1
  %vm5657 = vcmp.gt.s32.totalorder %v5656, 0
  %v5658 = vsel %vm5657, %v5656, 0
  %v5659 = vshrl.u32 %v5658, 5
  %v5660 = vand.u32 %v5658, 31
  %v5661 = vsub.s32 32, %v5660
  %v5662 = vshrl.u32 683565275, %v5661
  %v5663 = vshll.u32 683565275, %v5660
  %v5664 = vshrl.u32 2475754826, %v5661
  %v5665 = vor.u32 %v5663, %v5664
  %v5666 = vshll.u32 2475754826, %v5660
  %v5667 = vshrl.u32 2131351028, %v5661
  %v5668 = vor.u32 %v5666, %v5667
  %v5669 = vshll.u32 2131351028, %v5660
  %v5670 = vshrl.u32 2102212464, %v5661
  %v5671 = vor.u32 %v5669, %v5670
  %v5672 = vshll.u32 2102212464, %v5660
  %v5673 = vshrl.u32 920167782, %v5661
  %v5674 = vor.u32 %v5672, %v5673
  %v5675 = vshll.u32 920167782, %v5660
  %v5676 = vshrl.u32 1326507024, %v5661
  %v5677 = vor.u32 %v5675, %v5676
  %vm5678 = vcmp.lt.s32.totalorder %v5659, 1
  %vm5679 = vcmp.lt.s32.totalorder %v5659, 2
  %vm5680 = vcmp.lt.s32.totalorder %v5659, 3
  %vm5681 = vcmp.lt.s32.totalorder %v5659, 4
  %v5682 = vsel %vm5678, %v5662, %v5665
  %v5683 = vsel %vm5681, %v5671, 2102212464
  %v5684 = vsel %vm5680, %v5668, %v5683
  %v5685 = vsel %vm5679, %v5682, %v5684
  %v5686 = vsel %vm5678, %v5665, %v5668
  %v5687 = vsel %vm5681, %v5674, 920167782
  %v5688 = vsel %vm5680, %v5671, %v5687
  %v5689 = vsel %vm5679, %v5686, %v5688
  %v5690 = vsel %vm5678, %v5668, %v5671
  %v5691 = vsel %vm5681, %v5677, 1326507024
  %v5692 = vsel %vm5680, %v5674, %v5691
  %v5693 = vsel %vm5679, %v5690, %v5692
  %v5694 = vshll.u32 %v5654, 8
  %v5695 = vmul.u32.u64.compose %v5694, %v5693
  %v5696 = vextract.low.u32 %v5695
  %v5697 = vextract.high.u32 %v5695
  %v5698 = vmul.u32.u64.compose %v5694, %v5689
  %v5699 = vextract.low.u32 %v5698
  %v5700 = vextract.high.u32 %v5698
  %v5701 = vmul.u32 %v5694, %v5685
  %v5702 = vadd.s32 %v5697, %v5699
  %vm5703 = vc.u32 %v5697, %v5699
  %v5704 = vadd.s32 %v5700, 1
  %v5705 = vsel %vm5703, %v5704, %v5700
  %v5706 = vadd.s32 %v5701, %v5705
  %v5707 = vadd.s32 %v5706, 536870912
  %v5708 = vshrl.u32 %v5707, 30
  %v5709 = vshll.u32 %v5708, 30
  %v5710 = vsub.s32 %v5706, %v5709
  %vm5711 = vcmp.lt.s32.totalorder %v5710, 0
  %v5712 = vsub.s32 0, %v5710
  %v5713 = vsel %vm5711, %v5712, %v5710
  %v5714 = vclz %v5713
  %v5715 = vsub.s32 %v5714, 2
  %vm5716 = vcmp.gt.s32.totalorder 0, %v5715
  %v5717 = vsel %vm5716, 0, %v5715
  %v5718 = vsub.s32 32, %v5717
  %v5719 = vshll.u32 %v5710, %v5717
  %v5720 = vshrl.u32 %v5702, %v5718
  %v5721 = vor.u32 %v5719, %v5720
  %v5722 = vsub.s32 4294967266, %v5717
  %v5723 = vadd.s32 %v5722, 127
  %v5724 = vshll.u32 %v5723, 23
  %v5725 = vor.u32 4788187, %v5724
  %v5726 = vand.u32 2147483647, %v5725
  %v5728 = vcvt.s32.f32 %v5721
  %v5729 = vmul.f32 %v5728, %v5726
  %v5730 = vxor.u32 %v5729, 2147483648
  %v5731 = vsel %vm5648, %v5730, %v5729
  %v5732 = vsub.s32 4, %v5708
  %v5733 = vsel %vm5648, %v5732, %v5708
  %v5734 = vsel %vm5647, %v5645, %v5731
  %v5735 = vsel %vm5647, 0, %v5733
  %v5736 = vcosq.f32.pop %v5734
  %v5737 = vsinq.f32.pop %v5734
  %vm5738 = vweird.f32 %v5645
  %v5739 = vadd.s32 %v5735, 3
  %v5740 = vand.u32 %v5739, 3
  %vm5741 = vcmp.lt.s32.totalorder %v5740, 2
  %vm5742 = vcmp.eq.s32.totalorder %v5740, 0
  %v5743 = vxor.u32 %v5737, 2147483648
  %v5744 = vsel %vm5742, %v5736, %v5743
  %vm5745 = vcmp.eq.s32.totalorder %v5740, 2
  %v5746 = vxor.u32 %v5736, 2147483648
  %v5747 = vsel %vm5745, %v5746, %v5737
  %v5748 = vsel %vm5741, %v5744, %v5747
  %v5749 = vsel %vm5738, nan, %v5748
  %5750 = vst.msk [vmem:[#allocation2 + $0x98] sm:$0xff] %vm1074, %v5749
  %5752 = vset.pattern.permute.xlu0 0
  %5753 = vperm.xlu0 %5752, %v3088
  %v5754 = vpop.permute.xlu0 %5753
  %v5756 = vmul.f32 %v5754, %v89
  %5757 = vset.pattern.permute.xlu0 1
  %5758 = vperm.xlu0 %5757, %v3088
  %v5759 = vpop.permute.xlu0 %5758
  %v5761 = vmul.f32 %v5759, %v133
  %v5762 = vadd.f32 %v5756, %v5761
  %v5763 = vadd.f32 %v5762, %v154
  %v5764 = vsub.f32 %v5763, %v2591
  %v5765 = vand.u32 2147483647, %v5764
  %vm5766 = vcmp.le.f32.partialorder %v5765, 0.7853982
  %vm5767 = vcmp.lt.s32.totalorder %v5764, 0
  %v5768 = vand.u32 %v5764, 2139095040
  %v5769 = vshrl.u32 %v5768, 23
  %v5770 = vsub.s32 %v5769, 127
  %v5771 = vand.u32 2147483647, %v5764
  %v5772 = vand.u32 %v5771, 8388607
  %v5773 = vor.u32 %v5772, 8388608
  %v5774 = vsub.s32 0, %v5773
  %v5775 = vadd.s32 %v5770, 1
  %vm5776 = vcmp.gt.s32.totalorder %v5775, 0
  %v5777 = vsel %vm5776, %v5775, 0
  %v5778 = vshrl.u32 %v5777, 5
  %v5779 = vand.u32 %v5777, 31
  %v5780 = vsub.s32 32, %v5779
  %v5781 = vshrl.u32 683565275, %v5780
  %v5782 = vshll.u32 683565275, %v5779
  %v5783 = vshrl.u32 2475754826, %v5780
  %v5784 = vor.u32 %v5782, %v5783
  %v5785 = vshll.u32 2475754826, %v5779
  %v5786 = vshrl.u32 2131351028, %v5780
  %v5787 = vor.u32 %v5785, %v5786
  %v5788 = vshll.u32 2131351028, %v5779
  %v5789 = vshrl.u32 2102212464, %v5780
  %v5790 = vor.u32 %v5788, %v5789
  %v5791 = vshll.u32 2102212464, %v5779
  %v5792 = vshrl.u32 920167782, %v5780
  %v5793 = vor.u32 %v5791, %v5792
  %v5794 = vshll.u32 920167782, %v5779
  %v5795 = vshrl.u32 1326507024, %v5780
  %v5796 = vor.u32 %v5794, %v5795
  %vm5797 = vcmp.lt.s32.totalorder %v5778, 1
  %vm5798 = vcmp.lt.s32.totalorder %v5778, 2
  %vm5799 = vcmp.lt.s32.totalorder %v5778, 3
  %vm5800 = vcmp.lt.s32.totalorder %v5778, 4
  %v5801 = vsel %vm5797, %v5781, %v5784
  %v5802 = vsel %vm5800, %v5790, 2102212464
  %v5803 = vsel %vm5799, %v5787, %v5802
  %v5804 = vsel %vm5798, %v5801, %v5803
  %v5805 = vsel %vm5797, %v5784, %v5787
  %v5806 = vsel %vm5800, %v5793, 920167782
  %v5807 = vsel %vm5799, %v5790, %v5806
  %v5808 = vsel %vm5798, %v5805, %v5807
  %v5809 = vsel %vm5797, %v5787, %v5790
  %v5810 = vsel %vm5800, %v5796, 1326507024
  %v5811 = vsel %vm5799, %v5793, %v5810
  %v5812 = vsel %vm5798, %v5809, %v5811
  %v5813 = vshll.u32 %v5773, 8
  %v5814 = vmul.u32.u64.compose %v5813, %v5812
  %v5815 = vextract.low.u32 %v5814
  %v5816 = vextract.high.u32 %v5814
  %v5817 = vmul.u32.u64.compose %v5813, %v5808
  %v5818 = vextract.low.u32 %v5817
  %v5819 = vextract.high.u32 %v5817
  %v5820 = vmul.u32 %v5813, %v5804
  %v5821 = vadd.s32 %v5816, %v5818
  %vm5822 = vc.u32 %v5816, %v5818
  %v5823 = vadd.s32 %v5819, 1
  %v5824 = vsel %vm5822, %v5823, %v5819
  %v5825 = vadd.s32 %v5820, %v5824
  %v5826 = vadd.s32 %v5825, 536870912
  %v5827 = vshrl.u32 %v5826, 30
  %v5828 = vshll.u32 %v5827, 30
  %v5829 = vsub.s32 %v5825, %v5828
  %vm5830 = vcmp.lt.s32.totalorder %v5829, 0
  %v5831 = vsub.s32 0, %v5829
  %v5832 = vsel %vm5830, %v5831, %v5829
  %v5833 = vclz %v5832
  %v5834 = vsub.s32 %v5833, 2
  %vm5835 = vcmp.gt.s32.totalorder 0, %v5834
  %v5836 = vsel %vm5835, 0, %v5834
  %v5837 = vsub.s32 32, %v5836
  %v5838 = vshll.u32 %v5829, %v5836
  %v5839 = vshrl.u32 %v5821, %v5837
  %v5840 = vor.u32 %v5838, %v5839
  %v5841 = vsub.s32 4294967266, %v5836
  %v5842 = vadd.s32 %v5841, 127
  %v5843 = vshll.u32 %v5842, 23
  %v5844 = vor.u32 4788187, %v5843
  %v5845 = vand.u32 2147483647, %v5844
  %v5847 = vcvt.s32.f32 %v5840
  %v5848 = vmul.f32 %v5847, %v5845
  %v5849 = vxor.u32 %v5848, 2147483648
  %v5850 = vsel %vm5767, %v5849, %v5848
  %v5851 = vsub.s32 4, %v5827
  %v5852 = vsel %vm5767, %v5851, %v5827
  %v5853 = vsel %vm5766, %v5764, %v5850
  %v5854 = vsel %vm5766, 0, %v5852
  %v5855 = vcosq.f32.pop %v5853
  %v5856 = vsinq.f32.pop %v5853
  %vm5857 = vweird.f32 %v5764
  %v5858 = vadd.s32 %v5854, 3
  %v5859 = vand.u32 %v5858, 3
  %vm5860 = vcmp.lt.s32.totalorder %v5859, 2
  %vm5861 = vcmp.eq.s32.totalorder %v5859, 0
  %v5862 = vxor.u32 %v5856, 2147483648
  %v5863 = vsel %vm5861, %v5855, %v5862
  %vm5864 = vcmp.eq.s32.totalorder %v5859, 2
  %v5865 = vxor.u32 %v5855, 2147483648
  %v5866 = vsel %vm5864, %v5865, %v5856
  %v5867 = vsel %vm5860, %v5863, %v5866
  %v5868 = vsel %vm5857, nan, %v5867
  %5869 = vst.msk [vmem:[#allocation2 + $0xa0] sm:$0xff] %vm1074, %v5868
  %5871 = vset.pattern.permute.xlu0 0
  %5872 = vperm.xlu0 %5871, %v3093
  %v5873 = vpop.permute.xlu0 %5872
  %v5875 = vmul.f32 %v5873, %v89
  %5876 = vset.pattern.permute.xlu0 1
  %5877 = vperm.xlu0 %5876, %v3093
  %v5878 = vpop.permute.xlu0 %5877
  %v5880 = vmul.f32 %v5878, %v133
  %v5881 = vadd.f32 %v5875, %v5880
  %v5882 = vadd.f32 %v5881, %v154
  %v5883 = vadd.f32 %v5882, %v2147
  %v5884 = vand.u32 2147483647, %v5883
  %vm5885 = vcmp.le.f32.partialorder %v5884, 0.7853982
  %vm5886 = vcmp.lt.s32.totalorder %v5883, 0
  %v5887 = vand.u32 %v5883, 2139095040
  %v5888 = vshrl.u32 %v5887, 23
  %v5889 = vsub.s32 %v5888, 127
  %v5890 = vand.u32 2147483647, %v5883
  %v5891 = vand.u32 %v5890, 8388607
  %v5892 = vor.u32 %v5891, 8388608
  %v5893 = vsub.s32 0, %v5892
  %v5894 = vadd.s32 %v5889, 1
  %vm5895 = vcmp.gt.s32.totalorder %v5894, 0
  %v5896 = vsel %vm5895, %v5894, 0
  %v5897 = vshrl.u32 %v5896, 5
  %v5898 = vand.u32 %v5896, 31
  %v5899 = vsub.s32 32, %v5898
  %v5900 = vshrl.u32 683565275, %v5899
  %v5901 = vshll.u32 683565275, %v5898
  %v5902 = vshrl.u32 2475754826, %v5899
  %v5903 = vor.u32 %v5901, %v5902
  %v5904 = vshll.u32 2475754826, %v5898
  %v5905 = vshrl.u32 2131351028, %v5899
  %v5906 = vor.u32 %v5904, %v5905
  %v5907 = vshll.u32 2131351028, %v5898
  %v5908 = vshrl.u32 2102212464, %v5899
  %v5909 = vor.u32 %v5907, %v5908
  %v5910 = vshll.u32 2102212464, %v5898
  %v5911 = vshrl.u32 920167782, %v5899
  %v5912 = vor.u32 %v5910, %v5911
  %v5913 = vshll.u32 920167782, %v5898
  %v5914 = vshrl.u32 1326507024, %v5899
  %v5915 = vor.u32 %v5913, %v5914
  %vm5916 = vcmp.lt.s32.totalorder %v5897, 1
  %vm5917 = vcmp.lt.s32.totalorder %v5897, 2
  %vm5918 = vcmp.lt.s32.totalorder %v5897, 3
  %vm5919 = vcmp.lt.s32.totalorder %v5897, 4
  %v5920 = vsel %vm5916, %v5900, %v5903
  %v5921 = vsel %vm5919, %v5909, 2102212464
  %v5922 = vsel %vm5918, %v5906, %v5921
  %v5923 = vsel %vm5917, %v5920, %v5922
  %v5924 = vsel %vm5916, %v5903, %v5906
  %v5925 = vsel %vm5919, %v5912, 920167782
  %v5926 = vsel %vm5918, %v5909, %v5925
  %v5927 = vsel %vm5917, %v5924, %v5926
  %v5928 = vsel %vm5916, %v5906, %v5909
  %v5929 = vsel %vm5919, %v5915, 1326507024
  %v5930 = vsel %vm5918, %v5912, %v5929
  %v5931 = vsel %vm5917, %v5928, %v5930
  %v5932 = vshll.u32 %v5892, 8
  %v5933 = vmul.u32.u64.compose %v5932, %v5931
  %v5934 = vextract.low.u32 %v5933
  %v5935 = vextract.high.u32 %v5933
  %v5936 = vmul.u32.u64.compose %v5932, %v5927
  %v5937 = vextract.low.u32 %v5936
  %v5938 = vextract.high.u32 %v5936
  %v5939 = vmul.u32 %v5932, %v5923
  %v5940 = vadd.s32 %v5935, %v5937
  %vm5941 = vc.u32 %v5935, %v5937
  %v5942 = vadd.s32 %v5938, 1
  %v5943 = vsel %vm5941, %v5942, %v5938
  %v5944 = vadd.s32 %v5939, %v5943
  %v5945 = vadd.s32 %v5944, 536870912
  %v5946 = vshrl.u32 %v5945, 30
  %v5947 = vshll.u32 %v5946, 30
  %v5948 = vsub.s32 %v5944, %v5947
  %vm5949 = vcmp.lt.s32.totalorder %v5948, 0
  %v5950 = vsub.s32 0, %v5948
  %v5951 = vsel %vm5949, %v5950, %v5948
  %v5952 = vclz %v5951
  %v5953 = vsub.s32 %v5952, 2
  %vm5954 = vcmp.gt.s32.totalorder 0, %v5953
  %v5955 = vsel %vm5954, 0, %v5953
  %v5956 = vsub.s32 32, %v5955
  %v5957 = vshll.u32 %v5948, %v5955
  %v5958 = vshrl.u32 %v5940, %v5956
  %v5959 = vor.u32 %v5957, %v5958
  %v5960 = vsub.s32 4294967266, %v5955
  %v5961 = vadd.s32 %v5960, 127
  %v5962 = vshll.u32 %v5961, 23
  %v5963 = vor.u32 4788187, %v5962
  %v5964 = vand.u32 2147483647, %v5963
  %v5966 = vcvt.s32.f32 %v5959
  %v5967 = vmul.f32 %v5966, %v5964
  %v5968 = vxor.u32 %v5967, 2147483648
  %v5969 = vsel %vm5886, %v5968, %v5967
  %v5970 = vsub.s32 4, %v5946
  %v5971 = vsel %vm5886, %v5970, %v5946
  %v5972 = vsel %vm5885, %v5883, %v5969
  %v5973 = vsel %vm5885, 0, %v5971
  %v5974 = vcosq.f32.pop %v5972
  %v5975 = vsinq.f32.pop %v5972
  %vm5976 = vweird.f32 %v5883
  %v5977 = vadd.s32 %v5973, 3
  %v5978 = vand.u32 %v5977, 3
  %vm5979 = vcmp.lt.s32.totalorder %v5978, 2
  %vm5980 = vcmp.eq.s32.totalorder %v5978, 0
  %v5981 = vxor.u32 %v5975, 2147483648
  %v5982 = vsel %vm5980, %v5974, %v5981
  %vm5983 = vcmp.eq.s32.totalorder %v5978, 2
  %v5984 = vxor.u32 %v5974, 2147483648
  %v5985 = vsel %vm5983, %v5984, %v5975
  %v5986 = vsel %vm5979, %v5982, %v5985
  %v5987 = vsel %vm5976, nan, %v5986
  %5988 = vst.msk [vmem:[#allocation2 + $0xa8] sm:$0xff] %vm1074, %v5987
  %v5989 = vld [vmem:[#allocation2] sm:$0xff]
  %v5990 = vld [vmem:[#allocation2 + $0x8] sm:$0xff]
  %v5991 = vld [vmem:[#allocation2 + $0x10] sm:$0xff]
  %v5992 = vld [vmem:[#allocation2 + $0x18] sm:$0xff]
  %v5993 = vld [vmem:[#allocation2 + $0x20] sm:$0xff]
  %v5994 = vld [vmem:[#allocation2 + $0x28] sm:$0xff]
  %v5995 = vld [vmem:[#allocation2 + $0x30] sm:$0xff]
  %v5996 = vld [vmem:[#allocation2 + $0x38] sm:$0xff]
  %v5997 = vld [vmem:[#allocation2 + $0x40] sm:$0xff]
  %v5998 = vld [vmem:[#allocation2 + $0x48] sm:$0xff]
  %v5999 = vld [vmem:[#allocation2 + $0x50] sm:$0xff]
  %v6000 = vld [vmem:[#allocation2 + $0x58] sm:$0xff]
  %v6001 = vld [vmem:[#allocation2 + $0x60] sm:$0xff]
  %v6002 = vld [vmem:[#allocation2 + $0x68] sm:$0xff]
  %v6003 = vld [vmem:[#allocation2 + $0x70] sm:$0xff]
  %v6004 = vld [vmem:[#allocation2 + $0x78] sm:$0xff]
  %v6005 = vld [vmem:[#allocation2 + $0x80] sm:$0xff]
  %v6006 = vld [vmem:[#allocation2 + $0x88] sm:$0xff]
  %v6007 = vld [vmem:[#allocation2 + $0x90] sm:$0xff]
  %v6008 = vld [vmem:[#allocation2 + $0x98] sm:$0xff]
  %v6009 = vld [vmem:[#allocation2 + $0xa0] sm:$0xff]
  %v6010 = vld [vmem:[#allocation2 + $0xa8] sm:$0xff]
  %v6012 = vsel %vm1074, %v5989, 0
  %v6015 = vsel %vm1074, %v5990, 0
  %v6018 = vsel %vm1074, %v5991, 0
  %v6021 = vsel %vm1074, %v5992, 0
  %v6024 = vsel %vm1074, %v5993, 0
  %v6027 = vsel %vm1074, %v5994, 0
  %v6030 = vsel %vm1074, %v5995, 0
  %v6033 = vsel %vm1074, %v5996, 0
  %v6036 = vsel %vm1074, %v5997, 0
  %v6039 = vsel %vm1074, %v5998, 0
  %v6042 = vsel %vm1074, %v5999, 0
  %v6045 = vsel %vm1074, %v6000, 0
  %v6048 = vsel %vm1074, %v6001, 0
  %v6051 = vsel %vm1074, %v6002, 0
  %v6054 = vsel %vm1074, %v6003, 0
  %v6057 = vsel %vm1074, %v6004, 0
  %v6060 = vsel %vm1074, %v6005, 0
  %v6063 = vsel %vm1074, %v6006, 0
  %v6066 = vsel %vm1074, %v6007, 0
  %v6069 = vsel %vm1074, %v6008, 0
  %v6072 = vsel %vm1074, %v6009, 0
  %v6075 = vsel %vm1074, %v6010, 0
  %6077 = vmatprep.subr.mxu0 0.0
  %6078 = vmatpush1.msra.mxu0 %v31
  %6079 = vmatprep.subr.mxu0 0.0
  %6080 = vmatpush1.msra.mxu0 %v32
  %6081 = vmatprep.subr.mxu0 0.0
  %6082 = vmatpush1.msra.mxu0 %v33
  %6083 = vmatprep.subr.mxu0 0.0
  %6084 = vmatpush1.msra.mxu0 %v34
  %6085 = vmatprep.subr.mxu0 0.0
  %6086 = vmatpush1.msra.mxu0 0.0
  %6087 = vmatprep.subr.mxu0 0.0
  %6088 = vmatpush1.msra.mxu0 0.0
  %6089 = vmatprep.subr.mxu0 0.0
  %6090 = vmatpush1.msra.mxu0 0.0
  %6091 = vmatprep.subr.mxu0 0.0
  %6092 = vmatpush1.msra.mxu0 0.0
  %6093 = vmatprep.subr.mxu0 0.0
  %6094 = vmatpush1.msra.mxu0 0.0
  %6095 = vmatprep.subr.mxu0 0.0
  %6096 = vmatpush1.msra.mxu0 0.0
  %6097 = vmatprep.subr.mxu0 0.0
  %6098 = vmatpush1.msra.mxu0 0.0
  %6099 = vmatprep.subr.mxu0 0.0
  %6100 = vmatpush1.msra.mxu0 0.0
  %6101 = vmatprep.subr.mxu0 0.0
  %6102 = vmatpush1.msra.mxu0 0.0
  %6103 = vmatprep.subr.mxu0 0.0
  %6104 = vmatpush1.msra.mxu0 0.0
  %6105 = vmatprep.subr.mxu0 0.0
  %6106 = vmatpush1.msra.mxu0 0.0
  %6107 = vmatprep.subr.mxu0 0.0
  %6108 = vmatpush1.msra.mxu0 0.0
  %6109 = vmatprep.subr.mxu0 0.0
  %6110 = vmatpush1.msra.mxu0 0.0
  %6111 = vmatprep.subr.mxu0 0.0
  %6112 = vmatpush1.msra.mxu0 0.0
  %6113 = vmatprep.subr.mxu0 0.0
  %6114 = vmatpush1.msra.mxu0 0.0
  %6115 = vmatprep.subr.mxu0 0.0
  %6116 = vmatpush1.msra.mxu0 0.0
  %6117 = vmatprep.subr.mxu0 0.0
  %6118 = vmatpush1.msra.mxu0 0.0
  %6119 = vmatprep.subr.mxu0 0.0
  %6120 = vmatpush1.msra.mxu0 0.0
  %6121 = vmatprep.subr.mxu0 0.0
  %6122 = vmatpush1.msra.mxu0 0.0
  %6123 = vmatprep.subr.mxu0 0.0
  %6124 = vmatpush1.msra.mxu0 0.0
  %6125 = vmatprep.subr.mxu0 0.0
  %6126 = vmatpush1.msra.mxu0 0.0
  %6127 = vmatprep.subr.mxu0 0.0
  %6128 = vmatpush1.msra.mxu0 0.0
  %6129 = vmatprep.subr.mxu0 0.0
  %6130 = vmatpush1.msra.mxu0 0.0
  %6131 = vmatprep.subr.mxu0 0.0
  %6132 = vmatpush1.msra.mxu0 0.0
  %6133 = vmatprep.subr.mxu0 0.0
  %6134 = vmatpush1.msra.mxu0 0.0
  %6135 = vmatprep.subr.mxu0 0.0
  %6136 = vmatpush1.msra.mxu0 0.0
  %6137 = vmatprep.subr.mxu0 0.0
  %6138 = vmatpush1.msra.mxu0 0.0
  %6139 = vmatprep.subr.mxu0 0.0
  %6140 = vmatpush1.msra.mxu0 0.0
  %6141 = vmatprep.mubr.f32.mxu0 0.0
  %6142 = vmatmul.mubr.f32.gmra.mrb[0].mxu0 %v6012
  %v6143 = vpop.f32.mrb[0].mxu0
  %v6144 = vadd.f32 %v2837, %v6143
  %v6145 = vpop.f32.mrb[0].mxu0
  %6146 = vmatprep.mubr.f32.mxu0 0.0
  %6147 = vmatmul.mubr.f32.gmra.mrb[0].mxu0 %v6015
  %v6148 = vpop.f32.mrb[0].mxu0
  %v6149 = vadd.f32 %v2837, %v6148
  %v6150 = vpop.f32.mrb[0].mxu0
  %6151 = vmatprep.mubr.f32.mxu0 0.0
  %6152 = vmatmul.mubr.f32.gmra.mrb[0].mxu0 %v6018
  %v6153 = vpop.f32.mrb[0].mxu0
  %v6154 = vadd.f32 %v2837, %v6153
  %v6155 = vpop.f32.mrb[0].mxu0
  %6156 = vmatprep.mubr.f32.mxu0 0.0
  %6157 = vmatmul.mubr.f32.gmra.mrb[0].mxu0 %v6021
  %v6158 = vpop.f32.mrb[0].mxu0
  %v6159 = vadd.f32 %v2837, %v6158
  %v6160 = vpop.f32.mrb[0].mxu0
  %6161 = vmatprep.mubr.f32.mxu0 0.0
  %6162 = vmatmul.mubr.f32.gmra.mrb[0].mxu0 %v6024
  %v6163 = vpop.f32.mrb[0].mxu0
  %v6164 = vadd.f32 %v2837, %v6163
  %v6165 = vpop.f32.mrb[0].mxu0
  %6166 = vmatprep.mubr.f32.mxu0 0.0
  %6167 = vmatmul.mubr.f32.gmra.mrb[0].mxu0 %v6027
  %v6168 = vpop.f32.mrb[0].mxu0
  %v6169 = vadd.f32 %v2837, %v6168
  %v6170 = vpop.f32.mrb[0].mxu0
  %6171 = vmatprep.mubr.f32.mxu0 0.0
  %6172 = vmatmul.mubr.f32.gmra.mrb[0].mxu0 %v6030
  %v6173 = vpop.f32.mrb[0].mxu0
  %v6174 = vadd.f32 %v2837, %v6173
  %v6175 = vpop.f32.mrb[0].mxu0
  %6176 = vmatprep.mubr.f32.mxu0 0.0
  %6177 = vmatmul.mubr.f32.gmra.mrb[0].mxu0 %v6033
  %v6178 = vpop.f32.mrb[0].mxu0
  %v6179 = vadd.f32 %v2837, %v6178
  %v6180 = vpop.f32.mrb[0].mxu0
  %6181 = vmatprep.mubr.f32.mxu0 0.0
  %6182 = vmatmul.mubr.f32.gmra.mrb[0].mxu0 %v6036
  %v6183 = vpop.f32.mrb[0].mxu0
  %v6184 = vadd.f32 %v2837, %v6183
  %v6185 = vpop.f32.mrb[0].mxu0
  %6186 = vmatprep.mubr.f32.mxu0 0.0
  %6187 = vmatmul.mubr.f32.gmra.mrb[0].mxu0 %v6039
  %v6188 = vpop.f32.mrb[0].mxu0
  %v6189 = vadd.f32 %v2837, %v6188
  %v6190 = vpop.f32.mrb[0].mxu0
  %6191 = vmatprep.mubr.f32.mxu0 0.0
  %6192 = vmatmul.mubr.f32.gmra.mrb[0].mxu0 %v6042
  %v6193 = vpop.f32.mrb[0].mxu0
  %v6194 = vadd.f32 %v2837, %v6193
  %v6195 = vpop.f32.mrb[0].mxu0
  %6196 = vmatprep.mubr.f32.mxu0 0.0
  %6197 = vmatmul.mubr.f32.gmra.mrb[0].mxu0 %v6045
  %v6198 = vpop.f32.mrb[0].mxu0
  %v6199 = vadd.f32 %v2837, %v6198
  %v6200 = vpop.f32.mrb[0].mxu0
  %6201 = vmatprep.mubr.f32.mxu0 0.0
  %6202 = vmatmul.mubr.f32.gmra.mrb[0].mxu0 %v6048
  %v6203 = vpop.f32.mrb[0].mxu0
  %v6204 = vadd.f32 %v2837, %v6203
  %v6205 = vpop.f32.mrb[0].mxu0
  %6206 = vmatprep.mubr.f32.mxu0 0.0
  %6207 = vmatmul.mubr.f32.gmra.mrb[0].mxu0 %v6051
  %v6208 = vpop.f32.mrb[0].mxu0
  %v6209 = vadd.f32 %v2837, %v6208
  %v6210 = vpop.f32.mrb[0].mxu0
  %6211 = vmatprep.mubr.f32.mxu0 0.0
  %6212 = vmatmul.mubr.f32.gmra.mrb[0].mxu0 %v6054
  %v6213 = vpop.f32.mrb[0].mxu0
  %v6214 = vadd.f32 %v2837, %v6213
  %v6215 = vpop.f32.mrb[0].mxu0
  %6216 = vmatprep.mubr.f32.mxu0 0.0
  %6217 = vmatmul.mubr.f32.gmra.mrb[0].mxu0 %v6057
  %v6218 = vpop.f32.mrb[0].mxu0
  %v6219 = vadd.f32 %v2837, %v6218
  %v6220 = vpop.f32.mrb[0].mxu0
  %6221 = vmatprep.mubr.f32.mxu0 0.0
  %6222 = vmatmul.mubr.f32.gmra.mrb[0].mxu0 %v6060
  %v6223 = vpop.f32.mrb[0].mxu0
  %v6224 = vadd.f32 %v2837, %v6223
  %v6225 = vpop.f32.mrb[0].mxu0
  %6226 = vmatprep.mubr.f32.mxu0 0.0
  %6227 = vmatmul.mubr.f32.gmra.mrb[0].mxu0 %v6063
  %v6228 = vpop.f32.mrb[0].mxu0
  %v6229 = vadd.f32 %v2837, %v6228
  %v6230 = vpop.f32.mrb[0].mxu0
  %6231 = vmatprep.mubr.f32.mxu0 0.0
  %6232 = vmatmul.mubr.f32.gmra.mrb[0].mxu0 %v6066
  %v6233 = vpop.f32.mrb[0].mxu0
  %v6234 = vadd.f32 %v2837, %v6233
  %v6235 = vpop.f32.mrb[0].mxu0
  %6236 = vmatprep.mubr.f32.mxu0 0.0
  %6237 = vmatmul.mubr.f32.gmra.mrb[0].mxu0 %v6069
  %v6238 = vpop.f32.mrb[0].mxu0
  %v6239 = vadd.f32 %v2837, %v6238
  %v6240 = vpop.f32.mrb[0].mxu0
  %6241 = vmatprep.mubr.f32.mxu0 0.0
  %6242 = vmatmul.mubr.f32.gmra.mrb[0].mxu0 %v6072
  %v6243 = vpop.f32.mrb[0].mxu0
  %v6244 = vadd.f32 %v2837, %v6243
  %v6245 = vpop.f32.mrb[0].mxu0
  %6246 = vmatprep.mubr.f32.mxu0 0.0
  %6247 = vmatmul.mubr.f32.gmra.mrb[0].mxu0 %v6075
  %v6248 = vpop.f32.mrb[0].mxu0
  %v6249 = vadd.f32 %v2837, %v6248
  %v6250 = vpop.f32.mrb[0].mxu0
  %6251 = vdwg.mxu0
  %v6252 = vsub.f32 1.0, %v3323
  %v6253 = vsub.f32 1.0, %v3324
  %v6254 = vsub.f32 1.0, %v3325
  %v6255 = vsub.f32 1.0, %v3326
  %v6256 = vsub.f32 1.0, %v3327
  %v6257 = vsub.f32 1.0, %v3328
  %v6258 = vsub.f32 1.0, %v3329
  %v6259 = vsub.f32 1.0, %v3330
  %v6260 = vsub.f32 %v6144, %v36
  %v6261 = vsub.f32 %v6149, %v37
  %v6262 = vsub.f32 %v6154, %v38
  %v6263 = vsub.f32 %v6159, %v39
  %v6264 = vsub.f32 %v6164, %v40
  %v6265 = vsub.f32 %v6169, %v41
  %v6266 = vsub.f32 %v6174, %v42
  %v6267 = vsub.f32 %v6179, %v43
  %v6268 = vsub.f32 %v6184, %v3018
  %v6269 = vsub.f32 %v6189, %v3023
  %v6270 = vsub.f32 %v6194, %v3028
  %v6271 = vsub.f32 %v6199, %v3033
  %v6272 = vsub.f32 %v6204, %v3038
  %v6273 = vsub.f32 %v6209, %v3043
  %v6274 = vsub.f32 %v6214, %v3048
  %v6275 = vsub.f32 %v6219, %v3053
  %v6276 = vmul.f32 %v6260, %v6260
  %v6277 = vmul.f32 %v6261, %v6261
  %v6278 = vmul.f32 %v6262, %v6262
  %v6279 = vmul.f32 %v6263, %v6263
  %v6280 = vmul.f32 %v6264, %v6264
  %v6281 = vmul.f32 %v6265, %v6265
  %v6282 = vmul.f32 %v6266, %v6266
  %v6283 = vmul.f32 %v6267, %v6267
  %v6284 = vmul.f32 %v6268, %v6268
  %v6285 = vmul.f32 %v6269, %v6269
  %v6286 = vmul.f32 %v6270, %v6270
  %v6287 = vmul.f32 %v6271, %v6271
  %v6288 = vmul.f32 %v6272, %v6272
  %v6289 = vmul.f32 %v6273, %v6273
  %v6290 = vmul.f32 %v6274, %v6274
  %v6291 = vmul.f32 %v6275, %v6275
  %v6292 = vadd.f32 %v6276, %v6284
  %v6293 = vadd.f32 %v6277, %v6285
  %v6294 = vadd.f32 %v6278, %v6286
  %v6295 = vadd.f32 %v6279, %v6287
  %v6296 = vadd.f32 %v6280, %v6288
  %v6297 = vadd.f32 %v6281, %v6289
  %v6298 = vadd.f32 %v6282, %v6290
  %v6299 = vadd.f32 %v6283, %v6291
  %6301 = vset.pattern.permute.xlu0 2
  %6302 = vperm.xlu0 %6301, %v6252
  %v6303 = vpop.permute.xlu0 %6302
  %6306 = vset.pattern.permute.xlu0 2
  %6307 = vperm.xlu0 %6306, %v6253
  %v6308 = vpop.permute.xlu0 %6307
  %6311 = vset.pattern.permute.xlu0 2
  %6312 = vperm.xlu0 %6311, %v6254
  %v6313 = vpop.permute.xlu0 %6312
  %6316 = vset.pattern.permute.xlu0 2
  %6317 = vperm.xlu0 %6316, %v6255
  %v6318 = vpop.permute.xlu0 %6317
  %6321 = vset.pattern.permute.xlu0 2
  %6322 = vperm.xlu0 %6321, %v6256
  %v6323 = vpop.permute.xlu0 %6322
  %6326 = vset.pattern.permute.xlu0 2
  %6327 = vperm.xlu0 %6326, %v6257
  %v6328 = vpop.permute.xlu0 %6327
  %6331 = vset.pattern.permute.xlu0 2
  %6332 = vperm.xlu0 %6331, %v6258
  %v6333 = vpop.permute.xlu0 %6332
  %6336 = vset.pattern.permute.xlu0 2
  %6337 = vperm.xlu0 %6336, %v6259
  %v6338 = vpop.permute.xlu0 %6337
  %v6340 = vmul.f32 %v6303, %v6292
  %v6341 = vmul.f32 %v6308, %v6293
  %v6342 = vmul.f32 %v6313, %v6294
  %v6343 = vmul.f32 %v6318, %v6295
  %v6344 = vmul.f32 %v6323, %v6296
  %v6345 = vmul.f32 %v6328, %v6297
  %v6346 = vmul.f32 %v6333, %v6298
  %v6347 = vmul.f32 %v6338, %v6299
  %v6348 = vsel %vm3241, %v6340, 0.0
  %v6349 = vsel %vm3241, %v6341, 0.0
  %v6350 = vadd.f32 %v6348, %v6349
  %v6351 = vsel %vm3241, %v6342, 0.0
  %v6352 = vadd.f32 %v6350, %v6351
  %v6353 = vsel %vm3241, %v6343, 0.0
  %v6354 = vadd.f32 %v6352, %v6353
  %v6355 = vsel %vm3241, %v6344, 0.0
  %v6356 = vadd.f32 %v6354, %v6355
  %v6357 = vsel %vm3241, %v6345, 0.0
  %v6358 = vadd.f32 %v6356, %v6357
  %v6359 = vsel %vm3241, %v6346, 0.0
  %v6360 = vadd.f32 %v6358, %v6359
  %v6361 = vsel %vm3241, %v6347, 0.0
  %v6362 = vadd.f32 %v6360, %v6361
  %6363 = vadd.xlane.f32.xlu0 %v6362
  %v6364 = vpop.xlane.xlu0 %6363
  %v6365 = vrot.slane %v6364, 4
  %v6366 = vadd.f32 %v6364, %v6365
  %v6367 = vrot.slane %v6366, 2
  %v6368 = vadd.f32 %v6366, %v6367
  %v6369 = vrot.slane %v6368, 1
  %v6370 = vadd.f32 %v6368, %v6369
  %s6371 = vtos %v6370
  %v6372 = vsub.f32 %v6224, %v44
  %v6373 = vsub.f32 %v6229, %v45
  %v6374 = vmul.f32 %v6372, %v6372
  %v6375 = vsel %vm3241, %v6374, 0.0
  %6376 = vadd.xlane.f32.xlu0 %v6375
  %v6377 = vpop.xlane.xlu0 %6376
  %v6378 = vrot.slane %v6377, 4
  %v6379 = vadd.f32 %v6377, %v6378
  %v6380 = vrot.slane %v6379, 2
  %v6381 = vadd.f32 %v6379, %v6380
  %v6382 = vrot.slane %v6381, 1
  %v6383 = vadd.f32 %v6381, %v6382
  %s6384 = vtos %v6383
  %v6385 = vmul.f32 %v6373, %v6373
  %v6386 = vsel %vm3241, %v6385, 0.0
  %6387 = vadd.xlane.f32.xlu0 %v6386
  %v6388 = vpop.xlane.xlu0 %6387
  %v6389 = vrot.slane %v6388, 4
  %v6390 = vadd.f32 %v6388, %v6389
  %v6391 = vrot.slane %v6390, 2
  %v6392 = vadd.f32 %v6390, %v6391
  %v6393 = vrot.slane %v6392, 1
  %v6394 = vadd.f32 %v6392, %v6393
  %s6395 = vtos %v6394
  %s6396 = sadd.f32 %s6384, %s6395
  %s6397 = smul.f32 %s6396, 20.0
  %s6398 = sadd.f32 %s3306, %s6397
  %v6399 = vsub.f32 %v6234, %v44
  %v6400 = vsub.f32 %v6239, %v45
  %v6401 = vmul.f32 %v6399, %v6399
  %v6402 = vsel %vm3241, %v6401, 0.0
  %6403 = vadd.xlane.f32.xlu0 %v6402
  %v6404 = vpop.xlane.xlu0 %6403
  %v6405 = vrot.slane %v6404, 4
  %v6406 = vadd.f32 %v6404, %v6405
  %v6407 = vrot.slane %v6406, 2
  %v6408 = vadd.f32 %v6406, %v6407
  %v6409 = vrot.slane %v6408, 1
  %v6410 = vadd.f32 %v6408, %v6409
  %s6411 = vtos %v6410
  %v6412 = vmul.f32 %v6400, %v6400
  %v6413 = vsel %vm3241, %v6412, 0.0
  %6414 = vadd.xlane.f32.xlu0 %v6413
  %v6415 = vpop.xlane.xlu0 %6414
  %v6416 = vrot.slane %v6415, 4
  %v6417 = vadd.f32 %v6415, %v6416
  %v6418 = vrot.slane %v6417, 2
  %v6419 = vadd.f32 %v6417, %v6418
  %v6420 = vrot.slane %v6419, 1
  %v6421 = vadd.f32 %v6419, %v6420
  %s6422 = vtos %v6421
  %s6423 = sadd.f32 %s6411, %s6422
  %s6424 = smul.f32 %s6423, 20.0
  %s6425 = sadd.f32 %s6398, %s6424
  %v6426 = vsub.f32 %v6244, %v44
  %v6427 = vsub.f32 %v6249, %v45
  %v6428 = vmul.f32 %v6426, %v6426
  %v6429 = vsel %vm3241, %v6428, 0.0
  %6430 = vadd.xlane.f32.xlu0 %v6429
  %v6431 = vpop.xlane.xlu0 %6430
  %v6432 = vrot.slane %v6431, 4
  %v6433 = vadd.f32 %v6431, %v6432
  %v6434 = vrot.slane %v6433, 2
  %v6435 = vadd.f32 %v6433, %v6434
  %v6436 = vrot.slane %v6435, 1
  %v6437 = vadd.f32 %v6435, %v6436
  %s6438 = vtos %v6437
  %v6439 = vmul.f32 %v6427, %v6427
  %v6440 = vsel %vm3241, %v6439, 0.0
  %6441 = vadd.xlane.f32.xlu0 %v6440
  %v6442 = vpop.xlane.xlu0 %6441
  %v6443 = vrot.slane %v6442, 4
  %v6444 = vadd.f32 %v6442, %v6443
  %v6445 = vrot.slane %v6444, 2
  %v6446 = vadd.f32 %v6444, %v6445
  %v6447 = vrot.slane %v6446, 1
  %v6448 = vadd.f32 %v6446, %v6447
  %s6449 = vtos %v6448
  %s6450 = sadd.f32 %s6438, %s6449
  %s6451 = smul.f32 %s6450, 20.0
  %s6452 = sadd.f32 %s6425, %s6451
  %s6453 = smul.f32 %s3237, 0.00086805556
  %s6454 = smul.f32 %s6452, 0.0625
  %s6455 = smul.f32 %s3418, 0.0078125
  %s6456 = smul.f32 %s6371, 0.0078125
  %v6457 = vlaneseq
  %v6458 = vand.u32 %v6457, 127
  %vm6459 = vcmp.eq.s32.totalorder %v6458, 0
  %v6460 = vstv %s6454
  %v6461 = vsel %vm6459, %v6460, 0.0
  %v6462 = vadd.f32 %v6461, 0.0
  %vm6463 = vcmp.eq.s32.totalorder %v6458, 1
  %v6464 = vstv %s6455
  %v6465 = vsel %vm6463, %v6464, 0.0
  %v6466 = vadd.f32 %v6462, %v6465
  %vm6467 = vcmp.eq.s32.totalorder %v6458, 2
  %v6468 = vstv %s6456
  %v6469 = vsel %vm6467, %v6468, 0.0
  %v6470 = vadd.f32 %v6466, %v6469
  %vm6471 = vcmp.eq.s32.totalorder %v6458, 3
  %v6472 = vstv %s6453
  %v6473 = vsel %vm6471, %v6472, 0.0
  %v6474 = vadd.f32 %v6470, %v6473
  %6475 = vst [vmem:[%s8] sm:$0x1] %v6474
  // Predicated region
  $region34: #{warping_loss.1} parent=0 // pred_check
    _
  $region35: #{warping_loss.1} parent=0 // pred_check_branch
    %6477 = sbr.rel (0) target = $region37
  $region36: #{warping_loss.1} parent=0 // pred_region
    _
  $region37: #{warping_loss.1} parent=0 // pred_fallthru
    _
  // Predicated region
  $region38: #{warping_loss.1} parent=0 // pred_check
    _
  $region39: #{warping_loss.1} parent=0 // pred_check_branch
    %6479 = sbr.rel (0) target = $region41
  $region40: #{warping_loss.1} parent=0 // pred_region
    _
  $region41: #{warping_loss.1} parent=0 // pred_fallthru
    _

</llo_original>
